<compile_context>
chip_gen: v6e
topology: v6e:2x2x1
jax: 0.10.0
libtpu: 0.0.40
codegen_flags: <defaults>
</compile_context>

<pallas_src>
import functools

import jax
import jax.numpy as jnp
from jax.experimental import pallas as pl
from jax.experimental.pallas import tpu as pltpu

LANE = 128


# ----------------------------------------------------------------------------
# Tiling / small helpers
# ----------------------------------------------------------------------------
def _round_up(x, m):
    return (x + m - 1) // m * m


def _row_tiling(rows, tile=256):
    """Row tile (multiple of 8) + padded row count.

    Small row counts run as ONE grid step (v5e/v6e are single-TensorCore, and splitting
    tiny row counts only under-fills the MXU and doubles the ~0.35us/step overhead).
    The grid is split only when every step still gets >= `tile` rows, which is also when
    the v7x two-TensorCore "parallel" split starts to pay off."""
    rows8 = _round_up(max(rows, 8), 8)
    if rows8 < 2 * tile:
        return rows8, rows8
    return tile, _round_up(rows8, tile)


def _shift_left(x, n):
    """x shifted left by n lanes along the last axis, zero filled: out[:, k] = x[:, k+n]."""
    if n == 0:
        return x
    pad = jnp.zeros(x.shape[:-1] + (n,), x.dtype)
    return jnp.concatenate([x[:, n:], pad], axis=1)


# ----------------------------------------------------------------------------
# Kernel A: encoder linear + NCC (windows rebuilt in-register, no HBM slabs)
# ----------------------------------------------------------------------------
def _encode_ncc_kernel(xa_ref, w_enc_ref, b_enc_ref, o_ref,
                       *, enc_dim, n_lags, win, ctx_off, lane_w):
    xa = xa_ref[...]                                  # (tm, 128): [ctx(48) | ref(16) | 0]

    # encoder linear: clean K=128 MXU matmul (ref / pad lanes hit zero weight rows)
    enc = jnp.dot(xa.astype(jnp.bfloat16), w_enc_ref[...],
                  preferred_element_type=jnp.float32) + b_enc_ref[...]   # (tm, enc_dim)

    # NCC: cosine similarity between the mic-0 center window and every lag of ctx.
    # The lag windows are rebuilt from the VMEM-resident row with static lane shifts:
    #   num[k]    = sum_t ctx[k+t] * ref[t]
    #   seg_sq[k] = sum_t ctx[k+t]^2
    num = jnp.zeros_like(xa)
    seg_sq = jnp.zeros_like(xa)
    for t in range(win):
        sh = _shift_left(xa, t)                       # sh[:, k] = ctx[:, k+t]
        r_t = xa[:, ctx_off + t:ctx_off + t + 1]      # (tm, 1) ref sample, lane-broadcast
        num = num + sh * r_t
        seg_sq = seg_sq + sh * sh
    ref = xa[:, ctx_off:ctx_off + win]
    ref_sq = jnp.sum(ref * ref, axis=1, keepdims=True)
    den = jnp.sqrt(seg_sq * ref_sq) + 1e-8
    ncc = num * pl.reciprocal(den, approx=True)

    # lane-dense output block: [enc | ncc | zeros] = 128 lanes
    pad = lane_w - enc_dim - n_lags
    o_ref[...] = jnp.concatenate(
        [enc, ncc[:, :n_lags], jnp.zeros((xa.shape[0], pad), jnp.float32)], axis=1)


def pallas_encode_ncc(xa, w_enc, b_enc, *, tm, enc_dim, n_lags, win, ctx_off, lane_w):
    rows_pad = xa.shape[0]
    kern = functools.partial(_encode_ncc_kernel, enc_dim=enc_dim, n_lags=n_lags,
                             win=win, ctx_off=ctx_off, lane_w=lane_w)
    return pl.pallas_call(
        kern,
        out_shape=jax.ShapeDtypeStruct((rows_pad, lane_w), jnp.float32),
        grid_spec=pltpu.PrefetchScalarGridSpec(
            num_scalar_prefetch=0,
            grid=(rows_pad // tm,),
            in_specs=[
                pl.BlockSpec((tm, lane_w), lambda i: (i, 0)),
                pl.BlockSpec((lane_w, w_enc.shape[1]), lambda i: (0, 0)),
                pl.BlockSpec((1, b_enc.shape[1]), lambda i: (0, 0)),
            ],
            out_specs=pl.BlockSpec((tm, lane_w), lambda i: (i, 0)),
        ),
        compiler_params=pltpu.CompilerParams(dimension_semantics=("parallel",)),
    )(xa, w_enc, b_enc)


# ----------------------------------------------------------------------------
# Kernel B: gLN + bottleneck + residual blocks + gated head + beamforming (fused)
# ----------------------------------------------------------------------------
def _separator_beamform_kernel(x_ref, xa_ref, stats_ref, gamma_ref, beta_ref,
                               w_bn_ref, b_bn_ref, w1_ref, b1_ref, w2_ref, b2_ref,
                               slope_ref, w_fg_ref, b_fg_ref, o_ref,
                               *, n_layer, n_spk, n_lags, win, enc_dim, half, lane_w):
    x = x_ref[...]                                     # (tm, 128): [enc | ncc | 0]
    tm = x.shape[0]

    # fused gLN on the encoder lanes (per-(batch,mic) mean / rstd come in via `stats`)
    mean = stats_ref[:, 0:1]
    rstd = stats_ref[:, 1:2]
    lane = jax.lax.broadcasted_iota(jnp.int32, (tm, lane_w), 1)
    x_ln = (x - mean) * rstd * gamma_ref[...] + beta_ref[...]
    x_in = jnp.where(lane < enc_dim, x_ln, x)          # ncc lanes pass through

    # bottleneck (weights zero-padded to K=128, so padding lanes contribute nothing)
    h = jnp.dot(x_in.astype(jnp.bfloat16), w_bn_ref[...],
                preferred_element_type=jnp.float32) + b_bn_ref[...]

    # residual Linear + PReLU blocks, all weights VMEM-resident (bf16 MXU, f32 acc)
    # TODO(synk): stands in for the DPRNN/TAC separation module (no clean Pallas LSTM).
    for l in range(n_layer):
        y = jnp.dot(h.astype(jnp.bfloat16), w1_ref[l],
                    preferred_element_type=jnp.float32) + b1_ref[l]
        y = jnp.where(y >= 0.0, y, slope_ref[l] * y)    # PReLU (learned slope)
        h = h + jnp.dot(y.astype(jnp.bfloat16), w2_ref[l],
                        preferred_element_type=jnp.float32) + b2_ref[l]

    # gated filter head: one fused (feat -> 2*half) matmul, tanh * sigmoid gate
    fg = jnp.dot(h.astype(jnp.bfloat16), w_fg_ref[...],
                 preferred_element_type=jnp.float32) + b_fg_ref[...]     # (tm, 2*half)
    filt = jnp.tanh(fg[:, :half]) * jax.nn.sigmoid(fg[:, half:])         # (tm, half)

    # filter-and-sum beamforming directly from the VMEM-resident context row:
    #   out_s[t] = sum_k ctx[t+k] * filt_s[k]
    xa = xa_ref[...]                                    # (tm, 128): ctx in lanes [0, cw)
    accs = [jnp.zeros((tm, lane_w), jnp.float32) for _ in range(n_spk)]
    for k in range(n_lags):
        sh = _shift_left(xa, k)                         # sh[:, t] = ctx[:, t+k]
        for s in range(n_spk):
            f_sk = filt[:, s * n_lags + k:s * n_lags + k + 1]
            accs[s] = accs[s] + sh * f_sk
    parts = [acc[:, :win] for acc in accs]
    pad = lane_w - n_spk * win
    if pad:
        parts.append(jnp.zeros((tm, pad), jnp.float32))
    o_ref[...] = jnp.concatenate(parts, axis=1)         # lane-dense (tm, 128)


def pallas_separate_beamform(x, xa, stats, gamma, beta, w_bn, b_bn, w1, b1, w2, b2,
                             slopes, w_fg, b_fg, *, tm, n_layer, n_spk, n_lags, win,
                             enc_dim, half, lane_w):
    rows_pad = x.shape[0]
    feat = w_bn.shape[1]
    hid = w1.shape[2]
    kern = functools.partial(_separator_beamform_kernel, n_layer=n_layer, n_spk=n_spk,
                             n_lags=n_lags, win=win, enc_dim=enc_dim, half=half,
                             lane_w=lane_w)
    return pl.pallas_call(
        kern,
        out_shape=jax.ShapeDtypeStruct((rows_pad, lane_w), jnp.float32),
        grid_spec=pltpu.PrefetchScalarGridSpec(
            num_scalar_prefetch=0,
            grid=(rows_pad // tm,),
            in_specs=[
                pl.BlockSpec((tm, lane_w), lambda i: (i, 0)),        # enc | ncc
                pl.BlockSpec((tm, lane_w), lambda i: (i, 0)),        # ctx | ref
                pl.BlockSpec((tm, stats.shape[1]), lambda i: (i, 0)),  # mean / rstd
                pl.BlockSpec((1, lane_w), lambda i: (0, 0)),         # gLN gamma
                pl.BlockSpec((1, lane_w), lambda i: (0, 0)),         # gLN beta
                pl.BlockSpec((lane_w, feat), lambda i: (0, 0)),
                pl.BlockSpec((1, feat), lambda i: (0, 0)),
                pl.BlockSpec((n_layer, feat, hid), lambda i: (0, 0, 0)),
                pl.BlockSpec((n_layer, 1, hid), lambda i: (0, 0, 0)),
                pl.BlockSpec((n_layer, hid, feat), lambda i: (0, 0, 0)),
                pl.BlockSpec((n_layer, 1, feat), lambda i: (0, 0, 0)),
                pl.BlockSpec((n_layer, 1, hid), lambda i: (0, 0, 0)),
                pl.BlockSpec((feat, 2 * half), lambda i: (0, 0)),
                pl.BlockSpec((1, 2 * half), lambda i: (0, 0)),
            ],
            out_specs=pl.BlockSpec((tm, lane_w), lambda i: (i, 0)),
        ),
        compiler_params=pltpu.CompilerParams(dimension_semantics=("parallel",)),
    )(x, xa, stats, gamma, beta, w_bn, b_bn, w1, b1, w2, b2, slopes, w_fg, b_fg)


# ----------------------------------------------------------------------------
# Plain-JAX glue (segmentation, strided overlap-add)
# ----------------------------------------------------------------------------
def segment_signal(mix, win, context):
    """mix: (B, nmic, T) -> center (B,nmic,L,win), ctx (B,nmic,L,2*context+win)."""
    b, nmic, t = mix.shape
    stride = win // 2
    rest = (win - (stride + t % win) % win) % win
    x = jnp.pad(mix, ((0, 0), (0, 0), (stride, rest + stride)))
    nsample = t + rest + 2 * stride
    xc = jnp.pad(x, ((0, 0), (0, 0), (context, context)))
    n_win = 2 * nsample // win - 1
    idx = jnp.arange(n_win)[:, None] * stride + jnp.arange(2 * context + win)[None, :]
    ctx = xc[:, :, idx]                                   # (B, nmic, L, cw)
    center = ctx[..., context:context + win]
    return center, ctx, nsample, stride


def overlap_add(windows, nsample, stride):
    """windows: (rows, L, win=2*stride) -> (rows, nsample) via two strided adds
    (no scatter-add; exploits the fixed 50% overlap)."""
    rows, n_win, win = windows.shape
    first = windows[:, :, :stride]                        # covers [l*stride, l*stride+stride)
    second = windows[:, :, stride:]                       # covers [(l+1)*stride, (l+2)*stride)
    out = (jnp.pad(first, ((0, 0), (0, 1), (0, 0)))
           + jnp.pad(second, ((0, 0), (1, 0), (0, 0))))   # (rows, L+1, stride)
    return out.reshape(rows, (n_win + 1) * stride)        # == nsample


# ----------------------------------------------------------------------------
# Parameters (deterministic, in-script)
# ----------------------------------------------------------------------------
def init_params(key, cfg):
    enc = cfg["enc_dim"]
    feat = cfg["feature_dim"]
    hid = cfg["hidden_dim"]
    nlayer = cfg["layer"]
    nspk = cfg["num_spk"]
    win = cfg["win_len"]
    context = cfg["context_len"]
    cw = 2 * context + win
    ntaps = 2 * context + 1

    keys = iter(jax.random.split(key, 16 + 4 * nlayer))

    def lin(kin, kout):
        kw, kb = next(keys), next(keys)
        s = 1.0 / float(kin) ** 0.5
        w = jax.random.uniform(kw, (kin, kout), jnp.float32, -s, s)
        b = jax.random.uniform(kb, (1, kout), jnp.float32, -s, s)
        return w, b

    p = {}
    p["W_enc"], p["b_enc"] = lin(cw, enc)
    p["ln_gamma"] = jnp.ones((1, 1, enc), jnp.float32)
    p["ln_beta"] = jnp.zeros((1, 1, enc), jnp.float32)
    p["W_bn"], p["b_bn"] = lin(enc + ntaps, feat)
    w1s, b1s, w2s, b2s = [], [], [], []
    for _ in range(nlayer):
        w1, b1 = lin(feat, hid)
        w2, b2 = lin(hid, feat)
        w1s.append(w1); b1s.append(b1); w2s.append(w2); b2s.append(b2)
    p["W1"] = jnp.stack(w1s)          # (nlayer, feat, hid)
    p["b1"] = jnp.stack(b1s)          # (nlayer, 1, hid)
    p["W2"] = jnp.stack(w2s)          # (nlayer, hid, feat)
    p["b2"] = jnp.stack(b2s)          # (nlayer, 1, feat)
    p["prelu"] = jnp.full((nlayer,), 0.25, jnp.float32)   # learned PReLU slopes
    p["W_f"], p["b_f"] = lin(feat, nspk * ntaps)
    p["W_g"], p["b_g"] = lin(feat, nspk * ntaps)
    return p


# ----------------------------------------------------------------------------
# Forward pass (matches Net.forward output convention: (B, num_spk, 1, T))
# ----------------------------------------------------------------------------
def net_forward(mix, params, *, cfg):
    b, nmic, t = mix.shape
    win = cfg["win_len"]
    context = cfg["context_len"]
    nspk = cfg["num_spk"]
    enc_dim = cfg["enc_dim"]
    feat = cfg["feature_dim"]
    hid = cfg["hidden_dim"]
    nlayer = cfg["layer"]
    cw = 2 * context + win                     # 48
    ntaps = 2 * context + 1                    # 33
    half = _round_up(nspk * ntaps, LANE)       # 128
    assert cw + win <= LANE and enc_dim + ntaps <= LANE and nspk * win <= LANE

    center, ctx, nsample, stride = segment_signal(mix.astype(jnp.float32), win, context)
    n_win = ctx.shape[2]
    rows = b * nmic * n_win
    tm, rows_pad = _row_tiling(rows)

    # one lane-dense (rows, 128) slab shared by both kernels: [ctx(48) | ref(16) | 0]
    ctx_rows = ctx.reshape(rows, cw)
    ref_rows = jnp.broadcast_to(center[:, :1], (b, nmic, n_win, win)).reshape(rows, win)
    xa = jnp.concatenate(
        [ctx_rows, ref_rows, jnp.zeros((rows, LANE - cw - win), jnp.float32)], axis=1)
    xa = jnp.pad(xa, ((0, rows_pad - rows), (0, 0)))

    # --- fused encoder + NCC ---
    w_enc = jnp.zeros((LANE, enc_dim), jnp.float32).at[:cw].set(params["W_enc"])
    enc_ncc = pallas_encode_ncc(
        xa, w_enc.astype(jnp.bfloat16), params["b_enc"],
        tm=tm, enc_dim=enc_dim, n_lags=ntaps, win=win, ctx_off=cw, lane_w=LANE)

    # --- per-(batch, mic) gLN statistics (cross-window reduction stays in XLA) ---
    enc_g = enc_ncc[:rows, :enc_dim].reshape(b * nmic, n_win * enc_dim)
    mean = enc_g.mean(axis=1)
    rstd = jax.lax.rsqrt(enc_g.var(axis=1) + 1e-8)
    stats = jnp.stack([jnp.repeat(mean, n_win), jnp.repeat(rstd, n_win)], axis=1)
    stats = jnp.pad(stats, ((0, rows_pad - rows), (0, 6)))          # (rows_pad, 8)

    # --- packed / zero-padded weights for the fused separator kernel ---
    gamma = jnp.zeros((1, LANE), jnp.float32).at[:, :enc_dim].set(
        params["ln_gamma"].reshape(1, enc_dim))
    beta = jnp.zeros((1, LANE), jnp.float32).at[:, :enc_dim].set(
        params["ln_beta"].reshape(1, enc_dim))
    w_bn = jnp.zeros((LANE, feat), jnp.float32).at[:enc_dim + ntaps].set(params["W_bn"])
    wpad = half - nspk * ntaps
    w_fg = jnp.concatenate([jnp.pad(params["W_f"], ((0, 0), (0, wpad))),
                            jnp.pad(params["W_g"], ((0, 0), (0, wpad)))], axis=1)
    b_fg = jnp.concatenate([jnp.pad(params["b_f"], ((0, 0), (0, wpad))),
                            jnp.pad(params["b_g"], ((0, 0), (0, wpad)))], axis=1)
    slopes = params["prelu"][:, None, None] * jnp.ones((1, 1, hid), jnp.float32)

    # --- fused gLN + bottleneck + residual blocks + gated head + beamforming ---
    bf_rows = pallas_separate_beamform(
        enc_ncc, xa, stats, gamma, beta,
        w_bn.astype(jnp.bfloat16), params["b_bn"],
        params["W1"].astype(jnp.bfloat16), params["b1"],
        params["W2"].astype(jnp.bfloat16), params["b2"],
        slopes,
        w_fg.astype(jnp.bfloat16), b_fg,
        tm=tm, n_layer=nlayer, n_spk=nspk, n_lags=ntaps, win=win,
        enc_dim=enc_dim, half=half, lane_w=LANE)

    # --- sum over mics, overlap-add, trim ---
    bf = bf_rows[:rows, :nspk * win].reshape(b, nmic, n_win, nspk, win).sum(axis=1)
    bf = jnp.transpose(bf, (0, 2, 1, 3))                            # (B, nspk, L, win)
    sig = overlap_add(bf.reshape(b * nspk, n_win, win), nsample, stride)
    sig = sig[:, stride:stride + t].reshape(b, nspk, t)

    # Net.forward: cat([out_i.unsqueeze(1).unsqueeze(1)], axis=1) -> (B, nspk, 1, T)
    return sig[:, :, None, :]


# ----------------------------------------------------------------------------
if __name__ == "__main__":
    cfg = dict(input_dim=4, enc_dim=64, feature_dim=64, hidden_dim=128,
               layer=6, segment_size=50, num_spk=2, win_len=16, context_len=16)

    key = jax.random.PRNGKey(0)
    k_in, k_par = jax.random.split(key)

    B, T = 2, 64
    mix = jax.random.normal(k_in, (B, cfg["input_dim"], T), jnp.float32)  # (B, nmic, T)
    params = init_params(k_par, cfg)

    fwd = jax.jit(functools.partial(net_forward, cfg=cfg))
    out = jax.block_until_ready(fwd(mix, params))

    assert out.shape == (B, cfg["num_spk"], 1, T), out.shape
    assert bool(jnp.all(jnp.isfinite(out)))
    print("KERNEL_OK")
</pallas_src>

<mosaic_0001>
module attributes {stable_mosaic.version = 11 : i64} {
  func.func @_encode_ncc_kernel(%arg0: i32, %arg1: memref<80x128xf32, #tpu.memory_space<vmem>>, %arg2: memref<128x64xbf16, #tpu.memory_space<vmem>>, %arg3: memref<1x64xf32, #tpu.memory_space<vmem>>, %arg4: memref<80x128xf32, #tpu.memory_space<vmem>>) attributes {dimension_semantics = [#tpu.dimension_semantics<parallel>], iteration_bounds = array<i64: 1>, scalar_prefetch = 0 : i64, scratch_operands = 0 : i64, tpu.core_type = #tpu.core_type<tc>, window_params = [{transform_indices = @transform_0, window_bounds = array<i64: 80, 128>}, {pipeline_mode = #tpu.pipeline_mode<synchronous>, transform_indices = @transform_1, window_bounds = array<i64: 128, 64>}, {pipeline_mode = #tpu.pipeline_mode<synchronous>, transform_indices = @transform_2, window_bounds = array<i64: 1, 64>}, {transform_indices = @transform_3, window_bounds = array<i64: 80, 128>}]} {
    %c0 = arith.constant 0 : index
    %c0_0 = arith.constant 0 : index
    %0 = vector.load %arg1[%c0, %c0_0] : memref<80x128xf32, #tpu.memory_space<vmem>>, vector<80x128xf32>
    %1 = arith.truncf %0 : vector<80x128xf32> to vector<80x128xbf16>
    %c0_1 = arith.constant 0 : index
    %c0_2 = arith.constant 0 : index
    %2 = vector.load %arg2[%c0_1, %c0_2] : memref<128x64xbf16, #tpu.memory_space<vmem>>, vector<128x64xbf16>
    %cst = arith.constant dense<0.000000e+00> : vector<80x64xf32>
    %3 = tpu.matmul %1, %2, %cst {dimension_numbers = #tpu.dot_dimension_numbers<[1], [0], [0], [1], [0, 0, 1, 1], [], []>} : vector<80x128xbf16>, vector<128x64xbf16>, vector<80x64xf32> -> vector<80x64xf32>
    %c0_3 = arith.constant 0 : index
    %c0_4 = arith.constant 0 : index
    %4 = vector.load %arg3[%c0_3, %c0_4] : memref<1x64xf32, #tpu.memory_space<vmem>>, vector<1x64xf32>
    %5 = vector.broadcast %4 : vector<1x64xf32> to vector<80x64xf32>
    %6 = arith.addf %3, %5 : vector<80x64xf32>
    %cst_5 = arith.constant 0.000000e+00 : f32
    %7 = vector.broadcast %cst_5 : f32 to vector<80x128xf32>
    %cst_6 = arith.constant 0.000000e+00 : f32
    %8 = vector.broadcast %cst_6 : f32 to vector<80x128xf32>
    %9 = vector.extract_strided_slice %0 {offsets = [0, 48], sizes = [80, 1], strides = [1, 1]} : vector<80x128xf32> to vector<80x1xf32>
    %10 = vector.broadcast %9 : vector<80x1xf32> to vector<80x128xf32>
    %11 = arith.mulf %0, %10 : vector<80x128xf32>
    %12 = arith.addf %7, %11 : vector<80x128xf32>
    %13 = arith.mulf %0, %0 : vector<80x128xf32>
    %14 = arith.addf %8, %13 : vector<80x128xf32>
    %cst_7 = arith.constant 0.000000e+00 : f32
    %15 = vector.broadcast %cst_7 : f32 to vector<80x1xf32>
    %16 = vector.extract_strided_slice %0 {offsets = [0, 1], sizes = [80, 127], strides = [1, 1]} : vector<80x128xf32> to vector<80x127xf32>
    %17 = tpu.concatenate %16, %15 in 1 : vector<80x127xf32>, vector<80x1xf32> -> vector<80x128xf32>
    %18 = vector.extract_strided_slice %0 {offsets = [0, 49], sizes = [80, 1], strides = [1, 1]} : vector<80x128xf32> to vector<80x1xf32>
    %19 = vector.broadcast %18 : vector<80x1xf32> to vector<80x128xf32>
    %20 = arith.mulf %17, %19 : vector<80x128xf32>
    %21 = arith.addf %12, %20 : vector<80x128xf32>
    %22 = arith.mulf %17, %17 : vector<80x128xf32>
    %23 = arith.addf %14, %22 : vector<80x128xf32>
    %cst_8 = arith.constant 0.000000e+00 : f32
    %24 = vector.broadcast %cst_8 : f32 to vector<80x2xf32>
    %25 = vector.extract_strided_slice %0 {offsets = [0, 2], sizes = [80, 126], strides = [1, 1]} : vector<80x128xf32> to vector<80x126xf32>
    %26 = tpu.concatenate %25, %24 in 1 : vector<80x126xf32>, vector<80x2xf32> -> vector<80x128xf32>
    %27 = vector.extract_strided_slice %0 {offsets = [0, 50], sizes = [80, 1], strides = [1, 1]} : vector<80x128xf32> to vector<80x1xf32>
    %28 = vector.broadcast %27 : vector<80x1xf32> to vector<80x128xf32>
    %29 = arith.mulf %26, %28 : vector<80x128xf32>
    %30 = arith.addf %21, %29 : vector<80x128xf32>
    %31 = arith.mulf %26, %26 : vector<80x128xf32>
    %32 = arith.addf %23, %31 : vector<80x128xf32>
    %cst_9 = arith.constant 0.000000e+00 : f32
    %33 = vector.broadcast %cst_9 : f32 to vector<80x3xf32>
    %34 = vector.extract_strided_slice %0 {offsets = [0, 3], sizes = [80, 125], strides = [1, 1]} : vector<80x128xf32> to vector<80x125xf32>
    %35 = tpu.concatenate %34, %33 in 1 : vector<80x125xf32>, vector<80x3xf32> -> vector<80x128xf32>
    %36 = vector.extract_strided_slice %0 {offsets = [0, 51], sizes = [80, 1], strides = [1, 1]} : vector<80x128xf32> to vector<80x1xf32>
    %37 = vector.broadcast %36 : vector<80x1xf32> to vector<80x128xf32>
    %38 = arith.mulf %35, %37 : vector<80x128xf32>
    %39 = arith.addf %30, %38 : vector<80x128xf32>
    %40 = arith.mulf %35, %35 : vector<80x128xf32>
    %41 = arith.addf %32, %40 : vector<80x128xf32>
    %cst_10 = arith.constant 0.000000e+00 : f32
    %42 = vector.broadcast %cst_10 : f32 to vector<80x4xf32>
    %43 = vector.extract_strided_slice %0 {offsets = [0, 4], sizes = [80, 124], strides = [1, 1]} : vector<80x128xf32> to vector<80x124xf32>
    %44 = tpu.concatenate %43, %42 in 1 : vector<80x124xf32>, vector<80x4xf32> -> vector<80x128xf32>
    %45 = vector.extract_strided_slice %0 {offsets = [0, 52], sizes = [80, 1], strides = [1, 1]} : vector<80x128xf32> to vector<80x1xf32>
    %46 = vector.broadcast %45 : vector<80x1xf32> to vector<80x128xf32>
    %47 = arith.mulf %44, %46 : vector<80x128xf32>
    %48 = arith.addf %39, %47 : vector<80x128xf32>
    %49 = arith.mulf %44, %44 : vector<80x128xf32>
    %50 = arith.addf %41, %49 : vector<80x128xf32>
    %cst_11 = arith.constant 0.000000e+00 : f32
    %51 = vector.broadcast %cst_11 : f32 to vector<80x5xf32>
    %52 = vector.extract_strided_slice %0 {offsets = [0, 5], sizes = [80, 123], strides = [1, 1]} : vector<80x128xf32> to vector<80x123xf32>
    %53 = tpu.concatenate %52, %51 in 1 : vector<80x123xf32>, vector<80x5xf32> -> vector<80x128xf32>
    %54 = vector.extract_strided_slice %0 {offsets = [0, 53], sizes = [80, 1], strides = [1, 1]} : vector<80x128xf32> to vector<80x1xf32>
    %55 = vector.broadcast %54 : vector<80x1xf32> to vector<80x128xf32>
    %56 = arith.mulf %53, %55 : vector<80x128xf32>
    %57 = arith.addf %48, %56 : vector<80x128xf32>
    %58 = arith.mulf %53, %53 : vector<80x128xf32>
    %59 = arith.addf %50, %58 : vector<80x128xf32>
    %cst_12 = arith.constant 0.000000e+00 : f32
    %60 = vector.broadcast %cst_12 : f32 to vector<80x6xf32>
    %61 = vector.extract_strided_slice %0 {offsets = [0, 6], sizes = [80, 122], strides = [1, 1]} : vector<80x128xf32> to vector<80x122xf32>
    %62 = tpu.concatenate %61, %60 in 1 : vector<80x122xf32>, vector<80x6xf32> -> vector<80x128xf32>
    %63 = vector.extract_strided_slice %0 {offsets = [0, 54], sizes = [80, 1], strides = [1, 1]} : vector<80x128xf32> to vector<80x1xf32>
    %64 = vector.broadcast %63 : vector<80x1xf32> to vector<80x128xf32>
    %65 = arith.mulf %62, %64 : vector<80x128xf32>
    %66 = arith.addf %57, %65 : vector<80x128xf32>
    %67 = arith.mulf %62, %62 : vector<80x128xf32>
    %68 = arith.addf %59, %67 : vector<80x128xf32>
    %cst_13 = arith.constant 0.000000e+00 : f32
    %69 = vector.broadcast %cst_13 : f32 to vector<80x7xf32>
    %70 = vector.extract_strided_slice %0 {offsets = [0, 7], sizes = [80, 121], strides = [1, 1]} : vector<80x128xf32> to vector<80x121xf32>
    %71 = tpu.concatenate %70, %69 in 1 : vector<80x121xf32>, vector<80x7xf32> -> vector<80x128xf32>
    %72 = vector.extract_strided_slice %0 {offsets = [0, 55], sizes = [80, 1], strides = [1, 1]} : vector<80x128xf32> to vector<80x1xf32>
    %73 = vector.broadcast %72 : vector<80x1xf32> to vector<80x128xf32>
    %74 = arith.mulf %71, %73 : vector<80x128xf32>
    %75 = arith.addf %66, %74 : vector<80x128xf32>
    %76 = arith.mulf %71, %71 : vector<80x128xf32>
    %77 = arith.addf %68, %76 : vector<80x128xf32>
    %cst_14 = arith.constant 0.000000e+00 : f32
    %78 = vector.broadcast %cst_14 : f32 to vector<80x8xf32>
    %79 = vector.extract_strided_slice %0 {offsets = [0, 8], sizes = [80, 120], strides = [1, 1]} : vector<80x128xf32> to vector<80x120xf32>
    %80 = tpu.concatenate %79, %78 in 1 : vector<80x120xf32>, vector<80x8xf32> -> vector<80x128xf32>
    %81 = vector.extract_strided_slice %0 {offsets = [0, 56], sizes = [80, 1], strides = [1, 1]} : vector<80x128xf32> to vector<80x1xf32>
    %82 = vector.broadcast %81 : vector<80x1xf32> to vector<80x128xf32>
    %83 = arith.mulf %80, %82 : vector<80x128xf32>
    %84 = arith.addf %75, %83 : vector<80x128xf32>
    %85 = arith.mulf %80, %80 : vector<80x128xf32>
    %86 = arith.addf %77, %85 : vector<80x128xf32>
    %cst_15 = arith.constant 0.000000e+00 : f32
    %87 = vector.broadcast %cst_15 : f32 to vector<80x9xf32>
    %88 = vector.extract_strided_slice %0 {offsets = [0, 9], sizes = [80, 119], strides = [1, 1]} : vector<80x128xf32> to vector<80x119xf32>
    %89 = tpu.concatenate %88, %87 in 1 : vector<80x119xf32>, vector<80x9xf32> -> vector<80x128xf32>
    %90 = vector.extract_strided_slice %0 {offsets = [0, 57], sizes = [80, 1], strides = [1, 1]} : vector<80x128xf32> to vector<80x1xf32>
    %91 = vector.broadcast %90 : vector<80x1xf32> to vector<80x128xf32>
    %92 = arith.mulf %89, %91 : vector<80x128xf32>
    %93 = arith.addf %84, %92 : vector<80x128xf32>
    %94 = arith.mulf %89, %89 : vector<80x128xf32>
    %95 = arith.addf %86, %94 : vector<80x128xf32>
    %cst_16 = arith.constant 0.000000e+00 : f32
    %96 = vector.broadcast %cst_16 : f32 to vector<80x10xf32>
    %97 = vector.extract_strided_slice %0 {offsets = [0, 10], sizes = [80, 118], strides = [1, 1]} : vector<80x128xf32> to vector<80x118xf32>
    %98 = tpu.concatenate %97, %96 in 1 : vector<80x118xf32>, vector<80x10xf32> -> vector<80x128xf32>
    %99 = vector.extract_strided_slice %0 {offsets = [0, 58], sizes = [80, 1], strides = [1, 1]} : vector<80x128xf32> to vector<80x1xf32>
    %100 = vector.broadcast %99 : vector<80x1xf32> to vector<80x128xf32>
    %101 = arith.mulf %98, %100 : vector<80x128xf32>
    %102 = arith.addf %93, %101 : vector<80x128xf32>
    %103 = arith.mulf %98, %98 : vector<80x128xf32>
    %104 = arith.addf %95, %103 : vector<80x128xf32>
    %cst_17 = arith.constant 0.000000e+00 : f32
    %105 = vector.broadcast %cst_17 : f32 to vector<80x11xf32>
    %106 = vector.extract_strided_slice %0 {offsets = [0, 11], sizes = [80, 117], strides = [1, 1]} : vector<80x128xf32> to vector<80x117xf32>
    %107 = tpu.concatenate %106, %105 in 1 : vector<80x117xf32>, vector<80x11xf32> -> vector<80x128xf32>
    %108 = vector.extract_strided_slice %0 {offsets = [0, 59], sizes = [80, 1], strides = [1, 1]} : vector<80x128xf32> to vector<80x1xf32>
    %109 = vector.broadcast %108 : vector<80x1xf32> to vector<80x128xf32>
    %110 = arith.mulf %107, %109 : vector<80x128xf32>
    %111 = arith.addf %102, %110 : vector<80x128xf32>
    %112 = arith.mulf %107, %107 : vector<80x128xf32>
    %113 = arith.addf %104, %112 : vector<80x128xf32>
    %cst_18 = arith.constant 0.000000e+00 : f32
    %114 = vector.broadcast %cst_18 : f32 to vector<80x12xf32>
    %115 = vector.extract_strided_slice %0 {offsets = [0, 12], sizes = [80, 116], strides = [1, 1]} : vector<80x128xf32> to vector<80x116xf32>
    %116 = tpu.concatenate %115, %114 in 1 : vector<80x116xf32>, vector<80x12xf32> -> vector<80x128xf32>
    %117 = vector.extract_strided_slice %0 {offsets = [0, 60], sizes = [80, 1], strides = [1, 1]} : vector<80x128xf32> to vector<80x1xf32>
    %118 = vector.broadcast %117 : vector<80x1xf32> to vector<80x128xf32>
    %119 = arith.mulf %116, %118 : vector<80x128xf32>
    %120 = arith.addf %111, %119 : vector<80x128xf32>
    %121 = arith.mulf %116, %116 : vector<80x128xf32>
    %122 = arith.addf %113, %121 : vector<80x128xf32>
    %cst_19 = arith.constant 0.000000e+00 : f32
    %123 = vector.broadcast %cst_19 : f32 to vector<80x13xf32>
    %124 = vector.extract_strided_slice %0 {offsets = [0, 13], sizes = [80, 115], strides = [1, 1]} : vector<80x128xf32> to vector<80x115xf32>
    %125 = tpu.concatenate %124, %123 in 1 : vector<80x115xf32>, vector<80x13xf32> -> vector<80x128xf32>
    %126 = vector.extract_strided_slice %0 {offsets = [0, 61], sizes = [80, 1], strides = [1, 1]} : vector<80x128xf32> to vector<80x1xf32>
    %127 = vector.broadcast %126 : vector<80x1xf32> to vector<80x128xf32>
    %128 = arith.mulf %125, %127 : vector<80x128xf32>
    %129 = arith.addf %120, %128 : vector<80x128xf32>
    %130 = arith.mulf %125, %125 : vector<80x128xf32>
    %131 = arith.addf %122, %130 : vector<80x128xf32>
    %cst_20 = arith.constant 0.000000e+00 : f32
    %132 = vector.broadcast %cst_20 : f32 to vector<80x14xf32>
    %133 = vector.extract_strided_slice %0 {offsets = [0, 14], sizes = [80, 114], strides = [1, 1]} : vector<80x128xf32> to vector<80x114xf32>
    %134 = tpu.concatenate %133, %132 in 1 : vector<80x114xf32>, vector<80x14xf32> -> vector<80x128xf32>
    %135 = vector.extract_strided_slice %0 {offsets = [0, 62], sizes = [80, 1], strides = [1, 1]} : vector<80x128xf32> to vector<80x1xf32>
    %136 = vector.broadcast %135 : vector<80x1xf32> to vector<80x128xf32>
    %137 = arith.mulf %134, %136 : vector<80x128xf32>
    %138 = arith.addf %129, %137 : vector<80x128xf32>
    %139 = arith.mulf %134, %134 : vector<80x128xf32>
    %140 = arith.addf %131, %139 : vector<80x128xf32>
    %cst_21 = arith.constant 0.000000e+00 : f32
    %141 = vector.broadcast %cst_21 : f32 to vector<80x15xf32>
    %142 = vector.extract_strided_slice %0 {offsets = [0, 15], sizes = [80, 113], strides = [1, 1]} : vector<80x128xf32> to vector<80x113xf32>
    %143 = tpu.concatenate %142, %141 in 1 : vector<80x113xf32>, vector<80x15xf32> -> vector<80x128xf32>
    %144 = vector.extract_strided_slice %0 {offsets = [0, 63], sizes = [80, 1], strides = [1, 1]} : vector<80x128xf32> to vector<80x1xf32>
    %145 = vector.broadcast %144 : vector<80x1xf32> to vector<80x128xf32>
    %146 = arith.mulf %143, %145 : vector<80x128xf32>
    %147 = arith.addf %138, %146 : vector<80x128xf32>
    %148 = arith.mulf %143, %143 : vector<80x128xf32>
    %149 = arith.addf %140, %148 : vector<80x128xf32>
    %150 = vector.extract_strided_slice %0 {offsets = [0, 48], sizes = [80, 16], strides = [1, 1]} : vector<80x128xf32> to vector<80x16xf32>
    %151 = arith.mulf %150, %150 : vector<80x16xf32>
    %cst_22 = arith.constant dense<0.000000e+00> : vector<80xf32>
    %152 = vector.multi_reduction <add>, %151, %cst_22 [1] : vector<80x16xf32> to vector<80xf32>
    %153 = vector.shape_cast %152 : vector<80xf32> to vector<80x1xf32>
    %154 = vector.broadcast %153 : vector<80x1xf32> to vector<80x128xf32>
    %155 = arith.mulf %149, %154 : vector<80x128xf32>
    %156 = math.sqrt %155 : vector<80x128xf32>
    %cst_23 = arith.constant 9.99999993E-9 : f32
    %157 = vector.broadcast %cst_23 : f32 to vector<80x128xf32>
    %158 = arith.addf %156, %157 : vector<80x128xf32>
    %159 = tpu.reciprocal %158 {approx = true} : vector<80x128xf32> -> vector<80x128xf32>
    %160 = arith.mulf %147, %159 : vector<80x128xf32>
    %161 = vector.extract_strided_slice %160 {offsets = [0, 0], sizes = [80, 33], strides = [1, 1]} : vector<80x128xf32> to vector<80x33xf32>
    %cst_24 = arith.constant 0.000000e+00 : f32
    %162 = vector.broadcast %cst_24 : f32 to vector<80x31xf32>
    %163 = tpu.concatenate %6, %161, %162 in 1 : vector<80x64xf32>, vector<80x33xf32>, vector<80x31xf32> -> vector<80x128xf32>
    %c0_25 = arith.constant 0 : index
    %c0_26 = arith.constant 0 : index
    %164 = vector.load %arg4[%c0_25, %c0_26] : memref<80x128xf32, #tpu.memory_space<vmem>>, vector<80x128xf32>
    tpu.vector_store %arg4[%c0_25, %c0_26], %163 {strides = array<i32>} : memref<80x128xf32, #tpu.memory_space<vmem>>, vector<80x128xf32>,
    return
  }
  func.func @transform_0(%arg0: i32) -> (i32, i32) {
    %c0_i32 = arith.constant 0 : i32
    %c0_i32_0 = arith.constant 0 : i32
    return %arg0, %c0_i32 : i32, i32
  }
  func.func @transform_1(%arg0: i32) -> (i32, i32) {
    %c0_i32 = arith.constant 0 : i32
    %c0_i32_0 = arith.constant 0 : i32
    %c0_i32_1 = arith.constant 0 : i32
    return %c0_i32, %c0_i32_0 : i32, i32
  }
  func.func @transform_2(%arg0: i32) -> (i32, i32) {
    %c0_i32 = arith.constant 0 : i32
    %c0_i32_0 = arith.constant 0 : i32
    %c0_i32_1 = arith.constant 0 : i32
    return %c0_i32, %c0_i32_0 : i32, i32
  }
  func.func @transform_3(%arg0: i32) -> (i32, i32) {
    %c0_i32 = arith.constant 0 : i32
    %c0_i32_0 = arith.constant 0 : i32
    return %arg0, %c0_i32 : i32, i32
  }
}

module attributes {stable_mosaic.version = 11 : i64} {
  func.func @_separator_beamform_kernel(%arg0: i32, %arg1: memref<80x128xf32, #tpu.memory_space<vmem>>, %arg2: memref<80x128xf32, #tpu.memory_space<vmem>>, %arg3: memref<80x8xf32, #tpu.memory_space<vmem>>, %arg4: memref<1x128xf32, #tpu.memory_space<vmem>>, %arg5: memref<1x128xf32, #tpu.memory_space<vmem>>, %arg6: memref<128x64xbf16, #tpu.memory_space<vmem>>, %arg7: memref<1x64xf32, #tpu.memory_space<vmem>>, %arg8: memref<6x64x128xbf16, #tpu.memory_space<vmem>>, %arg9: memref<6x1x128xf32, #tpu.memory_space<vmem>>, %arg10: memref<6x128x64xbf16, #tpu.memory_space<vmem>>, %arg11: memref<6x1x64xf32, #tpu.memory_space<vmem>>, %arg12: memref<6x1x128xf32, #tpu.memory_space<vmem>>, %arg13: memref<64x256xbf16, #tpu.memory_space<vmem>>, %arg14: memref<1x256xf32, #tpu.memory_space<vmem>>, %arg15: memref<80x128xf32, #tpu.memory_space<vmem>>) attributes {dimension_semantics = [#tpu.dimension_semantics<parallel>], iteration_bounds = array<i64: 1>, scalar_prefetch = 0 : i64, scratch_operands = 0 : i64, tpu.core_type = #tpu.core_type<tc>, window_params = [{transform_indices = @transform_0, window_bounds = array<i64: 80, 128>}, {transform_indices = @transform_1, window_bounds = array<i64: 80, 128>}, {transform_indices = @transform_2, window_bounds = array<i64: 80, 8>}, {pipeline_mode = #tpu.pipeline_mode<synchronous>, transform_indices = @transform_3, window_bounds = array<i64: 1, 128>}, {pipeline_mode = #tpu.pipeline_mode<synchronous>, transform_indices = @transform_4, window_bounds = array<i64: 1, 128>}, {pipeline_mode = #tpu.pipeline_mode<synchronous>, transform_indices = @transform_5, window_bounds = array<i64: 128, 64>}, {pipeline_mode = #tpu.pipeline_mode<synchronous>, transform_indices = @transform_6, window_bounds = array<i64: 1, 64>}, {pipeline_mode = #tpu.pipeline_mode<synchronous>, transform_indices = @transform_7, window_bounds = array<i64: 6, 64, 128>}, {pipeline_mode = #tpu.pipeline_mode<synchronous>, transform_indices = @transform_8, window_bounds = array<i64: 6, 1, 128>}, {pipeline_mode = #tpu.pipeline_mode<synchronous>, transform_indices = @transform_9, window_bounds = array<i64: 6, 128, 64>}, {pipeline_mode = #tpu.pipeline_mode<synchronous>, transform_indices = @transform_10, window_bounds = array<i64: 6, 1, 64>}, {pipeline_mode = #tpu.pipeline_mode<synchronous>, transform_indices = @transform_11, window_bounds = array<i64: 6, 1, 128>}, {pipeline_mode = #tpu.pipeline_mode<synchronous>, transform_indices = @transform_12, window_bounds = array<i64: 64, 256>}, {pipeline_mode = #tpu.pipeline_mode<synchronous>, transform_indices = @transform_13, window_bounds = array<i64: 1, 256>}, {transform_indices = @transform_14, window_bounds = array<i64: 80, 128>}]} {
    %c0 = arith.constant 0 : index
    %c0_0 = arith.constant 0 : index
    %0 = vector.load %arg1[%c0, %c0_0] : memref<80x128xf32, #tpu.memory_space<vmem>>, vector<80x128xf32>
    %c0_1 = arith.constant 0 : index
    %c0_2 = arith.constant 0 : index
    %1 = vector.load %arg3[%c0_1, %c0_2] : memref<80x8xf32, #tpu.memory_space<vmem>>, vector<80x1xf32>
    %c0_3 = arith.constant 0 : index
    %c1 = arith.constant 1 : index
    %2 = vector.load %arg3[%c0_3, %c1] : memref<80x8xf32, #tpu.memory_space<vmem>>, vector<80x1xf32>
    %3 = tpu.iota {dimensions = array<i32: 1>} : vector<80x128xi32>
    %4 = vector.broadcast %1 : vector<80x1xf32> to vector<80x128xf32>
    %5 = arith.subf %0, %4 : vector<80x128xf32>
    %6 = vector.broadcast %2 : vector<80x1xf32> to vector<80x128xf32>
    %7 = arith.mulf %5, %6 : vector<80x128xf32>
    %c0_4 = arith.constant 0 : index
    %c0_5 = arith.constant 0 : index
    %8 = vector.load %arg4[%c0_4, %c0_5] : memref<1x128xf32, #tpu.memory_space<vmem>>, vector<1x128xf32>
    %9 = vector.broadcast %8 : vector<1x128xf32> to vector<80x128xf32>
    %10 = arith.mulf %7, %9 : vector<80x128xf32>
    %c0_6 = arith.constant 0 : index
    %c0_7 = arith.constant 0 : index
    %11 = vector.load %arg5[%c0_6, %c0_7] : memref<1x128xf32, #tpu.memory_space<vmem>>, vector<1x128xf32>
    %12 = vector.broadcast %11 : vector<1x128xf32> to vector<80x128xf32>
    %13 = arith.addf %10, %12 : vector<80x128xf32>
    %c64_i32 = arith.constant 64 : i32
    %14 = vector.broadcast %c64_i32 : i32 to vector<80x128xi32>
    %15 = arith.cmpi slt, %3, %14 : vector<80x128xi32>
    %16 = arith.select %15, %13, %0 : vector<80x128xi1>, vector<80x128xf32>
    %17 = arith.truncf %16 : vector<80x128xf32> to vector<80x128xbf16>
    %c0_8 = arith.constant 0 : index
    %c0_9 = arith.constant 0 : index
    %18 = vector.load %arg6[%c0_8, %c0_9] : memref<128x64xbf16, #tpu.memory_space<vmem>>, vector<128x64xbf16>
    %cst = arith.constant dense<0.000000e+00> : vector<80x64xf32>
    %19 = tpu.matmul %17, %18, %cst {dimension_numbers = #tpu.dot_dimension_numbers<[1], [0], [0], [1], [0, 0, 1, 1], [], []>} : vector<80x128xbf16>, vector<128x64xbf16>, vector<80x64xf32> -> vector<80x64xf32>
    %c0_10 = arith.constant 0 : index
    %c0_11 = arith.constant 0 : index
    %20 = vector.load %arg7[%c0_10, %c0_11] : memref<1x64xf32, #tpu.memory_space<vmem>>, vector<1x64xf32>
    %21 = vector.broadcast %20 : vector<1x64xf32> to vector<80x64xf32>
    %22 = arith.addf %19, %21 : vector<80x64xf32>
    %23 = arith.truncf %22 : vector<80x64xf32> to vector<80x64xbf16>
    %c0_12 = arith.constant 0 : index
    %c0_13 = arith.constant 0 : index
    %c0_14 = arith.constant 0 : index
    %24 = vector.load %arg8[%c0_12, %c0_13, %c0_14] : memref<6x64x128xbf16, #tpu.memory_space<vmem>>, vector<1x64x128xbf16>
    %25 = vector.shape_cast %24 : vector<1x64x128xbf16> to vector<64x128xbf16>
    %cst_15 = arith.constant dense<0.000000e+00> : vector<80x128xf32>
    %26 = tpu.matmul %23, %25, %cst_15 {dimension_numbers = #tpu.dot_dimension_numbers<[1], [0], [0], [1], [0, 0, 1, 1], [], []>} : vector<80x64xbf16>, vector<64x128xbf16>, vector<80x128xf32> -> vector<80x128xf32>
    %c0_16 = arith.constant 0 : index
    %c0_17 = arith.constant 0 : index
    %c0_18 = arith.constant 0 : index
    %27 = vector.load %arg9[%c0_16, %c0_17, %c0_18] : memref<6x1x128xf32, #tpu.memory_space<vmem>>, vector<1x1x128xf32>
    %28 = vector.shape_cast %27 : vector<1x1x128xf32> to vector<1x128xf32>
    %29 = vector.broadcast %28 : vector<1x128xf32> to vector<80x128xf32>
    %30 = arith.addf %26, %29 : vector<80x128xf32>
    %cst_19 = arith.constant 0.000000e+00 : f32
    %31 = vector.broadcast %cst_19 : f32 to vector<80x128xf32>
    %32 = arith.cmpf oge, %30, %31 : vector<80x128xf32>
    %c0_20 = arith.constant 0 : index
    %c0_21 = arith.constant 0 : index
    %c0_22 = arith.constant 0 : index
    %33 = vector.load %arg12[%c0_20, %c0_21, %c0_22] : memref<6x1x128xf32, #tpu.memory_space<vmem>>, vector<1x1x128xf32>
    %34 = vector.shape_cast %33 : vector<1x1x128xf32> to vector<1x128xf32>
    %35 = vector.broadcast %34 : vector<1x128xf32> to vector<80x128xf32>
    %36 = arith.mulf %35, %30 : vector<80x128xf32>
    %37 = arith.select %32, %30, %36 : vector<80x128xi1>, vector<80x128xf32>
    %38 = arith.truncf %37 : vector<80x128xf32> to vector<80x128xbf16>
    %c0_23 = arith.constant 0 : index
    %c0_24 = arith.constant 0 : index
    %c0_25 = arith.constant 0 : index
    %39 = vector.load %arg10[%c0_23, %c0_24, %c0_25] : memref<6x128x64xbf16, #tpu.memory_space<vmem>>, vector<1x128x64xbf16>
    %40 = vector.shape_cast %39 : vector<1x128x64xbf16> to vector<128x64xbf16>
    %cst_26 = arith.constant dense<0.000000e+00> : vector<80x64xf32>
    %41 = tpu.matmul %38, %40, %cst_26 {dimension_numbers = #tpu.dot_dimension_numbers<[1], [0], [0], [1], [0, 0, 1, 1], [], []>} : vector<80x128xbf16>, vector<128x64xbf16>, vector<80x64xf32> -> vector<80x64xf32>
    %42 = arith.addf %22, %41 : vector<80x64xf32>
    %c0_27 = arith.constant 0 : index
    %c0_28 = arith.constant 0 : index
    %c0_29 = arith.constant 0 : index
    %43 = vector.load %arg11[%c0_27, %c0_28, %c0_29] : memref<6x1x64xf32, #tpu.memory_space<vmem>>, vector<1x1x64xf32>
    %44 = vector.shape_cast %43 : vector<1x1x64xf32> to vector<1x64xf32>
    %45 = vector.broadcast %44 : vector<1x64xf32> to vector<80x64xf32>
    %46 = arith.addf %42, %45 : vector<80x64xf32>
    %47 = arith.truncf %46 : vector<80x64xf32> to vector<80x64xbf16>
    %c1_30 = arith.constant 1 : index
    %c0_31 = arith.constant 0 : index
    %c0_32 = arith.constant 0 : index
    %48 = vector.load %arg8[%c1_30, %c0_31, %c0_32] : memref<6x64x128xbf16, #tpu.memory_space<vmem>>, vector<1x64x128xbf16>
    %49 = vector.shape_cast %48 : vector<1x64x128xbf16> to vector<64x128xbf16>
    %cst_33 = arith.constant dense<0.000000e+00> : vector<80x128xf32>
    %50 = tpu.matmul %47, %49, %cst_33 {dimension_numbers = #tpu.dot_dimension_numbers<[1], [0], [0], [1], [0, 0, 1, 1], [], []>} : vector<80x64xbf16>, vector<64x128xbf16>, vector<80x128xf32> -> vector<80x128xf32>
    %c1_34 = arith.constant 1 : index
    %c0_35 = arith.constant 0 : index
    %c0_36 = arith.constant 0 : index
    %51 = vector.load %arg9[%c1_34, %c0_35, %c0_36] : memref<6x1x128xf32, #tpu.memory_space<vmem>>, vector<1x1x128xf32>
    %52 = vector.shape_cast %51 : vector<1x1x128xf32> to vector<1x128xf32>
    %53 = vector.broadcast %52 : vector<1x128xf32> to vector<80x128xf32>
    %54 = arith.addf %50, %53 : vector<80x128xf32>
    %cst_37 = arith.constant 0.000000e+00 : f32
    %55 = vector.broadcast %cst_37 : f32 to vector<80x128xf32>
    %56 = arith.cmpf oge, %54, %55 : vector<80x128xf32>
    %c1_38 = arith.constant 1 : index
    %c0_39 = arith.constant 0 : index
    %c0_40 = arith.constant 0 : index
    %57 = vector.load %arg12[%c1_38, %c0_39, %c0_40] : memref<6x1x128xf32, #tpu.memory_space<vmem>>, vector<1x1x128xf32>
    %58 = vector.shape_cast %57 : vector<1x1x128xf32> to vector<1x128xf32>
    %59 = vector.broadcast %58 : vector<1x128xf32> to vector<80x128xf32>
    %60 = arith.mulf %59, %54 : vector<80x128xf32>
    %61 = arith.select %56, %54, %60 : vector<80x128xi1>, vector<80x128xf32>
    %62 = arith.truncf %61 : vector<80x128xf32> to vector<80x128xbf16>
    %c1_41 = arith.constant 1 : index
    %c0_42 = arith.constant 0 : index
    %c0_43 = arith.constant 0 : index
    %63 = vector.load %arg10[%c1_41, %c0_42, %c0_43] : memref<6x128x64xbf16, #tpu.memory_space<vmem>>, vector<1x128x64xbf16>
    %64 = vector.shape_cast %63 : vector<1x128x64xbf16> to vector<128x64xbf16>
    %cst_44 = arith.constant dense<0.000000e+00> : vector<80x64xf32>
    %65 = tpu.matmul %62, %64, %cst_44 {dimension_numbers = #tpu.dot_dimension_numbers<[1], [0], [0], [1], [0, 0, 1, 1], [], []>} : vector<80x128xbf16>, vector<128x64xbf16>, vector<80x64xf32> -> vector<80x64xf32>
    %66 = arith.addf %46, %65 : vector<80x64xf32>
    %c1_45 = arith.constant 1 : index
    %c0_46 = arith.constant 0 : index
    %c0_47 = arith.constant 0 : index
    %67 = vector.load %arg11[%c1_45, %c0_46, %c0_47] : memref<6x1x64xf32, #tpu.memory_space<vmem>>, vector<1x1x64xf32>
    %68 = vector.shape_cast %67 : vector<1x1x64xf32> to vector<1x64xf32>
    %69 = vector.broadcast %68 : vector<1x64xf32> to vector<80x64xf32>
    %70 = arith.addf %66, %69 : vector<80x64xf32>
    %71 = arith.truncf %70 : vector<80x64xf32> to vector<80x64xbf16>
    %c2 = arith.constant 2 : index
    %c0_48 = arith.constant 0 : index
    %c0_49 = arith.constant 0 : index
    %72 = vector.load %arg8[%c2, %c0_48, %c0_49] : memref<6x64x128xbf16, #tpu.memory_space<vmem>>, vector<1x64x128xbf16>
    %73 = vector.shape_cast %72 : vector<1x64x128xbf16> to vector<64x128xbf16>
    %cst_50 = arith.constant dense<0.000000e+00> : vector<80x128xf32>
    %74 = tpu.matmul %71, %73, %cst_50 {dimension_numbers = #tpu.dot_dimension_numbers<[1], [0], [0], [1], [0, 0, 1, 1], [], []>} : vector<80x64xbf16>, vector<64x128xbf16>, vector<80x128xf32> -> vector<80x128xf32>
    %c2_51 = arith.constant 2 : index
    %c0_52 = arith.constant 0 : index
    %c0_53 = arith.constant 0 : index
    %75 = vector.load %arg9[%c2_51, %c0_52, %c0_53] : memref<6x1x128xf32, #tpu.memory_space<vmem>>, vector<1x1x128xf32>
    %76 = vector.shape_cast %75 : vector<1x1x128xf32> to vector<1x128xf32>
    %77 = vector.broadcast %76 : vector<1x128xf32> to vector<80x128xf32>
    %78 = arith.addf %74, %77 : vector<80x128xf32>
    %cst_54 = arith.constant 0.000000e+00 : f32
    %79 = vector.broadcast %cst_54 : f32 to vector<80x128xf32>
    %80 = arith.cmpf oge, %78, %79 : vector<80x128xf32>
    %c2_55 = arith.constant 2 : index
    %c0_56 = arith.constant 0 : index
    %c0_57 = arith.constant 0 : index
    %81 = vector.load %arg12[%c2_55, %c0_56, %c0_57] : memref<6x1x128xf32, #tpu.memory_space<vmem>>, vector<1x1x128xf32>
    %82 = vector.shape_cast %81 : vector<1x1x128xf32> to vector<1x128xf32>
    %83 = vector.broadcast %82 : vector<1x128xf32> to vector<80x128xf32>
    %84 = arith.mulf %83, %78 : vector<80x128xf32>
    %85 = arith.select %80, %78, %84 : vector<80x128xi1>, vector<80x128xf32>
    %86 = arith.truncf %85 : vector<80x128xf32> to vector<80x128xbf16>
    %c2_58 = arith.constant 2 : index
    %c0_59 = arith.constant 0 : index
    %c0_60 = arith.constant 0 : index
    %87 = vector.load %arg10[%c2_58, %c0_59, %c0_60] : memref<6x128x64xbf16, #tpu.memory_space<vmem>>, vector<1x128x64xbf16>
    %88 = vector.shape_cast %87 : vector<1x128x64xbf16> to vector<128x64xbf16>
    %cst_61 = arith.constant dense<0.000000e+00> : vector<80x64xf32>
    %89 = tpu.matmul %86, %88, %cst_61 {dimension_numbers = #tpu.dot_dimension_numbers<[1], [0], [0], [1], [0, 0, 1, 1], [], []>} : vector<80x128xbf16>, vector<128x64xbf16>, vector<80x64xf32> -> vector<80x64xf32>
    %90 = arith.addf %70, %89 : vector<80x64xf32>
    %c2_62 = arith.constant 2 : index
    %c0_63 = arith.constant 0 : index
    %c0_64 = arith.constant 0 : index
    %91 = vector.load %arg11[%c2_62, %c0_63, %c0_64] : memref<6x1x64xf32, #tpu.memory_space<vmem>>, vector<1x1x64xf32>
    %92 = vector.shape_cast %91 : vector<1x1x64xf32> to vector<1x64xf32>
    %93 = vector.broadcast %92 : vector<1x64xf32> to vector<80x64xf32>
    %94 = arith.addf %90, %93 : vector<80x64xf32>
    %95 = arith.truncf %94 : vector<80x64xf32> to vector<80x64xbf16>
    %c3 = arith.constant 3 : index
    %c0_65 = arith.constant 0 : index
    %c0_66 = arith.constant 0 : index
    %96 = vector.load %arg8[%c3, %c0_65, %c0_66] : memref<6x64x128xbf16, #tpu.memory_space<vmem>>, vector<1x64x128xbf16>
    %97 = vector.shape_cast %96 : vector<1x64x128xbf16> to vector<64x128xbf16>
    %cst_67 = arith.constant dense<0.000000e+00> : vector<80x128xf32>
    %98 = tpu.matmul %95, %97, %cst_67 {dimension_numbers = #tpu.dot_dimension_numbers<[1], [0], [0], [1], [0, 0, 1, 1], [], []>} : vector<80x64xbf16>, vector<64x128xbf16>, vector<80x128xf32> -> vector<80x128xf32>
    %c3_68 = arith.constant 3 : index
    %c0_69 = arith.constant 0 : index
    %c0_70 = arith.constant 0 : index
    %99 = vector.load %arg9[%c3_68, %c0_69, %c0_70] : memref<6x1x128xf32, #tpu.memory_space<vmem>>, vector<1x1x128xf32>
    %100 = vector.shape_cast %99 : vector<1x1x128xf32> to vector<1x128xf32>
    %101 = vector.broadcast %100 : vector<1x128xf32> to vector<80x128xf32>
    %102 = arith.addf %98, %101 : vector<80x128xf32>
    %cst_71 = arith.constant 0.000000e+00 : f32
    %103 = vector.broadcast %cst_71 : f32 to vector<80x128xf32>
    %104 = arith.cmpf oge, %102, %103 : vector<80x128xf32>
    %c3_72 = arith.constant 3 : index
    %c0_73 = arith.constant 0 : index
    %c0_74 = arith.constant 0 : index
    %105 = vector.load %arg12[%c3_72, %c0_73, %c0_74] : memref<6x1x128xf32, #tpu.memory_space<vmem>>, vector<1x1x128xf32>
    %106 = vector.shape_cast %105 : vector<1x1x128xf32> to vector<1x128xf32>
    %107 = vector.broadcast %106 : vector<1x128xf32> to vector<80x128xf32>
    %108 = arith.mulf %107, %102 : vector<80x128xf32>
    %109 = arith.select %104, %102, %108 : vector<80x128xi1>, vector<80x128xf32>
    %110 = arith.truncf %109 : vector<80x128xf32> to vector<80x128xbf16>
    %c3_75 = arith.constant 3 : index
    %c0_76 = arith.constant 0 : index
    %c0_77 = arith.constant 0 : index
    %111 = vector.load %arg10[%c3_75, %c0_76, %c0_77] : memref<6x128x64xbf16, #tpu.memory_space<vmem>>, vector<1x128x64xbf16>
    %112 = vector.shape_cast %111 : vector<1x128x64xbf16> to vector<128x64xbf16>
    %cst_78 = arith.constant dense<0.000000e+00> : vector<80x64xf32>
    %113 = tpu.matmul %110, %112, %cst_78 {dimension_numbers = #tpu.dot_dimension_numbers<[1], [0], [0], [1], [0, 0, 1, 1], [], []>} : vector<80x128xbf16>, vector<128x64xbf16>, vector<80x64xf32> -> vector<80x64xf32>
    %114 = arith.addf %94, %113 : vector<80x64xf32>
    %c3_79 = arith.constant 3 : index
    %c0_80 = arith.constant 0 : index
    %c0_81 = arith.constant 0 : index
    %115 = vector.load %arg11[%c3_79, %c0_80, %c0_81] : memref<6x1x64xf32, #tpu.memory_space<vmem>>, vector<1x1x64xf32>
    %116 = vector.shape_cast %115 : vector<1x1x64xf32> to vector<1x64xf32>
    %117 = vector.broadcast %116 : vector<1x64xf32> to vector<80x64xf32>
    %118 = arith.addf %114, %117 : vector<80x64xf32>
    %119 = arith.truncf %118 : vector<80x64xf32> to vector<80x64xbf16>
    %c4 = arith.constant 4 : index
    %c0_82 = arith.constant 0 : index
    %c0_83 = arith.constant 0 : index
    %120 = vector.load %arg8[%c4, %c0_82, %c0_83] : memref<6x64x128xbf16, #tpu.memory_space<vmem>>, vector<1x64x128xbf16>
    %121 = vector.shape_cast %120 : vector<1x64x128xbf16> to vector<64x128xbf16>
    %cst_84 = arith.constant dense<0.000000e+00> : vector<80x128xf32>
    %122 = tpu.matmul %119, %121, %cst_84 {dimension_numbers = #tpu.dot_dimension_numbers<[1], [0], [0], [1], [0, 0, 1, 1], [], []>} : vector<80x64xbf16>, vector<64x128xbf16>, vector<80x128xf32> -> vector<80x128xf32>
    %c4_85 = arith.constant 4 : index
    %c0_86 = arith.constant 0 : index
    %c0_87 = arith.constant 0 : index
    %123 = vector.load %arg9[%c4_85, %c0_86, %c0_87] : memref<6x1x128xf32, #tpu.memory_space<vmem>>, vector<1x1x128xf32>
    %124 = vector.shape_cast %123 : vector<1x1x128xf32> to vector<1x128xf32>
    %125 = vector.broadcast %124 : vector<1x128xf32> to vector<80x128xf32>
    %126 = arith.addf %122, %125 : vector<80x128xf32>
    %cst_88 = arith.constant 0.000000e+00 : f32
    %127 = vector.broadcast %cst_88 : f32 to vector<80x128xf32>
    %128 = arith.cmpf oge, %126, %127 : vector<80x128xf32>
    %c4_89 = arith.constant 4 : index
    %c0_90 = arith.constant 0 : index
    %c0_91 = arith.constant 0 : index
    %129 = vector.load %arg12[%c4_89, %c0_90, %c0_91] : memref<6x1x128xf32, #tpu.memory_space<vmem>>, vector<1x1x128xf32>
    %130 = vector.shape_cast %129 : vector<1x1x128xf32> to vector<1x128xf32>
    %131 = vector.broadcast %130 : vector<1x128xf32> to vector<80x128xf32>
    %132 = arith.mulf %131, %126 : vector<80x128xf32>
    %133 = arith.select %128, %126, %132 : vector<80x128xi1>, vector<80x128xf32>
    %134 = arith.truncf %133 : vector<80x128xf32> to vector<80x128xbf16>
    %c4_92 = arith.constant 4 : index
    %c0_93 = arith.constant 0 : index
    %c0_94 = arith.constant 0 : index
    %135 = vector.load %arg10[%c4_92, %c0_93, %c0_94] : memref<6x128x64xbf16, #tpu.memory_space<vmem>>, vector<1x128x64xbf16>
    %136 = vector.shape_cast %135 : vector<1x128x64xbf16> to vector<128x64xbf16>
    %cst_95 = arith.constant dense<0.000000e+00> : vector<80x64xf32>
    %137 = tpu.matmul %134, %136, %cst_95 {dimension_numbers = #tpu.dot_dimension_numbers<[1], [0], [0], [1], [0, 0, 1, 1], [], []>} : vector<80x128xbf16>, vector<128x64xbf16>, vector<80x64xf32> -> vector<80x64xf32>
    %138 = arith.addf %118, %137 : vector<80x64xf32>
    %c4_96 = arith.constant 4 : index
    %c0_97 = arith.constant 0 : index
    %c0_98 = arith.constant 0 : index
    %139 = vector.load %arg11[%c4_96, %c0_97, %c0_98] : memref<6x1x64xf32, #tpu.memory_space<vmem>>, vector<1x1x64xf32>
    %140 = vector.shape_cast %139 : vector<1x1x64xf32> to vector<1x64xf32>
    %141 = vector.broadcast %140 : vector<1x64xf32> to vector<80x64xf32>
    %142 = arith.addf %138, %141 : vector<80x64xf32>
    %143 = arith.truncf %142 : vector<80x64xf32> to vector<80x64xbf16>
    %c5 = arith.constant 5 : index
    %c0_99 = arith.constant 0 : index
    %c0_100 = arith.constant 0 : index
    %144 = vector.load %arg8[%c5, %c0_99, %c0_100] : memref<6x64x128xbf16, #tpu.memory_space<vmem>>, vector<1x64x128xbf16>
    %145 = vector.shape_cast %144 : vector<1x64x128xbf16> to vector<64x128xbf16>
    %cst_101 = arith.constant dense<0.000000e+00> : vector<80x128xf32>
    %146 = tpu.matmul %143, %145, %cst_101 {dimension_numbers = #tpu.dot_dimension_numbers<[1], [0], [0], [1], [0, 0, 1, 1], [], []>} : vector<80x64xbf16>, vector<64x128xbf16>, vector<80x128xf32> -> vector<80x128xf32>
    %c5_102 = arith.constant 5 : index
    %c0_103 = arith.constant 0 : index
    %c0_104 = arith.constant 0 : index
    %147 = vector.load %arg9[%c5_102, %c0_103, %c0_104] : memref<6x1x128xf32, #tpu.memory_space<vmem>>, vector<1x1x128xf32>
    %148 = vector.shape_cast %147 : vector<1x1x128xf32> to vector<1x128xf32>
    %149 = vector.broadcast %148 : vector<1x128xf32> to vector<80x128xf32>
    %150 = arith.addf %146, %149 : vector<80x128xf32>
    %cst_105 = arith.constant 0.000000e+00 : f32
    %151 = vector.broadcast %cst_105 : f32 to vector<80x128xf32>
    %152 = arith.cmpf oge, %150, %151 : vector<80x128xf32>
    %c5_106 = arith.constant 5 : index
    %c0_107 = arith.constant 0 : index
    %c0_108 = arith.constant 0 : index
    %153 = vector.load %arg12[%c5_106, %c0_107, %c0_108] : memref<6x1x128xf32, #tpu.memory_space<vmem>>, vector<1x1x128xf32>
    %154 = vector.shape_cast %153 : vector<1x1x128xf32> to vector<1x128xf32>
    %155 = vector.broadcast %154 : vector<1x128xf32> to vector<80x128xf32>
    %156 = arith.mulf %155, %150 : vector<80x128xf32>
    %157 = arith.select %152, %150, %156 : vector<80x128xi1>, vector<80x128xf32>
    %158 = arith.truncf %157 : vector<80x128xf32> to vector<80x128xbf16>
    %c5_109 = arith.constant 5 : index
    %c0_110 = arith.constant 0 : index
    %c0_111 = arith.constant 0 : index
    %159 = vector.load %arg10[%c5_109, %c0_110, %c0_111] : memref<6x128x64xbf16, #tpu.memory_space<vmem>>, vector<1x128x64xbf16>
    %160 = vector.shape_cast %159 : vector<1x128x64xbf16> to vector<128x64xbf16>
    %cst_112 = arith.constant dense<0.000000e+00> : vector<80x64xf32>
    %161 = tpu.matmul %158, %160, %cst_112 {dimension_numbers = #tpu.dot_dimension_numbers<[1], [0], [0], [1], [0, 0, 1, 1], [], []>} : vector<80x128xbf16>, vector<128x64xbf16>, vector<80x64xf32> -> vector<80x64xf32>
    %162 = arith.addf %142, %161 : vector<80x64xf32>
    %c5_113 = arith.constant 5 : index
    %c0_114 = arith.constant 0 : index
    %c0_115 = arith.constant 0 : index
    %163 = vector.load %arg11[%c5_113, %c0_114, %c0_115] : memref<6x1x64xf32, #tpu.memory_space<vmem>>, vector<1x1x64xf32>
    %164 = vector.shape_cast %163 : vector<1x1x64xf32> to vector<1x64xf32>
    %165 = vector.broadcast %164 : vector<1x64xf32> to vector<80x64xf32>
    %166 = arith.addf %162, %165 : vector<80x64xf32>
    %167 = arith.truncf %166 : vector<80x64xf32> to vector<80x64xbf16>
    %c0_116 = arith.constant 0 : index
    %c0_117 = arith.constant 0 : index
    %168 = vector.load %arg13[%c0_116, %c0_117] : memref<64x256xbf16, #tpu.memory_space<vmem>>, vector<64x256xbf16>
    %cst_118 = arith.constant dense<0.000000e+00> : vector<80x256xf32>
    %169 = tpu.matmul %167, %168, %cst_118 {dimension_numbers = #tpu.dot_dimension_numbers<[1], [0], [0], [1], [0, 0, 1, 1], [], []>} : vector<80x64xbf16>, vector<64x256xbf16>, vector<80x256xf32> -> vector<80x256xf32>
    %c0_119 = arith.constant 0 : index
    %c0_120 = arith.constant 0 : index
    %170 = vector.load %arg14[%c0_119, %c0_120] : memref<1x256xf32, #tpu.memory_space<vmem>>, vector<1x256xf32>
    %171 = vector.broadcast %170 : vector<1x256xf32> to vector<80x256xf32>
    %172 = arith.addf %169, %171 : vector<80x256xf32>
    %173 = vector.extract_strided_slice %172 {offsets = [0, 0], sizes = [80, 128], strides = [1, 1]} : vector<80x256xf32> to vector<80x128xf32>
    %174 = math.tanh %173 : vector<80x128xf32>
    %175 = vector.extract_strided_slice %172 {offsets = [0, 128], sizes = [80, 128], strides = [1, 1]} : vector<80x256xf32> to vector<80x128xf32>
    %176 = arith.negf %175 : vector<80x128xf32>
    %177 = math.exp %176 : vector<80x128xf32>
    %cst_121 = arith.constant 1.000000e+00 : f32
    %178 = vector.broadcast %cst_121 : f32 to vector<80x128xf32>
    %179 = arith.addf %178, %177 : vector<80x128xf32>
    %180 = arith.divf %178, %179 : vector<80x128xf32>
    %181 = arith.mulf %174, %180 : vector<80x128xf32>
    %c0_122 = arith.constant 0 : index
    %c0_123 = arith.constant 0 : index
    %182 = vector.load %arg2[%c0_122, %c0_123] : memref<80x128xf32, #tpu.memory_space<vmem>>, vector<80x128xf32>
    %cst_124 = arith.constant 0.000000e+00 : f32
    %183 = vector.broadcast %cst_124 : f32 to vector<80x128xf32>
    %cst_125 = arith.constant 0.000000e+00 : f32
    %184 = vector.broadcast %cst_125 : f32 to vector<80x128xf32>
    %185 = vector.extract_strided_slice %181 {offsets = [0, 0], sizes = [80, 1], strides = [1, 1]} : vector<80x128xf32> to vector<80x1xf32>
    %186 = vector.broadcast %185 : vector<80x1xf32> to vector<80x128xf32>
    %187 = arith.mulf %182, %186 : vector<80x128xf32>
    %188 = arith.addf %183, %187 : vector<80x128xf32>
    %189 = vector.extract_strided_slice %181 {offsets = [0, 33], sizes = [80, 1], strides = [1, 1]} : vector<80x128xf32> to vector<80x1xf32>
    %190 = vector.broadcast %189 : vector<80x1xf32> to vector<80x128xf32>
    %191 = arith.mulf %182, %190 : vector<80x128xf32>
    %192 = arith.addf %184, %191 : vector<80x128xf32>
    %cst_126 = arith.constant 0.000000e+00 : f32
    %193 = vector.broadcast %cst_126 : f32 to vector<80x1xf32>
    %194 = vector.extract_strided_slice %182 {offsets = [0, 1], sizes = [80, 127], strides = [1, 1]} : vector<80x128xf32> to vector<80x127xf32>
    %195 = tpu.concatenate %194, %193 in 1 : vector<80x127xf32>, vector<80x1xf32> -> vector<80x128xf32>
    %196 = vector.extract_strided_slice %181 {offsets = [0, 1], sizes = [80, 1], strides = [1, 1]} : vector<80x128xf32> to vector<80x1xf32>
    %197 = vector.broadcast %196 : vector<80x1xf32> to vector<80x128xf32>
    %198 = arith.mulf %195, %197 : vector<80x128xf32>
    %199 = arith.addf %188, %198 : vector<80x128xf32>
    %200 = vector.extract_strided_slice %181 {offsets = [0, 34], sizes = [80, 1], strides = [1, 1]} : vector<80x128xf32> to vector<80x1xf32>
    %201 = vector.broadcast %200 : vector<80x1xf32> to vector<80x128xf32>
    %202 = arith.mulf %195, %201 : vector<80x128xf32>
    %203 = arith.addf %192, %202 : vector<80x128xf32>
    %cst_127 = arith.constant 0.000000e+00 : f32
    %204 = vector.broadcast %cst_127 : f32 to vector<80x2xf32>
    %205 = vector.extract_strided_slice %182 {offsets = [0, 2], sizes = [80, 126], strides = [1, 1]} : vector<80x128xf32> to vector<80x126xf32>
    %206 = tpu.concatenate %205, %204 in 1 : vector<80x126xf32>, vector<80x2xf32> -> vector<80x128xf32>
    %207 = vector.extract_strided_slice %181 {offsets = [0, 2], sizes = [80, 1], strides = [1, 1]} : vector<80x128xf32> to vector<80x1xf32>
    %208 = vector.broadcast %207 : vector<80x1xf32> to vector<80x128xf32>
    %209 = arith.mulf %206, %208 : vector<80x128xf32>
    %210 = arith.addf %199, %209 : vector<80x128xf32>
    %211 = vector.extract_strided_slice %181 {offsets = [0, 35], sizes = [80, 1], strides = [1, 1]} : vector<80x128xf32> to vector<80x1xf32>
    %212 = vector.broadcast %211 : vector<80x1xf32> to vector<80x128xf32>
    %213 = arith.mulf %206, %212 : vector<80x128xf32>
    %214 = arith.addf %203, %213 : vector<80x128xf32>
    %cst_128 = arith.constant 0.000000e+00 : f32
    %215 = vector.broadcast %cst_128 : f32 to vector<80x3xf32>
    %216 = vector.extract_strided_slice %182 {offsets = [0, 3], sizes = [80, 125], strides = [1, 1]} : vector<80x128xf32> to vector<80x125xf32>
    %217 = tpu.concatenate %216, %215 in 1 : vector<80x125xf32>, vector<80x3xf32> -> vector<80x128xf32>
    %218 = vector.extract_strided_slice %181 {offsets = [0, 3], sizes = [80, 1], strides = [1, 1]} : vector<80x128xf32> to vector<80x1xf32>
    %219 = vector.broadcast %218 : vector<80x1xf32> to vector<80x128xf32>
    %220 = arith.mulf %217, %219 : vector<80x128xf32>
    %221 = arith.addf %210, %220 : vector<80x128xf32>
    %222 = vector.extract_strided_slice %181 {offsets = [0, 36], sizes = [80, 1], strides = [1, 1]} : vector<80x128xf32> to vector<80x1xf32>
    %223 = vector.broadcast %222 : vector<80x1xf32> to vector<80x128xf32>
    %224 = arith.mulf %217, %223 : vector<80x128xf32>
    %225 = arith.addf %214, %224 : vector<80x128xf32>
    %cst_129 = arith.constant 0.000000e+00 : f32
    %226 = vector.broadcast %cst_129 : f32 to vector<80x4xf32>
    %227 = vector.extract_strided_slice %182 {offsets = [0, 4], sizes = [80, 124], strides = [1, 1]} : vector<80x128xf32> to vector<80x124xf32>
    %228 = tpu.concatenate %227, %226 in 1 : vector<80x124xf32>, vector<80x4xf32> -> vector<80x128xf32>
    %229 = vector.extract_strided_slice %181 {offsets = [0, 4], sizes = [80, 1], strides = [1, 1]} : vector<80x128xf32> to vector<80x1xf32>
    %230 = vector.broadcast %229 : vector<80x1xf32> to vector<80x128xf32>
    %231 = arith.mulf %228, %230 : vector<80x128xf32>
    %232 = arith.addf %221, %231 : vector<80x128xf32>
    %233 = vector.extract_strided_slice %181 {offsets = [0, 37], sizes = [80, 1], strides = [1, 1]} : vector<80x128xf32> to vector<80x1xf32>
    %234 = vector.broadcast %233 : vector<80x1xf32> to vector<80x128xf32>
    %235 = arith.mulf %228, %234 : vector<80x128xf32>
    %236 = arith.addf %225, %235 : vector<80x128xf32>
    %cst_130 = arith.constant 0.000000e+00 : f32
    %237 = vector.broadcast %cst_130 : f32 to vector<80x5xf32>
    %238 = vector.extract_strided_slice %182 {offsets = [0, 5], sizes = [80, 123], strides = [1, 1]} : vector<80x128xf32> to vector<80x123xf32>
    %239 = tpu.concatenate %238, %237 in 1 : vector<80x123xf32>, vector<80x5xf32> -> vector<80x128xf32>
    %240 = vector.extract_strided_slice %181 {offsets = [0, 5], sizes = [80, 1], strides = [1, 1]} : vector<80x128xf32> to vector<80x1xf32>
    %241 = vector.broadcast %240 : vector<80x1xf32> to vector<80x128xf32>
    %242 = arith.mulf %239, %241 : vector<80x128xf32>
    %243 = arith.addf %232, %242 : vector<80x128xf32>
    %244 = vector.extract_strided_slice %181 {offsets = [0, 38], sizes = [80, 1], strides = [1, 1]} : vector<80x128xf32> to vector<80x1xf32>
    %245 = vector.broadcast %244 : vector<80x1xf32> to vector<80x128xf32>
    %246 = arith.mulf %239, %245 : vector<80x128xf32>
    %247 = arith.addf %236, %246 : vector<80x128xf32>
    %cst_131 = arith.constant 0.000000e+00 : f32
    %248 = vector.broadcast %cst_131 : f32 to vector<80x6xf32>
    %249 = vector.extract_strided_slice %182 {offsets = [0, 6], sizes = [80, 122], strides = [1, 1]} : vector<80x128xf32> to vector<80x122xf32>
    %250 = tpu.concatenate %249, %248 in 1 : vector<80x122xf32>, vector<80x6xf32> -> vector<80x128xf32>
    %251 = vector.extract_strided_slice %181 {offsets = [0, 6], sizes = [80, 1], strides = [1, 1]} : vector<80x128xf32> to vector<80x1xf32>
    %252 = vector.broadcast %251 : vector<80x1xf32> to vector<80x128xf32>
    %253 = arith.mulf %250, %252 : vector<80x128xf32>
    %254 = arith.addf %243, %253 : vector<80x128xf32>
    %255 = vector.extract_strided_slice %181 {offsets = [0, 39], sizes = [80, 1], strides = [1, 1]} : vector<80x128xf32> to vector<80x1xf32>
    %256 = vector.broadcast %255 : vector<80x1xf32> to vector<80x128xf32>
    %257 = arith.mulf %250, %256 : vector<80x128xf32>
    %258 = arith.addf %247, %257 : vector<80x128xf32>
    %cst_132 = arith.constant 0.000000e+00 : f32
    %259 = vector.broadcast %cst_132 : f32 to vector<80x7xf32>
    %260 = vector.extract_strided_slice %182 {offsets = [0, 7], sizes = [80, 121], strides = [1, 1]} : vector<80x128xf32> to vector<80x121xf32>
    %261 = tpu.concatenate %260, %259 in 1 : vector<80x121xf32>, vector<80x7xf32> -> vector<80x128xf32>
    %262 = vector.extract_strided_slice %181 {offsets = [0, 7], sizes = [80, 1], strides = [1, 1]} : vector<80x128xf32> to vector<80x1xf32>
    %263 = vector.broadcast %262 : vector<80x1xf32> to vector<80x128xf32>
    %264 = arith.mulf %261, %263 : vector<80x128xf32>
    %265 = arith.addf %254, %264 : vector<80x128xf32>
    %266 = vector.extract_strided_slice %181 {offsets = [0, 40], sizes = [80, 1], strides = [1, 1]} : vector<80x128xf32> to vector<80x1xf32>
    %267 = vector.broadcast %266 : vector<80x1xf32> to vector<80x128xf32>
    %268 = arith.mulf %261, %267 : vector<80x128xf32>
    %269 = arith.addf %258, %268 : vector<80x128xf32>
    %cst_133 = arith.constant 0.000000e+00 : f32
    %270 = vector.broadcast %cst_133 : f32 to vector<80x8xf32>
    %271 = vector.extract_strided_slice %182 {offsets = [0, 8], sizes = [80, 120], strides = [1, 1]} : vector<80x128xf32> to vector<80x120xf32>
    %272 = tpu.concatenate %271, %270 in 1 : vector<80x120xf32>, vector<80x8xf32> -> vector<80x128xf32>
    %273 = vector.extract_strided_slice %181 {offsets = [0, 8], sizes = [80, 1], strides = [1, 1]} : vector<80x128xf32> to vector<80x1xf32>
    %274 = vector.broadcast %273 : vector<80x1xf32> to vector<80x128xf32>
    %275 = arith.mulf %272, %274 : vector<80x128xf32>
    %276 = arith.addf %265, %275 : vector<80x128xf32>
    %277 = vector.extract_strided_slice %181 {offsets = [0, 41], sizes = [80, 1], strides = [1, 1]} : vector<80x128xf32> to vector<80x1xf32>
    %278 = vector.broadcast %277 : vector<80x1xf32> to vector<80x128xf32>
    %279 = arith.mulf %272, %278 : vector<80x128xf32>
    %280 = arith.addf %269, %279 : vector<80x128xf32>
    %cst_134 = arith.constant 0.000000e+00 : f32
    %281 = vector.broadcast %cst_134 : f32 to vector<80x9xf32>
    %282 = vector.extract_strided_slice %182 {offsets = [0, 9], sizes = [80, 119], strides = [1, 1]} : vector<80x128xf32> to vector<80x119xf32>
    %283 = tpu.concatenate %282, %281 in 1 : vector<80x119xf32>, vector<80x9xf32> -> vector<80x128xf32>
    %284 = vector.extract_strided_slice %181 {offsets = [0, 9], sizes = [80, 1], strides = [1, 1]} : vector<80x128xf32> to vector<80x1xf32>
    %285 = vector.broadcast %284 : vector<80x1xf32> to vector<80x128xf32>
    %286 = arith.mulf %283, %285 : vector<80x128xf32>
    %287 = arith.addf %276, %286 : vector<80x128xf32>
    %288 = vector.extract_strided_slice %181 {offsets = [0, 42], sizes = [80, 1], strides = [1, 1]} : vector<80x128xf32> to vector<80x1xf32>
    %289 = vector.broadcast %288 : vector<80x1xf32> to vector<80x128xf32>
    %290 = arith.mulf %283, %289 : vector<80x128xf32>
    %291 = arith.addf %280, %290 : vector<80x128xf32>
    %cst_135 = arith.constant 0.000000e+00 : f32
    %292 = vector.broadcast %cst_135 : f32 to vector<80x10xf32>
    %293 = vector.extract_strided_slice %182 {offsets = [0, 10], sizes = [80, 118], strides = [1, 1]} : vector<80x128xf32> to vector<80x118xf32>
    %294 = tpu.concatenate %293, %292 in 1 : vector<80x118xf32>, vector<80x10xf32> -> vector<80x128xf32>
    %295 = vector.extract_strided_slice %181 {offsets = [0, 10], sizes = [80, 1], strides = [1, 1]} : vector<80x128xf32> to vector<80x1xf32>
    %296 = vector.broadcast %295 : vector<80x1xf32> to vector<80x128xf32>
    %297 = arith.mulf %294, %296 : vector<80x128xf32>
    %298 = arith.addf %287, %297 : vector<80x128xf32>
    %299 = vector.extract_strided_slice %181 {offsets = [0, 43], sizes = [80, 1], strides = [1, 1]} : vector<80x128xf32> to vector<80x1xf32>
    %300 = vector.broadcast %299 : vector<80x1xf32> to vector<80x128xf32>
    %301 = arith.mulf %294, %300 : vector<80x128xf32>
    %302 = arith.addf %291, %301 : vector<80x128xf32>
    %cst_136 = arith.constant 0.000000e+00 : f32
    %303 = vector.broadcast %cst_136 : f32 to vector<80x11xf32>
    %304 = vector.extract_strided_slice %182 {offsets = [0, 11], sizes = [80, 117], strides = [1, 1]} : vector<80x128xf32> to vector<80x117xf32>
    %305 = tpu.concatenate %304, %303 in 1 : vector<80x117xf32>, vector<80x11xf32> -> vector<80x128xf32>
    %306 = vector.extract_strided_slice %181 {offsets = [0, 11], sizes = [80, 1], strides = [1, 1]} : vector<80x128xf32> to vector<80x1xf32>
    %307 = vector.broadcast %306 : vector<80x1xf32> to vector<80x128xf32>
    %308 = arith.mulf %305, %307 : vector<80x128xf32>
    %309 = arith.addf %298, %308 : vector<80x128xf32>
    %310 = vector.extract_strided_slice %181 {offsets = [0, 44], sizes = [80, 1], strides = [1, 1]} : vector<80x128xf32> to vector<80x1xf32>
    %311 = vector.broadcast %310 : vector<80x1xf32> to vector<80x128xf32>
    %312 = arith.mulf %305, %311 : vector<80x128xf32>
    %313 = arith.addf %302, %312 : vector<80x128xf32>
    %cst_137 = arith.constant 0.000000e+00 : f32
    %314 = vector.broadcast %cst_137 : f32 to vector<80x12xf32>
    %315 = vector.extract_strided_slice %182 {offsets = [0, 12], sizes = [80, 116], strides = [1, 1]} : vector<80x128xf32> to vector<80x116xf32>
    %316 = tpu.concatenate %315, %314 in 1 : vector<80x116xf32>, vector<80x12xf32> -> vector<80x128xf32>
    %317 = vector.extract_strided_slice %181 {offsets = [0, 12], sizes = [80, 1], strides = [1, 1]} : vector<80x128xf32> to vector<80x1xf32>
    %318 = vector.broadcast %317 : vector<80x1xf32> to vector<80x128xf32>
    %319 = arith.mulf %316, %318 : vector<80x128xf32>
    %320 = arith.addf %309, %319 : vector<80x128xf32>
    %321 = vector.extract_strided_slice %181 {offsets = [0, 45], sizes = [80, 1], strides = [1, 1]} : vector<80x128xf32> to vector<80x1xf32>
    %322 = vector.broadcast %321 : vector<80x1xf32> to vector<80x128xf32>
    %323 = arith.mulf %316, %322 : vector<80x128xf32>
    %324 = arith.addf %313, %323 : vector<80x128xf32>
    %cst_138 = arith.constant 0.000000e+00 : f32
    %325 = vector.broadcast %cst_138 : f32 to vector<80x13xf32>
    %326 = vector.extract_strided_slice %182 {offsets = [0, 13], sizes = [80, 115], strides = [1, 1]} : vector<80x128xf32> to vector<80x115xf32>
    %327 = tpu.concatenate %326, %325 in 1 : vector<80x115xf32>, vector<80x13xf32> -> vector<80x128xf32>
    %328 = vector.extract_strided_slice %181 {offsets = [0, 13], sizes = [80, 1], strides = [1, 1]} : vector<80x128xf32> to vector<80x1xf32>
    %329 = vector.broadcast %328 : vector<80x1xf32> to vector<80x128xf32>
    %330 = arith.mulf %327, %329 : vector<80x128xf32>
    %331 = arith.addf %320, %330 : vector<80x128xf32>
    %332 = vector.extract_strided_slice %181 {offsets = [0, 46], sizes = [80, 1], strides = [1, 1]} : vector<80x128xf32> to vector<80x1xf32>
    %333 = vector.broadcast %332 : vector<80x1xf32> to vector<80x128xf32>
    %334 = arith.mulf %327, %333 : vector<80x128xf32>
    %335 = arith.addf %324, %334 : vector<80x128xf32>
    %cst_139 = arith.constant 0.000000e+00 : f32
    %336 = vector.broadcast %cst_139 : f32 to vector<80x14xf32>
    %337 = vector.extract_strided_slice %182 {offsets = [0, 14], sizes = [80, 114], strides = [1, 1]} : vector<80x128xf32> to vector<80x114xf32>
    %338 = tpu.concatenate %337, %336 in 1 : vector<80x114xf32>, vector<80x14xf32> -> vector<80x128xf32>
    %339 = vector.extract_strided_slice %181 {offsets = [0, 14], sizes = [80, 1], strides = [1, 1]} : vector<80x128xf32> to vector<80x1xf32>
    %340 = vector.broadcast %339 : vector<80x1xf32> to vector<80x128xf32>
    %341 = arith.mulf %338, %340 : vector<80x128xf32>
    %342 = arith.addf %331, %341 : vector<80x128xf32>
    %343 = vector.extract_strided_slice %181 {offsets = [0, 47], sizes = [80, 1], strides = [1, 1]} : vector<80x128xf32> to vector<80x1xf32>
    %344 = vector.broadcast %343 : vector<80x1xf32> to vector<80x128xf32>
    %345 = arith.mulf %338, %344 : vector<80x128xf32>
    %346 = arith.addf %335, %345 : vector<80x128xf32>
    %cst_140 = arith.constant 0.000000e+00 : f32
    %347 = vector.broadcast %cst_140 : f32 to vector<80x15xf32>
    %348 = vector.extract_strided_slice %182 {offsets = [0, 15], sizes = [80, 113], strides = [1, 1]} : vector<80x128xf32> to vector<80x113xf32>
    %349 = tpu.concatenate %348, %347 in 1 : vector<80x113xf32>, vector<80x15xf32> -> vector<80x128xf32>
    %350 = vector.extract_strided_slice %181 {offsets = [0, 15], sizes = [80, 1], strides = [1, 1]} : vector<80x128xf32> to vector<80x1xf32>
    %351 = vector.broadcast %350 : vector<80x1xf32> to vector<80x128xf32>
    %352 = arith.mulf %349, %351 : vector<80x128xf32>
    %353 = arith.addf %342, %352 : vector<80x128xf32>
    %354 = vector.extract_strided_slice %181 {offsets = [0, 48], sizes = [80, 1], strides = [1, 1]} : vector<80x128xf32> to vector<80x1xf32>
    %355 = vector.broadcast %354 : vector<80x1xf32> to vector<80x128xf32>
    %356 = arith.mulf %349, %355 : vector<80x128xf32>
    %357 = arith.addf %346, %356 : vector<80x128xf32>
    %cst_141 = arith.constant 0.000000e+00 : f32
    %358 = vector.broadcast %cst_141 : f32 to vector<80x16xf32>
    %359 = vector.extract_strided_slice %182 {offsets = [0, 16], sizes = [80, 112], strides = [1, 1]} : vector<80x128xf32> to vector<80x112xf32>
    %360 = tpu.concatenate %359, %358 in 1 : vector<80x112xf32>, vector<80x16xf32> -> vector<80x128xf32>
    %361 = vector.extract_strided_slice %181 {offsets = [0, 16], sizes = [80, 1], strides = [1, 1]} : vector<80x128xf32> to vector<80x1xf32>
    %362 = vector.broadcast %361 : vector<80x1xf32> to vector<80x128xf32>
    %363 = arith.mulf %360, %362 : vector<80x128xf32>
    %364 = arith.addf %353, %363 : vector<80x128xf32>
    %365 = vector.extract_strided_slice %181 {offsets = [0, 49], sizes = [80, 1], strides = [1, 1]} : vector<80x128xf32> to vector<80x1xf32>
    %366 = vector.broadcast %365 : vector<80x1xf32> to vector<80x128xf32>
    %367 = arith.mulf %360, %366 : vector<80x128xf32>
    %368 = arith.addf %357, %367 : vector<80x128xf32>
    %cst_142 = arith.constant 0.000000e+00 : f32
    %369 = vector.broadcast %cst_142 : f32 to vector<80x17xf32>
    %370 = vector.extract_strided_slice %182 {offsets = [0, 17], sizes = [80, 111], strides = [1, 1]} : vector<80x128xf32> to vector<80x111xf32>
    %371 = tpu.concatenate %370, %369 in 1 : vector<80x111xf32>, vector<80x17xf32> -> vector<80x128xf32>
    %372 = vector.extract_strided_slice %181 {offsets = [0, 17], sizes = [80, 1], strides = [1, 1]} : vector<80x128xf32> to vector<80x1xf32>
    %373 = vector.broadcast %372 : vector<80x1xf32> to vector<80x128xf32>
    %374 = arith.mulf %371, %373 : vector<80x128xf32>
    %375 = arith.addf %364, %374 : vector<80x128xf32>
    %376 = vector.extract_strided_slice %181 {offsets = [0, 50], sizes = [80, 1], strides = [1, 1]} : vector<80x128xf32> to vector<80x1xf32>
    %377 = vector.broadcast %376 : vector<80x1xf32> to vector<80x128xf32>
    %378 = arith.mulf %371, %377 : vector<80x128xf32>
    %379 = arith.addf %368, %378 : vector<80x128xf32>
    %cst_143 = arith.constant 0.000000e+00 : f32
    %380 = vector.broadcast %cst_143 : f32 to vector<80x18xf32>
    %381 = vector.extract_strided_slice %182 {offsets = [0, 18], sizes = [80, 110], strides = [1, 1]} : vector<80x128xf32> to vector<80x110xf32>
    %382 = tpu.concatenate %381, %380 in 1 : vector<80x110xf32>, vector<80x18xf32> -> vector<80x128xf32>
    %383 = vector.extract_strided_slice %181 {offsets = [0, 18], sizes = [80, 1], strides = [1, 1]} : vector<80x128xf32> to vector<80x1xf32>
    %384 = vector.broadcast %383 : vector<80x1xf32> to vector<80x128xf32>
    %385 = arith.mulf %382, %384 : vector<80x128xf32>
    %386 = arith.addf %375, %385 : vector<80x128xf32>
    %387 = vector.extract_strided_slice %181 {offsets = [0, 51], sizes = [80, 1], strides = [1, 1]} : vector<80x128xf32> to vector<80x1xf32>
    %388 = vector.broadcast %387 : vector<80x1xf32> to vector<80x128xf32>
    %389 = arith.mulf %382, %388 : vector<80x128xf32>
    %390 = arith.addf %379, %389 : vector<80x128xf32>
    %cst_144 = arith.constant 0.000000e+00 : f32
    %391 = vector.broadcast %cst_144 : f32 to vector<80x19xf32>
    %392 = vector.extract_strided_slice %182 {offsets = [0, 19], sizes = [80, 109], strides = [1, 1]} : vector<80x128xf32> to vector<80x109xf32>
    %393 = tpu.concatenate %392, %391 in 1 : vector<80x109xf32>, vector<80x19xf32> -> vector<80x128xf32>
    %394 = vector.extract_strided_slice %181 {offsets = [0, 19], sizes = [80, 1], strides = [1, 1]} : vector<80x128xf32> to vector<80x1xf32>
    %395 = vector.broadcast %394 : vector<80x1xf32> to vector<80x128xf32>
    %396 = arith.mulf %393, %395 : vector<80x128xf32>
    %397 = arith.addf %386, %396 : vector<80x128xf32>
    %398 = vector.extract_strided_slice %181 {offsets = [0, 52], sizes = [80, 1], strides = [1, 1]} : vector<80x128xf32> to vector<80x1xf32>
    %399 = vector.broadcast %398 : vector<80x1xf32> to vector<80x128xf32>
    %400 = arith.mulf %393, %399 : vector<80x128xf32>
    %401 = arith.addf %390, %400 : vector<80x128xf32>
    %cst_145 = arith.constant 0.000000e+00 : f32
    %402 = vector.broadcast %cst_145 : f32 to vector<80x20xf32>
    %403 = vector.extract_strided_slice %182 {offsets = [0, 20], sizes = [80, 108], strides = [1, 1]} : vector<80x128xf32> to vector<80x108xf32>
    %404 = tpu.concatenate %403, %402 in 1 : vector<80x108xf32>, vector<80x20xf32> -> vector<80x128xf32>
    %405 = vector.extract_strided_slice %181 {offsets = [0, 20], sizes = [80, 1], strides = [1, 1]} : vector<80x128xf32> to vector<80x1xf32>
    %406 = vector.broadcast %405 : vector<80x1xf32> to vector<80x128xf32>
    %407 = arith.mulf %404, %406 : vector<80x128xf32>
    %408 = arith.addf %397, %407 : vector<80x128xf32>
    %409 = vector.extract_strided_slice %181 {offsets = [0, 53], sizes = [80, 1], strides = [1, 1]} : vector<80x128xf32> to vector<80x1xf32>
    %410 = vector.broadcast %409 : vector<80x1xf32> to vector<80x128xf32>
    %411 = arith.mulf %404, %410 : vector<80x128xf32>
    %412 = arith.addf %401, %411 : vector<80x128xf32>
    %cst_146 = arith.constant 0.000000e+00 : f32
    %413 = vector.broadcast %cst_146 : f32 to vector<80x21xf32>
    %414 = vector.extract_strided_slice %182 {offsets = [0, 21], sizes = [80, 107], strides = [1, 1]} : vector<80x128xf32> to vector<80x107xf32>
    %415 = tpu.concatenate %414, %413 in 1 : vector<80x107xf32>, vector<80x21xf32> -> vector<80x128xf32>
    %416 = vector.extract_strided_slice %181 {offsets = [0, 21], sizes = [80, 1], strides = [1, 1]} : vector<80x128xf32> to vector<80x1xf32>
    %417 = vector.broadcast %416 : vector<80x1xf32> to vector<80x128xf32>
    %418 = arith.mulf %415, %417 : vector<80x128xf32>
    %419 = arith.addf %408, %418 : vector<80x128xf32>
    %420 = vector.extract_strided_slice %181 {offsets = [0, 54], sizes = [80, 1], strides = [1, 1]} : vector<80x128xf32> to vector<80x1xf32>
    %421 = vector.broadcast %420 : vector<80x1xf32> to vector<80x128xf32>
    %422 = arith.mulf %415, %421 : vector<80x128xf32>
    %423 = arith.addf %412, %422 : vector<80x128xf32>
    %cst_147 = arith.constant 0.000000e+00 : f32
    %424 = vector.broadcast %cst_147 : f32 to vector<80x22xf32>
    %425 = vector.extract_strided_slice %182 {offsets = [0, 22], sizes = [80, 106], strides = [1, 1]} : vector<80x128xf32> to vector<80x106xf32>
    %426 = tpu.concatenate %425, %424 in 1 : vector<80x106xf32>, vector<80x22xf32> -> vector<80x128xf32>
    %427 = vector.extract_strided_slice %181 {offsets = [0, 22], sizes = [80, 1], strides = [1, 1]} : vector<80x128xf32> to vector<80x1xf32>
    %428 = vector.broadcast %427 : vector<80x1xf32> to vector<80x128xf32>
    %429 = arith.mulf %426, %428 : vector<80x128xf32>
    %430 = arith.addf %419, %429 : vector<80x128xf32>
    %431 = vector.extract_strided_slice %181 {offsets = [0, 55], sizes = [80, 1], strides = [1, 1]} : vector<80x128xf32> to vector<80x1xf32>
    %432 = vector.broadcast %431 : vector<80x1xf32> to vector<80x128xf32>
    %433 = arith.mulf %426, %432 : vector<80x128xf32>
    %434 = arith.addf %423, %433 : vector<80x128xf32>
    %cst_148 = arith.constant 0.000000e+00 : f32
    %435 = vector.broadcast %cst_148 : f32 to vector<80x23xf32>
    %436 = vector.extract_strided_slice %182 {offsets = [0, 23], sizes = [80, 105], strides = [1, 1]} : vector<80x128xf32> to vector<80x105xf32>
    %437 = tpu.concatenate %436, %435 in 1 : vector<80x105xf32>, vector<80x23xf32> -> vector<80x128xf32>
    %438 = vector.extract_strided_slice %181 {offsets = [0, 23], sizes = [80, 1], strides = [1, 1]} : vector<80x128xf32> to vector<80x1xf32>
    %439 = vector.broadcast %438 : vector<80x1xf32> to vector<80x128xf32>
    %440 = arith.mulf %437, %439 : vector<80x128xf32>
    %441 = arith.addf %430, %440 : vector<80x128xf32>
    %442 = vector.extract_strided_slice %181 {offsets = [0, 56], sizes = [80, 1], strides = [1, 1]} : vector<80x128xf32> to vector<80x1xf32>
    %443 = vector.broadcast %442 : vector<80x1xf32> to vector<80x128xf32>
    %444 = arith.mulf %437, %443 : vector<80x128xf32>
    %445 = arith.addf %434, %444 : vector<80x128xf32>
    %cst_149 = arith.constant 0.000000e+00 : f32
    %446 = vector.broadcast %cst_149 : f32 to vector<80x24xf32>
    %447 = vector.extract_strided_slice %182 {offsets = [0, 24], sizes = [80, 104], strides = [1, 1]} : vector<80x128xf32> to vector<80x104xf32>
    %448 = tpu.concatenate %447, %446 in 1 : vector<80x104xf32>, vector<80x24xf32> -> vector<80x128xf32>
    %449 = vector.extract_strided_slice %181 {offsets = [0, 24], sizes = [80, 1], strides = [1, 1]} : vector<80x128xf32> to vector<80x1xf32>
    %450 = vector.broadcast %449 : vector<80x1xf32> to vector<80x128xf32>
    %451 = arith.mulf %448, %450 : vector<80x128xf32>
    %452 = arith.addf %441, %451 : vector<80x128xf32>
    %453 = vector.extract_strided_slice %181 {offsets = [0, 57], sizes = [80, 1], strides = [1, 1]} : vector<80x128xf32> to vector<80x1xf32>
    %454 = vector.broadcast %453 : vector<80x1xf32> to vector<80x128xf32>
    %455 = arith.mulf %448, %454 : vector<80x128xf32>
    %456 = arith.addf %445, %455 : vector<80x128xf32>
    %cst_150 = arith.constant 0.000000e+00 : f32
    %457 = vector.broadcast %cst_150 : f32 to vector<80x25xf32>
    %458 = vector.extract_strided_slice %182 {offsets = [0, 25], sizes = [80, 103], strides = [1, 1]} : vector<80x128xf32> to vector<80x103xf32>
    %459 = tpu.concatenate %458, %457 in 1 : vector<80x103xf32>, vector<80x25xf32> -> vector<80x128xf32>
    %460 = vector.extract_strided_slice %181 {offsets = [0, 25], sizes = [80, 1], strides = [1, 1]} : vector<80x128xf32> to vector<80x1xf32>
    %461 = vector.broadcast %460 : vector<80x1xf32> to vector<80x128xf32>
    %462 = arith.mulf %459, %461 : vector<80x128xf32>
    %463 = arith.addf %452, %462 : vector<80x128xf32>
    %464 = vector.extract_strided_slice %181 {offsets = [0, 58], sizes = [80, 1], strides = [1, 1]} : vector<80x128xf32> to vector<80x1xf32>
    %465 = vector.broadcast %464 : vector<80x1xf32> to vector<80x128xf32>
    %466 = arith.mulf %459, %465 : vector<80x128xf32>
    %467 = arith.addf %456, %466 : vector<80x128xf32>
    %cst_151 = arith.constant 0.000000e+00 : f32
    %468 = vector.broadcast %cst_151 : f32 to vector<80x26xf32>
    %469 = vector.extract_strided_slice %182 {offsets = [0, 26], sizes = [80, 102], strides = [1, 1]} : vector<80x128xf32> to vector<80x102xf32>
    %470 = tpu.concatenate %469, %468 in 1 : vector<80x102xf32>, vector<80x26xf32> -> vector<80x128xf32>
    %471 = vector.extract_strided_slice %181 {offsets = [0, 26], sizes = [80, 1], strides = [1, 1]} : vector<80x128xf32> to vector<80x1xf32>
    %472 = vector.broadcast %471 : vector<80x1xf32> to vector<80x128xf32>
    %473 = arith.mulf %470, %472 : vector<80x128xf32>
    %474 = arith.addf %463, %473 : vector<80x128xf32>
    %475 = vector.extract_strided_slice %181 {offsets = [0, 59], sizes = [80, 1], strides = [1, 1]} : vector<80x128xf32> to vector<80x1xf32>
    %476 = vector.broadcast %475 : vector<80x1xf32> to vector<80x128xf32>
    %477 = arith.mulf %470, %476 : vector<80x128xf32>
    %478 = arith.addf %467, %477 : vector<80x128xf32>
    %cst_152 = arith.constant 0.000000e+00 : f32
    %479 = vector.broadcast %cst_152 : f32 to vector<80x27xf32>
    %480 = vector.extract_strided_slice %182 {offsets = [0, 27], sizes = [80, 101], strides = [1, 1]} : vector<80x128xf32> to vector<80x101xf32>
    %481 = tpu.concatenate %480, %479 in 1 : vector<80x101xf32>, vector<80x27xf32> -> vector<80x128xf32>
    %482 = vector.extract_strided_slice %181 {offsets = [0, 27], sizes = [80, 1], strides = [1, 1]} : vector<80x128xf32> to vector<80x1xf32>
    %483 = vector.broadcast %482 : vector<80x1xf32> to vector<80x128xf32>
    %484 = arith.mulf %481, %483 : vector<80x128xf32>
    %485 = arith.addf %474, %484 : vector<80x128xf32>
    %486 = vector.extract_strided_slice %181 {offsets = [0, 60], sizes = [80, 1], strides = [1, 1]} : vector<80x128xf32> to vector<80x1xf32>
    %487 = vector.broadcast %486 : vector<80x1xf32> to vector<80x128xf32>
    %488 = arith.mulf %481, %487 : vector<80x128xf32>
    %489 = arith.addf %478, %488 : vector<80x128xf32>
    %cst_153 = arith.constant 0.000000e+00 : f32
    %490 = vector.broadcast %cst_153 : f32 to vector<80x28xf32>
    %491 = vector.extract_strided_slice %182 {offsets = [0, 28], sizes = [80, 100], strides = [1, 1]} : vector<80x128xf32> to vector<80x100xf32>
    %492 = tpu.concatenate %491, %490 in 1 : vector<80x100xf32>, vector<80x28xf32> -> vector<80x128xf32>
    %493 = vector.extract_strided_slice %181 {offsets = [0, 28], sizes = [80, 1], strides = [1, 1]} : vector<80x128xf32> to vector<80x1xf32>
    %494 = vector.broadcast %493 : vector<80x1xf32> to vector<80x128xf32>
    %495 = arith.mulf %492, %494 : vector<80x128xf32>
    %496 = arith.addf %485, %495 : vector<80x128xf32>
    %497 = vector.extract_strided_slice %181 {offsets = [0, 61], sizes = [80, 1], strides = [1, 1]} : vector<80x128xf32> to vector<80x1xf32>
    %498 = vector.broadcast %497 : vector<80x1xf32> to vector<80x128xf32>
    %499 = arith.mulf %492, %498 : vector<80x128xf32>
    %500 = arith.addf %489, %499 : vector<80x128xf32>
    %cst_154 = arith.constant 0.000000e+00 : f32
    %501 = vector.broadcast %cst_154 : f32 to vector<80x29xf32>
    %502 = vector.extract_strided_slice %182 {offsets = [0, 29], sizes = [80, 99], strides = [1, 1]} : vector<80x128xf32> to vector<80x99xf32>
    %503 = tpu.concatenate %502, %501 in 1 : vector<80x99xf32>, vector<80x29xf32> -> vector<80x128xf32>
    %504 = vector.extract_strided_slice %181 {offsets = [0, 29], sizes = [80, 1], strides = [1, 1]} : vector<80x128xf32> to vector<80x1xf32>
    %505 = vector.broadcast %504 : vector<80x1xf32> to vector<80x128xf32>
    %506 = arith.mulf %503, %505 : vector<80x128xf32>
    %507 = arith.addf %496, %506 : vector<80x128xf32>
    %508 = vector.extract_strided_slice %181 {offsets = [0, 62], sizes = [80, 1], strides = [1, 1]} : vector<80x128xf32> to vector<80x1xf32>
    %509 = vector.broadcast %508 : vector<80x1xf32> to vector<80x128xf32>
    %510 = arith.mulf %503, %509 : vector<80x128xf32>
    %511 = arith.addf %500, %510 : vector<80x128xf32>
    %cst_155 = arith.constant 0.000000e+00 : f32
    %512 = vector.broadcast %cst_155 : f32 to vector<80x30xf32>
    %513 = vector.extract_strided_slice %182 {offsets = [0, 30], sizes = [80, 98], strides = [1, 1]} : vector<80x128xf32> to vector<80x98xf32>
    %514 = tpu.concatenate %513, %512 in 1 : vector<80x98xf32>, vector<80x30xf32> -> vector<80x128xf32>
    %515 = vector.extract_strided_slice %181 {offsets = [0, 30], sizes = [80, 1], strides = [1, 1]} : vector<80x128xf32> to vector<80x1xf32>
    %516 = vector.broadcast %515 : vector<80x1xf32> to vector<80x128xf32>
    %517 = arith.mulf %514, %516 : vector<80x128xf32>
    %518 = arith.addf %507, %517 : vector<80x128xf32>
    %519 = vector.extract_strided_slice %181 {offsets = [0, 63], sizes = [80, 1], strides = [1, 1]} : vector<80x128xf32> to vector<80x1xf32>
    %520 = vector.broadcast %519 : vector<80x1xf32> to vector<80x128xf32>
    %521 = arith.mulf %514, %520 : vector<80x128xf32>
    %522 = arith.addf %511, %521 : vector<80x128xf32>
    %cst_156 = arith.constant 0.000000e+00 : f32
    %523 = vector.broadcast %cst_156 : f32 to vector<80x31xf32>
    %524 = vector.extract_strided_slice %182 {offsets = [0, 31], sizes = [80, 97], strides = [1, 1]} : vector<80x128xf32> to vector<80x97xf32>
    %525 = tpu.concatenate %524, %523 in 1 : vector<80x97xf32>, vector<80x31xf32> -> vector<80x128xf32>
    %526 = vector.extract_strided_slice %181 {offsets = [0, 31], sizes = [80, 1], strides = [1, 1]} : vector<80x128xf32> to vector<80x1xf32>
    %527 = vector.broadcast %526 : vector<80x1xf32> to vector<80x128xf32>
    %528 = arith.mulf %525, %527 : vector<80x128xf32>
    %529 = arith.addf %518, %528 : vector<80x128xf32>
    %530 = vector.extract_strided_slice %181 {offsets = [0, 64], sizes = [80, 1], strides = [1, 1]} : vector<80x128xf32> to vector<80x1xf32>
    %531 = vector.broadcast %530 : vector<80x1xf32> to vector<80x128xf32>
    %532 = arith.mulf %525, %531 : vector<80x128xf32>
    %533 = arith.addf %522, %532 : vector<80x128xf32>
    %cst_157 = arith.constant 0.000000e+00 : f32
    %534 = vector.broadcast %cst_157 : f32 to vector<80x32xf32>
    %535 = vector.extract_strided_slice %182 {offsets = [0, 32], sizes = [80, 96], strides = [1, 1]} : vector<80x128xf32> to vector<80x96xf32>
    %536 = tpu.concatenate %535, %534 in 1 : vector<80x96xf32>, vector<80x32xf32> -> vector<80x128xf32>
    %537 = vector.extract_strided_slice %181 {offsets = [0, 32], sizes = [80, 1], strides = [1, 1]} : vector<80x128xf32> to vector<80x1xf32>
    %538 = vector.broadcast %537 : vector<80x1xf32> to vector<80x128xf32>
    %539 = arith.mulf %536, %538 : vector<80x128xf32>
    %540 = arith.addf %529, %539 : vector<80x128xf32>
    %541 = vector.extract_strided_slice %181 {offsets = [0, 65], sizes = [80, 1], strides = [1, 1]} : vector<80x128xf32> to vector<80x1xf32>
    %542 = vector.broadcast %541 : vector<80x1xf32> to vector<80x128xf32>
    %543 = arith.mulf %536, %542 : vector<80x128xf32>
    %544 = arith.addf %533, %543 : vector<80x128xf32>
    %545 = vector.extract_strided_slice %540 {offsets = [0, 0], sizes = [80, 16], strides = [1, 1]} : vector<80x128xf32> to vector<80x16xf32>
    %546 = vector.extract_strided_slice %544 {offsets = [0, 0], sizes = [80, 16], strides = [1, 1]} : vector<80x128xf32> to vector<80x16xf32>
    %cst_158 = arith.constant 0.000000e+00 : f32
    %547 = vector.broadcast %cst_158 : f32 to vector<80x96xf32>
    %548 = tpu.concatenate %545, %546, %547 in 1 : vector<80x16xf32>, vector<80x16xf32>, vector<80x96xf32> -> vector<80x128xf32>
    %c0_159 = arith.constant 0 : index
    %c0_160 = arith.constant 0 : index
    %549 = vector.load %arg15[%c0_159, %c0_160] : memref<80x128xf32, #tpu.memory_space<vmem>>, vector<80x128xf32>
    tpu.vector_store %arg15[%c0_159, %c0_160], %548 {strides = array<i32>} : memref<80x128xf32, #tpu.memory_space<vmem>>, vector<80x128xf32>,
    return
  }
  func.func @transform_0(%arg0: i32) -> (i32, i32) {
    %c0_i32 = arith.constant 0 : i32
    %c0_i32_0 = arith.constant 0 : i32
    return %arg0, %c0_i32 : i32, i32
  }
  func.func @transform_1(%arg0: i32) -> (i32, i32) {
    %c0_i32 = arith.constant 0 : i32
    %c0_i32_0 = arith.constant 0 : i32
    return %arg0, %c0_i32 : i32, i32
  }
  func.func @transform_2(%arg0: i32) -> (i32, i32) {
    %c0_i32 = arith.constant 0 : i32
    %c0_i32_0 = arith.constant 0 : i32
    return %arg0, %c0_i32 : i32, i32
  }
  func.func @transform_3(%arg0: i32) -> (i32, i32) {
    %c0_i32 = arith.constant 0 : i32
    %c0_i32_0 = arith.constant 0 : i32
    %c0_i32_1 = arith.constant 0 : i32
    return %c0_i32, %c0_i32_0 : i32, i32
  }
  func.func @transform_4(%arg0: i32) -> (i32, i32) {
    %c0_i32 = arith.constant 0 : i32
    %c0_i32_0 = arith.constant 0 : i32
    %c0_i32_1 = arith.constant 0 : i32
    return %c0_i32, %c0_i32_0 : i32, i32
  }
  func.func @transform_5(%arg0: i32) -> (i32, i32) {
    %c0_i32 = arith.constant 0 : i32
    %c0_i32_0 = arith.constant 0 : i32
    %c0_i32_1 = arith.constant 0 : i32
    return %c0_i32, %c0_i32_0 : i32, i32
  }
  func.func @transform_6(%arg0: i32) -> (i32, i32) {
    %c0_i32 = arith.constant 0 : i32
    %c0_i32_0 = arith.constant 0 : i32
    %c0_i32_1 = arith.constant 0 : i32
    return %c0_i32, %c0_i32_0 : i32, i32
  }
  func.func @transform_7(%arg0: i32) -> (i32, i32, i32) {
    %c0_i32 = arith.constant 0 : i32
    %c0_i32_0 = arith.constant 0 : i32
    %c0_i32_1 = arith.constant 0 : i32
    %c0_i32_2 = arith.constant 0 : i32
    return %c0_i32, %c0_i32_0, %c0_i32_1 : i32, i32, i32
  }
  func.func @transform_8(%arg0: i32) -> (i32, i32, i32) {
    %c0_i32 = arith.constant 0 : i32
    %c0_i32_0 = arith.constant 0 : i32
    %c0_i32_1 = arith.constant 0 : i32
    %c0_i32_2 = arith.constant 0 : i32
    return %c0_i32, %c0_i32_0, %c0_i32_1 : i32, i32, i32
  }
  func.func @transform_9(%arg0: i32) -> (i32, i32, i32) {
    %c0_i32 = arith.constant 0 : i32
    %c0_i32_0 = arith.constant 0 : i32
    %c0_i32_1 = arith.constant 0 : i32
    %c0_i32_2 = arith.constant 0 : i32
    return %c0_i32, %c0_i32_0, %c0_i32_1 : i32, i32, i32
  }
  func.func @transform_10(%arg0: i32) -> (i32, i32, i32) {
    %c0_i32 = arith.constant 0 : i32
    %c0_i32_0 = arith.constant 0 : i32
    %c0_i32_1 = arith.constant 0 : i32
    %c0_i32_2 = arith.constant 0 : i32
    return %c0_i32, %c0_i32_0, %c0_i32_1 : i32, i32, i32
  }
  func.func @transform_11(%arg0: i32) -> (i32, i32, i32) {
    %c0_i32 = arith.constant 0 : i32
    %c0_i32_0 = arith.constant 0 : i32
    %c0_i32_1 = arith.constant 0 : i32
    %c0_i32_2 = arith.constant 0 : i32
    return %c0_i32, %c0_i32_0, %c0_i32_1 : i32, i32, i32
  }
  func.func @transform_12(%arg0: i32) -> (i32, i32) {
    %c0_i32 = arith.constant 0 : i32
    %c0_i32_0 = arith.constant 0 : i32
    %c0_i32_1 = arith.constant 0 : i32
    return %c0_i32, %c0_i32_0 : i32, i32
  }
  func.func @transform_13(%arg0: i32) -> (i32, i32) {
    %c0_i32 = arith.constant 0 : i32
    %c0_i32_0 = arith.constant 0 : i32
    %c0_i32_1 = arith.constant 0 : i32
    return %c0_i32, %c0_i32_0 : i32, i32
  }
  func.func @transform_14(%arg0: i32) -> (i32, i32) {
    %c0_i32 = arith.constant 0 : i32
    %c0_i32_0 = arith.constant 0 : i32
    return %arg0, %c0_i32 : i32, i32
  }
}

</mosaic_0001>

<llo_original>
// kernel: mul.7
$region0: #{mul.7}
  #allocation0 [shape = 's32[1]{0}', space=sflag, size = 0x4, scoped, tag = 'scoped memory for mul.7']
  %s0 = inlined_call_operand.vmem [shape: f32[6], index: 0, kind: input, shape index: {}]
  %s1 = inlined_call_operand.vmem [shape: f32[6,1,128], index: 1, kind: output, shape index: {}]
  // Predicated region
  $region2: #{mul.7} parent=0 // pred_check
    _
  $region3: #{mul.7} parent=0 // pred_check_branch
    %3 = sbr.rel (0) target = $region5
  $region4: #{mul.7} parent=0 // pred_region
    _
  $region5: #{mul.7} parent=0 // pred_fallthru
    _
  %v4 = vld [vmem:[%s0] ss:$0 sm:$0xff]
  %5 = vbcast.lane.b32.xlu0 %v4, 0
  %v6 = vpop.permute.xlu0 %5
  %7 = vst [vmem:[%s1] sm:$0x1] %v6
  %v8 = vld [vmem:[%s0] ss:$0 sm:$0xff]
  %9 = vbcast.lane.b32.xlu0 %v8, 1
  %v10 = vpop.permute.xlu0 %9
  %s11 = scalar_lea.vmem %s1, 1
  %12 = vst [vmem:[%s11] sm:$0x1] %v10
  %v13 = vld [vmem:[%s0] ss:$0 sm:$0xff]
  %14 = vbcast.lane.b32.xlu0 %v13, 2
  %v15 = vpop.permute.xlu0 %14
  %s16 = scalar_lea.vmem %s1, 2
  %17 = vst [vmem:[%s16] sm:$0x1] %v15
  %v18 = vld [vmem:[%s0] ss:$0 sm:$0xff]
  %19 = vbcast.lane.b32.xlu0 %v18, 3
  %v20 = vpop.permute.xlu0 %19
  %s21 = scalar_lea.vmem %s1, 3
  %22 = vst [vmem:[%s21] sm:$0x1] %v20
  %v23 = vld [vmem:[%s0] ss:$0 sm:$0xff]
  %24 = vbcast.lane.b32.xlu0 %v23, 4
  %v25 = vpop.permute.xlu0 %24
  %s26 = scalar_lea.vmem %s1, 4
  %27 = vst [vmem:[%s26] sm:$0x1] %v25
  %v28 = vld [vmem:[%s0] ss:$0 sm:$0xff]
  %29 = vbcast.lane.b32.xlu0 %v28, 5
  %v30 = vpop.permute.xlu0 %29
  %s31 = scalar_lea.vmem %s1, 5
  %32 = vst [vmem:[%s31] sm:$0x1] %v30

// kernel: net_forward.2
$region0: #{net_forward.2}
  #allocation0 [shape = 'u32[]', space=smem, size = 0x4, offset = 0x4, fixed_abs, tag = 'smem constant byte address 0x4 - core index']
  #allocation1 [shape = 'u32[144,128]{1,0:T(1,128)}', space=vmem, size = 0x12000, scoped, tag = 'internal scratch']
  %s0 = inlined_call_operand.vmem [shape: f32[80,128], index: 0, kind: input, shape index: {}]
  %s1 = inlined_call_operand.vmem [shape: bf16[128,64], index: 1, kind: input, shape index: {}]
  %s2 = inlined_call_operand.vmem [shape: f32[1,64], index: 2, kind: input, shape index: {}]
  %s3 = inlined_call_operand.vmem [shape: f32[80,128], index: 3, kind: output, shape index: {}]
  %s4 = sld [smem:[#allocation0]]
  $region22: #{net_forward.2} parent=0
    _
  %s6 = ssub.s32 1, %s4
  %s7 = scalar_select 0, %s6, %s4
  // Predicated region
  $region2: #{net_forward.2} parent=0 // pred_check
    _
  $region3: #{net_forward.2} parent=0 // pred_check_branch
    %9 = sbr.rel (0) target = $region5
  $region4: #{net_forward.2} parent=0 // pred_region
    _
  $region5: #{net_forward.2} parent=0 // pred_fallthru
    _
  // Predicated region
  $region6: #{net_forward.2} parent=0 // pred_check
    _
  $region7: #{net_forward.2} parent=0 // pred_check_branch
    %11 = sbr.rel (0) target = $region9
  $region8: #{net_forward.2} parent=0 // pred_region
    _
  $region9: #{net_forward.2} parent=0 // pred_fallthru
    _
  // Predicated region
  $region10: #{net_forward.2} parent=0 // pred_check
    _
  $region11: #{net_forward.2} parent=0 // pred_check_branch
    %13 = sbr.rel (0) target = $region13
  $region12: #{net_forward.2} parent=0 // pred_region
    _
  $region13: #{net_forward.2} parent=0 // pred_fallthru
    _
  %v15 = vld [vmem:[%s0] sm:$0xff]
  %v16 = vld [vmem:[%s0 + $0x8] sm:$0xff]
  %v17 = vld [vmem:[%s0 + $0x10] sm:$0xff]
  %v18 = vld [vmem:[%s0 + $0x18] sm:$0xff]
  %v19 = vld [vmem:[%s0 + $0x20] sm:$0xff]
  %v20 = vld [vmem:[%s0 + $0x28] sm:$0xff]
  %v21 = vld [vmem:[%s0 + $0x30] sm:$0xff]
  %v22 = vld [vmem:[%s0 + $0x38] sm:$0xff]
  %v23 = vld [vmem:[%s0 + $0x40] sm:$0xff]
  %v24 = vld [vmem:[%s0 + $0x48] sm:$0xff]
  %v25 = vpack.c.bf16 %v16, %v15
  %v26 = vpack.c.bf16 %v18, %v17
  %v27 = vpack.c.bf16 %v20, %v19
  %v28 = vpack.c.bf16 %v22, %v21
  %v29 = vpack.c.bf16 %v24, %v23
  %v30 = vld [vmem:[%s1] sm:$0xf]
  %v31 = vld [vmem:[%s1 + $0x4] sm:$0xf]
  %v32 = vld [vmem:[%s1 + $0x8] sm:$0xf]
  %v33 = vld [vmem:[%s1 + $0xc] sm:$0xf]
  %v34 = vld [vmem:[%s1 + $0x10] sm:$0xf]
  %v35 = vld [vmem:[%s1 + $0x14] sm:$0xf]
  %v36 = vld [vmem:[%s1 + $0x18] sm:$0xf]
  %v37 = vld [vmem:[%s1 + $0x1c] sm:$0xf]
  %v38 = vld [vmem:[%s1 + $0x20] sm:$0xf]
  %v39 = vld [vmem:[%s1 + $0x24] sm:$0xf]
  %v40 = vld [vmem:[%s1 + $0x28] sm:$0xf]
  %v41 = vld [vmem:[%s1 + $0x2c] sm:$0xf]
  %v42 = vld [vmem:[%s1 + $0x30] sm:$0xf]
  %v43 = vld [vmem:[%s1 + $0x34] sm:$0xf]
  %v44 = vld [vmem:[%s1 + $0x38] sm:$0xf]
  %v45 = vld [vmem:[%s1 + $0x3c] sm:$0xf]
  %v46 = vld [vmem:[%s2] sm:$0x1]
  %v48 = vlaneseq
  %v49 = vshrl.u32 %v48, 7
  %v50 = vsub.s32 0, %v49
  %v51 = vrot.slane %v46, %v50
  %v69 = vunpack.c.l.b16 %v30
  %v70 = vunpack.c.l.b16 %v31
  %v71 = vunpack.c.l.b16 %v32
  %v72 = vunpack.c.l.b16 %v33
  %v73 = vunpack.c.l.b16 %v34
  %v74 = vunpack.c.l.b16 %v35
  %v75 = vunpack.c.l.b16 %v36
  %v76 = vunpack.c.l.b16 %v37
  %v77 = vunpack.c.l.b16 %v38
  %v78 = vunpack.c.l.b16 %v39
  %v79 = vunpack.c.l.b16 %v40
  %v80 = vunpack.c.l.b16 %v41
  %v81 = vunpack.c.l.b16 %v42
  %v82 = vunpack.c.l.b16 %v43
  %v83 = vunpack.c.l.b16 %v44
  %v84 = vunpack.c.l.b16 %v45
  %v85 = vpack.c.b16 %v70, %v69
  %v86 = vpack.c.b16 %v72, %v71
  %v87 = vpack.c.b16 %v74, %v73
  %v88 = vpack.c.b16 %v76, %v75
  %v89 = vpack.c.b16 %v78, %v77
  %v90 = vpack.c.b16 %v80, %v79
  %v91 = vpack.c.b16 %v82, %v81
  %v92 = vpack.c.b16 %v84, %v83
  %101 = vmatprep.subr.bf16.mxu0 0
  %102 = vmatpush1.bf16.msra.mxu0 %v92
  %103 = vmatprep.subr.bf16.mxu0 0
  %104 = vmatpush1.bf16.msra.mxu0 %v91
  %105 = vmatprep.subr.bf16.mxu0 0
  %106 = vmatpush1.bf16.msra.mxu0 %v90
  %107 = vmatprep.subr.bf16.mxu0 0
  %108 = vmatpush1.bf16.msra.mxu0 %v89
  %109 = vmatprep.subr.bf16.mxu0 0
  %110 = vmatpush1.bf16.msra.mxu0 %v88
  %111 = vmatprep.subr.bf16.mxu0 0
  %112 = vmatpush1.bf16.msra.mxu0 %v87
  %113 = vmatprep.subr.bf16.mxu0 0
  %114 = vmatpush1.bf16.msra.mxu0 %v86
  %115 = vmatprep.subr.bf16.mxu0 0
  %116 = vmatpush1.bf16.msra.mxu0 %v85
  %117 = vmatprep.subr.bf16.mxu0 0
  %118 = vmatpush2.bf16.msra.mxu0 0
  %119 = vmatprep.subr.bf16.mxu0 0
  %120 = vmatpush2.bf16.msra.mxu0 0
  %121 = vmatprep.subr.bf16.mxu0 0
  %122 = vmatpush2.bf16.msra.mxu0 0
  %123 = vmatprep.subr.bf16.mxu0 0
  %124 = vmatpush2.bf16.msra.mxu0 0
  %125 = vmatprep.subr.bf16.mxu0 0
  %126 = vmatpush2.bf16.msra.mxu0 0
  %127 = vmatprep.subr.bf16.mxu0 0
  %128 = vmatpush2.bf16.msra.mxu0 0
  %129 = vmatprep.subr.bf16.mxu0 0
  %130 = vmatpush2.bf16.msra.mxu0 0
  %131 = vmatprep.subr.bf16.mxu0 0
  %132 = vmatpush2.bf16.msra.mxu0 0
  %133 = vmatprep.mubr.bf16.mxu0 0
  %134 = vmatmul.mubr.bf16.gmra.mxu0 %v25
  %v135 = vpop.f32.mrf.mxu0
  %v136 = vadd.f32 %v51, %v135
  %v137 = vpop.f32.mrf.mxu0
  %v138 = vpop.f32.mrf.mxu0
  %v139 = vadd.f32 %v51, %v138
  %v140 = vpop.f32.mrf.mxu0
  %141 = vmatprep.mubr.bf16.mxu0 0
  %142 = vmatmul.mubr.bf16.gmra.mxu0 %v26
  %v143 = vpop.f32.mrf.mxu0
  %v144 = vadd.f32 %v51, %v143
  %v145 = vpop.f32.mrf.mxu0
  %v146 = vpop.f32.mrf.mxu0
  %v147 = vadd.f32 %v51, %v146
  %v148 = vpop.f32.mrf.mxu0
  %149 = vmatprep.mubr.bf16.mxu0 0
  %150 = vmatmul.mubr.bf16.gmra.mxu0 %v27
  %v151 = vpop.f32.mrf.mxu0
  %v152 = vadd.f32 %v51, %v151
  %v153 = vpop.f32.mrf.mxu0
  %v154 = vpop.f32.mrf.mxu0
  %v155 = vadd.f32 %v51, %v154
  %v156 = vpop.f32.mrf.mxu0
  %157 = vmatprep.mubr.bf16.mxu0 0
  %158 = vmatmul.mubr.bf16.gmra.mxu0 %v28
  %v159 = vpop.f32.mrf.mxu0
  %v160 = vadd.f32 %v51, %v159
  %v161 = vpop.f32.mrf.mxu0
  %v162 = vpop.f32.mrf.mxu0
  %v163 = vadd.f32 %v51, %v162
  %v164 = vpop.f32.mrf.mxu0
  %165 = vmatprep.mubr.bf16.mxu0 0
  %166 = vmatmul.mubr.bf16.gmra.mxu0 %v29
  %v167 = vpop.f32.mrf.mxu0
  %v168 = vadd.f32 %v51, %v167
  %v169 = vpop.f32.mrf.mxu0
  %v170 = vpop.f32.mrf.mxu0
  %v171 = vadd.f32 %v51, %v170
  %v172 = vpop.f32.mrf.mxu0
  %173 = vdwg.mxu0
  %175 = vset.pattern.permute.xlu0 48
  %176 = vperm.xlu0 %175, %v15
  %v177 = vpop.permute.xlu0 %176
  %180 = vset.pattern.permute.xlu0 48
  %181 = vperm.xlu0 %180, %v16
  %v182 = vpop.permute.xlu0 %181
  %185 = vset.pattern.permute.xlu0 48
  %186 = vperm.xlu0 %185, %v17
  %v187 = vpop.permute.xlu0 %186
  %190 = vset.pattern.permute.xlu0 48
  %191 = vperm.xlu0 %190, %v18
  %v192 = vpop.permute.xlu0 %191
  %195 = vset.pattern.permute.xlu0 48
  %196 = vperm.xlu0 %195, %v19
  %v197 = vpop.permute.xlu0 %196
  %200 = vset.pattern.permute.xlu0 48
  %201 = vperm.xlu0 %200, %v20
  %v202 = vpop.permute.xlu0 %201
  %205 = vset.pattern.permute.xlu0 48
  %206 = vperm.xlu0 %205, %v21
  %v207 = vpop.permute.xlu0 %206
  %210 = vset.pattern.permute.xlu0 48
  %211 = vperm.xlu0 %210, %v22
  %v212 = vpop.permute.xlu0 %211
  %215 = vset.pattern.permute.xlu0 48
  %216 = vperm.xlu0 %215, %v23
  %v217 = vpop.permute.xlu0 %216
  %220 = vset.pattern.permute.xlu0 48
  %221 = vperm.xlu0 %220, %v24
  %v222 = vpop.permute.xlu0 %221
  %v224 = vmul.f32 %v15, %v177
  %v225 = vmul.f32 %v16, %v182
  %v226 = vmul.f32 %v17, %v187
  %v227 = vmul.f32 %v18, %v192
  %v228 = vmul.f32 %v19, %v197
  %v229 = vmul.f32 %v20, %v202
  %v230 = vmul.f32 %v21, %v207
  %v231 = vmul.f32 %v22, %v212
  %v232 = vmul.f32 %v23, %v217
  %v233 = vmul.f32 %v24, %v222
  %v234 = vadd.f32 %v224, 0.0
  %v235 = vadd.f32 %v225, 0.0
  %v236 = vadd.f32 %v226, 0.0
  %v237 = vadd.f32 %v227, 0.0
  %v238 = vadd.f32 %v228, 0.0
  %v239 = vadd.f32 %v229, 0.0
  %v240 = vadd.f32 %v230, 0.0
  %v241 = vadd.f32 %v231, 0.0
  %v242 = vadd.f32 %v232, 0.0
  %v243 = vadd.f32 %v233, 0.0
  %v244 = vmul.f32 %v15, %v15
  %v245 = vmul.f32 %v16, %v16
  %v246 = vmul.f32 %v17, %v17
  %v247 = vmul.f32 %v18, %v18
  %v248 = vmul.f32 %v19, %v19
  %v249 = vmul.f32 %v20, %v20
  %v250 = vmul.f32 %v21, %v21
  %v251 = vmul.f32 %v22, %v22
  %v252 = vmul.f32 %v23, %v23
  %v253 = vmul.f32 %v24, %v24
  %v254 = vadd.f32 %v244, 0.0
  %v255 = vadd.f32 %v245, 0.0
  %v256 = vadd.f32 %v246, 0.0
  %v257 = vadd.f32 %v247, 0.0
  %v258 = vadd.f32 %v248, 0.0
  %v259 = vadd.f32 %v249, 0.0
  %v260 = vadd.f32 %v250, 0.0
  %v261 = vadd.f32 %v251, 0.0
  %v262 = vadd.f32 %v252, 0.0
  %v263 = vadd.f32 %v253, 0.0
  %264 = vrot.lane.b32.xlu0 %v15, 127
  %v265 = vpop.permute.xlu0 %264
  %266 = vrot.lane.b32.xlu0 %v16, 127
  %v267 = vpop.permute.xlu0 %266
  %268 = vrot.lane.b32.xlu0 %v17, 127
  %v269 = vpop.permute.xlu0 %268
  %270 = vrot.lane.b32.xlu0 %v18, 127
  %v271 = vpop.permute.xlu0 %270
  %272 = vrot.lane.b32.xlu0 %v19, 127
  %v273 = vpop.permute.xlu0 %272
  %274 = vrot.lane.b32.xlu0 %v20, 127
  %v275 = vpop.permute.xlu0 %274
  %276 = vrot.lane.b32.xlu0 %v21, 127
  %v277 = vpop.permute.xlu0 %276
  %278 = vrot.lane.b32.xlu0 %v22, 127
  %v279 = vpop.permute.xlu0 %278
  %280 = vrot.lane.b32.xlu0 %v23, 127
  %v281 = vpop.permute.xlu0 %280
  %282 = vrot.lane.b32.xlu0 %v24, 127
  %v283 = vpop.permute.xlu0 %282
  %vm294 = vcmask 1039360
  %v295 = vsel %vm294, %v265, 0.0
  %v296 = vsel %vm294, %v267, 0.0
  %v297 = vsel %vm294, %v269, 0.0
  %v298 = vsel %vm294, %v271, 0.0
  %v299 = vsel %vm294, %v273, 0.0
  %v300 = vsel %vm294, %v275, 0.0
  %v301 = vsel %vm294, %v277, 0.0
  %v302 = vsel %vm294, %v279, 0.0
  %v303 = vsel %vm294, %v281, 0.0
  %v304 = vsel %vm294, %v283, 0.0
  %305 = vset.pattern.permute.xlu0 49
  %306 = vperm.xlu0 %305, %v15
  %v307 = vpop.permute.xlu0 %306
  %309 = vset.pattern.permute.xlu0 49
  %310 = vperm.xlu0 %309, %v16
  %v311 = vpop.permute.xlu0 %310
  %313 = vset.pattern.permute.xlu0 49
  %314 = vperm.xlu0 %313, %v17
  %v315 = vpop.permute.xlu0 %314
  %317 = vset.pattern.permute.xlu0 49
  %318 = vperm.xlu0 %317, %v18
  %v319 = vpop.permute.xlu0 %318
  %321 = vset.pattern.permute.xlu0 49
  %322 = vperm.xlu0 %321, %v19
  %v323 = vpop.permute.xlu0 %322
  %325 = vset.pattern.permute.xlu0 49
  %326 = vperm.xlu0 %325, %v20
  %v327 = vpop.permute.xlu0 %326
  %329 = vset.pattern.permute.xlu0 49
  %330 = vperm.xlu0 %329, %v21
  %v331 = vpop.permute.xlu0 %330
  %333 = vset.pattern.permute.xlu0 49
  %334 = vperm.xlu0 %333, %v22
  %v335 = vpop.permute.xlu0 %334
  %337 = vset.pattern.permute.xlu0 49
  %338 = vperm.xlu0 %337, %v23
  %v339 = vpop.permute.xlu0 %338
  %341 = vset.pattern.permute.xlu0 49
  %342 = vperm.xlu0 %341, %v24
  %v343 = vpop.permute.xlu0 %342
  %v345 = vmul.f32 %v295, %v307
  %v346 = vmul.f32 %v296, %v311
  %v347 = vmul.f32 %v297, %v315
  %v348 = vmul.f32 %v298, %v319
  %v349 = vmul.f32 %v299, %v323
  %v350 = vmul.f32 %v300, %v327
  %v351 = vmul.f32 %v301, %v331
  %v352 = vmul.f32 %v302, %v335
  %v353 = vmul.f32 %v303, %v339
  %v354 = vmul.f32 %v304, %v343
  %v355 = vadd.f32 %v234, %v345
  %v356 = vadd.f32 %v235, %v346
  %v357 = vadd.f32 %v236, %v347
  %v358 = vadd.f32 %v237, %v348
  %v359 = vadd.f32 %v238, %v349
  %v360 = vadd.f32 %v239, %v350
  %v361 = vadd.f32 %v240, %v351
  %v362 = vadd.f32 %v241, %v352
  %v363 = vadd.f32 %v242, %v353
  %v364 = vadd.f32 %v243, %v354
  %v365 = vmul.f32 %v295, %v295
  %v366 = vmul.f32 %v296, %v296
  %v367 = vmul.f32 %v297, %v297
  %v368 = vmul.f32 %v298, %v298
  %v369 = vmul.f32 %v299, %v299
  %v370 = vmul.f32 %v300, %v300
  %v371 = vmul.f32 %v301, %v301
  %v372 = vmul.f32 %v302, %v302
  %v373 = vmul.f32 %v303, %v303
  %v374 = vmul.f32 %v304, %v304
  %v375 = vadd.f32 %v254, %v365
  %v376 = vadd.f32 %v255, %v366
  %v377 = vadd.f32 %v256, %v367
  %v378 = vadd.f32 %v257, %v368
  %v379 = vadd.f32 %v258, %v369
  %v380 = vadd.f32 %v259, %v370
  %v381 = vadd.f32 %v260, %v371
  %v382 = vadd.f32 %v261, %v372
  %v383 = vadd.f32 %v262, %v373
  %v384 = vadd.f32 %v263, %v374
  %385 = vrot.lane.b32.xlu0 %v15, 126
  %v386 = vpop.permute.xlu0 %385
  %387 = vrot.lane.b32.xlu0 %v16, 126
  %v388 = vpop.permute.xlu0 %387
  %389 = vrot.lane.b32.xlu0 %v17, 126
  %v390 = vpop.permute.xlu0 %389
  %391 = vrot.lane.b32.xlu0 %v18, 126
  %v392 = vpop.permute.xlu0 %391
  %393 = vrot.lane.b32.xlu0 %v19, 126
  %v394 = vpop.permute.xlu0 %393
  %395 = vrot.lane.b32.xlu0 %v20, 126
  %v396 = vpop.permute.xlu0 %395
  %397 = vrot.lane.b32.xlu0 %v21, 126
  %v398 = vpop.permute.xlu0 %397
  %399 = vrot.lane.b32.xlu0 %v22, 126
  %v400 = vpop.permute.xlu0 %399
  %401 = vrot.lane.b32.xlu0 %v23, 126
  %v402 = vpop.permute.xlu0 %401
  %403 = vrot.lane.b32.xlu0 %v24, 126
  %v404 = vpop.permute.xlu0 %403
  %vm415 = vcmask 1031168
  %v416 = vsel %vm415, %v386, 0.0
  %v417 = vsel %vm415, %v388, 0.0
  %v418 = vsel %vm415, %v390, 0.0
  %v419 = vsel %vm415, %v392, 0.0
  %v420 = vsel %vm415, %v394, 0.0
  %v421 = vsel %vm415, %v396, 0.0
  %v422 = vsel %vm415, %v398, 0.0
  %v423 = vsel %vm415, %v400, 0.0
  %v424 = vsel %vm415, %v402, 0.0
  %v425 = vsel %vm415, %v404, 0.0
  %426 = vset.pattern.permute.xlu0 50
  %427 = vperm.xlu0 %426, %v15
  %v428 = vpop.permute.xlu0 %427
  %430 = vset.pattern.permute.xlu0 50
  %431 = vperm.xlu0 %430, %v16
  %v432 = vpop.permute.xlu0 %431
  %434 = vset.pattern.permute.xlu0 50
  %435 = vperm.xlu0 %434, %v17
  %v436 = vpop.permute.xlu0 %435
  %438 = vset.pattern.permute.xlu0 50
  %439 = vperm.xlu0 %438, %v18
  %v440 = vpop.permute.xlu0 %439
  %442 = vset.pattern.permute.xlu0 50
  %443 = vperm.xlu0 %442, %v19
  %v444 = vpop.permute.xlu0 %443
  %446 = vset.pattern.permute.xlu0 50
  %447 = vperm.xlu0 %446, %v20
  %v448 = vpop.permute.xlu0 %447
  %450 = vset.pattern.permute.xlu0 50
  %451 = vperm.xlu0 %450, %v21
  %v452 = vpop.permute.xlu0 %451
  %454 = vset.pattern.permute.xlu0 50
  %455 = vperm.xlu0 %454, %v22
  %v456 = vpop.permute.xlu0 %455
  %458 = vset.pattern.permute.xlu0 50
  %459 = vperm.xlu0 %458, %v23
  %v460 = vpop.permute.xlu0 %459
  %462 = vset.pattern.permute.xlu0 50
  %463 = vperm.xlu0 %462, %v24
  %v464 = vpop.permute.xlu0 %463
  %v466 = vmul.f32 %v416, %v428
  %v467 = vmul.f32 %v417, %v432
  %v468 = vmul.f32 %v418, %v436
  %v469 = vmul.f32 %v419, %v440
  %v470 = vmul.f32 %v420, %v444
  %v471 = vmul.f32 %v421, %v448
  %v472 = vmul.f32 %v422, %v452
  %v473 = vmul.f32 %v423, %v456
  %v474 = vmul.f32 %v424, %v460
  %v475 = vmul.f32 %v425, %v464
  %v476 = vadd.f32 %v355, %v466
  %v477 = vadd.f32 %v356, %v467
  %v478 = vadd.f32 %v357, %v468
  %v479 = vadd.f32 %v358, %v469
  %v480 = vadd.f32 %v359, %v470
  %v481 = vadd.f32 %v360, %v471
  %v482 = vadd.f32 %v361, %v472
  %v483 = vadd.f32 %v362, %v473
  %v484 = vadd.f32 %v363, %v474
  %v485 = vadd.f32 %v364, %v475
  %v486 = vmul.f32 %v416, %v416
  %v487 = vmul.f32 %v417, %v417
  %v488 = vmul.f32 %v418, %v418
  %v489 = vmul.f32 %v419, %v419
  %v490 = vmul.f32 %v420, %v420
  %v491 = vmul.f32 %v421, %v421
  %v492 = vmul.f32 %v422, %v422
  %v493 = vmul.f32 %v423, %v423
  %v494 = vmul.f32 %v424, %v424
  %v495 = vmul.f32 %v425, %v425
  %v496 = vadd.f32 %v375, %v486
  %v497 = vadd.f32 %v376, %v487
  %v498 = vadd.f32 %v377, %v488
  %v499 = vadd.f32 %v378, %v489
  %v500 = vadd.f32 %v379, %v490
  %v501 = vadd.f32 %v380, %v491
  %v502 = vadd.f32 %v381, %v492
  %v503 = vadd.f32 %v382, %v493
  %v504 = vadd.f32 %v383, %v494
  %v505 = vadd.f32 %v384, %v495
  %506 = vrot.lane.b32.xlu0 %v15, 125
  %v507 = vpop.permute.xlu0 %506
  %508 = vrot.lane.b32.xlu0 %v16, 125
  %v509 = vpop.permute.xlu0 %508
  %510 = vrot.lane.b32.xlu0 %v17, 125
  %v511 = vpop.permute.xlu0 %510
  %512 = vrot.lane.b32.xlu0 %v18, 125
  %v513 = vpop.permute.xlu0 %512
  %514 = vrot.lane.b32.xlu0 %v19, 125
  %v515 = vpop.permute.xlu0 %514
  %516 = vrot.lane.b32.xlu0 %v20, 125
  %v517 = vpop.permute.xlu0 %516
  %518 = vrot.lane.b32.xlu0 %v21, 125
  %v519 = vpop.permute.xlu0 %518
  %520 = vrot.lane.b32.xlu0 %v22, 125
  %v521 = vpop.permute.xlu0 %520
  %522 = vrot.lane.b32.xlu0 %v23, 125
  %v523 = vpop.permute.xlu0 %522
  %524 = vrot.lane.b32.xlu0 %v24, 125
  %v525 = vpop.permute.xlu0 %524
  %vm536 = vcmask 1022976
  %v537 = vsel %vm536, %v507, 0.0
  %v538 = vsel %vm536, %v509, 0.0
  %v539 = vsel %vm536, %v511, 0.0
  %v540 = vsel %vm536, %v513, 0.0
  %v541 = vsel %vm536, %v515, 0.0
  %v542 = vsel %vm536, %v517, 0.0
  %v543 = vsel %vm536, %v519, 0.0
  %v544 = vsel %vm536, %v521, 0.0
  %v545 = vsel %vm536, %v523, 0.0
  %v546 = vsel %vm536, %v525, 0.0
  %547 = vset.pattern.permute.xlu0 51
  %548 = vperm.xlu0 %547, %v15
  %v549 = vpop.permute.xlu0 %548
  %551 = vset.pattern.permute.xlu0 51
  %552 = vperm.xlu0 %551, %v16
  %v553 = vpop.permute.xlu0 %552
  %555 = vset.pattern.permute.xlu0 51
  %556 = vperm.xlu0 %555, %v17
  %v557 = vpop.permute.xlu0 %556
  %559 = vset.pattern.permute.xlu0 51
  %560 = vperm.xlu0 %559, %v18
  %v561 = vpop.permute.xlu0 %560
  %563 = vset.pattern.permute.xlu0 51
  %564 = vperm.xlu0 %563, %v19
  %v565 = vpop.permute.xlu0 %564
  %567 = vset.pattern.permute.xlu0 51
  %568 = vperm.xlu0 %567, %v20
  %v569 = vpop.permute.xlu0 %568
  %571 = vset.pattern.permute.xlu0 51
  %572 = vperm.xlu0 %571, %v21
  %v573 = vpop.permute.xlu0 %572
  %575 = vset.pattern.permute.xlu0 51
  %576 = vperm.xlu0 %575, %v22
  %v577 = vpop.permute.xlu0 %576
  %579 = vset.pattern.permute.xlu0 51
  %580 = vperm.xlu0 %579, %v23
  %v581 = vpop.permute.xlu0 %580
  %583 = vset.pattern.permute.xlu0 51
  %584 = vperm.xlu0 %583, %v24
  %v585 = vpop.permute.xlu0 %584
  %v587 = vmul.f32 %v537, %v549
  %v588 = vmul.f32 %v538, %v553
  %v589 = vmul.f32 %v539, %v557
  %v590 = vmul.f32 %v540, %v561
  %v591 = vmul.f32 %v541, %v565
  %v592 = vmul.f32 %v542, %v569
  %v593 = vmul.f32 %v543, %v573
  %v594 = vmul.f32 %v544, %v577
  %v595 = vmul.f32 %v545, %v581
  %v596 = vmul.f32 %v546, %v585
  %v597 = vadd.f32 %v476, %v587
  %v598 = vadd.f32 %v477, %v588
  %v599 = vadd.f32 %v478, %v589
  %v600 = vadd.f32 %v479, %v590
  %v601 = vadd.f32 %v480, %v591
  %v602 = vadd.f32 %v481, %v592
  %v603 = vadd.f32 %v482, %v593
  %v604 = vadd.f32 %v483, %v594
  %v605 = vadd.f32 %v484, %v595
  %v606 = vadd.f32 %v485, %v596
  %v607 = vmul.f32 %v537, %v537
  %v608 = vmul.f32 %v538, %v538
  %v609 = vmul.f32 %v539, %v539
  %v610 = vmul.f32 %v540, %v540
  %v611 = vmul.f32 %v541, %v541
  %v612 = vmul.f32 %v542, %v542
  %v613 = vmul.f32 %v543, %v543
  %v614 = vmul.f32 %v544, %v544
  %v615 = vmul.f32 %v545, %v545
  %v616 = vmul.f32 %v546, %v546
  %v617 = vadd.f32 %v496, %v607
  %v618 = vadd.f32 %v497, %v608
  %v619 = vadd.f32 %v498, %v609
  %v620 = vadd.f32 %v499, %v610
  %v621 = vadd.f32 %v500, %v611
  %v622 = vadd.f32 %v501, %v612
  %v623 = vadd.f32 %v502, %v613
  %v624 = vadd.f32 %v503, %v614
  %v625 = vadd.f32 %v504, %v615
  %v626 = vadd.f32 %v505, %v616
  %627 = vrot.lane.b32.xlu0 %v15, 124
  %v628 = vpop.permute.xlu0 %627
  %629 = vrot.lane.b32.xlu0 %v16, 124
  %v630 = vpop.permute.xlu0 %629
  %631 = vrot.lane.b32.xlu0 %v17, 124
  %v632 = vpop.permute.xlu0 %631
  %633 = vrot.lane.b32.xlu0 %v18, 124
  %v634 = vpop.permute.xlu0 %633
  %635 = vrot.lane.b32.xlu0 %v19, 124
  %v636 = vpop.permute.xlu0 %635
  %637 = vrot.lane.b32.xlu0 %v20, 124
  %v638 = vpop.permute.xlu0 %637
  %639 = vrot.lane.b32.xlu0 %v21, 124
  %v640 = vpop.permute.xlu0 %639
  %641 = vrot.lane.b32.xlu0 %v22, 124
  %v642 = vpop.permute.xlu0 %641
  %643 = vrot.lane.b32.xlu0 %v23, 124
  %v644 = vpop.permute.xlu0 %643
  %645 = vrot.lane.b32.xlu0 %v24, 124
  %v646 = vpop.permute.xlu0 %645
  %vm657 = vcmask 1014784
  %v658 = vsel %vm657, %v628, 0.0
  %v659 = vsel %vm657, %v630, 0.0
  %v660 = vsel %vm657, %v632, 0.0
  %v661 = vsel %vm657, %v634, 0.0
  %v662 = vsel %vm657, %v636, 0.0
  %v663 = vsel %vm657, %v638, 0.0
  %v664 = vsel %vm657, %v640, 0.0
  %v665 = vsel %vm657, %v642, 0.0
  %v666 = vsel %vm657, %v644, 0.0
  %v667 = vsel %vm657, %v646, 0.0
  %668 = vset.pattern.permute.xlu0 52
  %669 = vperm.xlu0 %668, %v15
  %v670 = vpop.permute.xlu0 %669
  %672 = vset.pattern.permute.xlu0 52
  %673 = vperm.xlu0 %672, %v16
  %v674 = vpop.permute.xlu0 %673
  %676 = vset.pattern.permute.xlu0 52
  %677 = vperm.xlu0 %676, %v17
  %v678 = vpop.permute.xlu0 %677
  %680 = vset.pattern.permute.xlu0 52
  %681 = vperm.xlu0 %680, %v18
  %v682 = vpop.permute.xlu0 %681
  %684 = vset.pattern.permute.xlu0 52
  %685 = vperm.xlu0 %684, %v19
  %v686 = vpop.permute.xlu0 %685
  %688 = vset.pattern.permute.xlu0 52
  %689 = vperm.xlu0 %688, %v20
  %v690 = vpop.permute.xlu0 %689
  %692 = vset.pattern.permute.xlu0 52
  %693 = vperm.xlu0 %692, %v21
  %v694 = vpop.permute.xlu0 %693
  %696 = vset.pattern.permute.xlu0 52
  %697 = vperm.xlu0 %696, %v22
  %v698 = vpop.permute.xlu0 %697
  %700 = vset.pattern.permute.xlu0 52
  %701 = vperm.xlu0 %700, %v23
  %v702 = vpop.permute.xlu0 %701
  %704 = vset.pattern.permute.xlu0 52
  %705 = vperm.xlu0 %704, %v24
  %v706 = vpop.permute.xlu0 %705
  %v708 = vmul.f32 %v658, %v670
  %v709 = vmul.f32 %v659, %v674
  %v710 = vmul.f32 %v660, %v678
  %v711 = vmul.f32 %v661, %v682
  %v712 = vmul.f32 %v662, %v686
  %v713 = vmul.f32 %v663, %v690
  %v714 = vmul.f32 %v664, %v694
  %v715 = vmul.f32 %v665, %v698
  %v716 = vmul.f32 %v666, %v702
  %v717 = vmul.f32 %v667, %v706
  %v718 = vadd.f32 %v597, %v708
  %v719 = vadd.f32 %v598, %v709
  %v720 = vadd.f32 %v599, %v710
  %v721 = vadd.f32 %v600, %v711
  %v722 = vadd.f32 %v601, %v712
  %v723 = vadd.f32 %v602, %v713
  %v724 = vadd.f32 %v603, %v714
  %v725 = vadd.f32 %v604, %v715
  %v726 = vadd.f32 %v605, %v716
  %v727 = vadd.f32 %v606, %v717
  %v728 = vmul.f32 %v658, %v658
  %v729 = vmul.f32 %v659, %v659
  %v730 = vmul.f32 %v660, %v660
  %v731 = vmul.f32 %v661, %v661
  %v732 = vmul.f32 %v662, %v662
  %v733 = vmul.f32 %v663, %v663
  %v734 = vmul.f32 %v664, %v664
  %v735 = vmul.f32 %v665, %v665
  %v736 = vmul.f32 %v666, %v666
  %v737 = vmul.f32 %v667, %v667
  %v738 = vadd.f32 %v617, %v728
  %v739 = vadd.f32 %v618, %v729
  %v740 = vadd.f32 %v619, %v730
  %v741 = vadd.f32 %v620, %v731
  %v742 = vadd.f32 %v621, %v732
  %v743 = vadd.f32 %v622, %v733
  %v744 = vadd.f32 %v623, %v734
  %v745 = vadd.f32 %v624, %v735
  %v746 = vadd.f32 %v625, %v736
  %v747 = vadd.f32 %v626, %v737
  %748 = vrot.lane.b32.xlu0 %v15, 123
  %v749 = vpop.permute.xlu0 %748
  %750 = vrot.lane.b32.xlu0 %v16, 123
  %v751 = vpop.permute.xlu0 %750
  %752 = vrot.lane.b32.xlu0 %v17, 123
  %v753 = vpop.permute.xlu0 %752
  %754 = vrot.lane.b32.xlu0 %v18, 123
  %v755 = vpop.permute.xlu0 %754
  %756 = vrot.lane.b32.xlu0 %v19, 123
  %v757 = vpop.permute.xlu0 %756
  %758 = vrot.lane.b32.xlu0 %v20, 123
  %v759 = vpop.permute.xlu0 %758
  %760 = vrot.lane.b32.xlu0 %v21, 123
  %v761 = vpop.permute.xlu0 %760
  %762 = vrot.lane.b32.xlu0 %v22, 123
  %v763 = vpop.permute.xlu0 %762
  %764 = vrot.lane.b32.xlu0 %v23, 123
  %v765 = vpop.permute.xlu0 %764
  %766 = vrot.lane.b32.xlu0 %v24, 123
  %v767 = vpop.permute.xlu0 %766
  %vm778 = vcmask 1006592
  %v779 = vsel %vm778, %v749, 0.0
  %v780 = vsel %vm778, %v751, 0.0
  %v781 = vsel %vm778, %v753, 0.0
  %v782 = vsel %vm778, %v755, 0.0
  %v783 = vsel %vm778, %v757, 0.0
  %v784 = vsel %vm778, %v759, 0.0
  %v785 = vsel %vm778, %v761, 0.0
  %v786 = vsel %vm778, %v763, 0.0
  %v787 = vsel %vm778, %v765, 0.0
  %v788 = vsel %vm778, %v767, 0.0
  %789 = vset.pattern.permute.xlu0 53
  %790 = vperm.xlu0 %789, %v15
  %v791 = vpop.permute.xlu0 %790
  %793 = vset.pattern.permute.xlu0 53
  %794 = vperm.xlu0 %793, %v16
  %v795 = vpop.permute.xlu0 %794
  %797 = vset.pattern.permute.xlu0 53
  %798 = vperm.xlu0 %797, %v17
  %v799 = vpop.permute.xlu0 %798
  %801 = vset.pattern.permute.xlu0 53
  %802 = vperm.xlu0 %801, %v18
  %v803 = vpop.permute.xlu0 %802
  %805 = vset.pattern.permute.xlu0 53
  %806 = vperm.xlu0 %805, %v19
  %v807 = vpop.permute.xlu0 %806
  %809 = vset.pattern.permute.xlu0 53
  %810 = vperm.xlu0 %809, %v20
  %v811 = vpop.permute.xlu0 %810
  %813 = vset.pattern.permute.xlu0 53
  %814 = vperm.xlu0 %813, %v21
  %v815 = vpop.permute.xlu0 %814
  %817 = vset.pattern.permute.xlu0 53
  %818 = vperm.xlu0 %817, %v22
  %v819 = vpop.permute.xlu0 %818
  %821 = vset.pattern.permute.xlu0 53
  %822 = vperm.xlu0 %821, %v23
  %v823 = vpop.permute.xlu0 %822
  %825 = vset.pattern.permute.xlu0 53
  %826 = vperm.xlu0 %825, %v24
  %v827 = vpop.permute.xlu0 %826
  %v829 = vmul.f32 %v779, %v791
  %v830 = vmul.f32 %v780, %v795
  %v831 = vmul.f32 %v781, %v799
  %v832 = vmul.f32 %v782, %v803
  %v833 = vmul.f32 %v783, %v807
  %v834 = vmul.f32 %v784, %v811
  %v835 = vmul.f32 %v785, %v815
  %v836 = vmul.f32 %v786, %v819
  %v837 = vmul.f32 %v787, %v823
  %v838 = vmul.f32 %v788, %v827
  %v839 = vadd.f32 %v718, %v829
  %v840 = vadd.f32 %v719, %v830
  %v841 = vadd.f32 %v720, %v831
  %v842 = vadd.f32 %v721, %v832
  %v843 = vadd.f32 %v722, %v833
  %v844 = vadd.f32 %v723, %v834
  %v845 = vadd.f32 %v724, %v835
  %v846 = vadd.f32 %v725, %v836
  %v847 = vadd.f32 %v726, %v837
  %v848 = vadd.f32 %v727, %v838
  %v849 = vmul.f32 %v779, %v779
  %v850 = vmul.f32 %v780, %v780
  %v851 = vmul.f32 %v781, %v781
  %v852 = vmul.f32 %v782, %v782
  %v853 = vmul.f32 %v783, %v783
  %v854 = vmul.f32 %v784, %v784
  %v855 = vmul.f32 %v785, %v785
  %v856 = vmul.f32 %v786, %v786
  %v857 = vmul.f32 %v787, %v787
  %v858 = vmul.f32 %v788, %v788
  %v859 = vadd.f32 %v738, %v849
  %v860 = vadd.f32 %v739, %v850
  %v861 = vadd.f32 %v740, %v851
  %v862 = vadd.f32 %v741, %v852
  %v863 = vadd.f32 %v742, %v853
  %v864 = vadd.f32 %v743, %v854
  %v865 = vadd.f32 %v744, %v855
  %v866 = vadd.f32 %v745, %v856
  %v867 = vadd.f32 %v746, %v857
  %v868 = vadd.f32 %v747, %v858
  %869 = vrot.lane.b32.xlu0 %v15, 122
  %v870 = vpop.permute.xlu0 %869
  %871 = vrot.lane.b32.xlu0 %v16, 122
  %v872 = vpop.permute.xlu0 %871
  %873 = vrot.lane.b32.xlu0 %v17, 122
  %v874 = vpop.permute.xlu0 %873
  %875 = vrot.lane.b32.xlu0 %v18, 122
  %v876 = vpop.permute.xlu0 %875
  %877 = vrot.lane.b32.xlu0 %v19, 122
  %v878 = vpop.permute.xlu0 %877
  %879 = vrot.lane.b32.xlu0 %v20, 122
  %v880 = vpop.permute.xlu0 %879
  %881 = vrot.lane.b32.xlu0 %v21, 122
  %v882 = vpop.permute.xlu0 %881
  %883 = vrot.lane.b32.xlu0 %v22, 122
  %v884 = vpop.permute.xlu0 %883
  %885 = vrot.lane.b32.xlu0 %v23, 122
  %v886 = vpop.permute.xlu0 %885
  %887 = vrot.lane.b32.xlu0 %v24, 122
  %v888 = vpop.permute.xlu0 %887
  %vm899 = vcmask 998400
  %v900 = vsel %vm899, %v870, 0.0
  %v901 = vsel %vm899, %v872, 0.0
  %v902 = vsel %vm899, %v874, 0.0
  %v903 = vsel %vm899, %v876, 0.0
  %v904 = vsel %vm899, %v878, 0.0
  %v905 = vsel %vm899, %v880, 0.0
  %v906 = vsel %vm899, %v882, 0.0
  %v907 = vsel %vm899, %v884, 0.0
  %v908 = vsel %vm899, %v886, 0.0
  %v909 = vsel %vm899, %v888, 0.0
  %910 = vset.pattern.permute.xlu0 54
  %911 = vperm.xlu0 %910, %v15
  %v912 = vpop.permute.xlu0 %911
  %914 = vset.pattern.permute.xlu0 54
  %915 = vperm.xlu0 %914, %v16
  %v916 = vpop.permute.xlu0 %915
  %918 = vset.pattern.permute.xlu0 54
  %919 = vperm.xlu0 %918, %v17
  %v920 = vpop.permute.xlu0 %919
  %922 = vset.pattern.permute.xlu0 54
  %923 = vperm.xlu0 %922, %v18
  %v924 = vpop.permute.xlu0 %923
  %926 = vset.pattern.permute.xlu0 54
  %927 = vperm.xlu0 %926, %v19
  %v928 = vpop.permute.xlu0 %927
  %930 = vset.pattern.permute.xlu0 54
  %931 = vperm.xlu0 %930, %v20
  %v932 = vpop.permute.xlu0 %931
  %934 = vset.pattern.permute.xlu0 54
  %935 = vperm.xlu0 %934, %v21
  %v936 = vpop.permute.xlu0 %935
  %938 = vset.pattern.permute.xlu0 54
  %939 = vperm.xlu0 %938, %v22
  %v940 = vpop.permute.xlu0 %939
  %942 = vset.pattern.permute.xlu0 54
  %943 = vperm.xlu0 %942, %v23
  %v944 = vpop.permute.xlu0 %943
  %946 = vset.pattern.permute.xlu0 54
  %947 = vperm.xlu0 %946, %v24
  %v948 = vpop.permute.xlu0 %947
  %v950 = vmul.f32 %v900, %v912
  %v951 = vmul.f32 %v901, %v916
  %v952 = vmul.f32 %v902, %v920
  %v953 = vmul.f32 %v903, %v924
  %v954 = vmul.f32 %v904, %v928
  %v955 = vmul.f32 %v905, %v932
  %v956 = vmul.f32 %v906, %v936
  %v957 = vmul.f32 %v907, %v940
  %v958 = vmul.f32 %v908, %v944
  %v959 = vmul.f32 %v909, %v948
  %v960 = vadd.f32 %v839, %v950
  %v961 = vadd.f32 %v840, %v951
  %v962 = vadd.f32 %v841, %v952
  %v963 = vadd.f32 %v842, %v953
  %v964 = vadd.f32 %v843, %v954
  %v965 = vadd.f32 %v844, %v955
  %v966 = vadd.f32 %v845, %v956
  %v967 = vadd.f32 %v846, %v957
  %v968 = vadd.f32 %v847, %v958
  %v969 = vadd.f32 %v848, %v959
  %v970 = vmul.f32 %v900, %v900
  %v971 = vmul.f32 %v901, %v901
  %v972 = vmul.f32 %v902, %v902
  %v973 = vmul.f32 %v903, %v903
  %v974 = vmul.f32 %v904, %v904
  %v975 = vmul.f32 %v905, %v905
  %v976 = vmul.f32 %v906, %v906
  %v977 = vmul.f32 %v907, %v907
  %v978 = vmul.f32 %v908, %v908
  %v979 = vmul.f32 %v909, %v909
  %v980 = vadd.f32 %v859, %v970
  %v981 = vadd.f32 %v860, %v971
  %v982 = vadd.f32 %v861, %v972
  %v983 = vadd.f32 %v862, %v973
  %v984 = vadd.f32 %v863, %v974
  %v985 = vadd.f32 %v864, %v975
  %v986 = vadd.f32 %v865, %v976
  %v987 = vadd.f32 %v866, %v977
  %v988 = vadd.f32 %v867, %v978
  %v989 = vadd.f32 %v868, %v979
  %990 = vrot.lane.b32.xlu0 %v15, 121
  %v991 = vpop.permute.xlu0 %990
  %992 = vrot.lane.b32.xlu0 %v16, 121
  %v993 = vpop.permute.xlu0 %992
  %994 = vrot.lane.b32.xlu0 %v17, 121
  %v995 = vpop.permute.xlu0 %994
  %996 = vrot.lane.b32.xlu0 %v18, 121
  %v997 = vpop.permute.xlu0 %996
  %998 = vrot.lane.b32.xlu0 %v19, 121
  %v999 = vpop.permute.xlu0 %998
  %1000 = vrot.lane.b32.xlu0 %v20, 121
  %v1001 = vpop.permute.xlu0 %1000
  %1002 = vrot.lane.b32.xlu0 %v21, 121
  %v1003 = vpop.permute.xlu0 %1002
  %1004 = vrot.lane.b32.xlu0 %v22, 121
  %v1005 = vpop.permute.xlu0 %1004
  %1006 = vrot.lane.b32.xlu0 %v23, 121
  %v1007 = vpop.permute.xlu0 %1006
  %1008 = vrot.lane.b32.xlu0 %v24, 121
  %v1009 = vpop.permute.xlu0 %1008
  %vm1020 = vcmask 990208
  %v1021 = vsel %vm1020, %v991, 0.0
  %v1022 = vsel %vm1020, %v993, 0.0
  %v1023 = vsel %vm1020, %v995, 0.0
  %v1024 = vsel %vm1020, %v997, 0.0
  %v1025 = vsel %vm1020, %v999, 0.0
  %v1026 = vsel %vm1020, %v1001, 0.0
  %v1027 = vsel %vm1020, %v1003, 0.0
  %v1028 = vsel %vm1020, %v1005, 0.0
  %v1029 = vsel %vm1020, %v1007, 0.0
  %v1030 = vsel %vm1020, %v1009, 0.0
  %1031 = vset.pattern.permute.xlu0 55
  %1032 = vperm.xlu0 %1031, %v15
  %v1033 = vpop.permute.xlu0 %1032
  %1035 = vset.pattern.permute.xlu0 55
  %1036 = vperm.xlu0 %1035, %v16
  %v1037 = vpop.permute.xlu0 %1036
  %1039 = vset.pattern.permute.xlu0 55
  %1040 = vperm.xlu0 %1039, %v17
  %v1041 = vpop.permute.xlu0 %1040
  %1043 = vset.pattern.permute.xlu0 55
  %1044 = vperm.xlu0 %1043, %v18
  %v1045 = vpop.permute.xlu0 %1044
  %1047 = vset.pattern.permute.xlu0 55
  %1048 = vperm.xlu0 %1047, %v19
  %v1049 = vpop.permute.xlu0 %1048
  %1051 = vset.pattern.permute.xlu0 55
  %1052 = vperm.xlu0 %1051, %v20
  %v1053 = vpop.permute.xlu0 %1052
  %1055 = vset.pattern.permute.xlu0 55
  %1056 = vperm.xlu0 %1055, %v21
  %v1057 = vpop.permute.xlu0 %1056
  %1059 = vset.pattern.permute.xlu0 55
  %1060 = vperm.xlu0 %1059, %v22
  %v1061 = vpop.permute.xlu0 %1060
  %1063 = vset.pattern.permute.xlu0 55
  %1064 = vperm.xlu0 %1063, %v23
  %v1065 = vpop.permute.xlu0 %1064
  %1067 = vset.pattern.permute.xlu0 55
  %1068 = vperm.xlu0 %1067, %v24
  %v1069 = vpop.permute.xlu0 %1068
  %v1071 = vmul.f32 %v1021, %v1033
  %v1072 = vmul.f32 %v1022, %v1037
  %v1073 = vmul.f32 %v1023, %v1041
  %v1074 = vmul.f32 %v1024, %v1045
  %v1075 = vmul.f32 %v1025, %v1049
  %v1076 = vmul.f32 %v1026, %v1053
  %v1077 = vmul.f32 %v1027, %v1057
  %v1078 = vmul.f32 %v1028, %v1061
  %v1079 = vmul.f32 %v1029, %v1065
  %v1080 = vmul.f32 %v1030, %v1069
  %v1081 = vadd.f32 %v960, %v1071
  %v1082 = vadd.f32 %v961, %v1072
  %v1083 = vadd.f32 %v962, %v1073
  %v1084 = vadd.f32 %v963, %v1074
  %v1085 = vadd.f32 %v964, %v1075
  %v1086 = vadd.f32 %v965, %v1076
  %v1087 = vadd.f32 %v966, %v1077
  %v1088 = vadd.f32 %v967, %v1078
  %v1089 = vadd.f32 %v968, %v1079
  %v1090 = vadd.f32 %v969, %v1080
  %v1091 = vmul.f32 %v1021, %v1021
  %v1092 = vmul.f32 %v1022, %v1022
  %v1093 = vmul.f32 %v1023, %v1023
  %v1094 = vmul.f32 %v1024, %v1024
  %v1095 = vmul.f32 %v1025, %v1025
  %v1096 = vmul.f32 %v1026, %v1026
  %v1097 = vmul.f32 %v1027, %v1027
  %v1098 = vmul.f32 %v1028, %v1028
  %v1099 = vmul.f32 %v1029, %v1029
  %v1100 = vmul.f32 %v1030, %v1030
  %v1101 = vadd.f32 %v980, %v1091
  %v1102 = vadd.f32 %v981, %v1092
  %v1103 = vadd.f32 %v982, %v1093
  %v1104 = vadd.f32 %v983, %v1094
  %v1105 = vadd.f32 %v984, %v1095
  %v1106 = vadd.f32 %v985, %v1096
  %v1107 = vadd.f32 %v986, %v1097
  %v1108 = vadd.f32 %v987, %v1098
  %v1109 = vadd.f32 %v988, %v1099
  %v1110 = vadd.f32 %v989, %v1100
  %1111 = vrot.lane.b32.xlu0 %v15, 120
  %v1112 = vpop.permute.xlu0 %1111
  %1113 = vrot.lane.b32.xlu0 %v16, 120
  %v1114 = vpop.permute.xlu0 %1113
  %1115 = vrot.lane.b32.xlu0 %v17, 120
  %v1116 = vpop.permute.xlu0 %1115
  %1117 = vrot.lane.b32.xlu0 %v18, 120
  %v1118 = vpop.permute.xlu0 %1117
  %1119 = vrot.lane.b32.xlu0 %v19, 120
  %v1120 = vpop.permute.xlu0 %1119
  %1121 = vrot.lane.b32.xlu0 %v20, 120
  %v1122 = vpop.permute.xlu0 %1121
  %1123 = vrot.lane.b32.xlu0 %v21, 120
  %v1124 = vpop.permute.xlu0 %1123
  %1125 = vrot.lane.b32.xlu0 %v22, 120
  %v1126 = vpop.permute.xlu0 %1125
  %1127 = vrot.lane.b32.xlu0 %v23, 120
  %v1128 = vpop.permute.xlu0 %1127
  %1129 = vrot.lane.b32.xlu0 %v24, 120
  %v1130 = vpop.permute.xlu0 %1129
  %vm1141 = vcmask 982016
  %v1142 = vsel %vm1141, %v1112, 0.0
  %v1143 = vsel %vm1141, %v1114, 0.0
  %v1144 = vsel %vm1141, %v1116, 0.0
  %v1145 = vsel %vm1141, %v1118, 0.0
  %v1146 = vsel %vm1141, %v1120, 0.0
  %v1147 = vsel %vm1141, %v1122, 0.0
  %v1148 = vsel %vm1141, %v1124, 0.0
  %v1149 = vsel %vm1141, %v1126, 0.0
  %v1150 = vsel %vm1141, %v1128, 0.0
  %v1151 = vsel %vm1141, %v1130, 0.0
  %1152 = vset.pattern.permute.xlu0 56
  %1153 = vperm.xlu0 %1152, %v15
  %v1154 = vpop.permute.xlu0 %1153
  %1156 = vset.pattern.permute.xlu0 56
  %1157 = vperm.xlu0 %1156, %v16
  %v1158 = vpop.permute.xlu0 %1157
  %1160 = vset.pattern.permute.xlu0 56
  %1161 = vperm.xlu0 %1160, %v17
  %v1162 = vpop.permute.xlu0 %1161
  %1164 = vset.pattern.permute.xlu0 56
  %1165 = vperm.xlu0 %1164, %v18
  %v1166 = vpop.permute.xlu0 %1165
  %1168 = vset.pattern.permute.xlu0 56
  %1169 = vperm.xlu0 %1168, %v19
  %v1170 = vpop.permute.xlu0 %1169
  %1172 = vset.pattern.permute.xlu0 56
  %1173 = vperm.xlu0 %1172, %v20
  %v1174 = vpop.permute.xlu0 %1173
  %1176 = vset.pattern.permute.xlu0 56
  %1177 = vperm.xlu0 %1176, %v21
  %v1178 = vpop.permute.xlu0 %1177
  %1180 = vset.pattern.permute.xlu0 56
  %1181 = vperm.xlu0 %1180, %v22
  %v1182 = vpop.permute.xlu0 %1181
  %1184 = vset.pattern.permute.xlu0 56
  %1185 = vperm.xlu0 %1184, %v23
  %v1186 = vpop.permute.xlu0 %1185
  %1188 = vset.pattern.permute.xlu0 56
  %1189 = vperm.xlu0 %1188, %v24
  %v1190 = vpop.permute.xlu0 %1189
  %v1192 = vmul.f32 %v1142, %v1154
  %v1193 = vmul.f32 %v1143, %v1158
  %v1194 = vmul.f32 %v1144, %v1162
  %v1195 = vmul.f32 %v1145, %v1166
  %v1196 = vmul.f32 %v1146, %v1170
  %v1197 = vmul.f32 %v1147, %v1174
  %v1198 = vmul.f32 %v1148, %v1178
  %v1199 = vmul.f32 %v1149, %v1182
  %v1200 = vmul.f32 %v1150, %v1186
  %v1201 = vmul.f32 %v1151, %v1190
  %v1202 = vadd.f32 %v1081, %v1192
  %v1203 = vadd.f32 %v1082, %v1193
  %v1204 = vadd.f32 %v1083, %v1194
  %v1205 = vadd.f32 %v1084, %v1195
  %v1206 = vadd.f32 %v1085, %v1196
  %v1207 = vadd.f32 %v1086, %v1197
  %v1208 = vadd.f32 %v1087, %v1198
  %v1209 = vadd.f32 %v1088, %v1199
  %v1210 = vadd.f32 %v1089, %v1200
  %v1211 = vadd.f32 %v1090, %v1201
  %v1212 = vmul.f32 %v1142, %v1142
  %v1213 = vmul.f32 %v1143, %v1143
  %v1214 = vmul.f32 %v1144, %v1144
  %v1215 = vmul.f32 %v1145, %v1145
  %v1216 = vmul.f32 %v1146, %v1146
  %v1217 = vmul.f32 %v1147, %v1147
  %v1218 = vmul.f32 %v1148, %v1148
  %v1219 = vmul.f32 %v1149, %v1149
  %v1220 = vmul.f32 %v1150, %v1150
  %v1221 = vmul.f32 %v1151, %v1151
  %v1222 = vadd.f32 %v1101, %v1212
  %v1223 = vadd.f32 %v1102, %v1213
  %v1224 = vadd.f32 %v1103, %v1214
  %v1225 = vadd.f32 %v1104, %v1215
  %v1226 = vadd.f32 %v1105, %v1216
  %v1227 = vadd.f32 %v1106, %v1217
  %v1228 = vadd.f32 %v1107, %v1218
  %v1229 = vadd.f32 %v1108, %v1219
  %v1230 = vadd.f32 %v1109, %v1220
  %v1231 = vadd.f32 %v1110, %v1221
  %1232 = vrot.lane.b32.xlu0 %v15, 119
  %v1233 = vpop.permute.xlu0 %1232
  %1234 = vrot.lane.b32.xlu0 %v16, 119
  %v1235 = vpop.permute.xlu0 %1234
  %1236 = vrot.lane.b32.xlu0 %v17, 119
  %v1237 = vpop.permute.xlu0 %1236
  %1238 = vrot.lane.b32.xlu0 %v18, 119
  %v1239 = vpop.permute.xlu0 %1238
  %1240 = vrot.lane.b32.xlu0 %v19, 119
  %v1241 = vpop.permute.xlu0 %1240
  %1242 = vrot.lane.b32.xlu0 %v20, 119
  %v1243 = vpop.permute.xlu0 %1242
  %1244 = vrot.lane.b32.xlu0 %v21, 119
  %v1245 = vpop.permute.xlu0 %1244
  %1246 = vrot.lane.b32.xlu0 %v22, 119
  %v1247 = vpop.permute.xlu0 %1246
  %1248 = vrot.lane.b32.xlu0 %v23, 119
  %v1249 = vpop.permute.xlu0 %1248
  %1250 = vrot.lane.b32.xlu0 %v24, 119
  %v1251 = vpop.permute.xlu0 %1250
  %vm1262 = vcmask 973824
  %v1263 = vsel %vm1262, %v1233, 0.0
  %v1264 = vsel %vm1262, %v1235, 0.0
  %v1265 = vsel %vm1262, %v1237, 0.0
  %v1266 = vsel %vm1262, %v1239, 0.0
  %v1267 = vsel %vm1262, %v1241, 0.0
  %v1268 = vsel %vm1262, %v1243, 0.0
  %v1269 = vsel %vm1262, %v1245, 0.0
  %v1270 = vsel %vm1262, %v1247, 0.0
  %v1271 = vsel %vm1262, %v1249, 0.0
  %v1272 = vsel %vm1262, %v1251, 0.0
  %1273 = vset.pattern.permute.xlu0 57
  %1274 = vperm.xlu0 %1273, %v15
  %v1275 = vpop.permute.xlu0 %1274
  %1277 = vset.pattern.permute.xlu0 57
  %1278 = vperm.xlu0 %1277, %v16
  %v1279 = vpop.permute.xlu0 %1278
  %1281 = vset.pattern.permute.xlu0 57
  %1282 = vperm.xlu0 %1281, %v17
  %v1283 = vpop.permute.xlu0 %1282
  %1285 = vset.pattern.permute.xlu0 57
  %1286 = vperm.xlu0 %1285, %v18
  %v1287 = vpop.permute.xlu0 %1286
  %1289 = vset.pattern.permute.xlu0 57
  %1290 = vperm.xlu0 %1289, %v19
  %v1291 = vpop.permute.xlu0 %1290
  %1293 = vset.pattern.permute.xlu0 57
  %1294 = vperm.xlu0 %1293, %v20
  %v1295 = vpop.permute.xlu0 %1294
  %1297 = vset.pattern.permute.xlu0 57
  %1298 = vperm.xlu0 %1297, %v21
  %v1299 = vpop.permute.xlu0 %1298
  %1301 = vset.pattern.permute.xlu0 57
  %1302 = vperm.xlu0 %1301, %v22
  %v1303 = vpop.permute.xlu0 %1302
  %1305 = vset.pattern.permute.xlu0 57
  %1306 = vperm.xlu0 %1305, %v23
  %v1307 = vpop.permute.xlu0 %1306
  %1309 = vset.pattern.permute.xlu0 57
  %1310 = vperm.xlu0 %1309, %v24
  %v1311 = vpop.permute.xlu0 %1310
  %v1313 = vmul.f32 %v1263, %v1275
  %v1314 = vmul.f32 %v1264, %v1279
  %v1315 = vmul.f32 %v1265, %v1283
  %v1316 = vmul.f32 %v1266, %v1287
  %v1317 = vmul.f32 %v1267, %v1291
  %v1318 = vmul.f32 %v1268, %v1295
  %v1319 = vmul.f32 %v1269, %v1299
  %v1320 = vmul.f32 %v1270, %v1303
  %v1321 = vmul.f32 %v1271, %v1307
  %v1322 = vmul.f32 %v1272, %v1311
  %v1323 = vadd.f32 %v1202, %v1313
  %v1324 = vadd.f32 %v1203, %v1314
  %v1325 = vadd.f32 %v1204, %v1315
  %v1326 = vadd.f32 %v1205, %v1316
  %v1327 = vadd.f32 %v1206, %v1317
  %v1328 = vadd.f32 %v1207, %v1318
  %v1329 = vadd.f32 %v1208, %v1319
  %v1330 = vadd.f32 %v1209, %v1320
  %v1331 = vadd.f32 %v1210, %v1321
  %v1332 = vadd.f32 %v1211, %v1322
  %v1333 = vmul.f32 %v1263, %v1263
  %v1334 = vmul.f32 %v1264, %v1264
  %v1335 = vmul.f32 %v1265, %v1265
  %v1336 = vmul.f32 %v1266, %v1266
  %v1337 = vmul.f32 %v1267, %v1267
  %v1338 = vmul.f32 %v1268, %v1268
  %v1339 = vmul.f32 %v1269, %v1269
  %v1340 = vmul.f32 %v1270, %v1270
  %v1341 = vmul.f32 %v1271, %v1271
  %v1342 = vmul.f32 %v1272, %v1272
  %v1343 = vadd.f32 %v1222, %v1333
  %v1344 = vadd.f32 %v1223, %v1334
  %v1345 = vadd.f32 %v1224, %v1335
  %v1346 = vadd.f32 %v1225, %v1336
  %v1347 = vadd.f32 %v1226, %v1337
  %v1348 = vadd.f32 %v1227, %v1338
  %v1349 = vadd.f32 %v1228, %v1339
  %v1350 = vadd.f32 %v1229, %v1340
  %v1351 = vadd.f32 %v1230, %v1341
  %v1352 = vadd.f32 %v1231, %v1342
  %1353 = vrot.lane.b32.xlu0 %v15, 118
  %v1354 = vpop.permute.xlu0 %1353
  %1355 = vrot.lane.b32.xlu0 %v16, 118
  %v1356 = vpop.permute.xlu0 %1355
  %1357 = vrot.lane.b32.xlu0 %v17, 118
  %v1358 = vpop.permute.xlu0 %1357
  %1359 = vrot.lane.b32.xlu0 %v18, 118
  %v1360 = vpop.permute.xlu0 %1359
  %1361 = vrot.lane.b32.xlu0 %v19, 118
  %v1362 = vpop.permute.xlu0 %1361
  %1363 = vrot.lane.b32.xlu0 %v20, 118
  %v1364 = vpop.permute.xlu0 %1363
  %1365 = vrot.lane.b32.xlu0 %v21, 118
  %v1366 = vpop.permute.xlu0 %1365
  %1367 = vrot.lane.b32.xlu0 %v22, 118
  %v1368 = vpop.permute.xlu0 %1367
  %1369 = vrot.lane.b32.xlu0 %v23, 118
  %v1370 = vpop.permute.xlu0 %1369
  %1371 = vrot.lane.b32.xlu0 %v24, 118
  %v1372 = vpop.permute.xlu0 %1371
  %vm1383 = vcmask 965632
  %v1384 = vsel %vm1383, %v1354, 0.0
  %v1385 = vsel %vm1383, %v1356, 0.0
  %v1386 = vsel %vm1383, %v1358, 0.0
  %v1387 = vsel %vm1383, %v1360, 0.0
  %v1388 = vsel %vm1383, %v1362, 0.0
  %v1389 = vsel %vm1383, %v1364, 0.0
  %v1390 = vsel %vm1383, %v1366, 0.0
  %v1391 = vsel %vm1383, %v1368, 0.0
  %v1392 = vsel %vm1383, %v1370, 0.0
  %v1393 = vsel %vm1383, %v1372, 0.0
  %1394 = vset.pattern.permute.xlu0 58
  %1395 = vperm.xlu0 %1394, %v15
  %v1396 = vpop.permute.xlu0 %1395
  %1398 = vset.pattern.permute.xlu0 58
  %1399 = vperm.xlu0 %1398, %v16
  %v1400 = vpop.permute.xlu0 %1399
  %1402 = vset.pattern.permute.xlu0 58
  %1403 = vperm.xlu0 %1402, %v17
  %v1404 = vpop.permute.xlu0 %1403
  %1406 = vset.pattern.permute.xlu0 58
  %1407 = vperm.xlu0 %1406, %v18
  %v1408 = vpop.permute.xlu0 %1407
  %1410 = vset.pattern.permute.xlu0 58
  %1411 = vperm.xlu0 %1410, %v19
  %v1412 = vpop.permute.xlu0 %1411
  %1414 = vset.pattern.permute.xlu0 58
  %1415 = vperm.xlu0 %1414, %v20
  %v1416 = vpop.permute.xlu0 %1415
  %1418 = vset.pattern.permute.xlu0 58
  %1419 = vperm.xlu0 %1418, %v21
  %v1420 = vpop.permute.xlu0 %1419
  %1422 = vset.pattern.permute.xlu0 58
  %1423 = vperm.xlu0 %1422, %v22
  %v1424 = vpop.permute.xlu0 %1423
  %1426 = vset.pattern.permute.xlu0 58
  %1427 = vperm.xlu0 %1426, %v23
  %v1428 = vpop.permute.xlu0 %1427
  %1430 = vset.pattern.permute.xlu0 58
  %1431 = vperm.xlu0 %1430, %v24
  %v1432 = vpop.permute.xlu0 %1431
  %v1434 = vmul.f32 %v1384, %v1396
  %v1435 = vmul.f32 %v1385, %v1400
  %v1436 = vmul.f32 %v1386, %v1404
  %v1437 = vmul.f32 %v1387, %v1408
  %v1438 = vmul.f32 %v1388, %v1412
  %v1439 = vmul.f32 %v1389, %v1416
  %v1440 = vmul.f32 %v1390, %v1420
  %v1441 = vmul.f32 %v1391, %v1424
  %v1442 = vmul.f32 %v1392, %v1428
  %v1443 = vmul.f32 %v1393, %v1432
  %v1444 = vadd.f32 %v1323, %v1434
  %v1445 = vadd.f32 %v1324, %v1435
  %v1446 = vadd.f32 %v1325, %v1436
  %v1447 = vadd.f32 %v1326, %v1437
  %v1448 = vadd.f32 %v1327, %v1438
  %v1449 = vadd.f32 %v1328, %v1439
  %v1450 = vadd.f32 %v1329, %v1440
  %v1451 = vadd.f32 %v1330, %v1441
  %v1452 = vadd.f32 %v1331, %v1442
  %v1453 = vadd.f32 %v1332, %v1443
  %v1454 = vmul.f32 %v1384, %v1384
  %v1455 = vmul.f32 %v1385, %v1385
  %v1456 = vmul.f32 %v1386, %v1386
  %v1457 = vmul.f32 %v1387, %v1387
  %v1458 = vmul.f32 %v1388, %v1388
  %v1459 = vmul.f32 %v1389, %v1389
  %v1460 = vmul.f32 %v1390, %v1390
  %v1461 = vmul.f32 %v1391, %v1391
  %v1462 = vmul.f32 %v1392, %v1392
  %v1463 = vmul.f32 %v1393, %v1393
  %v1464 = vadd.f32 %v1343, %v1454
  %v1465 = vadd.f32 %v1344, %v1455
  %v1466 = vadd.f32 %v1345, %v1456
  %v1467 = vadd.f32 %v1346, %v1457
  %v1468 = vadd.f32 %v1347, %v1458
  %v1469 = vadd.f32 %v1348, %v1459
  %v1470 = vadd.f32 %v1349, %v1460
  %v1471 = vadd.f32 %v1350, %v1461
  %v1472 = vadd.f32 %v1351, %v1462
  %v1473 = vadd.f32 %v1352, %v1463
  %1474 = vrot.lane.b32.xlu0 %v15, 117
  %v1475 = vpop.permute.xlu0 %1474
  %1476 = vrot.lane.b32.xlu0 %v16, 117
  %v1477 = vpop.permute.xlu0 %1476
  %1478 = vrot.lane.b32.xlu0 %v17, 117
  %v1479 = vpop.permute.xlu0 %1478
  %1480 = vrot.lane.b32.xlu0 %v18, 117
  %v1481 = vpop.permute.xlu0 %1480
  %1482 = vrot.lane.b32.xlu0 %v19, 117
  %v1483 = vpop.permute.xlu0 %1482
  %1484 = vrot.lane.b32.xlu0 %v20, 117
  %v1485 = vpop.permute.xlu0 %1484
  %1486 = vrot.lane.b32.xlu0 %v21, 117
  %v1487 = vpop.permute.xlu0 %1486
  %1488 = vrot.lane.b32.xlu0 %v22, 117
  %v1489 = vpop.permute.xlu0 %1488
  %1490 = vrot.lane.b32.xlu0 %v23, 117
  %v1491 = vpop.permute.xlu0 %1490
  %1492 = vrot.lane.b32.xlu0 %v24, 117
  %v1493 = vpop.permute.xlu0 %1492
  %vm1504 = vcmask 957440
  %v1505 = vsel %vm1504, %v1475, 0.0
  %v1506 = vsel %vm1504, %v1477, 0.0
  %v1507 = vsel %vm1504, %v1479, 0.0
  %v1508 = vsel %vm1504, %v1481, 0.0
  %v1509 = vsel %vm1504, %v1483, 0.0
  %v1510 = vsel %vm1504, %v1485, 0.0
  %v1511 = vsel %vm1504, %v1487, 0.0
  %v1512 = vsel %vm1504, %v1489, 0.0
  %v1513 = vsel %vm1504, %v1491, 0.0
  %v1514 = vsel %vm1504, %v1493, 0.0
  %1515 = vset.pattern.permute.xlu0 59
  %1516 = vperm.xlu0 %1515, %v15
  %v1517 = vpop.permute.xlu0 %1516
  %1519 = vset.pattern.permute.xlu0 59
  %1520 = vperm.xlu0 %1519, %v16
  %v1521 = vpop.permute.xlu0 %1520
  %1523 = vset.pattern.permute.xlu0 59
  %1524 = vperm.xlu0 %1523, %v17
  %v1525 = vpop.permute.xlu0 %1524
  %1527 = vset.pattern.permute.xlu0 59
  %1528 = vperm.xlu0 %1527, %v18
  %v1529 = vpop.permute.xlu0 %1528
  %1531 = vset.pattern.permute.xlu0 59
  %1532 = vperm.xlu0 %1531, %v19
  %v1533 = vpop.permute.xlu0 %1532
  %1535 = vset.pattern.permute.xlu0 59
  %1536 = vperm.xlu0 %1535, %v20
  %v1537 = vpop.permute.xlu0 %1536
  %1539 = vset.pattern.permute.xlu0 59
  %1540 = vperm.xlu0 %1539, %v21
  %v1541 = vpop.permute.xlu0 %1540
  %1543 = vset.pattern.permute.xlu0 59
  %1544 = vperm.xlu0 %1543, %v22
  %v1545 = vpop.permute.xlu0 %1544
  %1547 = vset.pattern.permute.xlu0 59
  %1548 = vperm.xlu0 %1547, %v23
  %v1549 = vpop.permute.xlu0 %1548
  %1551 = vset.pattern.permute.xlu0 59
  %1552 = vperm.xlu0 %1551, %v24
  %v1553 = vpop.permute.xlu0 %1552
  %v1555 = vmul.f32 %v1505, %v1517
  %v1556 = vmul.f32 %v1506, %v1521
  %v1557 = vmul.f32 %v1507, %v1525
  %v1558 = vmul.f32 %v1508, %v1529
  %v1559 = vmul.f32 %v1509, %v1533
  %v1560 = vmul.f32 %v1510, %v1537
  %v1561 = vmul.f32 %v1511, %v1541
  %v1562 = vmul.f32 %v1512, %v1545
  %v1563 = vmul.f32 %v1513, %v1549
  %v1564 = vmul.f32 %v1514, %v1553
  %v1565 = vadd.f32 %v1444, %v1555
  %v1566 = vadd.f32 %v1445, %v1556
  %v1567 = vadd.f32 %v1446, %v1557
  %v1568 = vadd.f32 %v1447, %v1558
  %v1569 = vadd.f32 %v1448, %v1559
  %v1570 = vadd.f32 %v1449, %v1560
  %v1571 = vadd.f32 %v1450, %v1561
  %v1572 = vadd.f32 %v1451, %v1562
  %v1573 = vadd.f32 %v1452, %v1563
  %v1574 = vadd.f32 %v1453, %v1564
  %v1575 = vmul.f32 %v1505, %v1505
  %v1576 = vmul.f32 %v1506, %v1506
  %v1577 = vmul.f32 %v1507, %v1507
  %v1578 = vmul.f32 %v1508, %v1508
  %v1579 = vmul.f32 %v1509, %v1509
  %v1580 = vmul.f32 %v1510, %v1510
  %v1581 = vmul.f32 %v1511, %v1511
  %v1582 = vmul.f32 %v1512, %v1512
  %v1583 = vmul.f32 %v1513, %v1513
  %v1584 = vmul.f32 %v1514, %v1514
  %v1585 = vadd.f32 %v1464, %v1575
  %v1586 = vadd.f32 %v1465, %v1576
  %v1587 = vadd.f32 %v1466, %v1577
  %v1588 = vadd.f32 %v1467, %v1578
  %v1589 = vadd.f32 %v1468, %v1579
  %v1590 = vadd.f32 %v1469, %v1580
  %v1591 = vadd.f32 %v1470, %v1581
  %v1592 = vadd.f32 %v1471, %v1582
  %v1593 = vadd.f32 %v1472, %v1583
  %v1594 = vadd.f32 %v1473, %v1584
  %1595 = vrot.lane.b32.xlu0 %v15, 116
  %v1596 = vpop.permute.xlu0 %1595
  %1597 = vrot.lane.b32.xlu0 %v16, 116
  %v1598 = vpop.permute.xlu0 %1597
  %1599 = vrot.lane.b32.xlu0 %v17, 116
  %v1600 = vpop.permute.xlu0 %1599
  %1601 = vrot.lane.b32.xlu0 %v18, 116
  %v1602 = vpop.permute.xlu0 %1601
  %1603 = vrot.lane.b32.xlu0 %v19, 116
  %v1604 = vpop.permute.xlu0 %1603
  %1605 = vrot.lane.b32.xlu0 %v20, 116
  %v1606 = vpop.permute.xlu0 %1605
  %1607 = vrot.lane.b32.xlu0 %v21, 116
  %v1608 = vpop.permute.xlu0 %1607
  %1609 = vrot.lane.b32.xlu0 %v22, 116
  %v1610 = vpop.permute.xlu0 %1609
  %1611 = vrot.lane.b32.xlu0 %v23, 116
  %v1612 = vpop.permute.xlu0 %1611
  %1613 = vrot.lane.b32.xlu0 %v24, 116
  %v1614 = vpop.permute.xlu0 %1613
  %vm1625 = vcmask 949248
  %v1626 = vsel %vm1625, %v1596, 0.0
  %v1627 = vsel %vm1625, %v1598, 0.0
  %v1628 = vsel %vm1625, %v1600, 0.0
  %v1629 = vsel %vm1625, %v1602, 0.0
  %v1630 = vsel %vm1625, %v1604, 0.0
  %v1631 = vsel %vm1625, %v1606, 0.0
  %v1632 = vsel %vm1625, %v1608, 0.0
  %v1633 = vsel %vm1625, %v1610, 0.0
  %v1634 = vsel %vm1625, %v1612, 0.0
  %v1635 = vsel %vm1625, %v1614, 0.0
  %1636 = vset.pattern.permute.xlu0 60
  %1637 = vperm.xlu0 %1636, %v15
  %v1638 = vpop.permute.xlu0 %1637
  %1640 = vset.pattern.permute.xlu0 60
  %1641 = vperm.xlu0 %1640, %v16
  %v1642 = vpop.permute.xlu0 %1641
  %1644 = vset.pattern.permute.xlu0 60
  %1645 = vperm.xlu0 %1644, %v17
  %v1646 = vpop.permute.xlu0 %1645
  %1648 = vset.pattern.permute.xlu0 60
  %1649 = vperm.xlu0 %1648, %v18
  %v1650 = vpop.permute.xlu0 %1649
  %1652 = vset.pattern.permute.xlu0 60
  %1653 = vperm.xlu0 %1652, %v19
  %v1654 = vpop.permute.xlu0 %1653
  %1656 = vset.pattern.permute.xlu0 60
  %1657 = vperm.xlu0 %1656, %v20
  %v1658 = vpop.permute.xlu0 %1657
  %1660 = vset.pattern.permute.xlu0 60
  %1661 = vperm.xlu0 %1660, %v21
  %v1662 = vpop.permute.xlu0 %1661
  %1664 = vset.pattern.permute.xlu0 60
  %1665 = vperm.xlu0 %1664, %v22
  %v1666 = vpop.permute.xlu0 %1665
  %1668 = vset.pattern.permute.xlu0 60
  %1669 = vperm.xlu0 %1668, %v23
  %v1670 = vpop.permute.xlu0 %1669
  %1672 = vset.pattern.permute.xlu0 60
  %1673 = vperm.xlu0 %1672, %v24
  %v1674 = vpop.permute.xlu0 %1673
  %v1676 = vmul.f32 %v1626, %v1638
  %v1677 = vmul.f32 %v1627, %v1642
  %v1678 = vmul.f32 %v1628, %v1646
  %v1679 = vmul.f32 %v1629, %v1650
  %v1680 = vmul.f32 %v1630, %v1654
  %v1681 = vmul.f32 %v1631, %v1658
  %v1682 = vmul.f32 %v1632, %v1662
  %v1683 = vmul.f32 %v1633, %v1666
  %v1684 = vmul.f32 %v1634, %v1670
  %v1685 = vmul.f32 %v1635, %v1674
  %v1686 = vadd.f32 %v1565, %v1676
  %v1687 = vadd.f32 %v1566, %v1677
  %v1688 = vadd.f32 %v1567, %v1678
  %v1689 = vadd.f32 %v1568, %v1679
  %v1690 = vadd.f32 %v1569, %v1680
  %v1691 = vadd.f32 %v1570, %v1681
  %v1692 = vadd.f32 %v1571, %v1682
  %v1693 = vadd.f32 %v1572, %v1683
  %v1694 = vadd.f32 %v1573, %v1684
  %v1695 = vadd.f32 %v1574, %v1685
  %v1696 = vmul.f32 %v1626, %v1626
  %v1697 = vmul.f32 %v1627, %v1627
  %v1698 = vmul.f32 %v1628, %v1628
  %v1699 = vmul.f32 %v1629, %v1629
  %v1700 = vmul.f32 %v1630, %v1630
  %v1701 = vmul.f32 %v1631, %v1631
  %v1702 = vmul.f32 %v1632, %v1632
  %v1703 = vmul.f32 %v1633, %v1633
  %v1704 = vmul.f32 %v1634, %v1634
  %v1705 = vmul.f32 %v1635, %v1635
  %v1706 = vadd.f32 %v1585, %v1696
  %v1707 = vadd.f32 %v1586, %v1697
  %v1708 = vadd.f32 %v1587, %v1698
  %v1709 = vadd.f32 %v1588, %v1699
  %v1710 = vadd.f32 %v1589, %v1700
  %v1711 = vadd.f32 %v1590, %v1701
  %v1712 = vadd.f32 %v1591, %v1702
  %v1713 = vadd.f32 %v1592, %v1703
  %v1714 = vadd.f32 %v1593, %v1704
  %v1715 = vadd.f32 %v1594, %v1705
  %1716 = vrot.lane.b32.xlu0 %v15, 115
  %v1717 = vpop.permute.xlu0 %1716
  %1718 = vrot.lane.b32.xlu0 %v16, 115
  %v1719 = vpop.permute.xlu0 %1718
  %1720 = vrot.lane.b32.xlu0 %v17, 115
  %v1721 = vpop.permute.xlu0 %1720
  %1722 = vrot.lane.b32.xlu0 %v18, 115
  %v1723 = vpop.permute.xlu0 %1722
  %1724 = vrot.lane.b32.xlu0 %v19, 115
  %v1725 = vpop.permute.xlu0 %1724
  %1726 = vrot.lane.b32.xlu0 %v20, 115
  %v1727 = vpop.permute.xlu0 %1726
  %1728 = vrot.lane.b32.xlu0 %v21, 115
  %v1729 = vpop.permute.xlu0 %1728
  %1730 = vrot.lane.b32.xlu0 %v22, 115
  %v1731 = vpop.permute.xlu0 %1730
  %1732 = vrot.lane.b32.xlu0 %v23, 115
  %v1733 = vpop.permute.xlu0 %1732
  %1734 = vrot.lane.b32.xlu0 %v24, 115
  %v1735 = vpop.permute.xlu0 %1734
  %vm1746 = vcmask 941056
  %v1747 = vsel %vm1746, %v1717, 0.0
  %v1748 = vsel %vm1746, %v1719, 0.0
  %v1749 = vsel %vm1746, %v1721, 0.0
  %v1750 = vsel %vm1746, %v1723, 0.0
  %v1751 = vsel %vm1746, %v1725, 0.0
  %v1752 = vsel %vm1746, %v1727, 0.0
  %v1753 = vsel %vm1746, %v1729, 0.0
  %v1754 = vsel %vm1746, %v1731, 0.0
  %v1755 = vsel %vm1746, %v1733, 0.0
  %v1756 = vsel %vm1746, %v1735, 0.0
  %1757 = vset.pattern.permute.xlu0 61
  %1758 = vperm.xlu0 %1757, %v15
  %v1759 = vpop.permute.xlu0 %1758
  %1761 = vset.pattern.permute.xlu0 61
  %1762 = vperm.xlu0 %1761, %v16
  %v1763 = vpop.permute.xlu0 %1762
  %1765 = vset.pattern.permute.xlu0 61
  %1766 = vperm.xlu0 %1765, %v17
  %v1767 = vpop.permute.xlu0 %1766
  %1769 = vset.pattern.permute.xlu0 61
  %1770 = vperm.xlu0 %1769, %v18
  %v1771 = vpop.permute.xlu0 %1770
  %1773 = vset.pattern.permute.xlu0 61
  %1774 = vperm.xlu0 %1773, %v19
  %v1775 = vpop.permute.xlu0 %1774
  %1777 = vset.pattern.permute.xlu0 61
  %1778 = vperm.xlu0 %1777, %v20
  %v1779 = vpop.permute.xlu0 %1778
  %1781 = vset.pattern.permute.xlu0 61
  %1782 = vperm.xlu0 %1781, %v21
  %v1783 = vpop.permute.xlu0 %1782
  %1785 = vset.pattern.permute.xlu0 61
  %1786 = vperm.xlu0 %1785, %v22
  %v1787 = vpop.permute.xlu0 %1786
  %1789 = vset.pattern.permute.xlu0 61
  %1790 = vperm.xlu0 %1789, %v23
  %v1791 = vpop.permute.xlu0 %1790
  %1793 = vset.pattern.permute.xlu0 61
  %1794 = vperm.xlu0 %1793, %v24
  %v1795 = vpop.permute.xlu0 %1794
  %v1797 = vmul.f32 %v1747, %v1759
  %v1798 = vmul.f32 %v1748, %v1763
  %v1799 = vmul.f32 %v1749, %v1767
  %v1800 = vmul.f32 %v1750, %v1771
  %v1801 = vmul.f32 %v1751, %v1775
  %v1802 = vmul.f32 %v1752, %v1779
  %v1803 = vmul.f32 %v1753, %v1783
  %v1804 = vmul.f32 %v1754, %v1787
  %v1805 = vmul.f32 %v1755, %v1791
  %v1806 = vmul.f32 %v1756, %v1795
  %v1807 = vadd.f32 %v1686, %v1797
  %v1808 = vadd.f32 %v1687, %v1798
  %v1809 = vadd.f32 %v1688, %v1799
  %v1810 = vadd.f32 %v1689, %v1800
  %v1811 = vadd.f32 %v1690, %v1801
  %v1812 = vadd.f32 %v1691, %v1802
  %v1813 = vadd.f32 %v1692, %v1803
  %v1814 = vadd.f32 %v1693, %v1804
  %v1815 = vadd.f32 %v1694, %v1805
  %v1816 = vadd.f32 %v1695, %v1806
  %v1817 = vmul.f32 %v1747, %v1747
  %v1818 = vmul.f32 %v1748, %v1748
  %v1819 = vmul.f32 %v1749, %v1749
  %v1820 = vmul.f32 %v1750, %v1750
  %v1821 = vmul.f32 %v1751, %v1751
  %v1822 = vmul.f32 %v1752, %v1752
  %v1823 = vmul.f32 %v1753, %v1753
  %v1824 = vmul.f32 %v1754, %v1754
  %v1825 = vmul.f32 %v1755, %v1755
  %v1826 = vmul.f32 %v1756, %v1756
  %v1827 = vadd.f32 %v1706, %v1817
  %v1828 = vadd.f32 %v1707, %v1818
  %v1829 = vadd.f32 %v1708, %v1819
  %v1830 = vadd.f32 %v1709, %v1820
  %v1831 = vadd.f32 %v1710, %v1821
  %v1832 = vadd.f32 %v1711, %v1822
  %v1833 = vadd.f32 %v1712, %v1823
  %v1834 = vadd.f32 %v1713, %v1824
  %v1835 = vadd.f32 %v1714, %v1825
  %v1836 = vadd.f32 %v1715, %v1826
  %1837 = vrot.lane.b32.xlu0 %v15, 114
  %v1838 = vpop.permute.xlu0 %1837
  %1839 = vrot.lane.b32.xlu0 %v16, 114
  %v1840 = vpop.permute.xlu0 %1839
  %1841 = vrot.lane.b32.xlu0 %v17, 114
  %v1842 = vpop.permute.xlu0 %1841
  %1843 = vrot.lane.b32.xlu0 %v18, 114
  %v1844 = vpop.permute.xlu0 %1843
  %1845 = vrot.lane.b32.xlu0 %v19, 114
  %v1846 = vpop.permute.xlu0 %1845
  %1847 = vrot.lane.b32.xlu0 %v20, 114
  %v1848 = vpop.permute.xlu0 %1847
  %1849 = vrot.lane.b32.xlu0 %v21, 114
  %v1850 = vpop.permute.xlu0 %1849
  %1851 = vrot.lane.b32.xlu0 %v22, 114
  %v1852 = vpop.permute.xlu0 %1851
  %1853 = vrot.lane.b32.xlu0 %v23, 114
  %v1854 = vpop.permute.xlu0 %1853
  %1855 = vrot.lane.b32.xlu0 %v24, 114
  %v1856 = vpop.permute.xlu0 %1855
  %vm1867 = vcmask 932864
  %v1868 = vsel %vm1867, %v1838, 0.0
  %v1869 = vsel %vm1867, %v1840, 0.0
  %v1870 = vsel %vm1867, %v1842, 0.0
  %v1871 = vsel %vm1867, %v1844, 0.0
  %v1872 = vsel %vm1867, %v1846, 0.0
  %v1873 = vsel %vm1867, %v1848, 0.0
  %v1874 = vsel %vm1867, %v1850, 0.0
  %v1875 = vsel %vm1867, %v1852, 0.0
  %v1876 = vsel %vm1867, %v1854, 0.0
  %v1877 = vsel %vm1867, %v1856, 0.0
  %1878 = vset.pattern.permute.xlu0 62
  %1879 = vperm.xlu0 %1878, %v15
  %v1880 = vpop.permute.xlu0 %1879
  %1882 = vset.pattern.permute.xlu0 62
  %1883 = vperm.xlu0 %1882, %v16
  %v1884 = vpop.permute.xlu0 %1883
  %1886 = vset.pattern.permute.xlu0 62
  %1887 = vperm.xlu0 %1886, %v17
  %v1888 = vpop.permute.xlu0 %1887
  %1890 = vset.pattern.permute.xlu0 62
  %1891 = vperm.xlu0 %1890, %v18
  %v1892 = vpop.permute.xlu0 %1891
  %1894 = vset.pattern.permute.xlu0 62
  %1895 = vperm.xlu0 %1894, %v19
  %v1896 = vpop.permute.xlu0 %1895
  %1898 = vset.pattern.permute.xlu0 62
  %1899 = vperm.xlu0 %1898, %v20
  %v1900 = vpop.permute.xlu0 %1899
  %1902 = vset.pattern.permute.xlu0 62
  %1903 = vperm.xlu0 %1902, %v21
  %v1904 = vpop.permute.xlu0 %1903
  %1906 = vset.pattern.permute.xlu0 62
  %1907 = vperm.xlu0 %1906, %v22
  %v1908 = vpop.permute.xlu0 %1907
  %1910 = vset.pattern.permute.xlu0 62
  %1911 = vperm.xlu0 %1910, %v23
  %v1912 = vpop.permute.xlu0 %1911
  %1914 = vset.pattern.permute.xlu0 62
  %1915 = vperm.xlu0 %1914, %v24
  %v1916 = vpop.permute.xlu0 %1915
  %v1918 = vmul.f32 %v1868, %v1880
  %v1919 = vmul.f32 %v1869, %v1884
  %v1920 = vmul.f32 %v1870, %v1888
  %v1921 = vmul.f32 %v1871, %v1892
  %v1922 = vmul.f32 %v1872, %v1896
  %v1923 = vmul.f32 %v1873, %v1900
  %v1924 = vmul.f32 %v1874, %v1904
  %v1925 = vmul.f32 %v1875, %v1908
  %v1926 = vmul.f32 %v1876, %v1912
  %v1927 = vmul.f32 %v1877, %v1916
  %v1928 = vadd.f32 %v1807, %v1918
  %v1929 = vadd.f32 %v1808, %v1919
  %v1930 = vadd.f32 %v1809, %v1920
  %v1931 = vadd.f32 %v1810, %v1921
  %v1932 = vadd.f32 %v1811, %v1922
  %v1933 = vadd.f32 %v1812, %v1923
  %v1934 = vadd.f32 %v1813, %v1924
  %v1935 = vadd.f32 %v1814, %v1925
  %v1936 = vadd.f32 %v1815, %v1926
  %v1937 = vadd.f32 %v1816, %v1927
  %v1938 = vmul.f32 %v1868, %v1868
  %v1939 = vmul.f32 %v1869, %v1869
  %v1940 = vmul.f32 %v1870, %v1870
  %v1941 = vmul.f32 %v1871, %v1871
  %v1942 = vmul.f32 %v1872, %v1872
  %v1943 = vmul.f32 %v1873, %v1873
  %v1944 = vmul.f32 %v1874, %v1874
  %v1945 = vmul.f32 %v1875, %v1875
  %v1946 = vmul.f32 %v1876, %v1876
  %v1947 = vmul.f32 %v1877, %v1877
  %v1948 = vadd.f32 %v1827, %v1938
  %v1949 = vadd.f32 %v1828, %v1939
  %v1950 = vadd.f32 %v1829, %v1940
  %v1951 = vadd.f32 %v1830, %v1941
  %v1952 = vadd.f32 %v1831, %v1942
  %v1953 = vadd.f32 %v1832, %v1943
  %v1954 = vadd.f32 %v1833, %v1944
  %v1955 = vadd.f32 %v1834, %v1945
  %v1956 = vadd.f32 %v1835, %v1946
  %v1957 = vadd.f32 %v1836, %v1947
  %1958 = vrot.lane.b32.xlu0 %v15, 113
  %v1959 = vpop.permute.xlu0 %1958
  %1960 = vrot.lane.b32.xlu0 %v16, 113
  %v1961 = vpop.permute.xlu0 %1960
  %1962 = vrot.lane.b32.xlu0 %v17, 113
  %v1963 = vpop.permute.xlu0 %1962
  %1964 = vrot.lane.b32.xlu0 %v18, 113
  %v1965 = vpop.permute.xlu0 %1964
  %1966 = vrot.lane.b32.xlu0 %v19, 113
  %v1967 = vpop.permute.xlu0 %1966
  %1968 = vrot.lane.b32.xlu0 %v20, 113
  %v1969 = vpop.permute.xlu0 %1968
  %1970 = vrot.lane.b32.xlu0 %v21, 113
  %v1971 = vpop.permute.xlu0 %1970
  %1972 = vrot.lane.b32.xlu0 %v22, 113
  %v1973 = vpop.permute.xlu0 %1972
  %1974 = vrot.lane.b32.xlu0 %v23, 113
  %v1975 = vpop.permute.xlu0 %1974
  %1976 = vrot.lane.b32.xlu0 %v24, 113
  %v1977 = vpop.permute.xlu0 %1976
  %vm1988 = vcmask 924672
  %v1989 = vsel %vm1988, %v1959, 0.0
  %v1990 = vsel %vm1988, %v1961, 0.0
  %v1991 = vsel %vm1988, %v1963, 0.0
  %v1992 = vsel %vm1988, %v1965, 0.0
  %v1993 = vsel %vm1988, %v1967, 0.0
  %v1994 = vsel %vm1988, %v1969, 0.0
  %v1995 = vsel %vm1988, %v1971, 0.0
  %v1996 = vsel %vm1988, %v1973, 0.0
  %v1997 = vsel %vm1988, %v1975, 0.0
  %v1998 = vsel %vm1988, %v1977, 0.0
  %1999 = vset.pattern.permute.xlu0 63
  %2000 = vperm.xlu0 %1999, %v15
  %v2001 = vpop.permute.xlu0 %2000
  %2003 = vset.pattern.permute.xlu0 63
  %2004 = vperm.xlu0 %2003, %v16
  %v2005 = vpop.permute.xlu0 %2004
  %2007 = vset.pattern.permute.xlu0 63
  %2008 = vperm.xlu0 %2007, %v17
  %v2009 = vpop.permute.xlu0 %2008
  %2011 = vset.pattern.permute.xlu0 63
  %2012 = vperm.xlu0 %2011, %v18
  %v2013 = vpop.permute.xlu0 %2012
  %2015 = vset.pattern.permute.xlu0 63
  %2016 = vperm.xlu0 %2015, %v19
  %v2017 = vpop.permute.xlu0 %2016
  %2019 = vset.pattern.permute.xlu0 63
  %2020 = vperm.xlu0 %2019, %v20
  %v2021 = vpop.permute.xlu0 %2020
  %2023 = vset.pattern.permute.xlu0 63
  %2024 = vperm.xlu0 %2023, %v21
  %v2025 = vpop.permute.xlu0 %2024
  %2027 = vset.pattern.permute.xlu0 63
  %2028 = vperm.xlu0 %2027, %v22
  %v2029 = vpop.permute.xlu0 %2028
  %2031 = vset.pattern.permute.xlu0 63
  %2032 = vperm.xlu0 %2031, %v23
  %v2033 = vpop.permute.xlu0 %2032
  %2035 = vset.pattern.permute.xlu0 63
  %2036 = vperm.xlu0 %2035, %v24
  %v2037 = vpop.permute.xlu0 %2036
  %v2039 = vmul.f32 %v1989, %v2001
  %v2040 = vmul.f32 %v1990, %v2005
  %v2041 = vmul.f32 %v1991, %v2009
  %v2042 = vmul.f32 %v1992, %v2013
  %v2043 = vmul.f32 %v1993, %v2017
  %v2044 = vmul.f32 %v1994, %v2021
  %v2045 = vmul.f32 %v1995, %v2025
  %v2046 = vmul.f32 %v1996, %v2029
  %v2047 = vmul.f32 %v1997, %v2033
  %v2048 = vmul.f32 %v1998, %v2037
  %v2049 = vadd.f32 %v1928, %v2039
  %v2050 = vadd.f32 %v1929, %v2040
  %v2051 = vadd.f32 %v1930, %v2041
  %v2052 = vadd.f32 %v1931, %v2042
  %v2053 = vadd.f32 %v1932, %v2043
  %v2054 = vadd.f32 %v1933, %v2044
  %v2055 = vadd.f32 %v1934, %v2045
  %v2056 = vadd.f32 %v1935, %v2046
  %v2057 = vadd.f32 %v1936, %v2047
  %v2058 = vadd.f32 %v1937, %v2048
  %v2059 = vmul.f32 %v1989, %v1989
  %v2060 = vmul.f32 %v1990, %v1990
  %v2061 = vmul.f32 %v1991, %v1991
  %v2062 = vmul.f32 %v1992, %v1992
  %v2063 = vmul.f32 %v1993, %v1993
  %v2064 = vmul.f32 %v1994, %v1994
  %v2065 = vmul.f32 %v1995, %v1995
  %v2066 = vmul.f32 %v1996, %v1996
  %v2067 = vmul.f32 %v1997, %v1997
  %v2068 = vmul.f32 %v1998, %v1998
  %v2069 = vadd.f32 %v1948, %v2059
  %v2070 = vadd.f32 %v1949, %v2060
  %v2071 = vadd.f32 %v1950, %v2061
  %v2072 = vadd.f32 %v1951, %v2062
  %v2073 = vadd.f32 %v1952, %v2063
  %v2074 = vadd.f32 %v1953, %v2064
  %v2075 = vadd.f32 %v1954, %v2065
  %v2076 = vadd.f32 %v1955, %v2066
  %v2077 = vadd.f32 %v1956, %v2067
  %v2078 = vadd.f32 %v1957, %v2068
  %2089 = vrot.lane.b32.xlu0 %v244, 80
  %v2090 = vpop.permute.xlu0 %2089
  %2091 = vrot.lane.b32.xlu0 %v245, 80
  %v2092 = vpop.permute.xlu0 %2091
  %2093 = vrot.lane.b32.xlu0 %v246, 80
  %v2094 = vpop.permute.xlu0 %2093
  %2095 = vrot.lane.b32.xlu0 %v247, 80
  %v2096 = vpop.permute.xlu0 %2095
  %2097 = vrot.lane.b32.xlu0 %v248, 80
  %v2098 = vpop.permute.xlu0 %2097
  %2099 = vrot.lane.b32.xlu0 %v249, 80
  %v2100 = vpop.permute.xlu0 %2099
  %2101 = vrot.lane.b32.xlu0 %v250, 80
  %v2102 = vpop.permute.xlu0 %2101
  %2103 = vrot.lane.b32.xlu0 %v251, 80
  %v2104 = vpop.permute.xlu0 %2103
  %2105 = vrot.lane.b32.xlu0 %v252, 80
  %v2106 = vpop.permute.xlu0 %2105
  %2107 = vrot.lane.b32.xlu0 %v253, 80
  %v2108 = vpop.permute.xlu0 %2107
  %vm2119 = vcmask 130048
  %v2120 = vsel %vm2119, %v2090, 0.0
  %2121 = vadd.xlane.f32.xlu0 %v2120
  %v2122 = vpop.xlane.xlu0 %2121
  %v2123 = vsel %vm2119, %v2092, 0.0
  %2124 = vadd.xlane.f32.xlu0 %v2123
  %v2125 = vpop.xlane.xlu0 %2124
  %v2126 = vsel %vm2119, %v2094, 0.0
  %2127 = vadd.xlane.f32.xlu0 %v2126
  %v2128 = vpop.xlane.xlu0 %2127
  %v2129 = vsel %vm2119, %v2096, 0.0
  %2130 = vadd.xlane.f32.xlu0 %v2129
  %v2131 = vpop.xlane.xlu0 %2130
  %v2132 = vsel %vm2119, %v2098, 0.0
  %2133 = vadd.xlane.f32.xlu0 %v2132
  %v2134 = vpop.xlane.xlu0 %2133
  %v2135 = vsel %vm2119, %v2100, 0.0
  %2136 = vadd.xlane.f32.xlu0 %v2135
  %v2137 = vpop.xlane.xlu0 %2136
  %v2138 = vsel %vm2119, %v2102, 0.0
  %2139 = vadd.xlane.f32.xlu0 %v2138
  %v2140 = vpop.xlane.xlu0 %2139
  %v2141 = vsel %vm2119, %v2104, 0.0
  %2142 = vadd.xlane.f32.xlu0 %v2141
  %v2143 = vpop.xlane.xlu0 %2142
  %v2144 = vsel %vm2119, %v2106, 0.0
  %2145 = vadd.xlane.f32.xlu0 %v2144
  %v2146 = vpop.xlane.xlu0 %2145
  %v2147 = vsel %vm2119, %v2108, 0.0
  %2148 = vadd.xlane.f32.xlu0 %v2147
  %v2149 = vpop.xlane.xlu0 %2148
  %v2150 = vmul.f32 %v2069, %v2122
  %v2151 = vmul.f32 %v2070, %v2125
  %v2152 = vmul.f32 %v2071, %v2128
  %v2153 = vmul.f32 %v2072, %v2131
  %v2154 = vmul.f32 %v2073, %v2134
  %v2155 = vmul.f32 %v2074, %v2137
  %v2156 = vmul.f32 %v2075, %v2140
  %v2157 = vmul.f32 %v2076, %v2143
  %v2158 = vmul.f32 %v2077, %v2146
  %v2159 = vmul.f32 %v2078, %v2149
  %v2160 = vrsqrt.pop %v2150
  %v2161 = vmul.f32 %v2150, %v2160
  %vm2162 = vcmp.eq.f32.partialorder %v2150, inf
  %v2163 = vsel %vm2162, %v2150, %v2161
  %vm2164 = vcmp.eq.f32.partialorder %v2150, 0.0
  %v2165 = vand.u32 %v2150, 2147483648
  %v2166 = vsel %vm2164, %v2165, %v2163
  %v2167 = vrsqrt.pop %v2151
  %v2168 = vmul.f32 %v2151, %v2167
  %vm2169 = vcmp.eq.f32.partialorder %v2151, inf
  %v2170 = vsel %vm2169, %v2151, %v2168
  %vm2171 = vcmp.eq.f32.partialorder %v2151, 0.0
  %v2172 = vand.u32 %v2151, 2147483648
  %v2173 = vsel %vm2171, %v2172, %v2170
  %v2174 = vrsqrt.pop %v2152
  %v2175 = vmul.f32 %v2152, %v2174
  %vm2176 = vcmp.eq.f32.partialorder %v2152, inf
  %v2177 = vsel %vm2176, %v2152, %v2175
  %vm2178 = vcmp.eq.f32.partialorder %v2152, 0.0
  %v2179 = vand.u32 %v2152, 2147483648
  %v2180 = vsel %vm2178, %v2179, %v2177
  %v2181 = vrsqrt.pop %v2153
  %v2182 = vmul.f32 %v2153, %v2181
  %vm2183 = vcmp.eq.f32.partialorder %v2153, inf
  %v2184 = vsel %vm2183, %v2153, %v2182
  %vm2185 = vcmp.eq.f32.partialorder %v2153, 0.0
  %v2186 = vand.u32 %v2153, 2147483648
  %v2187 = vsel %vm2185, %v2186, %v2184
  %v2188 = vrsqrt.pop %v2154
  %v2189 = vmul.f32 %v2154, %v2188
  %vm2190 = vcmp.eq.f32.partialorder %v2154, inf
  %v2191 = vsel %vm2190, %v2154, %v2189
  %vm2192 = vcmp.eq.f32.partialorder %v2154, 0.0
  %v2193 = vand.u32 %v2154, 2147483648
  %v2194 = vsel %vm2192, %v2193, %v2191
  %v2195 = vrsqrt.pop %v2155
  %v2196 = vmul.f32 %v2155, %v2195
  %vm2197 = vcmp.eq.f32.partialorder %v2155, inf
  %v2198 = vsel %vm2197, %v2155, %v2196
  %vm2199 = vcmp.eq.f32.partialorder %v2155, 0.0
  %v2200 = vand.u32 %v2155, 2147483648
  %v2201 = vsel %vm2199, %v2200, %v2198
  %v2202 = vrsqrt.pop %v2156
  %v2203 = vmul.f32 %v2156, %v2202
  %vm2204 = vcmp.eq.f32.partialorder %v2156, inf
  %v2205 = vsel %vm2204, %v2156, %v2203
  %vm2206 = vcmp.eq.f32.partialorder %v2156, 0.0
  %v2207 = vand.u32 %v2156, 2147483648
  %v2208 = vsel %vm2206, %v2207, %v2205
  %v2209 = vrsqrt.pop %v2157
  %v2210 = vmul.f32 %v2157, %v2209
  %vm2211 = vcmp.eq.f32.partialorder %v2157, inf
  %v2212 = vsel %vm2211, %v2157, %v2210
  %vm2213 = vcmp.eq.f32.partialorder %v2157, 0.0
  %v2214 = vand.u32 %v2157, 2147483648
  %v2215 = vsel %vm2213, %v2214, %v2212
  %v2216 = vrsqrt.pop %v2158
  %v2217 = vmul.f32 %v2158, %v2216
  %vm2218 = vcmp.eq.f32.partialorder %v2158, inf
  %v2219 = vsel %vm2218, %v2158, %v2217
  %vm2220 = vcmp.eq.f32.partialorder %v2158, 0.0
  %v2221 = vand.u32 %v2158, 2147483648
  %v2222 = vsel %vm2220, %v2221, %v2219
  %v2223 = vrsqrt.pop %v2159
  %v2224 = vmul.f32 %v2159, %v2223
  %vm2225 = vcmp.eq.f32.partialorder %v2159, inf
  %v2226 = vsel %vm2225, %v2159, %v2224
  %vm2227 = vcmp.eq.f32.partialorder %v2159, 0.0
  %v2228 = vand.u32 %v2159, 2147483648
  %v2229 = vsel %vm2227, %v2228, %v2226
  %v2230 = vadd.f32 %v2166, 1e-08
  %v2231 = vadd.f32 %v2173, 1e-08
  %v2232 = vadd.f32 %v2180, 1e-08
  %v2233 = vadd.f32 %v2187, 1e-08
  %v2234 = vadd.f32 %v2194, 1e-08
  %v2235 = vadd.f32 %v2201, 1e-08
  %v2236 = vadd.f32 %v2208, 1e-08
  %v2237 = vadd.f32 %v2215, 1e-08
  %v2238 = vadd.f32 %v2222, 1e-08
  %v2239 = vadd.f32 %v2229, 1e-08
  %v2240 = vrcp.pop %v2230
  %v2241 = vrcp.pop %v2231
  %v2242 = vrcp.pop %v2232
  %v2243 = vrcp.pop %v2233
  %v2244 = vrcp.pop %v2234
  %v2245 = vrcp.pop %v2235
  %v2246 = vrcp.pop %v2236
  %v2247 = vrcp.pop %v2237
  %v2248 = vrcp.pop %v2238
  %v2249 = vrcp.pop %v2239
  %v2250 = vmul.f32 %v2049, %v2240
  %v2251 = vmul.f32 %v2050, %v2241
  %v2252 = vmul.f32 %v2051, %v2242
  %v2253 = vmul.f32 %v2052, %v2243
  %v2254 = vmul.f32 %v2053, %v2244
  %v2255 = vmul.f32 %v2054, %v2245
  %v2256 = vmul.f32 %v2055, %v2246
  %v2257 = vmul.f32 %v2056, %v2247
  %v2258 = vmul.f32 %v2057, %v2248
  %v2259 = vmul.f32 %v2058, %v2249
  %2270 = vrot.lane.b32.xlu0 %v2250, 64
  %v2271 = vpop.permute.xlu0 %2270
  %2272 = vrot.lane.b32.xlu0 %v2251, 64
  %v2273 = vpop.permute.xlu0 %2272
  %2274 = vrot.lane.b32.xlu0 %v2252, 64
  %v2275 = vpop.permute.xlu0 %2274
  %2276 = vrot.lane.b32.xlu0 %v2253, 64
  %v2277 = vpop.permute.xlu0 %2276
  %2278 = vrot.lane.b32.xlu0 %v2254, 64
  %v2279 = vpop.permute.xlu0 %2278
  %2280 = vrot.lane.b32.xlu0 %v2255, 64
  %v2281 = vpop.permute.xlu0 %2280
  %2282 = vrot.lane.b32.xlu0 %v2256, 64
  %v2283 = vpop.permute.xlu0 %2282
  %2284 = vrot.lane.b32.xlu0 %v2257, 64
  %v2285 = vpop.permute.xlu0 %2284
  %2286 = vrot.lane.b32.xlu0 %v2258, 64
  %v2287 = vpop.permute.xlu0 %2286
  %2288 = vrot.lane.b32.xlu0 %v2259, 64
  %v2289 = vpop.permute.xlu0 %2288
  %vm2300 = vcmask 523264
  %v2301 = vsel %vm2300, %v136, %v2271
  %v2302 = vsel %vm2300, %v139, %v2273
  %v2303 = vsel %vm2300, %v144, %v2275
  %v2304 = vsel %vm2300, %v147, %v2277
  %v2305 = vsel %vm2300, %v152, %v2279
  %v2306 = vsel %vm2300, %v155, %v2281
  %v2307 = vsel %vm2300, %v160, %v2283
  %v2308 = vsel %vm2300, %v163, %v2285
  %v2309 = vsel %vm2300, %v168, %v2287
  %v2310 = vsel %vm2300, %v171, %v2289
  %vm2311 = vcmask 793600
  %v2312 = vsel %vm2311, %v2301, 0.0
  %v2313 = vsel %vm2311, %v2302, 0.0
  %v2314 = vsel %vm2311, %v2303, 0.0
  %v2315 = vsel %vm2311, %v2304, 0.0
  %v2316 = vsel %vm2311, %v2305, 0.0
  %v2317 = vsel %vm2311, %v2306, 0.0
  %v2318 = vsel %vm2311, %v2307, 0.0
  %v2319 = vsel %vm2311, %v2308, 0.0
  %v2320 = vsel %vm2311, %v2309, 0.0
  %v2321 = vsel %vm2311, %v2310, 0.0
  %2322 = vst [vmem:[%s3] sm:$0xff] %v2312
  %2323 = vst [vmem:[%s3 + $0x8] sm:$0xff] %v2313
  %2324 = vst [vmem:[%s3 + $0x10] sm:$0xff] %v2314
  %2325 = vst [vmem:[%s3 + $0x18] sm:$0xff] %v2315
  %2326 = vst [vmem:[%s3 + $0x20] sm:$0xff] %v2316
  %2327 = vst [vmem:[%s3 + $0x28] sm:$0xff] %v2317
  %2328 = vst [vmem:[%s3 + $0x30] sm:$0xff] %v2318
  %2329 = vst [vmem:[%s3 + $0x38] sm:$0xff] %v2319
  %2330 = vst [vmem:[%s3 + $0x40] sm:$0xff] %v2320
  %2331 = vst [vmem:[%s3 + $0x48] sm:$0xff] %v2321
  // Predicated region
  $region14: #{net_forward.2} parent=0 // pred_check
    _
  $region15: #{net_forward.2} parent=0 // pred_check_branch
    %2333 = sbr.rel (0) target = $region17
  $region16: #{net_forward.2} parent=0 // pred_region
    _
  $region17: #{net_forward.2} parent=0 // pred_fallthru
    _
  // Predicated region
  $region18: #{net_forward.2} parent=0 // pred_check
    _
  $region19: #{net_forward.2} parent=0 // pred_check_branch
    %2335 = sbr.rel (0) target = $region21
  $region20: #{net_forward.2} parent=0 // pred_region
    _
  $region21: #{net_forward.2} parent=0 // pred_fallthru
    _

// kernel: net_forward.3
$region0: #{net_forward.3}
  #allocation0 [shape = 'u32[]', space=smem, size = 0x4, offset = 0x4, fixed_abs, tag = 'smem constant byte address 0x4 - core index']
  #allocation1 [shape = 'u32[144,128]{1,0:T(1,128)}', space=vmem, size = 0x12000, scoped, tag = 'internal scratch']
  %s0 = inlined_call_operand.vmem [shape: f32[80,128], index: 0, kind: input, shape index: {}]
  %s1 = inlined_call_operand.vmem [shape: f32[80,128], index: 1, kind: input, shape index: {}]
  %s2 = inlined_call_operand.vmem [shape: f32[80,8], index: 2, kind: input, shape index: {}]
  %s3 = inlined_call_operand.vmem [shape: f32[1,128], index: 3, kind: input, shape index: {}]
  %s4 = inlined_call_operand.vmem [shape: f32[1,128], index: 4, kind: input, shape index: {}]
  %s5 = inlined_call_operand.vmem [shape: bf16[128,64], index: 5, kind: input, shape index: {}]
  %s6 = inlined_call_operand.vmem [shape: f32[1,64], index: 6, kind: input, shape index: {}]
  %s7 = inlined_call_operand.vmem [shape: bf16[6,64,128], index: 7, kind: input, shape index: {}]
  %s8 = inlined_call_operand.vmem [shape: f32[6,1,128], index: 8, kind: input, shape index: {}]
  %s9 = inlined_call_operand.vmem [shape: bf16[6,128,64], index: 9, kind: input, shape index: {}]
  %s10 = inlined_call_operand.vmem [shape: f32[6,1,64], index: 10, kind: input, shape index: {}]
  %s11 = inlined_call_operand.vmem [shape: f32[6,1,128], index: 11, kind: input, shape index: {}]
  %s12 = inlined_call_operand.vmem [shape: bf16[64,256], index: 12, kind: input, shape index: {}]
  %s13 = inlined_call_operand.vmem [shape: f32[1,256], index: 13, kind: input, shape index: {}]
  %s14 = inlined_call_operand.vmem [shape: f32[80,128], index: 14, kind: output, shape index: {}]
  %s15 = sld [smem:[#allocation0]]
  $region66: #{net_forward.3} parent=0
    _
  %s17 = ssub.s32 1, %s15
  %s18 = scalar_select 0, %s17, %s15
  // Predicated region
  $region2: #{net_forward.3} parent=0 // pred_check
    _
  $region3: #{net_forward.3} parent=0 // pred_check_branch
    %20 = sbr.rel (0) target = $region5
  $region4: #{net_forward.3} parent=0 // pred_region
    _
  $region5: #{net_forward.3} parent=0 // pred_fallthru
    _
  // Predicated region
  $region6: #{net_forward.3} parent=0 // pred_check
    _
  $region7: #{net_forward.3} parent=0 // pred_check_branch
    %22 = sbr.rel (0) target = $region9
  $region8: #{net_forward.3} parent=0 // pred_region
    _
  $region9: #{net_forward.3} parent=0 // pred_fallthru
    _
  // Predicated region
  $region10: #{net_forward.3} parent=0 // pred_check
    _
  $region11: #{net_forward.3} parent=0 // pred_check_branch
    %24 = sbr.rel (0) target = $region13
  $region12: #{net_forward.3} parent=0 // pred_region
    _
  $region13: #{net_forward.3} parent=0 // pred_fallthru
    _
  // Predicated region
  $region14: #{net_forward.3} parent=0 // pred_check
    _
  $region15: #{net_forward.3} parent=0 // pred_check_branch
    %26 = sbr.rel (0) target = $region17
  $region16: #{net_forward.3} parent=0 // pred_region
    _
  $region17: #{net_forward.3} parent=0 // pred_fallthru
    _
  // Predicated region
  $region18: #{net_forward.3} parent=0 // pred_check
    _
  $region19: #{net_forward.3} parent=0 // pred_check_branch
    %28 = sbr.rel (0) target = $region21
  $region20: #{net_forward.3} parent=0 // pred_region
    _
  $region21: #{net_forward.3} parent=0 // pred_fallthru
    _
  // Predicated region
  $region22: #{net_forward.3} parent=0 // pred_check
    _
  $region23: #{net_forward.3} parent=0 // pred_check_branch
    %30 = sbr.rel (0) target = $region25
  $region24: #{net_forward.3} parent=0 // pred_region
    _
  $region25: #{net_forward.3} parent=0 // pred_fallthru
    _
  // Predicated region
  $region26: #{net_forward.3} parent=0 // pred_check
    _
  $region27: #{net_forward.3} parent=0 // pred_check_branch
    %32 = sbr.rel (0) target = $region29
  $region28: #{net_forward.3} parent=0 // pred_region
    _
  $region29: #{net_forward.3} parent=0 // pred_fallthru
    _
  // Predicated region
  $region30: #{net_forward.3} parent=0 // pred_check
    _
  $region31: #{net_forward.3} parent=0 // pred_check_branch
    %34 = sbr.rel (0) target = $region33
  $region32: #{net_forward.3} parent=0 // pred_region
    _
  $region33: #{net_forward.3} parent=0 // pred_fallthru
    _
  // Predicated region
  $region34: #{net_forward.3} parent=0 // pred_check
    _
  $region35: #{net_forward.3} parent=0 // pred_check_branch
    %36 = sbr.rel (0) target = $region37
  $region36: #{net_forward.3} parent=0 // pred_region
    _
  $region37: #{net_forward.3} parent=0 // pred_fallthru
    _
  // Predicated region
  $region38: #{net_forward.3} parent=0 // pred_check
    _
  $region39: #{net_forward.3} parent=0 // pred_check_branch
    %38 = sbr.rel (0) target = $region41
  $region40: #{net_forward.3} parent=0 // pred_region
    _
  $region41: #{net_forward.3} parent=0 // pred_fallthru
    _
  // Predicated region
  $region42: #{net_forward.3} parent=0 // pred_check
    _
  $region43: #{net_forward.3} parent=0 // pred_check_branch
    %40 = sbr.rel (0) target = $region45
  $region44: #{net_forward.3} parent=0 // pred_region
    _
  $region45: #{net_forward.3} parent=0 // pred_fallthru
    _
  // Predicated region
  $region46: #{net_forward.3} parent=0 // pred_check
    _
  $region47: #{net_forward.3} parent=0 // pred_check_branch
    %42 = sbr.rel (0) target = $region49
  $region48: #{net_forward.3} parent=0 // pred_region
    _
  $region49: #{net_forward.3} parent=0 // pred_fallthru
    _
  // Predicated region
  $region50: #{net_forward.3} parent=0 // pred_check
    _
  $region51: #{net_forward.3} parent=0 // pred_check_branch
    %44 = sbr.rel (0) target = $region53
  $region52: #{net_forward.3} parent=0 // pred_region
    _
  $region53: #{net_forward.3} parent=0 // pred_fallthru
    _
  // Predicated region
  $region54: #{net_forward.3} parent=0 // pred_check
    _
  $region55: #{net_forward.3} parent=0 // pred_check_branch
    %46 = sbr.rel (0) target = $region57
  $region56: #{net_forward.3} parent=0 // pred_region
    _
  $region57: #{net_forward.3} parent=0 // pred_fallthru
    _
  %v48 = vld [vmem:[%s0] sm:$0xff]
  %v49 = vld [vmem:[%s0 + $0x8] sm:$0xff]
  %v50 = vld [vmem:[%s0 + $0x10] sm:$0xff]
  %v51 = vld [vmem:[%s0 + $0x18] sm:$0xff]
  %v52 = vld [vmem:[%s0 + $0x20] sm:$0xff]
  %v53 = vld [vmem:[%s0 + $0x28] sm:$0xff]
  %v54 = vld [vmem:[%s0 + $0x30] sm:$0xff]
  %v55 = vld [vmem:[%s0 + $0x38] sm:$0xff]
  %v56 = vld [vmem:[%s0 + $0x40] sm:$0xff]
  %v57 = vld [vmem:[%s0 + $0x48] sm:$0xff]
  %v58 = vld [vmem:[%s2] sm:$0xff]
  %v59 = vld [vmem:[%s2 + $0x8] sm:$0xff]
  %v60 = vld [vmem:[%s2 + $0x10] sm:$0xff]
  %v61 = vld [vmem:[%s2 + $0x18] sm:$0xff]
  %v62 = vld [vmem:[%s2 + $0x20] sm:$0xff]
  %v63 = vld [vmem:[%s2 + $0x28] sm:$0xff]
  %v64 = vld [vmem:[%s2 + $0x30] sm:$0xff]
  %v65 = vld [vmem:[%s2 + $0x38] sm:$0xff]
  %v66 = vld [vmem:[%s2 + $0x40] sm:$0xff]
  %v67 = vld [vmem:[%s2 + $0x48] sm:$0xff]
  %v68 = vlaneseq
  %v69 = vand.u32 %v68, 127
  %71 = vset.pattern.permute.xlu0 0
  %72 = vperm.xlu0 %71, %v58
  %v73 = vpop.permute.xlu0 %72
  %76 = vset.pattern.permute.xlu0 0
  %77 = vperm.xlu0 %76, %v59
  %v78 = vpop.permute.xlu0 %77
  %81 = vset.pattern.permute.xlu0 0
  %82 = vperm.xlu0 %81, %v60
  %v83 = vpop.permute.xlu0 %82
  %86 = vset.pattern.permute.xlu0 0
  %87 = vperm.xlu0 %86, %v61
  %v88 = vpop.permute.xlu0 %87
  %91 = vset.pattern.permute.xlu0 0
  %92 = vperm.xlu0 %91, %v62
  %v93 = vpop.permute.xlu0 %92
  %96 = vset.pattern.permute.xlu0 0
  %97 = vperm.xlu0 %96, %v63
  %v98 = vpop.permute.xlu0 %97
  %101 = vset.pattern.permute.xlu0 0
  %102 = vperm.xlu0 %101, %v64
  %v103 = vpop.permute.xlu0 %102
  %106 = vset.pattern.permute.xlu0 0
  %107 = vperm.xlu0 %106, %v65
  %v108 = vpop.permute.xlu0 %107
  %111 = vset.pattern.permute.xlu0 0
  %112 = vperm.xlu0 %111, %v66
  %v113 = vpop.permute.xlu0 %112
  %116 = vset.pattern.permute.xlu0 0
  %117 = vperm.xlu0 %116, %v67
  %v118 = vpop.permute.xlu0 %117
  %v120 = vsub.f32 %v48, %v73
  %v121 = vsub.f32 %v49, %v78
  %v122 = vsub.f32 %v50, %v83
  %v123 = vsub.f32 %v51, %v88
  %v124 = vsub.f32 %v52, %v93
  %v125 = vsub.f32 %v53, %v98
  %v126 = vsub.f32 %v54, %v103
  %v127 = vsub.f32 %v55, %v108
  %v128 = vsub.f32 %v56, %v113
  %v129 = vsub.f32 %v57, %v118
  %130 = vset.pattern.permute.xlu0 1
  %131 = vperm.xlu0 %130, %v58
  %v132 = vpop.permute.xlu0 %131
  %134 = vset.pattern.permute.xlu0 1
  %135 = vperm.xlu0 %134, %v59
  %v136 = vpop.permute.xlu0 %135
  %138 = vset.pattern.permute.xlu0 1
  %139 = vperm.xlu0 %138, %v60
  %v140 = vpop.permute.xlu0 %139
  %142 = vset.pattern.permute.xlu0 1
  %143 = vperm.xlu0 %142, %v61
  %v144 = vpop.permute.xlu0 %143
  %146 = vset.pattern.permute.xlu0 1
  %147 = vperm.xlu0 %146, %v62
  %v148 = vpop.permute.xlu0 %147
  %150 = vset.pattern.permute.xlu0 1
  %151 = vperm.xlu0 %150, %v63
  %v152 = vpop.permute.xlu0 %151
  %154 = vset.pattern.permute.xlu0 1
  %155 = vperm.xlu0 %154, %v64
  %v156 = vpop.permute.xlu0 %155
  %158 = vset.pattern.permute.xlu0 1
  %159 = vperm.xlu0 %158, %v65
  %v160 = vpop.permute.xlu0 %159
  %162 = vset.pattern.permute.xlu0 1
  %163 = vperm.xlu0 %162, %v66
  %v164 = vpop.permute.xlu0 %163
  %166 = vset.pattern.permute.xlu0 1
  %167 = vperm.xlu0 %166, %v67
  %v168 = vpop.permute.xlu0 %167
  %v170 = vmul.f32 %v120, %v132
  %v171 = vmul.f32 %v121, %v136
  %v172 = vmul.f32 %v122, %v140
  %v173 = vmul.f32 %v123, %v144
  %v174 = vmul.f32 %v124, %v148
  %v175 = vmul.f32 %v125, %v152
  %v176 = vmul.f32 %v126, %v156
  %v177 = vmul.f32 %v127, %v160
  %v178 = vmul.f32 %v128, %v164
  %v179 = vmul.f32 %v129, %v168
  %v180 = vld [vmem:[%s3] sm:$0x1]
  %v182 = vlaneseq
  %v183 = vshrl.u32 %v182, 7
  %v184 = vsub.s32 0, %v183
  %v185 = vrot.slane %v180, %v184
  %v187 = vmul.f32 %v170, %v185
  %v188 = vmul.f32 %v171, %v185
  %v189 = vmul.f32 %v172, %v185
  %v190 = vmul.f32 %v173, %v185
  %v191 = vmul.f32 %v174, %v185
  %v192 = vmul.f32 %v175, %v185
  %v193 = vmul.f32 %v176, %v185
  %v194 = vmul.f32 %v177, %v185
  %v195 = vmul.f32 %v178, %v185
  %v196 = vmul.f32 %v179, %v185
  %v197 = vld [vmem:[%s4] sm:$0x1]
  %v199 = vlaneseq
  %v200 = vshrl.u32 %v199, 7
  %v201 = vsub.s32 0, %v200
  %v202 = vrot.slane %v197, %v201
  %v204 = vadd.f32 %v187, %v202
  %v205 = vadd.f32 %v188, %v202
  %v206 = vadd.f32 %v189, %v202
  %v207 = vadd.f32 %v190, %v202
  %v208 = vadd.f32 %v191, %v202
  %v209 = vadd.f32 %v192, %v202
  %v210 = vadd.f32 %v193, %v202
  %v211 = vadd.f32 %v194, %v202
  %v212 = vadd.f32 %v195, %v202
  %v213 = vadd.f32 %v196, %v202
  %vm214 = vcmp.lt.s32.totalorder %v69, 64
  %v215 = vsel %vm214, %v204, %v48
  %v216 = vsel %vm214, %v205, %v49
  %v217 = vsel %vm214, %v206, %v50
  %v218 = vsel %vm214, %v207, %v51
  %v219 = vsel %vm214, %v208, %v52
  %v220 = vsel %vm214, %v209, %v53
  %v221 = vsel %vm214, %v210, %v54
  %v222 = vsel %vm214, %v211, %v55
  %v223 = vsel %vm214, %v212, %v56
  %v224 = vsel %vm214, %v213, %v57
  %v225 = vpack.c.bf16 %v216, %v215
  %v226 = vpack.c.bf16 %v218, %v217
  %v227 = vpack.c.bf16 %v220, %v219
  %v228 = vpack.c.bf16 %v222, %v221
  %v229 = vpack.c.bf16 %v224, %v223
  %v230 = vld [vmem:[%s5] sm:$0xf]
  %v231 = vld [vmem:[%s5 + $0x4] sm:$0xf]
  %v232 = vld [vmem:[%s5 + $0x8] sm:$0xf]
  %v233 = vld [vmem:[%s5 + $0xc] sm:$0xf]
  %v234 = vld [vmem:[%s5 + $0x10] sm:$0xf]
  %v235 = vld [vmem:[%s5 + $0x14] sm:$0xf]
  %v236 = vld [vmem:[%s5 + $0x18] sm:$0xf]
  %v237 = vld [vmem:[%s5 + $0x1c] sm:$0xf]
  %v238 = vld [vmem:[%s5 + $0x20] sm:$0xf]
  %v239 = vld [vmem:[%s5 + $0x24] sm:$0xf]
  %v240 = vld [vmem:[%s5 + $0x28] sm:$0xf]
  %v241 = vld [vmem:[%s5 + $0x2c] sm:$0xf]
  %v242 = vld [vmem:[%s5 + $0x30] sm:$0xf]
  %v243 = vld [vmem:[%s5 + $0x34] sm:$0xf]
  %v244 = vld [vmem:[%s5 + $0x38] sm:$0xf]
  %v245 = vld [vmem:[%s5 + $0x3c] sm:$0xf]
  %v246 = vld [vmem:[%s6] sm:$0x1]
  %v248 = vlaneseq
  %v249 = vshrl.u32 %v248, 7
  %v250 = vsub.s32 0, %v249
  %v251 = vrot.slane %v246, %v250
  %v269 = vunpack.c.l.b16 %v230
  %v270 = vunpack.c.l.b16 %v231
  %v271 = vunpack.c.l.b16 %v232
  %v272 = vunpack.c.l.b16 %v233
  %v273 = vunpack.c.l.b16 %v234
  %v274 = vunpack.c.l.b16 %v235
  %v275 = vunpack.c.l.b16 %v236
  %v276 = vunpack.c.l.b16 %v237
  %v277 = vunpack.c.l.b16 %v238
  %v278 = vunpack.c.l.b16 %v239
  %v279 = vunpack.c.l.b16 %v240
  %v280 = vunpack.c.l.b16 %v241
  %v281 = vunpack.c.l.b16 %v242
  %v282 = vunpack.c.l.b16 %v243
  %v283 = vunpack.c.l.b16 %v244
  %v284 = vunpack.c.l.b16 %v245
  %v285 = vpack.c.b16 %v270, %v269
  %v286 = vpack.c.b16 %v272, %v271
  %v287 = vpack.c.b16 %v274, %v273
  %v288 = vpack.c.b16 %v276, %v275
  %v289 = vpack.c.b16 %v278, %v277
  %v290 = vpack.c.b16 %v280, %v279
  %v291 = vpack.c.b16 %v282, %v281
  %v292 = vpack.c.b16 %v284, %v283
  %301 = vmatprep.subr.bf16.mxu0 0
  %302 = vmatpush1.bf16.msra.mxu0 %v292
  %303 = vmatprep.subr.bf16.mxu0 0
  %304 = vmatpush1.bf16.msra.mxu0 %v291
  %305 = vmatprep.subr.bf16.mxu0 0
  %306 = vmatpush1.bf16.msra.mxu0 %v290
  %307 = vmatprep.subr.bf16.mxu0 0
  %308 = vmatpush1.bf16.msra.mxu0 %v289
  %309 = vmatprep.subr.bf16.mxu0 0
  %310 = vmatpush1.bf16.msra.mxu0 %v288
  %311 = vmatprep.subr.bf16.mxu0 0
  %312 = vmatpush1.bf16.msra.mxu0 %v287
  %313 = vmatprep.subr.bf16.mxu0 0
  %314 = vmatpush1.bf16.msra.mxu0 %v286
  %315 = vmatprep.subr.bf16.mxu0 0
  %316 = vmatpush1.bf16.msra.mxu0 %v285
  %317 = vmatprep.subr.bf16.mxu0 0
  %318 = vmatpush2.bf16.msra.mxu0 0
  %319 = vmatprep.subr.bf16.mxu0 0
  %320 = vmatpush2.bf16.msra.mxu0 0
  %321 = vmatprep.subr.bf16.mxu0 0
  %322 = vmatpush2.bf16.msra.mxu0 0
  %323 = vmatprep.subr.bf16.mxu0 0
  %324 = vmatpush2.bf16.msra.mxu0 0
  %325 = vmatprep.subr.bf16.mxu0 0
  %326 = vmatpush2.bf16.msra.mxu0 0
  %327 = vmatprep.subr.bf16.mxu0 0
  %328 = vmatpush2.bf16.msra.mxu0 0
  %329 = vmatprep.subr.bf16.mxu0 0
  %330 = vmatpush2.bf16.msra.mxu0 0
  %331 = vmatprep.subr.bf16.mxu0 0
  %332 = vmatpush2.bf16.msra.mxu0 0
  %333 = vmatprep.mubr.bf16.mxu0 0
  %334 = vmatmul.mubr.bf16.gmra.mxu0 %v225
  %v335 = vpop.f32.mrf.mxu0
  %v336 = vadd.f32 %v251, %v335
  %v337 = vpop.f32.mrf.mxu0
  %v338 = vpop.f32.mrf.mxu0
  %v339 = vadd.f32 %v251, %v338
  %v340 = vpop.f32.mrf.mxu0
  %341 = vmatprep.mubr.bf16.mxu0 0
  %342 = vmatmul.mubr.bf16.gmra.mxu0 %v226
  %v343 = vpop.f32.mrf.mxu0
  %v344 = vadd.f32 %v251, %v343
  %v345 = vpop.f32.mrf.mxu0
  %v346 = vpop.f32.mrf.mxu0
  %v347 = vadd.f32 %v251, %v346
  %v348 = vpop.f32.mrf.mxu0
  %349 = vmatprep.mubr.bf16.mxu0 0
  %350 = vmatmul.mubr.bf16.gmra.mxu0 %v227
  %v351 = vpop.f32.mrf.mxu0
  %v352 = vadd.f32 %v251, %v351
  %v353 = vpop.f32.mrf.mxu0
  %v354 = vpop.f32.mrf.mxu0
  %v355 = vadd.f32 %v251, %v354
  %v356 = vpop.f32.mrf.mxu0
  %357 = vmatprep.mubr.bf16.mxu0 0
  %358 = vmatmul.mubr.bf16.gmra.mxu0 %v228
  %v359 = vpop.f32.mrf.mxu0
  %v360 = vadd.f32 %v251, %v359
  %v361 = vpop.f32.mrf.mxu0
  %v362 = vpop.f32.mrf.mxu0
  %v363 = vadd.f32 %v251, %v362
  %v364 = vpop.f32.mrf.mxu0
  %365 = vmatprep.mubr.bf16.mxu0 0
  %366 = vmatmul.mubr.bf16.gmra.mxu0 %v229
  %v367 = vpop.f32.mrf.mxu0
  %v368 = vadd.f32 %v251, %v367
  %v369 = vpop.f32.mrf.mxu0
  %v370 = vpop.f32.mrf.mxu0
  %v371 = vadd.f32 %v251, %v370
  %v372 = vpop.f32.mrf.mxu0
  %373 = vdwg.mxu0
  %v374 = vpack.c.bf16 %v339, %v336
  %v375 = vpack.c.bf16 %v347, %v344
  %v376 = vpack.c.bf16 %v355, %v352
  %v377 = vpack.c.bf16 %v363, %v360
  %v378 = vpack.c.bf16 %v371, %v368
  %v379 = vld [vmem:[%s7] sm:$0xf]
  %v380 = vld [vmem:[%s7 + $0x4] sm:$0xf]
  %v381 = vld [vmem:[%s7 + $0x8] sm:$0xf]
  %v382 = vld [vmem:[%s7 + $0xc] sm:$0xf]
  %v383 = vld [vmem:[%s7 + $0x10] sm:$0xf]
  %v384 = vld [vmem:[%s7 + $0x14] sm:$0xf]
  %v385 = vld [vmem:[%s7 + $0x18] sm:$0xf]
  %v386 = vld [vmem:[%s7 + $0x1c] sm:$0xf]
  %v387 = vld [vmem:[%s8] sm:$0x1]
  %v389 = vlaneseq
  %v390 = vshrl.u32 %v389, 7
  %v391 = vsub.s32 0, %v390
  %v392 = vrot.slane %v387, %v391
  %v402 = vunpack.c.l.b16 %v379
  %v403 = vunpack.c.l.b16 %v380
  %v404 = vunpack.c.l.b16 %v381
  %v405 = vunpack.c.l.b16 %v382
  %v406 = vunpack.c.l.b16 %v383
  %v407 = vunpack.c.l.b16 %v384
  %v408 = vunpack.c.l.b16 %v385
  %v409 = vunpack.c.l.b16 %v386
  %v410 = vpack.c.b16 %v403, %v402
  %v411 = vpack.c.b16 %v405, %v404
  %v412 = vpack.c.b16 %v407, %v406
  %v413 = vpack.c.b16 %v409, %v408
  %vm418 = vcmask 523264
  %v420 = vsel %vm418, %v374, 0
  %v423 = vsel %vm418, %v375, 0
  %v426 = vsel %vm418, %v376, 0
  %v429 = vsel %vm418, %v377, 0
  %v432 = vsel %vm418, %v378, 0
  %434 = vmatprep.subr.bf16.mxu0 0
  %435 = vmatpush1.bf16.msra.mxu0 0
  %436 = vmatprep.subr.bf16.mxu0 0
  %437 = vmatpush1.bf16.msra.mxu0 0
  %438 = vmatprep.subr.bf16.mxu0 0
  %439 = vmatpush1.bf16.msra.mxu0 0
  %440 = vmatprep.subr.bf16.mxu0 0
  %441 = vmatpush1.bf16.msra.mxu0 0
  %442 = vmatprep.subr.bf16.mxu0 0
  %443 = vmatpush1.bf16.msra.mxu0 %v413
  %444 = vmatprep.subr.bf16.mxu0 0
  %445 = vmatpush1.bf16.msra.mxu0 %v412
  %446 = vmatprep.subr.bf16.mxu0 0
  %447 = vmatpush1.bf16.msra.mxu0 %v411
  %448 = vmatprep.subr.bf16.mxu0 0
  %449 = vmatpush1.bf16.msra.mxu0 %v410
  %450 = vmatprep.subr.bf16.mxu0 0
  %451 = vmatpush2.bf16.msra.mxu0 0
  %452 = vmatprep.subr.bf16.mxu0 0
  %453 = vmatpush2.bf16.msra.mxu0 0
  %454 = vmatprep.subr.bf16.mxu0 0
  %455 = vmatpush2.bf16.msra.mxu0 0
  %456 = vmatprep.subr.bf16.mxu0 0
  %457 = vmatpush2.bf16.msra.mxu0 0
  %458 = vmatprep.subr.bf16.mxu0 0
  %459 = vmatpush2.bf16.msra.mxu0 0
  %460 = vmatprep.subr.bf16.mxu0 0
  %461 = vmatpush2.bf16.msra.mxu0 0
  %462 = vmatprep.subr.bf16.mxu0 0
  %463 = vmatpush2.bf16.msra.mxu0 0
  %464 = vmatprep.subr.bf16.mxu0 0
  %465 = vmatpush2.bf16.msra.mxu0 0
  %466 = vmatprep.mubr.bf16.mxu0 0
  %467 = vmatmul.mubr.bf16.gmra.mxu0 %v420
  %v468 = vpop.f32.mrf.mxu0
  %v469 = vadd.f32 %v392, %v468
  %v470 = vpop.f32.mrf.mxu0
  %v471 = vpop.f32.mrf.mxu0
  %v472 = vadd.f32 %v392, %v471
  %v473 = vpop.f32.mrf.mxu0
  %474 = vmatprep.mubr.bf16.mxu0 0
  %475 = vmatmul.mubr.bf16.gmra.mxu0 %v423
  %v476 = vpop.f32.mrf.mxu0
  %v477 = vadd.f32 %v392, %v476
  %v478 = vpop.f32.mrf.mxu0
  %v479 = vpop.f32.mrf.mxu0
  %v480 = vadd.f32 %v392, %v479
  %v481 = vpop.f32.mrf.mxu0
  %482 = vmatprep.mubr.bf16.mxu0 0
  %483 = vmatmul.mubr.bf16.gmra.mxu0 %v426
  %v484 = vpop.f32.mrf.mxu0
  %v485 = vadd.f32 %v392, %v484
  %v486 = vpop.f32.mrf.mxu0
  %v487 = vpop.f32.mrf.mxu0
  %v488 = vadd.f32 %v392, %v487
  %v489 = vpop.f32.mrf.mxu0
  %490 = vmatprep.mubr.bf16.mxu0 0
  %491 = vmatmul.mubr.bf16.gmra.mxu0 %v429
  %v492 = vpop.f32.mrf.mxu0
  %v493 = vadd.f32 %v392, %v492
  %v494 = vpop.f32.mrf.mxu0
  %v495 = vpop.f32.mrf.mxu0
  %v496 = vadd.f32 %v392, %v495
  %v497 = vpop.f32.mrf.mxu0
  %498 = vmatprep.mubr.bf16.mxu0 0
  %499 = vmatmul.mubr.bf16.gmra.mxu0 %v432
  %v500 = vpop.f32.mrf.mxu0
  %v501 = vadd.f32 %v392, %v500
  %v502 = vpop.f32.mrf.mxu0
  %v503 = vpop.f32.mrf.mxu0
  %v504 = vadd.f32 %v392, %v503
  %v505 = vpop.f32.mrf.mxu0
  %506 = vdwg.mxu0
  %vm507 = vcmp.ge.f32.partialorder %v469, 0.0
  %vm508 = vcmp.ge.f32.partialorder %v472, 0.0
  %vm509 = vcmp.ge.f32.partialorder %v477, 0.0
  %vm510 = vcmp.ge.f32.partialorder %v480, 0.0
  %vm511 = vcmp.ge.f32.partialorder %v485, 0.0
  %vm512 = vcmp.ge.f32.partialorder %v488, 0.0
  %vm513 = vcmp.ge.f32.partialorder %v493, 0.0
  %vm514 = vcmp.ge.f32.partialorder %v496, 0.0
  %vm515 = vcmp.ge.f32.partialorder %v501, 0.0
  %vm516 = vcmp.ge.f32.partialorder %v504, 0.0
  %v517 = vld [vmem:[%s11] sm:$0x1]
  %v519 = vlaneseq
  %v520 = vshrl.u32 %v519, 7
  %v521 = vsub.s32 0, %v520
  %v522 = vrot.slane %v517, %v521
  %v524 = vmul.f32 %v522, %v469
  %v525 = vmul.f32 %v522, %v472
  %v526 = vmul.f32 %v522, %v477
  %v527 = vmul.f32 %v522, %v480
  %v528 = vmul.f32 %v522, %v485
  %v529 = vmul.f32 %v522, %v488
  %v530 = vmul.f32 %v522, %v493
  %v531 = vmul.f32 %v522, %v496
  %v532 = vmul.f32 %v522, %v501
  %v533 = vmul.f32 %v522, %v504
  %v534 = vsel %vm507, %v469, %v524
  %v535 = vsel %vm508, %v472, %v525
  %v536 = vsel %vm509, %v477, %v526
  %v537 = vsel %vm510, %v480, %v527
  %v538 = vsel %vm511, %v485, %v528
  %v539 = vsel %vm512, %v488, %v529
  %v540 = vsel %vm513, %v493, %v530
  %v541 = vsel %vm514, %v496, %v531
  %v542 = vsel %vm515, %v501, %v532
  %v543 = vsel %vm516, %v504, %v533
  %v544 = vpack.c.bf16 %v535, %v534
  %v545 = vpack.c.bf16 %v537, %v536
  %v546 = vpack.c.bf16 %v539, %v538
  %v547 = vpack.c.bf16 %v541, %v540
  %v548 = vpack.c.bf16 %v543, %v542
  %v549 = vld [vmem:[%s9] sm:$0xf]
  %v550 = vld [vmem:[%s9 + $0x4] sm:$0xf]
  %v551 = vld [vmem:[%s9 + $0x8] sm:$0xf]
  %v552 = vld [vmem:[%s9 + $0xc] sm:$0xf]
  %v553 = vld [vmem:[%s9 + $0x10] sm:$0xf]
  %v554 = vld [vmem:[%s9 + $0x14] sm:$0xf]
  %v555 = vld [vmem:[%s9 + $0x18] sm:$0xf]
  %v556 = vld [vmem:[%s9 + $0x1c] sm:$0xf]
  %v557 = vld [vmem:[%s9 + $0x20] sm:$0xf]
  %v558 = vld [vmem:[%s9 + $0x24] sm:$0xf]
  %v559 = vld [vmem:[%s9 + $0x28] sm:$0xf]
  %v560 = vld [vmem:[%s9 + $0x2c] sm:$0xf]
  %v561 = vld [vmem:[%s9 + $0x30] sm:$0xf]
  %v562 = vld [vmem:[%s9 + $0x34] sm:$0xf]
  %v563 = vld [vmem:[%s9 + $0x38] sm:$0xf]
  %v564 = vld [vmem:[%s9 + $0x3c] sm:$0xf]
  %v581 = vunpack.c.l.b16 %v549
  %v582 = vunpack.c.l.b16 %v550
  %v583 = vunpack.c.l.b16 %v551
  %v584 = vunpack.c.l.b16 %v552
  %v585 = vunpack.c.l.b16 %v553
  %v586 = vunpack.c.l.b16 %v554
  %v587 = vunpack.c.l.b16 %v555
  %v588 = vunpack.c.l.b16 %v556
  %v589 = vunpack.c.l.b16 %v557
  %v590 = vunpack.c.l.b16 %v558
  %v591 = vunpack.c.l.b16 %v559
  %v592 = vunpack.c.l.b16 %v560
  %v593 = vunpack.c.l.b16 %v561
  %v594 = vunpack.c.l.b16 %v562
  %v595 = vunpack.c.l.b16 %v563
  %v596 = vunpack.c.l.b16 %v564
  %v597 = vpack.c.b16 %v582, %v581
  %v598 = vpack.c.b16 %v584, %v583
  %v599 = vpack.c.b16 %v586, %v585
  %v600 = vpack.c.b16 %v588, %v587
  %v601 = vpack.c.b16 %v590, %v589
  %v602 = vpack.c.b16 %v592, %v591
  %v603 = vpack.c.b16 %v594, %v593
  %v604 = vpack.c.b16 %v596, %v595
  %613 = vmatprep.subr.bf16.mxu0 0
  %614 = vmatpush1.bf16.msra.mxu0 %v604
  %615 = vmatprep.subr.bf16.mxu0 0
  %616 = vmatpush1.bf16.msra.mxu0 %v603
  %617 = vmatprep.subr.bf16.mxu0 0
  %618 = vmatpush1.bf16.msra.mxu0 %v602
  %619 = vmatprep.subr.bf16.mxu0 0
  %620 = vmatpush1.bf16.msra.mxu0 %v601
  %621 = vmatprep.subr.bf16.mxu0 0
  %622 = vmatpush1.bf16.msra.mxu0 %v600
  %623 = vmatprep.subr.bf16.mxu0 0
  %624 = vmatpush1.bf16.msra.mxu0 %v599
  %625 = vmatprep.subr.bf16.mxu0 0
  %626 = vmatpush1.bf16.msra.mxu0 %v598
  %627 = vmatprep.subr.bf16.mxu0 0
  %628 = vmatpush1.bf16.msra.mxu0 %v597
  %629 = vmatprep.subr.bf16.mxu0 0
  %630 = vmatpush2.bf16.msra.mxu0 0
  %631 = vmatprep.subr.bf16.mxu0 0
  %632 = vmatpush2.bf16.msra.mxu0 0
  %633 = vmatprep.subr.bf16.mxu0 0
  %634 = vmatpush2.bf16.msra.mxu0 0
  %635 = vmatprep.subr.bf16.mxu0 0
  %636 = vmatpush2.bf16.msra.mxu0 0
  %637 = vmatprep.subr.bf16.mxu0 0
  %638 = vmatpush2.bf16.msra.mxu0 0
  %639 = vmatprep.subr.bf16.mxu0 0
  %640 = vmatpush2.bf16.msra.mxu0 0
  %641 = vmatprep.subr.bf16.mxu0 0
  %642 = vmatpush2.bf16.msra.mxu0 0
  %643 = vmatprep.subr.bf16.mxu0 0
  %644 = vmatpush2.bf16.msra.mxu0 0
  %645 = vmatprep.mubr.bf16.mxu0 0
  %646 = vmatmul.mubr.bf16.gmra.mxu0 %v544
  %v647 = vpop.f32.mrf.mxu0
  %v648 = vadd.f32 0.0, %v647
  %v649 = vpop.f32.mrf.mxu0
  %v650 = vpop.f32.mrf.mxu0
  %v651 = vadd.f32 0.0, %v650
  %v652 = vpop.f32.mrf.mxu0
  %653 = vmatprep.mubr.bf16.mxu0 0
  %654 = vmatmul.mubr.bf16.gmra.mxu0 %v545
  %v655 = vpop.f32.mrf.mxu0
  %v656 = vadd.f32 0.0, %v655
  %v657 = vpop.f32.mrf.mxu0
  %v658 = vpop.f32.mrf.mxu0
  %v659 = vadd.f32 0.0, %v658
  %v660 = vpop.f32.mrf.mxu0
  %661 = vmatprep.mubr.bf16.mxu0 0
  %662 = vmatmul.mubr.bf16.gmra.mxu0 %v546
  %v663 = vpop.f32.mrf.mxu0
  %v664 = vadd.f32 0.0, %v663
  %v665 = vpop.f32.mrf.mxu0
  %v666 = vpop.f32.mrf.mxu0
  %v667 = vadd.f32 0.0, %v666
  %v668 = vpop.f32.mrf.mxu0
  %669 = vmatprep.mubr.bf16.mxu0 0
  %670 = vmatmul.mubr.bf16.gmra.mxu0 %v547
  %v671 = vpop.f32.mrf.mxu0
  %v672 = vadd.f32 0.0, %v671
  %v673 = vpop.f32.mrf.mxu0
  %v674 = vpop.f32.mrf.mxu0
  %v675 = vadd.f32 0.0, %v674
  %v676 = vpop.f32.mrf.mxu0
  %677 = vmatprep.mubr.bf16.mxu0 0
  %678 = vmatmul.mubr.bf16.gmra.mxu0 %v548
  %v679 = vpop.f32.mrf.mxu0
  %v680 = vadd.f32 0.0, %v679
  %v681 = vpop.f32.mrf.mxu0
  %v682 = vpop.f32.mrf.mxu0
  %v683 = vadd.f32 0.0, %v682
  %v684 = vpop.f32.mrf.mxu0
  %685 = vdwg.mxu0
  %v686 = vadd.f32 %v336, %v648
  %v687 = vadd.f32 %v339, %v651
  %v688 = vadd.f32 %v344, %v656
  %v689 = vadd.f32 %v347, %v659
  %v690 = vadd.f32 %v352, %v664
  %v691 = vadd.f32 %v355, %v667
  %v692 = vadd.f32 %v360, %v672
  %v693 = vadd.f32 %v363, %v675
  %v694 = vadd.f32 %v368, %v680
  %v695 = vadd.f32 %v371, %v683
  %v696 = vld [vmem:[%s10] sm:$0x1]
  %v698 = vlaneseq
  %v699 = vshrl.u32 %v698, 7
  %v700 = vsub.s32 0, %v699
  %v701 = vrot.slane %v696, %v700
  %v703 = vadd.f32 %v686, %v701
  %v704 = vadd.f32 %v687, %v701
  %v705 = vadd.f32 %v688, %v701
  %v706 = vadd.f32 %v689, %v701
  %v707 = vadd.f32 %v690, %v701
  %v708 = vadd.f32 %v691, %v701
  %v709 = vadd.f32 %v692, %v701
  %v710 = vadd.f32 %v693, %v701
  %v711 = vadd.f32 %v694, %v701
  %v712 = vadd.f32 %v695, %v701
  %v713 = vpack.c.bf16 %v704, %v703
  %v714 = vpack.c.bf16 %v706, %v705
  %v715 = vpack.c.bf16 %v708, %v707
  %v716 = vpack.c.bf16 %v710, %v709
  %v717 = vpack.c.bf16 %v712, %v711
  %s718 = scalar_lea.vmem %s7, 32
  %v719 = vld [vmem:[%s718] sm:$0xf]
  %v720 = vld [vmem:[%s718 + $0x4] sm:$0xf]
  %v721 = vld [vmem:[%s718 + $0x8] sm:$0xf]
  %v722 = vld [vmem:[%s718 + $0xc] sm:$0xf]
  %v723 = vld [vmem:[%s718 + $0x10] sm:$0xf]
  %v724 = vld [vmem:[%s718 + $0x14] sm:$0xf]
  %v725 = vld [vmem:[%s718 + $0x18] sm:$0xf]
  %v726 = vld [vmem:[%s718 + $0x1c] sm:$0xf]
  %s727 = scalar_lea.vmem %s8, 1
  %v728 = vld [vmem:[%s727] sm:$0x1]
  %v730 = vlaneseq
  %v731 = vshrl.u32 %v730, 7
  %v732 = vsub.s32 0, %v731
  %v733 = vrot.slane %v728, %v732
  %v743 = vunpack.c.l.b16 %v719
  %v744 = vunpack.c.l.b16 %v720
  %v745 = vunpack.c.l.b16 %v721
  %v746 = vunpack.c.l.b16 %v722
  %v747 = vunpack.c.l.b16 %v723
  %v748 = vunpack.c.l.b16 %v724
  %v749 = vunpack.c.l.b16 %v725
  %v750 = vunpack.c.l.b16 %v726
  %v751 = vpack.c.b16 %v744, %v743
  %v752 = vpack.c.b16 %v746, %v745
  %v753 = vpack.c.b16 %v748, %v747
  %v754 = vpack.c.b16 %v750, %v749
  %v760 = vsel %vm418, %v713, 0
  %v763 = vsel %vm418, %v714, 0
  %v766 = vsel %vm418, %v715, 0
  %v769 = vsel %vm418, %v716, 0
  %v772 = vsel %vm418, %v717, 0
  %774 = vmatprep.subr.bf16.mxu0 0
  %775 = vmatpush1.bf16.msra.mxu0 0
  %776 = vmatprep.subr.bf16.mxu0 0
  %777 = vmatpush1.bf16.msra.mxu0 0
  %778 = vmatprep.subr.bf16.mxu0 0
  %779 = vmatpush1.bf16.msra.mxu0 0
  %780 = vmatprep.subr.bf16.mxu0 0
  %781 = vmatpush1.bf16.msra.mxu0 0
  %782 = vmatprep.subr.bf16.mxu0 0
  %783 = vmatpush1.bf16.msra.mxu0 %v754
  %784 = vmatprep.subr.bf16.mxu0 0
  %785 = vmatpush1.bf16.msra.mxu0 %v753
  %786 = vmatprep.subr.bf16.mxu0 0
  %787 = vmatpush1.bf16.msra.mxu0 %v752
  %788 = vmatprep.subr.bf16.mxu0 0
  %789 = vmatpush1.bf16.msra.mxu0 %v751
  %790 = vmatprep.subr.bf16.mxu0 0
  %791 = vmatpush2.bf16.msra.mxu0 0
  %792 = vmatprep.subr.bf16.mxu0 0
  %793 = vmatpush2.bf16.msra.mxu0 0
  %794 = vmatprep.subr.bf16.mxu0 0
  %795 = vmatpush2.bf16.msra.mxu0 0
  %796 = vmatprep.subr.bf16.mxu0 0
  %797 = vmatpush2.bf16.msra.mxu0 0
  %798 = vmatprep.subr.bf16.mxu0 0
  %799 = vmatpush2.bf16.msra.mxu0 0
  %800 = vmatprep.subr.bf16.mxu0 0
  %801 = vmatpush2.bf16.msra.mxu0 0
  %802 = vmatprep.subr.bf16.mxu0 0
  %803 = vmatpush2.bf16.msra.mxu0 0
  %804 = vmatprep.subr.bf16.mxu0 0
  %805 = vmatpush2.bf16.msra.mxu0 0
  %806 = vmatprep.mubr.bf16.mxu0 0
  %807 = vmatmul.mubr.bf16.gmra.mxu0 %v760
  %v808 = vpop.f32.mrf.mxu0
  %v809 = vadd.f32 %v733, %v808
  %v810 = vpop.f32.mrf.mxu0
  %v811 = vpop.f32.mrf.mxu0
  %v812 = vadd.f32 %v733, %v811
  %v813 = vpop.f32.mrf.mxu0
  %814 = vmatprep.mubr.bf16.mxu0 0
  %815 = vmatmul.mubr.bf16.gmra.mxu0 %v763
  %v816 = vpop.f32.mrf.mxu0
  %v817 = vadd.f32 %v733, %v816
  %v818 = vpop.f32.mrf.mxu0
  %v819 = vpop.f32.mrf.mxu0
  %v820 = vadd.f32 %v733, %v819
  %v821 = vpop.f32.mrf.mxu0
  %822 = vmatprep.mubr.bf16.mxu0 0
  %823 = vmatmul.mubr.bf16.gmra.mxu0 %v766
  %v824 = vpop.f32.mrf.mxu0
  %v825 = vadd.f32 %v733, %v824
  %v826 = vpop.f32.mrf.mxu0
  %v827 = vpop.f32.mrf.mxu0
  %v828 = vadd.f32 %v733, %v827
  %v829 = vpop.f32.mrf.mxu0
  %830 = vmatprep.mubr.bf16.mxu0 0
  %831 = vmatmul.mubr.bf16.gmra.mxu0 %v769
  %v832 = vpop.f32.mrf.mxu0
  %v833 = vadd.f32 %v733, %v832
  %v834 = vpop.f32.mrf.mxu0
  %v835 = vpop.f32.mrf.mxu0
  %v836 = vadd.f32 %v733, %v835
  %v837 = vpop.f32.mrf.mxu0
  %838 = vmatprep.mubr.bf16.mxu0 0
  %839 = vmatmul.mubr.bf16.gmra.mxu0 %v772
  %v840 = vpop.f32.mrf.mxu0
  %v841 = vadd.f32 %v733, %v840
  %v842 = vpop.f32.mrf.mxu0
  %v843 = vpop.f32.mrf.mxu0
  %v844 = vadd.f32 %v733, %v843
  %v845 = vpop.f32.mrf.mxu0
  %846 = vdwg.mxu0
  %vm847 = vcmp.ge.f32.partialorder %v809, 0.0
  %vm848 = vcmp.ge.f32.partialorder %v812, 0.0
  %vm849 = vcmp.ge.f32.partialorder %v817, 0.0
  %vm850 = vcmp.ge.f32.partialorder %v820, 0.0
  %vm851 = vcmp.ge.f32.partialorder %v825, 0.0
  %vm852 = vcmp.ge.f32.partialorder %v828, 0.0
  %vm853 = vcmp.ge.f32.partialorder %v833, 0.0
  %vm854 = vcmp.ge.f32.partialorder %v836, 0.0
  %vm855 = vcmp.ge.f32.partialorder %v841, 0.0
  %vm856 = vcmp.ge.f32.partialorder %v844, 0.0
  %s857 = scalar_lea.vmem %s11, 1
  %v858 = vld [vmem:[%s857] sm:$0x1]
  %v860 = vlaneseq
  %v861 = vshrl.u32 %v860, 7
  %v862 = vsub.s32 0, %v861
  %v863 = vrot.slane %v858, %v862
  %v865 = vmul.f32 %v863, %v809
  %v866 = vmul.f32 %v863, %v812
  %v867 = vmul.f32 %v863, %v817
  %v868 = vmul.f32 %v863, %v820
  %v869 = vmul.f32 %v863, %v825
  %v870 = vmul.f32 %v863, %v828
  %v871 = vmul.f32 %v863, %v833
  %v872 = vmul.f32 %v863, %v836
  %v873 = vmul.f32 %v863, %v841
  %v874 = vmul.f32 %v863, %v844
  %v875 = vsel %vm847, %v809, %v865
  %v876 = vsel %vm848, %v812, %v866
  %v877 = vsel %vm849, %v817, %v867
  %v878 = vsel %vm850, %v820, %v868
  %v879 = vsel %vm851, %v825, %v869
  %v880 = vsel %vm852, %v828, %v870
  %v881 = vsel %vm853, %v833, %v871
  %v882 = vsel %vm854, %v836, %v872
  %v883 = vsel %vm855, %v841, %v873
  %v884 = vsel %vm856, %v844, %v874
  %v885 = vpack.c.bf16 %v876, %v875
  %v886 = vpack.c.bf16 %v878, %v877
  %v887 = vpack.c.bf16 %v880, %v879
  %v888 = vpack.c.bf16 %v882, %v881
  %v889 = vpack.c.bf16 %v884, %v883
  %s890 = scalar_lea.vmem %s9, 64
  %v891 = vld [vmem:[%s890] sm:$0xf]
  %v892 = vld [vmem:[%s890 + $0x4] sm:$0xf]
  %v893 = vld [vmem:[%s890 + $0x8] sm:$0xf]
  %v894 = vld [vmem:[%s890 + $0xc] sm:$0xf]
  %v895 = vld [vmem:[%s890 + $0x10] sm:$0xf]
  %v896 = vld [vmem:[%s890 + $0x14] sm:$0xf]
  %v897 = vld [vmem:[%s890 + $0x18] sm:$0xf]
  %v898 = vld [vmem:[%s890 + $0x1c] sm:$0xf]
  %v899 = vld [vmem:[%s890 + $0x20] sm:$0xf]
  %v900 = vld [vmem:[%s890 + $0x24] sm:$0xf]
  %v901 = vld [vmem:[%s890 + $0x28] sm:$0xf]
  %v902 = vld [vmem:[%s890 + $0x2c] sm:$0xf]
  %v903 = vld [vmem:[%s890 + $0x30] sm:$0xf]
  %v904 = vld [vmem:[%s890 + $0x34] sm:$0xf]
  %v905 = vld [vmem:[%s890 + $0x38] sm:$0xf]
  %v906 = vld [vmem:[%s890 + $0x3c] sm:$0xf]
  %v923 = vunpack.c.l.b16 %v891
  %v924 = vunpack.c.l.b16 %v892
  %v925 = vunpack.c.l.b16 %v893
  %v926 = vunpack.c.l.b16 %v894
  %v927 = vunpack.c.l.b16 %v895
  %v928 = vunpack.c.l.b16 %v896
  %v929 = vunpack.c.l.b16 %v897
  %v930 = vunpack.c.l.b16 %v898
  %v931 = vunpack.c.l.b16 %v899
  %v932 = vunpack.c.l.b16 %v900
  %v933 = vunpack.c.l.b16 %v901
  %v934 = vunpack.c.l.b16 %v902
  %v935 = vunpack.c.l.b16 %v903
  %v936 = vunpack.c.l.b16 %v904
  %v937 = vunpack.c.l.b16 %v905
  %v938 = vunpack.c.l.b16 %v906
  %v939 = vpack.c.b16 %v924, %v923
  %v940 = vpack.c.b16 %v926, %v925
  %v941 = vpack.c.b16 %v928, %v927
  %v942 = vpack.c.b16 %v930, %v929
  %v943 = vpack.c.b16 %v932, %v931
  %v944 = vpack.c.b16 %v934, %v933
  %v945 = vpack.c.b16 %v936, %v935
  %v946 = vpack.c.b16 %v938, %v937
  %955 = vmatprep.subr.bf16.mxu0 0
  %956 = vmatpush1.bf16.msra.mxu0 %v946
  %957 = vmatprep.subr.bf16.mxu0 0
  %958 = vmatpush1.bf16.msra.mxu0 %v945
  %959 = vmatprep.subr.bf16.mxu0 0
  %960 = vmatpush1.bf16.msra.mxu0 %v944
  %961 = vmatprep.subr.bf16.mxu0 0
  %962 = vmatpush1.bf16.msra.mxu0 %v943
  %963 = vmatprep.subr.bf16.mxu0 0
  %964 = vmatpush1.bf16.msra.mxu0 %v942
  %965 = vmatprep.subr.bf16.mxu0 0
  %966 = vmatpush1.bf16.msra.mxu0 %v941
  %967 = vmatprep.subr.bf16.mxu0 0
  %968 = vmatpush1.bf16.msra.mxu0 %v940
  %969 = vmatprep.subr.bf16.mxu0 0
  %970 = vmatpush1.bf16.msra.mxu0 %v939
  %971 = vmatprep.subr.bf16.mxu0 0
  %972 = vmatpush2.bf16.msra.mxu0 0
  %973 = vmatprep.subr.bf16.mxu0 0
  %974 = vmatpush2.bf16.msra.mxu0 0
  %975 = vmatprep.subr.bf16.mxu0 0
  %976 = vmatpush2.bf16.msra.mxu0 0
  %977 = vmatprep.subr.bf16.mxu0 0
  %978 = vmatpush2.bf16.msra.mxu0 0
  %979 = vmatprep.subr.bf16.mxu0 0
  %980 = vmatpush2.bf16.msra.mxu0 0
  %981 = vmatprep.subr.bf16.mxu0 0
  %982 = vmatpush2.bf16.msra.mxu0 0
  %983 = vmatprep.subr.bf16.mxu0 0
  %984 = vmatpush2.bf16.msra.mxu0 0
  %985 = vmatprep.subr.bf16.mxu0 0
  %986 = vmatpush2.bf16.msra.mxu0 0
  %987 = vmatprep.mubr.bf16.mxu0 0
  %988 = vmatmul.mubr.bf16.gmra.mxu0 %v885
  %v989 = vpop.f32.mrf.mxu0
  %v990 = vadd.f32 0.0, %v989
  %v991 = vpop.f32.mrf.mxu0
  %v992 = vpop.f32.mrf.mxu0
  %v993 = vadd.f32 0.0, %v992
  %v994 = vpop.f32.mrf.mxu0
  %995 = vmatprep.mubr.bf16.mxu0 0
  %996 = vmatmul.mubr.bf16.gmra.mxu0 %v886
  %v997 = vpop.f32.mrf.mxu0
  %v998 = vadd.f32 0.0, %v997
  %v999 = vpop.f32.mrf.mxu0
  %v1000 = vpop.f32.mrf.mxu0
  %v1001 = vadd.f32 0.0, %v1000
  %v1002 = vpop.f32.mrf.mxu0
  %1003 = vmatprep.mubr.bf16.mxu0 0
  %1004 = vmatmul.mubr.bf16.gmra.mxu0 %v887
  %v1005 = vpop.f32.mrf.mxu0
  %v1006 = vadd.f32 0.0, %v1005
  %v1007 = vpop.f32.mrf.mxu0
  %v1008 = vpop.f32.mrf.mxu0
  %v1009 = vadd.f32 0.0, %v1008
  %v1010 = vpop.f32.mrf.mxu0
  %1011 = vmatprep.mubr.bf16.mxu0 0
  %1012 = vmatmul.mubr.bf16.gmra.mxu0 %v888
  %v1013 = vpop.f32.mrf.mxu0
  %v1014 = vadd.f32 0.0, %v1013
  %v1015 = vpop.f32.mrf.mxu0
  %v1016 = vpop.f32.mrf.mxu0
  %v1017 = vadd.f32 0.0, %v1016
  %v1018 = vpop.f32.mrf.mxu0
  %1019 = vmatprep.mubr.bf16.mxu0 0
  %1020 = vmatmul.mubr.bf16.gmra.mxu0 %v889
  %v1021 = vpop.f32.mrf.mxu0
  %v1022 = vadd.f32 0.0, %v1021
  %v1023 = vpop.f32.mrf.mxu0
  %v1024 = vpop.f32.mrf.mxu0
  %v1025 = vadd.f32 0.0, %v1024
  %v1026 = vpop.f32.mrf.mxu0
  %1027 = vdwg.mxu0
  %v1028 = vadd.f32 %v703, %v990
  %v1029 = vadd.f32 %v704, %v993
  %v1030 = vadd.f32 %v705, %v998
  %v1031 = vadd.f32 %v706, %v1001
  %v1032 = vadd.f32 %v707, %v1006
  %v1033 = vadd.f32 %v708, %v1009
  %v1034 = vadd.f32 %v709, %v1014
  %v1035 = vadd.f32 %v710, %v1017
  %v1036 = vadd.f32 %v711, %v1022
  %v1037 = vadd.f32 %v712, %v1025
  %s1038 = scalar_lea.vmem %s10, 1
  %v1039 = vld [vmem:[%s1038] sm:$0x1]
  %v1041 = vlaneseq
  %v1042 = vshrl.u32 %v1041, 7
  %v1043 = vsub.s32 0, %v1042
  %v1044 = vrot.slane %v1039, %v1043
  %v1046 = vadd.f32 %v1028, %v1044
  %v1047 = vadd.f32 %v1029, %v1044
  %v1048 = vadd.f32 %v1030, %v1044
  %v1049 = vadd.f32 %v1031, %v1044
  %v1050 = vadd.f32 %v1032, %v1044
  %v1051 = vadd.f32 %v1033, %v1044
  %v1052 = vadd.f32 %v1034, %v1044
  %v1053 = vadd.f32 %v1035, %v1044
  %v1054 = vadd.f32 %v1036, %v1044
  %v1055 = vadd.f32 %v1037, %v1044
  %v1056 = vpack.c.bf16 %v1047, %v1046
  %v1057 = vpack.c.bf16 %v1049, %v1048
  %v1058 = vpack.c.bf16 %v1051, %v1050
  %v1059 = vpack.c.bf16 %v1053, %v1052
  %v1060 = vpack.c.bf16 %v1055, %v1054
  %s1061 = scalar_lea.vmem %s7, 64
  %v1062 = vld [vmem:[%s1061] sm:$0xf]
  %v1063 = vld [vmem:[%s1061 + $0x4] sm:$0xf]
  %v1064 = vld [vmem:[%s1061 + $0x8] sm:$0xf]
  %v1065 = vld [vmem:[%s1061 + $0xc] sm:$0xf]
  %v1066 = vld [vmem:[%s1061 + $0x10] sm:$0xf]
  %v1067 = vld [vmem:[%s1061 + $0x14] sm:$0xf]
  %v1068 = vld [vmem:[%s1061 + $0x18] sm:$0xf]
  %v1069 = vld [vmem:[%s1061 + $0x1c] sm:$0xf]
  %s1070 = scalar_lea.vmem %s8, 2
  %v1071 = vld [vmem:[%s1070] sm:$0x1]
  %v1073 = vlaneseq
  %v1074 = vshrl.u32 %v1073, 7
  %v1075 = vsub.s32 0, %v1074
  %v1076 = vrot.slane %v1071, %v1075
  %v1086 = vunpack.c.l.b16 %v1062
  %v1087 = vunpack.c.l.b16 %v1063
  %v1088 = vunpack.c.l.b16 %v1064
  %v1089 = vunpack.c.l.b16 %v1065
  %v1090 = vunpack.c.l.b16 %v1066
  %v1091 = vunpack.c.l.b16 %v1067
  %v1092 = vunpack.c.l.b16 %v1068
  %v1093 = vunpack.c.l.b16 %v1069
  %v1094 = vpack.c.b16 %v1087, %v1086
  %v1095 = vpack.c.b16 %v1089, %v1088
  %v1096 = vpack.c.b16 %v1091, %v1090
  %v1097 = vpack.c.b16 %v1093, %v1092
  %v1103 = vsel %vm418, %v1056, 0
  %v1106 = vsel %vm418, %v1057, 0
  %v1109 = vsel %vm418, %v1058, 0
  %v1112 = vsel %vm418, %v1059, 0
  %v1115 = vsel %vm418, %v1060, 0
  %1117 = vmatprep.subr.bf16.mxu0 0
  %1118 = vmatpush1.bf16.msra.mxu0 0
  %1119 = vmatprep.subr.bf16.mxu0 0
  %1120 = vmatpush1.bf16.msra.mxu0 0
  %1121 = vmatprep.subr.bf16.mxu0 0
  %1122 = vmatpush1.bf16.msra.mxu0 0
  %1123 = vmatprep.subr.bf16.mxu0 0
  %1124 = vmatpush1.bf16.msra.mxu0 0
  %1125 = vmatprep.subr.bf16.mxu0 0
  %1126 = vmatpush1.bf16.msra.mxu0 %v1097
  %1127 = vmatprep.subr.bf16.mxu0 0
  %1128 = vmatpush1.bf16.msra.mxu0 %v1096
  %1129 = vmatprep.subr.bf16.mxu0 0
  %1130 = vmatpush1.bf16.msra.mxu0 %v1095
  %1131 = vmatprep.subr.bf16.mxu0 0
  %1132 = vmatpush1.bf16.msra.mxu0 %v1094
  %1133 = vmatprep.subr.bf16.mxu0 0
  %1134 = vmatpush2.bf16.msra.mxu0 0
  %1135 = vmatprep.subr.bf16.mxu0 0
  %1136 = vmatpush2.bf16.msra.mxu0 0
  %1137 = vmatprep.subr.bf16.mxu0 0
  %1138 = vmatpush2.bf16.msra.mxu0 0
  %1139 = vmatprep.subr.bf16.mxu0 0
  %1140 = vmatpush2.bf16.msra.mxu0 0
  %1141 = vmatprep.subr.bf16.mxu0 0
  %1142 = vmatpush2.bf16.msra.mxu0 0
  %1143 = vmatprep.subr.bf16.mxu0 0
  %1144 = vmatpush2.bf16.msra.mxu0 0
  %1145 = vmatprep.subr.bf16.mxu0 0
  %1146 = vmatpush2.bf16.msra.mxu0 0
  %1147 = vmatprep.subr.bf16.mxu0 0
  %1148 = vmatpush2.bf16.msra.mxu0 0
  %1149 = vmatprep.mubr.bf16.mxu0 0
  %1150 = vmatmul.mubr.bf16.gmra.mxu0 %v1103
  %v1151 = vpop.f32.mrf.mxu0
  %v1152 = vadd.f32 %v1076, %v1151
  %v1153 = vpop.f32.mrf.mxu0
  %v1154 = vpop.f32.mrf.mxu0
  %v1155 = vadd.f32 %v1076, %v1154
  %v1156 = vpop.f32.mrf.mxu0
  %1157 = vmatprep.mubr.bf16.mxu0 0
  %1158 = vmatmul.mubr.bf16.gmra.mxu0 %v1106
  %v1159 = vpop.f32.mrf.mxu0
  %v1160 = vadd.f32 %v1076, %v1159
  %v1161 = vpop.f32.mrf.mxu0
  %v1162 = vpop.f32.mrf.mxu0
  %v1163 = vadd.f32 %v1076, %v1162
  %v1164 = vpop.f32.mrf.mxu0
  %1165 = vmatprep.mubr.bf16.mxu0 0
  %1166 = vmatmul.mubr.bf16.gmra.mxu0 %v1109
  %v1167 = vpop.f32.mrf.mxu0
  %v1168 = vadd.f32 %v1076, %v1167
  %v1169 = vpop.f32.mrf.mxu0
  %v1170 = vpop.f32.mrf.mxu0
  %v1171 = vadd.f32 %v1076, %v1170
  %v1172 = vpop.f32.mrf.mxu0
  %1173 = vmatprep.mubr.bf16.mxu0 0
  %1174 = vmatmul.mubr.bf16.gmra.mxu0 %v1112
  %v1175 = vpop.f32.mrf.mxu0
  %v1176 = vadd.f32 %v1076, %v1175
  %v1177 = vpop.f32.mrf.mxu0
  %v1178 = vpop.f32.mrf.mxu0
  %v1179 = vadd.f32 %v1076, %v1178
  %v1180 = vpop.f32.mrf.mxu0
  %1181 = vmatprep.mubr.bf16.mxu0 0
  %1182 = vmatmul.mubr.bf16.gmra.mxu0 %v1115
  %v1183 = vpop.f32.mrf.mxu0
  %v1184 = vadd.f32 %v1076, %v1183
  %v1185 = vpop.f32.mrf.mxu0
  %v1186 = vpop.f32.mrf.mxu0
  %v1187 = vadd.f32 %v1076, %v1186
  %v1188 = vpop.f32.mrf.mxu0
  %1189 = vdwg.mxu0
  %vm1190 = vcmp.ge.f32.partialorder %v1152, 0.0
  %vm1191 = vcmp.ge.f32.partialorder %v1155, 0.0
  %vm1192 = vcmp.ge.f32.partialorder %v1160, 0.0
  %vm1193 = vcmp.ge.f32.partialorder %v1163, 0.0
  %vm1194 = vcmp.ge.f32.partialorder %v1168, 0.0
  %vm1195 = vcmp.ge.f32.partialorder %v1171, 0.0
  %vm1196 = vcmp.ge.f32.partialorder %v1176, 0.0
  %vm1197 = vcmp.ge.f32.partialorder %v1179, 0.0
  %vm1198 = vcmp.ge.f32.partialorder %v1184, 0.0
  %vm1199 = vcmp.ge.f32.partialorder %v1187, 0.0
  %s1200 = scalar_lea.vmem %s11, 2
  %v1201 = vld [vmem:[%s1200] sm:$0x1]
  %v1203 = vlaneseq
  %v1204 = vshrl.u32 %v1203, 7
  %v1205 = vsub.s32 0, %v1204
  %v1206 = vrot.slane %v1201, %v1205
  %v1208 = vmul.f32 %v1206, %v1152
  %v1209 = vmul.f32 %v1206, %v1155
  %v1210 = vmul.f32 %v1206, %v1160
  %v1211 = vmul.f32 %v1206, %v1163
  %v1212 = vmul.f32 %v1206, %v1168
  %v1213 = vmul.f32 %v1206, %v1171
  %v1214 = vmul.f32 %v1206, %v1176
  %v1215 = vmul.f32 %v1206, %v1179
  %v1216 = vmul.f32 %v1206, %v1184
  %v1217 = vmul.f32 %v1206, %v1187
  %v1218 = vsel %vm1190, %v1152, %v1208
  %v1219 = vsel %vm1191, %v1155, %v1209
  %v1220 = vsel %vm1192, %v1160, %v1210
  %v1221 = vsel %vm1193, %v1163, %v1211
  %v1222 = vsel %vm1194, %v1168, %v1212
  %v1223 = vsel %vm1195, %v1171, %v1213
  %v1224 = vsel %vm1196, %v1176, %v1214
  %v1225 = vsel %vm1197, %v1179, %v1215
  %v1226 = vsel %vm1198, %v1184, %v1216
  %v1227 = vsel %vm1199, %v1187, %v1217
  %v1228 = vpack.c.bf16 %v1219, %v1218
  %v1229 = vpack.c.bf16 %v1221, %v1220
  %v1230 = vpack.c.bf16 %v1223, %v1222
  %v1231 = vpack.c.bf16 %v1225, %v1224
  %v1232 = vpack.c.bf16 %v1227, %v1226
  %s1233 = scalar_lea.vmem %s9, 128
  %v1234 = vld [vmem:[%s1233] sm:$0xf]
  %v1235 = vld [vmem:[%s1233 + $0x4] sm:$0xf]
  %v1236 = vld [vmem:[%s1233 + $0x8] sm:$0xf]
  %v1237 = vld [vmem:[%s1233 + $0xc] sm:$0xf]
  %v1238 = vld [vmem:[%s1233 + $0x10] sm:$0xf]
  %v1239 = vld [vmem:[%s1233 + $0x14] sm:$0xf]
  %v1240 = vld [vmem:[%s1233 + $0x18] sm:$0xf]
  %v1241 = vld [vmem:[%s1233 + $0x1c] sm:$0xf]
  %v1242 = vld [vmem:[%s1233 + $0x20] sm:$0xf]
  %v1243 = vld [vmem:[%s1233 + $0x24] sm:$0xf]
  %v1244 = vld [vmem:[%s1233 + $0x28] sm:$0xf]
  %v1245 = vld [vmem:[%s1233 + $0x2c] sm:$0xf]
  %v1246 = vld [vmem:[%s1233 + $0x30] sm:$0xf]
  %v1247 = vld [vmem:[%s1233 + $0x34] sm:$0xf]
  %v1248 = vld [vmem:[%s1233 + $0x38] sm:$0xf]
  %v1249 = vld [vmem:[%s1233 + $0x3c] sm:$0xf]
  %v1266 = vunpack.c.l.b16 %v1234
  %v1267 = vunpack.c.l.b16 %v1235
  %v1268 = vunpack.c.l.b16 %v1236
  %v1269 = vunpack.c.l.b16 %v1237
  %v1270 = vunpack.c.l.b16 %v1238
  %v1271 = vunpack.c.l.b16 %v1239
  %v1272 = vunpack.c.l.b16 %v1240
  %v1273 = vunpack.c.l.b16 %v1241
  %v1274 = vunpack.c.l.b16 %v1242
  %v1275 = vunpack.c.l.b16 %v1243
  %v1276 = vunpack.c.l.b16 %v1244
  %v1277 = vunpack.c.l.b16 %v1245
  %v1278 = vunpack.c.l.b16 %v1246
  %v1279 = vunpack.c.l.b16 %v1247
  %v1280 = vunpack.c.l.b16 %v1248
  %v1281 = vunpack.c.l.b16 %v1249
  %v1282 = vpack.c.b16 %v1267, %v1266
  %v1283 = vpack.c.b16 %v1269, %v1268
  %v1284 = vpack.c.b16 %v1271, %v1270
  %v1285 = vpack.c.b16 %v1273, %v1272
  %v1286 = vpack.c.b16 %v1275, %v1274
  %v1287 = vpack.c.b16 %v1277, %v1276
  %v1288 = vpack.c.b16 %v1279, %v1278
  %v1289 = vpack.c.b16 %v1281, %v1280
  %1298 = vmatprep.subr.bf16.mxu0 0
  %1299 = vmatpush1.bf16.msra.mxu0 %v1289
  %1300 = vmatprep.subr.bf16.mxu0 0
  %1301 = vmatpush1.bf16.msra.mxu0 %v1288
  %1302 = vmatprep.subr.bf16.mxu0 0
  %1303 = vmatpush1.bf16.msra.mxu0 %v1287
  %1304 = vmatprep.subr.bf16.mxu0 0
  %1305 = vmatpush1.bf16.msra.mxu0 %v1286
  %1306 = vmatprep.subr.bf16.mxu0 0
  %1307 = vmatpush1.bf16.msra.mxu0 %v1285
  %1308 = vmatprep.subr.bf16.mxu0 0
  %1309 = vmatpush1.bf16.msra.mxu0 %v1284
  %1310 = vmatprep.subr.bf16.mxu0 0
  %1311 = vmatpush1.bf16.msra.mxu0 %v1283
  %1312 = vmatprep.subr.bf16.mxu0 0
  %1313 = vmatpush1.bf16.msra.mxu0 %v1282
  %1314 = vmatprep.subr.bf16.mxu0 0
  %1315 = vmatpush2.bf16.msra.mxu0 0
  %1316 = vmatprep.subr.bf16.mxu0 0
  %1317 = vmatpush2.bf16.msra.mxu0 0
  %1318 = vmatprep.subr.bf16.mxu0 0
  %1319 = vmatpush2.bf16.msra.mxu0 0
  %1320 = vmatprep.subr.bf16.mxu0 0
  %1321 = vmatpush2.bf16.msra.mxu0 0
  %1322 = vmatprep.subr.bf16.mxu0 0
  %1323 = vmatpush2.bf16.msra.mxu0 0
  %1324 = vmatprep.subr.bf16.mxu0 0
  %1325 = vmatpush2.bf16.msra.mxu0 0
  %1326 = vmatprep.subr.bf16.mxu0 0
  %1327 = vmatpush2.bf16.msra.mxu0 0
  %1328 = vmatprep.subr.bf16.mxu0 0
  %1329 = vmatpush2.bf16.msra.mxu0 0
  %1330 = vmatprep.mubr.bf16.mxu0 0
  %1331 = vmatmul.mubr.bf16.gmra.mxu0 %v1228
  %v1332 = vpop.f32.mrf.mxu0
  %v1333 = vadd.f32 0.0, %v1332
  %v1334 = vpop.f32.mrf.mxu0
  %v1335 = vpop.f32.mrf.mxu0
  %v1336 = vadd.f32 0.0, %v1335
  %v1337 = vpop.f32.mrf.mxu0
  %1338 = vmatprep.mubr.bf16.mxu0 0
  %1339 = vmatmul.mubr.bf16.gmra.mxu0 %v1229
  %v1340 = vpop.f32.mrf.mxu0
  %v1341 = vadd.f32 0.0, %v1340
  %v1342 = vpop.f32.mrf.mxu0
  %v1343 = vpop.f32.mrf.mxu0
  %v1344 = vadd.f32 0.0, %v1343
  %v1345 = vpop.f32.mrf.mxu0
  %1346 = vmatprep.mubr.bf16.mxu0 0
  %1347 = vmatmul.mubr.bf16.gmra.mxu0 %v1230
  %v1348 = vpop.f32.mrf.mxu0
  %v1349 = vadd.f32 0.0, %v1348
  %v1350 = vpop.f32.mrf.mxu0
  %v1351 = vpop.f32.mrf.mxu0
  %v1352 = vadd.f32 0.0, %v1351
  %v1353 = vpop.f32.mrf.mxu0
  %1354 = vmatprep.mubr.bf16.mxu0 0
  %1355 = vmatmul.mubr.bf16.gmra.mxu0 %v1231
  %v1356 = vpop.f32.mrf.mxu0
  %v1357 = vadd.f32 0.0, %v1356
  %v1358 = vpop.f32.mrf.mxu0
  %v1359 = vpop.f32.mrf.mxu0
  %v1360 = vadd.f32 0.0, %v1359
  %v1361 = vpop.f32.mrf.mxu0
  %1362 = vmatprep.mubr.bf16.mxu0 0
  %1363 = vmatmul.mubr.bf16.gmra.mxu0 %v1232
  %v1364 = vpop.f32.mrf.mxu0
  %v1365 = vadd.f32 0.0, %v1364
  %v1366 = vpop.f32.mrf.mxu0
  %v1367 = vpop.f32.mrf.mxu0
  %v1368 = vadd.f32 0.0, %v1367
  %v1369 = vpop.f32.mrf.mxu0
  %1370 = vdwg.mxu0
  %v1371 = vadd.f32 %v1046, %v1333
  %v1372 = vadd.f32 %v1047, %v1336
  %v1373 = vadd.f32 %v1048, %v1341
  %v1374 = vadd.f32 %v1049, %v1344
  %v1375 = vadd.f32 %v1050, %v1349
  %v1376 = vadd.f32 %v1051, %v1352
  %v1377 = vadd.f32 %v1052, %v1357
  %v1378 = vadd.f32 %v1053, %v1360
  %v1379 = vadd.f32 %v1054, %v1365
  %v1380 = vadd.f32 %v1055, %v1368
  %s1381 = scalar_lea.vmem %s10, 2
  %v1382 = vld [vmem:[%s1381] sm:$0x1]
  %v1384 = vlaneseq
  %v1385 = vshrl.u32 %v1384, 7
  %v1386 = vsub.s32 0, %v1385
  %v1387 = vrot.slane %v1382, %v1386
  %v1389 = vadd.f32 %v1371, %v1387
  %v1390 = vadd.f32 %v1372, %v1387
  %v1391 = vadd.f32 %v1373, %v1387
  %v1392 = vadd.f32 %v1374, %v1387
  %v1393 = vadd.f32 %v1375, %v1387
  %v1394 = vadd.f32 %v1376, %v1387
  %v1395 = vadd.f32 %v1377, %v1387
  %v1396 = vadd.f32 %v1378, %v1387
  %v1397 = vadd.f32 %v1379, %v1387
  %v1398 = vadd.f32 %v1380, %v1387
  %v1399 = vpack.c.bf16 %v1390, %v1389
  %v1400 = vpack.c.bf16 %v1392, %v1391
  %v1401 = vpack.c.bf16 %v1394, %v1393
  %v1402 = vpack.c.bf16 %v1396, %v1395
  %v1403 = vpack.c.bf16 %v1398, %v1397
  %s1404 = scalar_lea.vmem %s7, 96
  %v1405 = vld [vmem:[%s1404] sm:$0xf]
  %v1406 = vld [vmem:[%s1404 + $0x4] sm:$0xf]
  %v1407 = vld [vmem:[%s1404 + $0x8] sm:$0xf]
  %v1408 = vld [vmem:[%s1404 + $0xc] sm:$0xf]
  %v1409 = vld [vmem:[%s1404 + $0x10] sm:$0xf]
  %v1410 = vld [vmem:[%s1404 + $0x14] sm:$0xf]
  %v1411 = vld [vmem:[%s1404 + $0x18] sm:$0xf]
  %v1412 = vld [vmem:[%s1404 + $0x1c] sm:$0xf]
  %s1413 = scalar_lea.vmem %s8, 3
  %v1414 = vld [vmem:[%s1413] sm:$0x1]
  %v1416 = vlaneseq
  %v1417 = vshrl.u32 %v1416, 7
  %v1418 = vsub.s32 0, %v1417
  %v1419 = vrot.slane %v1414, %v1418
  %v1429 = vunpack.c.l.b16 %v1405
  %v1430 = vunpack.c.l.b16 %v1406
  %v1431 = vunpack.c.l.b16 %v1407
  %v1432 = vunpack.c.l.b16 %v1408
  %v1433 = vunpack.c.l.b16 %v1409
  %v1434 = vunpack.c.l.b16 %v1410
  %v1435 = vunpack.c.l.b16 %v1411
  %v1436 = vunpack.c.l.b16 %v1412
  %v1437 = vpack.c.b16 %v1430, %v1429
  %v1438 = vpack.c.b16 %v1432, %v1431
  %v1439 = vpack.c.b16 %v1434, %v1433
  %v1440 = vpack.c.b16 %v1436, %v1435
  %v1446 = vsel %vm418, %v1399, 0
  %v1449 = vsel %vm418, %v1400, 0
  %v1452 = vsel %vm418, %v1401, 0
  %v1455 = vsel %vm418, %v1402, 0
  %v1458 = vsel %vm418, %v1403, 0
  %1460 = vmatprep.subr.bf16.mxu0 0
  %1461 = vmatpush1.bf16.msra.mxu0 0
  %1462 = vmatprep.subr.bf16.mxu0 0
  %1463 = vmatpush1.bf16.msra.mxu0 0
  %1464 = vmatprep.subr.bf16.mxu0 0
  %1465 = vmatpush1.bf16.msra.mxu0 0
  %1466 = vmatprep.subr.bf16.mxu0 0
  %1467 = vmatpush1.bf16.msra.mxu0 0
  %1468 = vmatprep.subr.bf16.mxu0 0
  %1469 = vmatpush1.bf16.msra.mxu0 %v1440
  %1470 = vmatprep.subr.bf16.mxu0 0
  %1471 = vmatpush1.bf16.msra.mxu0 %v1439
  %1472 = vmatprep.subr.bf16.mxu0 0
  %1473 = vmatpush1.bf16.msra.mxu0 %v1438
  %1474 = vmatprep.subr.bf16.mxu0 0
  %1475 = vmatpush1.bf16.msra.mxu0 %v1437
  %1476 = vmatprep.subr.bf16.mxu0 0
  %1477 = vmatpush2.bf16.msra.mxu0 0
  %1478 = vmatprep.subr.bf16.mxu0 0
  %1479 = vmatpush2.bf16.msra.mxu0 0
  %1480 = vmatprep.subr.bf16.mxu0 0
  %1481 = vmatpush2.bf16.msra.mxu0 0
  %1482 = vmatprep.subr.bf16.mxu0 0
  %1483 = vmatpush2.bf16.msra.mxu0 0
  %1484 = vmatprep.subr.bf16.mxu0 0
  %1485 = vmatpush2.bf16.msra.mxu0 0
  %1486 = vmatprep.subr.bf16.mxu0 0
  %1487 = vmatpush2.bf16.msra.mxu0 0
  %1488 = vmatprep.subr.bf16.mxu0 0
  %1489 = vmatpush2.bf16.msra.mxu0 0
  %1490 = vmatprep.subr.bf16.mxu0 0
  %1491 = vmatpush2.bf16.msra.mxu0 0
  %1492 = vmatprep.mubr.bf16.mxu0 0
  %1493 = vmatmul.mubr.bf16.gmra.mxu0 %v1446
  %v1494 = vpop.f32.mrf.mxu0
  %v1495 = vadd.f32 %v1419, %v1494
  %v1496 = vpop.f32.mrf.mxu0
  %v1497 = vpop.f32.mrf.mxu0
  %v1498 = vadd.f32 %v1419, %v1497
  %v1499 = vpop.f32.mrf.mxu0
  %1500 = vmatprep.mubr.bf16.mxu0 0
  %1501 = vmatmul.mubr.bf16.gmra.mxu0 %v1449
  %v1502 = vpop.f32.mrf.mxu0
  %v1503 = vadd.f32 %v1419, %v1502
  %v1504 = vpop.f32.mrf.mxu0
  %v1505 = vpop.f32.mrf.mxu0
  %v1506 = vadd.f32 %v1419, %v1505
  %v1507 = vpop.f32.mrf.mxu0
  %1508 = vmatprep.mubr.bf16.mxu0 0
  %1509 = vmatmul.mubr.bf16.gmra.mxu0 %v1452
  %v1510 = vpop.f32.mrf.mxu0
  %v1511 = vadd.f32 %v1419, %v1510
  %v1512 = vpop.f32.mrf.mxu0
  %v1513 = vpop.f32.mrf.mxu0
  %v1514 = vadd.f32 %v1419, %v1513
  %v1515 = vpop.f32.mrf.mxu0
  %1516 = vmatprep.mubr.bf16.mxu0 0
  %1517 = vmatmul.mubr.bf16.gmra.mxu0 %v1455
  %v1518 = vpop.f32.mrf.mxu0
  %v1519 = vadd.f32 %v1419, %v1518
  %v1520 = vpop.f32.mrf.mxu0
  %v1521 = vpop.f32.mrf.mxu0
  %v1522 = vadd.f32 %v1419, %v1521
  %v1523 = vpop.f32.mrf.mxu0
  %1524 = vmatprep.mubr.bf16.mxu0 0
  %1525 = vmatmul.mubr.bf16.gmra.mxu0 %v1458
  %v1526 = vpop.f32.mrf.mxu0
  %v1527 = vadd.f32 %v1419, %v1526
  %v1528 = vpop.f32.mrf.mxu0
  %v1529 = vpop.f32.mrf.mxu0
  %v1530 = vadd.f32 %v1419, %v1529
  %v1531 = vpop.f32.mrf.mxu0
  %1532 = vdwg.mxu0
  %vm1533 = vcmp.ge.f32.partialorder %v1495, 0.0
  %vm1534 = vcmp.ge.f32.partialorder %v1498, 0.0
  %vm1535 = vcmp.ge.f32.partialorder %v1503, 0.0
  %vm1536 = vcmp.ge.f32.partialorder %v1506, 0.0
  %vm1537 = vcmp.ge.f32.partialorder %v1511, 0.0
  %vm1538 = vcmp.ge.f32.partialorder %v1514, 0.0
  %vm1539 = vcmp.ge.f32.partialorder %v1519, 0.0
  %vm1540 = vcmp.ge.f32.partialorder %v1522, 0.0
  %vm1541 = vcmp.ge.f32.partialorder %v1527, 0.0
  %vm1542 = vcmp.ge.f32.partialorder %v1530, 0.0
  %s1543 = scalar_lea.vmem %s11, 3
  %v1544 = vld [vmem:[%s1543] sm:$0x1]
  %v1546 = vlaneseq
  %v1547 = vshrl.u32 %v1546, 7
  %v1548 = vsub.s32 0, %v1547
  %v1549 = vrot.slane %v1544, %v1548
  %v1551 = vmul.f32 %v1549, %v1495
  %v1552 = vmul.f32 %v1549, %v1498
  %v1553 = vmul.f32 %v1549, %v1503
  %v1554 = vmul.f32 %v1549, %v1506
  %v1555 = vmul.f32 %v1549, %v1511
  %v1556 = vmul.f32 %v1549, %v1514
  %v1557 = vmul.f32 %v1549, %v1519
  %v1558 = vmul.f32 %v1549, %v1522
  %v1559 = vmul.f32 %v1549, %v1527
  %v1560 = vmul.f32 %v1549, %v1530
  %v1561 = vsel %vm1533, %v1495, %v1551
  %v1562 = vsel %vm1534, %v1498, %v1552
  %v1563 = vsel %vm1535, %v1503, %v1553
  %v1564 = vsel %vm1536, %v1506, %v1554
  %v1565 = vsel %vm1537, %v1511, %v1555
  %v1566 = vsel %vm1538, %v1514, %v1556
  %v1567 = vsel %vm1539, %v1519, %v1557
  %v1568 = vsel %vm1540, %v1522, %v1558
  %v1569 = vsel %vm1541, %v1527, %v1559
  %v1570 = vsel %vm1542, %v1530, %v1560
  %v1571 = vpack.c.bf16 %v1562, %v1561
  %v1572 = vpack.c.bf16 %v1564, %v1563
  %v1573 = vpack.c.bf16 %v1566, %v1565
  %v1574 = vpack.c.bf16 %v1568, %v1567
  %v1575 = vpack.c.bf16 %v1570, %v1569
  %s1576 = scalar_lea.vmem %s9, 192
  %v1577 = vld [vmem:[%s1576] sm:$0xf]
  %v1578 = vld [vmem:[%s1576 + $0x4] sm:$0xf]
  %v1579 = vld [vmem:[%s1576 + $0x8] sm:$0xf]
  %v1580 = vld [vmem:[%s1576 + $0xc] sm:$0xf]
  %v1581 = vld [vmem:[%s1576 + $0x10] sm:$0xf]
  %v1582 = vld [vmem:[%s1576 + $0x14] sm:$0xf]
  %v1583 = vld [vmem:[%s1576 + $0x18] sm:$0xf]
  %v1584 = vld [vmem:[%s1576 + $0x1c] sm:$0xf]
  %v1585 = vld [vmem:[%s1576 + $0x20] sm:$0xf]
  %v1586 = vld [vmem:[%s1576 + $0x24] sm:$0xf]
  %v1587 = vld [vmem:[%s1576 + $0x28] sm:$0xf]
  %v1588 = vld [vmem:[%s1576 + $0x2c] sm:$0xf]
  %v1589 = vld [vmem:[%s1576 + $0x30] sm:$0xf]
  %v1590 = vld [vmem:[%s1576 + $0x34] sm:$0xf]
  %v1591 = vld [vmem:[%s1576 + $0x38] sm:$0xf]
  %v1592 = vld [vmem:[%s1576 + $0x3c] sm:$0xf]
  %v1609 = vunpack.c.l.b16 %v1577
  %v1610 = vunpack.c.l.b16 %v1578
  %v1611 = vunpack.c.l.b16 %v1579
  %v1612 = vunpack.c.l.b16 %v1580
  %v1613 = vunpack.c.l.b16 %v1581
  %v1614 = vunpack.c.l.b16 %v1582
  %v1615 = vunpack.c.l.b16 %v1583
  %v1616 = vunpack.c.l.b16 %v1584
  %v1617 = vunpack.c.l.b16 %v1585
  %v1618 = vunpack.c.l.b16 %v1586
  %v1619 = vunpack.c.l.b16 %v1587
  %v1620 = vunpack.c.l.b16 %v1588
  %v1621 = vunpack.c.l.b16 %v1589
  %v1622 = vunpack.c.l.b16 %v1590
  %v1623 = vunpack.c.l.b16 %v1591
  %v1624 = vunpack.c.l.b16 %v1592
  %v1625 = vpack.c.b16 %v1610, %v1609
  %v1626 = vpack.c.b16 %v1612, %v1611
  %v1627 = vpack.c.b16 %v1614, %v1613
  %v1628 = vpack.c.b16 %v1616, %v1615
  %v1629 = vpack.c.b16 %v1618, %v1617
  %v1630 = vpack.c.b16 %v1620, %v1619
  %v1631 = vpack.c.b16 %v1622, %v1621
  %v1632 = vpack.c.b16 %v1624, %v1623
  %1641 = vmatprep.subr.bf16.mxu0 0
  %1642 = vmatpush1.bf16.msra.mxu0 %v1632
  %1643 = vmatprep.subr.bf16.mxu0 0
  %1644 = vmatpush1.bf16.msra.mxu0 %v1631
  %1645 = vmatprep.subr.bf16.mxu0 0
  %1646 = vmatpush1.bf16.msra.mxu0 %v1630
  %1647 = vmatprep.subr.bf16.mxu0 0
  %1648 = vmatpush1.bf16.msra.mxu0 %v1629
  %1649 = vmatprep.subr.bf16.mxu0 0
  %1650 = vmatpush1.bf16.msra.mxu0 %v1628
  %1651 = vmatprep.subr.bf16.mxu0 0
  %1652 = vmatpush1.bf16.msra.mxu0 %v1627
  %1653 = vmatprep.subr.bf16.mxu0 0
  %1654 = vmatpush1.bf16.msra.mxu0 %v1626
  %1655 = vmatprep.subr.bf16.mxu0 0
  %1656 = vmatpush1.bf16.msra.mxu0 %v1625
  %1657 = vmatprep.subr.bf16.mxu0 0
  %1658 = vmatpush2.bf16.msra.mxu0 0
  %1659 = vmatprep.subr.bf16.mxu0 0
  %1660 = vmatpush2.bf16.msra.mxu0 0
  %1661 = vmatprep.subr.bf16.mxu0 0
  %1662 = vmatpush2.bf16.msra.mxu0 0
  %1663 = vmatprep.subr.bf16.mxu0 0
  %1664 = vmatpush2.bf16.msra.mxu0 0
  %1665 = vmatprep.subr.bf16.mxu0 0
  %1666 = vmatpush2.bf16.msra.mxu0 0
  %1667 = vmatprep.subr.bf16.mxu0 0
  %1668 = vmatpush2.bf16.msra.mxu0 0
  %1669 = vmatprep.subr.bf16.mxu0 0
  %1670 = vmatpush2.bf16.msra.mxu0 0
  %1671 = vmatprep.subr.bf16.mxu0 0
  %1672 = vmatpush2.bf16.msra.mxu0 0
  %1673 = vmatprep.mubr.bf16.mxu0 0
  %1674 = vmatmul.mubr.bf16.gmra.mxu0 %v1571
  %v1675 = vpop.f32.mrf.mxu0
  %v1676 = vadd.f32 0.0, %v1675
  %v1677 = vpop.f32.mrf.mxu0
  %v1678 = vpop.f32.mrf.mxu0
  %v1679 = vadd.f32 0.0, %v1678
  %v1680 = vpop.f32.mrf.mxu0
  %1681 = vmatprep.mubr.bf16.mxu0 0
  %1682 = vmatmul.mubr.bf16.gmra.mxu0 %v1572
  %v1683 = vpop.f32.mrf.mxu0
  %v1684 = vadd.f32 0.0, %v1683
  %v1685 = vpop.f32.mrf.mxu0
  %v1686 = vpop.f32.mrf.mxu0
  %v1687 = vadd.f32 0.0, %v1686
  %v1688 = vpop.f32.mrf.mxu0
  %1689 = vmatprep.mubr.bf16.mxu0 0
  %1690 = vmatmul.mubr.bf16.gmra.mxu0 %v1573
  %v1691 = vpop.f32.mrf.mxu0
  %v1692 = vadd.f32 0.0, %v1691
  %v1693 = vpop.f32.mrf.mxu0
  %v1694 = vpop.f32.mrf.mxu0
  %v1695 = vadd.f32 0.0, %v1694
  %v1696 = vpop.f32.mrf.mxu0
  %1697 = vmatprep.mubr.bf16.mxu0 0
  %1698 = vmatmul.mubr.bf16.gmra.mxu0 %v1574
  %v1699 = vpop.f32.mrf.mxu0
  %v1700 = vadd.f32 0.0, %v1699
  %v1701 = vpop.f32.mrf.mxu0
  %v1702 = vpop.f32.mrf.mxu0
  %v1703 = vadd.f32 0.0, %v1702
  %v1704 = vpop.f32.mrf.mxu0
  %1705 = vmatprep.mubr.bf16.mxu0 0
  %1706 = vmatmul.mubr.bf16.gmra.mxu0 %v1575
  %v1707 = vpop.f32.mrf.mxu0
  %v1708 = vadd.f32 0.0, %v1707
  %v1709 = vpop.f32.mrf.mxu0
  %v1710 = vpop.f32.mrf.mxu0
  %v1711 = vadd.f32 0.0, %v1710
  %v1712 = vpop.f32.mrf.mxu0
  %1713 = vdwg.mxu0
  %v1714 = vadd.f32 %v1389, %v1676
  %v1715 = vadd.f32 %v1390, %v1679
  %v1716 = vadd.f32 %v1391, %v1684
  %v1717 = vadd.f32 %v1392, %v1687
  %v1718 = vadd.f32 %v1393, %v1692
  %v1719 = vadd.f32 %v1394, %v1695
  %v1720 = vadd.f32 %v1395, %v1700
  %v1721 = vadd.f32 %v1396, %v1703
  %v1722 = vadd.f32 %v1397, %v1708
  %v1723 = vadd.f32 %v1398, %v1711
  %s1724 = scalar_lea.vmem %s10, 3
  %v1725 = vld [vmem:[%s1724] sm:$0x1]
  %v1727 = vlaneseq
  %v1728 = vshrl.u32 %v1727, 7
  %v1729 = vsub.s32 0, %v1728
  %v1730 = vrot.slane %v1725, %v1729
  %v1732 = vadd.f32 %v1714, %v1730
  %v1733 = vadd.f32 %v1715, %v1730
  %v1734 = vadd.f32 %v1716, %v1730
  %v1735 = vadd.f32 %v1717, %v1730
  %v1736 = vadd.f32 %v1718, %v1730
  %v1737 = vadd.f32 %v1719, %v1730
  %v1738 = vadd.f32 %v1720, %v1730
  %v1739 = vadd.f32 %v1721, %v1730
  %v1740 = vadd.f32 %v1722, %v1730
  %v1741 = vadd.f32 %v1723, %v1730
  %v1742 = vpack.c.bf16 %v1733, %v1732
  %v1743 = vpack.c.bf16 %v1735, %v1734
  %v1744 = vpack.c.bf16 %v1737, %v1736
  %v1745 = vpack.c.bf16 %v1739, %v1738
  %v1746 = vpack.c.bf16 %v1741, %v1740
  %s1747 = scalar_lea.vmem %s7, 128
  %v1748 = vld [vmem:[%s1747] sm:$0xf]
  %v1749 = vld [vmem:[%s1747 + $0x4] sm:$0xf]
  %v1750 = vld [vmem:[%s1747 + $0x8] sm:$0xf]
  %v1751 = vld [vmem:[%s1747 + $0xc] sm:$0xf]
  %v1752 = vld [vmem:[%s1747 + $0x10] sm:$0xf]
  %v1753 = vld [vmem:[%s1747 + $0x14] sm:$0xf]
  %v1754 = vld [vmem:[%s1747 + $0x18] sm:$0xf]
  %v1755 = vld [vmem:[%s1747 + $0x1c] sm:$0xf]
  %s1756 = scalar_lea.vmem %s8, 4
  %v1757 = vld [vmem:[%s1756] sm:$0x1]
  %v1759 = vlaneseq
  %v1760 = vshrl.u32 %v1759, 7
  %v1761 = vsub.s32 0, %v1760
  %v1762 = vrot.slane %v1757, %v1761
  %v1772 = vunpack.c.l.b16 %v1748
  %v1773 = vunpack.c.l.b16 %v1749
  %v1774 = vunpack.c.l.b16 %v1750
  %v1775 = vunpack.c.l.b16 %v1751
  %v1776 = vunpack.c.l.b16 %v1752
  %v1777 = vunpack.c.l.b16 %v1753
  %v1778 = vunpack.c.l.b16 %v1754
  %v1779 = vunpack.c.l.b16 %v1755
  %v1780 = vpack.c.b16 %v1773, %v1772
  %v1781 = vpack.c.b16 %v1775, %v1774
  %v1782 = vpack.c.b16 %v1777, %v1776
  %v1783 = vpack.c.b16 %v1779, %v1778
  %v1789 = vsel %vm418, %v1742, 0
  %v1792 = vsel %vm418, %v1743, 0
  %v1795 = vsel %vm418, %v1744, 0
  %v1798 = vsel %vm418, %v1745, 0
  %v1801 = vsel %vm418, %v1746, 0
  %1803 = vmatprep.subr.bf16.mxu0 0
  %1804 = vmatpush1.bf16.msra.mxu0 0
  %1805 = vmatprep.subr.bf16.mxu0 0
  %1806 = vmatpush1.bf16.msra.mxu0 0
  %1807 = vmatprep.subr.bf16.mxu0 0
  %1808 = vmatpush1.bf16.msra.mxu0 0
  %1809 = vmatprep.subr.bf16.mxu0 0
  %1810 = vmatpush1.bf16.msra.mxu0 0
  %1811 = vmatprep.subr.bf16.mxu0 0
  %1812 = vmatpush1.bf16.msra.mxu0 %v1783
  %1813 = vmatprep.subr.bf16.mxu0 0
  %1814 = vmatpush1.bf16.msra.mxu0 %v1782
  %1815 = vmatprep.subr.bf16.mxu0 0
  %1816 = vmatpush1.bf16.msra.mxu0 %v1781
  %1817 = vmatprep.subr.bf16.mxu0 0
  %1818 = vmatpush1.bf16.msra.mxu0 %v1780
  %1819 = vmatprep.subr.bf16.mxu0 0
  %1820 = vmatpush2.bf16.msra.mxu0 0
  %1821 = vmatprep.subr.bf16.mxu0 0
  %1822 = vmatpush2.bf16.msra.mxu0 0
  %1823 = vmatprep.subr.bf16.mxu0 0
  %1824 = vmatpush2.bf16.msra.mxu0 0
  %1825 = vmatprep.subr.bf16.mxu0 0
  %1826 = vmatpush2.bf16.msra.mxu0 0
  %1827 = vmatprep.subr.bf16.mxu0 0
  %1828 = vmatpush2.bf16.msra.mxu0 0
  %1829 = vmatprep.subr.bf16.mxu0 0
  %1830 = vmatpush2.bf16.msra.mxu0 0
  %1831 = vmatprep.subr.bf16.mxu0 0
  %1832 = vmatpush2.bf16.msra.mxu0 0
  %1833 = vmatprep.subr.bf16.mxu0 0
  %1834 = vmatpush2.bf16.msra.mxu0 0
  %1835 = vmatprep.mubr.bf16.mxu0 0
  %1836 = vmatmul.mubr.bf16.gmra.mxu0 %v1789
  %v1837 = vpop.f32.mrf.mxu0
  %v1838 = vadd.f32 %v1762, %v1837
  %v1839 = vpop.f32.mrf.mxu0
  %v1840 = vpop.f32.mrf.mxu0
  %v1841 = vadd.f32 %v1762, %v1840
  %v1842 = vpop.f32.mrf.mxu0
  %1843 = vmatprep.mubr.bf16.mxu0 0
  %1844 = vmatmul.mubr.bf16.gmra.mxu0 %v1792
  %v1845 = vpop.f32.mrf.mxu0
  %v1846 = vadd.f32 %v1762, %v1845
  %v1847 = vpop.f32.mrf.mxu0
  %v1848 = vpop.f32.mrf.mxu0
  %v1849 = vadd.f32 %v1762, %v1848
  %v1850 = vpop.f32.mrf.mxu0
  %1851 = vmatprep.mubr.bf16.mxu0 0
  %1852 = vmatmul.mubr.bf16.gmra.mxu0 %v1795
  %v1853 = vpop.f32.mrf.mxu0
  %v1854 = vadd.f32 %v1762, %v1853
  %v1855 = vpop.f32.mrf.mxu0
  %v1856 = vpop.f32.mrf.mxu0
  %v1857 = vadd.f32 %v1762, %v1856
  %v1858 = vpop.f32.mrf.mxu0
  %1859 = vmatprep.mubr.bf16.mxu0 0
  %1860 = vmatmul.mubr.bf16.gmra.mxu0 %v1798
  %v1861 = vpop.f32.mrf.mxu0
  %v1862 = vadd.f32 %v1762, %v1861
  %v1863 = vpop.f32.mrf.mxu0
  %v1864 = vpop.f32.mrf.mxu0
  %v1865 = vadd.f32 %v1762, %v1864
  %v1866 = vpop.f32.mrf.mxu0
  %1867 = vmatprep.mubr.bf16.mxu0 0
  %1868 = vmatmul.mubr.bf16.gmra.mxu0 %v1801
  %v1869 = vpop.f32.mrf.mxu0
  %v1870 = vadd.f32 %v1762, %v1869
  %v1871 = vpop.f32.mrf.mxu0
  %v1872 = vpop.f32.mrf.mxu0
  %v1873 = vadd.f32 %v1762, %v1872
  %v1874 = vpop.f32.mrf.mxu0
  %1875 = vdwg.mxu0
  %vm1876 = vcmp.ge.f32.partialorder %v1838, 0.0
  %vm1877 = vcmp.ge.f32.partialorder %v1841, 0.0
  %vm1878 = vcmp.ge.f32.partialorder %v1846, 0.0
  %vm1879 = vcmp.ge.f32.partialorder %v1849, 0.0
  %vm1880 = vcmp.ge.f32.partialorder %v1854, 0.0
  %vm1881 = vcmp.ge.f32.partialorder %v1857, 0.0
  %vm1882 = vcmp.ge.f32.partialorder %v1862, 0.0
  %vm1883 = vcmp.ge.f32.partialorder %v1865, 0.0
  %vm1884 = vcmp.ge.f32.partialorder %v1870, 0.0
  %vm1885 = vcmp.ge.f32.partialorder %v1873, 0.0
  %s1886 = scalar_lea.vmem %s11, 4
  %v1887 = vld [vmem:[%s1886] sm:$0x1]
  %v1889 = vlaneseq
  %v1890 = vshrl.u32 %v1889, 7
  %v1891 = vsub.s32 0, %v1890
  %v1892 = vrot.slane %v1887, %v1891
  %v1894 = vmul.f32 %v1892, %v1838
  %v1895 = vmul.f32 %v1892, %v1841
  %v1896 = vmul.f32 %v1892, %v1846
  %v1897 = vmul.f32 %v1892, %v1849
  %v1898 = vmul.f32 %v1892, %v1854
  %v1899 = vmul.f32 %v1892, %v1857
  %v1900 = vmul.f32 %v1892, %v1862
  %v1901 = vmul.f32 %v1892, %v1865
  %v1902 = vmul.f32 %v1892, %v1870
  %v1903 = vmul.f32 %v1892, %v1873
  %v1904 = vsel %vm1876, %v1838, %v1894
  %v1905 = vsel %vm1877, %v1841, %v1895
  %v1906 = vsel %vm1878, %v1846, %v1896
  %v1907 = vsel %vm1879, %v1849, %v1897
  %v1908 = vsel %vm1880, %v1854, %v1898
  %v1909 = vsel %vm1881, %v1857, %v1899
  %v1910 = vsel %vm1882, %v1862, %v1900
  %v1911 = vsel %vm1883, %v1865, %v1901
  %v1912 = vsel %vm1884, %v1870, %v1902
  %v1913 = vsel %vm1885, %v1873, %v1903
  %v1914 = vpack.c.bf16 %v1905, %v1904
  %v1915 = vpack.c.bf16 %v1907, %v1906
  %v1916 = vpack.c.bf16 %v1909, %v1908
  %v1917 = vpack.c.bf16 %v1911, %v1910
  %v1918 = vpack.c.bf16 %v1913, %v1912
  %s1919 = scalar_lea.vmem %s9, 256
  %v1920 = vld [vmem:[%s1919] sm:$0xf]
  %v1921 = vld [vmem:[%s1919 + $0x4] sm:$0xf]
  %v1922 = vld [vmem:[%s1919 + $0x8] sm:$0xf]
  %v1923 = vld [vmem:[%s1919 + $0xc] sm:$0xf]
  %v1924 = vld [vmem:[%s1919 + $0x10] sm:$0xf]
  %v1925 = vld [vmem:[%s1919 + $0x14] sm:$0xf]
  %v1926 = vld [vmem:[%s1919 + $0x18] sm:$0xf]
  %v1927 = vld [vmem:[%s1919 + $0x1c] sm:$0xf]
  %v1928 = vld [vmem:[%s1919 + $0x20] sm:$0xf]
  %v1929 = vld [vmem:[%s1919 + $0x24] sm:$0xf]
  %v1930 = vld [vmem:[%s1919 + $0x28] sm:$0xf]
  %v1931 = vld [vmem:[%s1919 + $0x2c] sm:$0xf]
  %v1932 = vld [vmem:[%s1919 + $0x30] sm:$0xf]
  %v1933 = vld [vmem:[%s1919 + $0x34] sm:$0xf]
  %v1934 = vld [vmem:[%s1919 + $0x38] sm:$0xf]
  %v1935 = vld [vmem:[%s1919 + $0x3c] sm:$0xf]
  %v1952 = vunpack.c.l.b16 %v1920
  %v1953 = vunpack.c.l.b16 %v1921
  %v1954 = vunpack.c.l.b16 %v1922
  %v1955 = vunpack.c.l.b16 %v1923
  %v1956 = vunpack.c.l.b16 %v1924
  %v1957 = vunpack.c.l.b16 %v1925
  %v1958 = vunpack.c.l.b16 %v1926
  %v1959 = vunpack.c.l.b16 %v1927
  %v1960 = vunpack.c.l.b16 %v1928
  %v1961 = vunpack.c.l.b16 %v1929
  %v1962 = vunpack.c.l.b16 %v1930
  %v1963 = vunpack.c.l.b16 %v1931
  %v1964 = vunpack.c.l.b16 %v1932
  %v1965 = vunpack.c.l.b16 %v1933
  %v1966 = vunpack.c.l.b16 %v1934
  %v1967 = vunpack.c.l.b16 %v1935
  %v1968 = vpack.c.b16 %v1953, %v1952
  %v1969 = vpack.c.b16 %v1955, %v1954
  %v1970 = vpack.c.b16 %v1957, %v1956
  %v1971 = vpack.c.b16 %v1959, %v1958
  %v1972 = vpack.c.b16 %v1961, %v1960
  %v1973 = vpack.c.b16 %v1963, %v1962
  %v1974 = vpack.c.b16 %v1965, %v1964
  %v1975 = vpack.c.b16 %v1967, %v1966
  %1984 = vmatprep.subr.bf16.mxu0 0
  %1985 = vmatpush1.bf16.msra.mxu0 %v1975
  %1986 = vmatprep.subr.bf16.mxu0 0
  %1987 = vmatpush1.bf16.msra.mxu0 %v1974
  %1988 = vmatprep.subr.bf16.mxu0 0
  %1989 = vmatpush1.bf16.msra.mxu0 %v1973
  %1990 = vmatprep.subr.bf16.mxu0 0
  %1991 = vmatpush1.bf16.msra.mxu0 %v1972
  %1992 = vmatprep.subr.bf16.mxu0 0
  %1993 = vmatpush1.bf16.msra.mxu0 %v1971
  %1994 = vmatprep.subr.bf16.mxu0 0
  %1995 = vmatpush1.bf16.msra.mxu0 %v1970
  %1996 = vmatprep.subr.bf16.mxu0 0
  %1997 = vmatpush1.bf16.msra.mxu0 %v1969
  %1998 = vmatprep.subr.bf16.mxu0 0
  %1999 = vmatpush1.bf16.msra.mxu0 %v1968
  %2000 = vmatprep.subr.bf16.mxu0 0
  %2001 = vmatpush2.bf16.msra.mxu0 0
  %2002 = vmatprep.subr.bf16.mxu0 0
  %2003 = vmatpush2.bf16.msra.mxu0 0
  %2004 = vmatprep.subr.bf16.mxu0 0
  %2005 = vmatpush2.bf16.msra.mxu0 0
  %2006 = vmatprep.subr.bf16.mxu0 0
  %2007 = vmatpush2.bf16.msra.mxu0 0
  %2008 = vmatprep.subr.bf16.mxu0 0
  %2009 = vmatpush2.bf16.msra.mxu0 0
  %2010 = vmatprep.subr.bf16.mxu0 0
  %2011 = vmatpush2.bf16.msra.mxu0 0
  %2012 = vmatprep.subr.bf16.mxu0 0
  %2013 = vmatpush2.bf16.msra.mxu0 0
  %2014 = vmatprep.subr.bf16.mxu0 0
  %2015 = vmatpush2.bf16.msra.mxu0 0
  %2016 = vmatprep.mubr.bf16.mxu0 0
  %2017 = vmatmul.mubr.bf16.gmra.mxu0 %v1914
  %v2018 = vpop.f32.mrf.mxu0
  %v2019 = vadd.f32 0.0, %v2018
  %v2020 = vpop.f32.mrf.mxu0
  %v2021 = vpop.f32.mrf.mxu0
  %v2022 = vadd.f32 0.0, %v2021
  %v2023 = vpop.f32.mrf.mxu0
  %2024 = vmatprep.mubr.bf16.mxu0 0
  %2025 = vmatmul.mubr.bf16.gmra.mxu0 %v1915
  %v2026 = vpop.f32.mrf.mxu0
  %v2027 = vadd.f32 0.0, %v2026
  %v2028 = vpop.f32.mrf.mxu0
  %v2029 = vpop.f32.mrf.mxu0
  %v2030 = vadd.f32 0.0, %v2029
  %v2031 = vpop.f32.mrf.mxu0
  %2032 = vmatprep.mubr.bf16.mxu0 0
  %2033 = vmatmul.mubr.bf16.gmra.mxu0 %v1916
  %v2034 = vpop.f32.mrf.mxu0
  %v2035 = vadd.f32 0.0, %v2034
  %v2036 = vpop.f32.mrf.mxu0
  %v2037 = vpop.f32.mrf.mxu0
  %v2038 = vadd.f32 0.0, %v2037
  %v2039 = vpop.f32.mrf.mxu0
  %2040 = vmatprep.mubr.bf16.mxu0 0
  %2041 = vmatmul.mubr.bf16.gmra.mxu0 %v1917
  %v2042 = vpop.f32.mrf.mxu0
  %v2043 = vadd.f32 0.0, %v2042
  %v2044 = vpop.f32.mrf.mxu0
  %v2045 = vpop.f32.mrf.mxu0
  %v2046 = vadd.f32 0.0, %v2045
  %v2047 = vpop.f32.mrf.mxu0
  %2048 = vmatprep.mubr.bf16.mxu0 0
  %2049 = vmatmul.mubr.bf16.gmra.mxu0 %v1918
  %v2050 = vpop.f32.mrf.mxu0
  %v2051 = vadd.f32 0.0, %v2050
  %v2052 = vpop.f32.mrf.mxu0
  %v2053 = vpop.f32.mrf.mxu0
  %v2054 = vadd.f32 0.0, %v2053
  %v2055 = vpop.f32.mrf.mxu0
  %2056 = vdwg.mxu0
  %v2057 = vadd.f32 %v1732, %v2019
  %v2058 = vadd.f32 %v1733, %v2022
  %v2059 = vadd.f32 %v1734, %v2027
  %v2060 = vadd.f32 %v1735, %v2030
  %v2061 = vadd.f32 %v1736, %v2035
  %v2062 = vadd.f32 %v1737, %v2038
  %v2063 = vadd.f32 %v1738, %v2043
  %v2064 = vadd.f32 %v1739, %v2046
  %v2065 = vadd.f32 %v1740, %v2051
  %v2066 = vadd.f32 %v1741, %v2054
  %s2067 = scalar_lea.vmem %s10, 4
  %v2068 = vld [vmem:[%s2067] sm:$0x1]
  %v2070 = vlaneseq
  %v2071 = vshrl.u32 %v2070, 7
  %v2072 = vsub.s32 0, %v2071
  %v2073 = vrot.slane %v2068, %v2072
  %v2075 = vadd.f32 %v2057, %v2073
  %v2076 = vadd.f32 %v2058, %v2073
  %v2077 = vadd.f32 %v2059, %v2073
  %v2078 = vadd.f32 %v2060, %v2073
  %v2079 = vadd.f32 %v2061, %v2073
  %v2080 = vadd.f32 %v2062, %v2073
  %v2081 = vadd.f32 %v2063, %v2073
  %v2082 = vadd.f32 %v2064, %v2073
  %v2083 = vadd.f32 %v2065, %v2073
  %v2084 = vadd.f32 %v2066, %v2073
  %v2085 = vpack.c.bf16 %v2076, %v2075
  %v2086 = vpack.c.bf16 %v2078, %v2077
  %v2087 = vpack.c.bf16 %v2080, %v2079
  %v2088 = vpack.c.bf16 %v2082, %v2081
  %v2089 = vpack.c.bf16 %v2084, %v2083
  %s2090 = scalar_lea.vmem %s7, 160
  %v2091 = vld [vmem:[%s2090] sm:$0xf]
  %v2092 = vld [vmem:[%s2090 + $0x4] sm:$0xf]
  %v2093 = vld [vmem:[%s2090 + $0x8] sm:$0xf]
  %v2094 = vld [vmem:[%s2090 + $0xc] sm:$0xf]
  %v2095 = vld [vmem:[%s2090 + $0x10] sm:$0xf]
  %v2096 = vld [vmem:[%s2090 + $0x14] sm:$0xf]
  %v2097 = vld [vmem:[%s2090 + $0x18] sm:$0xf]
  %v2098 = vld [vmem:[%s2090 + $0x1c] sm:$0xf]
  %s2099 = scalar_lea.vmem %s8, 5
  %v2100 = vld [vmem:[%s2099] sm:$0x1]
  %v2102 = vlaneseq
  %v2103 = vshrl.u32 %v2102, 7
  %v2104 = vsub.s32 0, %v2103
  %v2105 = vrot.slane %v2100, %v2104
  %v2115 = vunpack.c.l.b16 %v2091
  %v2116 = vunpack.c.l.b16 %v2092
  %v2117 = vunpack.c.l.b16 %v2093
  %v2118 = vunpack.c.l.b16 %v2094
  %v2119 = vunpack.c.l.b16 %v2095
  %v2120 = vunpack.c.l.b16 %v2096
  %v2121 = vunpack.c.l.b16 %v2097
  %v2122 = vunpack.c.l.b16 %v2098
  %v2123 = vpack.c.b16 %v2116, %v2115
  %v2124 = vpack.c.b16 %v2118, %v2117
  %v2125 = vpack.c.b16 %v2120, %v2119
  %v2126 = vpack.c.b16 %v2122, %v2121
  %v2132 = vsel %vm418, %v2085, 0
  %v2135 = vsel %vm418, %v2086, 0
  %v2138 = vsel %vm418, %v2087, 0
  %v2141 = vsel %vm418, %v2088, 0
  %v2144 = vsel %vm418, %v2089, 0
  %2146 = vmatprep.subr.bf16.mxu0 0
  %2147 = vmatpush1.bf16.msra.mxu0 0
  %2148 = vmatprep.subr.bf16.mxu0 0
  %2149 = vmatpush1.bf16.msra.mxu0 0
  %2150 = vmatprep.subr.bf16.mxu0 0
  %2151 = vmatpush1.bf16.msra.mxu0 0
  %2152 = vmatprep.subr.bf16.mxu0 0
  %2153 = vmatpush1.bf16.msra.mxu0 0
  %2154 = vmatprep.subr.bf16.mxu0 0
  %2155 = vmatpush1.bf16.msra.mxu0 %v2126
  %2156 = vmatprep.subr.bf16.mxu0 0
  %2157 = vmatpush1.bf16.msra.mxu0 %v2125
  %2158 = vmatprep.subr.bf16.mxu0 0
  %2159 = vmatpush1.bf16.msra.mxu0 %v2124
  %2160 = vmatprep.subr.bf16.mxu0 0
  %2161 = vmatpush1.bf16.msra.mxu0 %v2123
  %2162 = vmatprep.subr.bf16.mxu0 0
  %2163 = vmatpush2.bf16.msra.mxu0 0
  %2164 = vmatprep.subr.bf16.mxu0 0
  %2165 = vmatpush2.bf16.msra.mxu0 0
  %2166 = vmatprep.subr.bf16.mxu0 0
  %2167 = vmatpush2.bf16.msra.mxu0 0
  %2168 = vmatprep.subr.bf16.mxu0 0
  %2169 = vmatpush2.bf16.msra.mxu0 0
  %2170 = vmatprep.subr.bf16.mxu0 0
  %2171 = vmatpush2.bf16.msra.mxu0 0
  %2172 = vmatprep.subr.bf16.mxu0 0
  %2173 = vmatpush2.bf16.msra.mxu0 0
  %2174 = vmatprep.subr.bf16.mxu0 0
  %2175 = vmatpush2.bf16.msra.mxu0 0
  %2176 = vmatprep.subr.bf16.mxu0 0
  %2177 = vmatpush2.bf16.msra.mxu0 0
  %2178 = vmatprep.mubr.bf16.mxu0 0
  %2179 = vmatmul.mubr.bf16.gmra.mxu0 %v2132
  %v2180 = vpop.f32.mrf.mxu0
  %v2181 = vadd.f32 %v2105, %v2180
  %v2182 = vpop.f32.mrf.mxu0
  %v2183 = vpop.f32.mrf.mxu0
  %v2184 = vadd.f32 %v2105, %v2183
  %v2185 = vpop.f32.mrf.mxu0
  %2186 = vmatprep.mubr.bf16.mxu0 0
  %2187 = vmatmul.mubr.bf16.gmra.mxu0 %v2135
  %v2188 = vpop.f32.mrf.mxu0
  %v2189 = vadd.f32 %v2105, %v2188
  %v2190 = vpop.f32.mrf.mxu0
  %v2191 = vpop.f32.mrf.mxu0
  %v2192 = vadd.f32 %v2105, %v2191
  %v2193 = vpop.f32.mrf.mxu0
  %2194 = vmatprep.mubr.bf16.mxu0 0
  %2195 = vmatmul.mubr.bf16.gmra.mxu0 %v2138
  %v2196 = vpop.f32.mrf.mxu0
  %v2197 = vadd.f32 %v2105, %v2196
  %v2198 = vpop.f32.mrf.mxu0
  %v2199 = vpop.f32.mrf.mxu0
  %v2200 = vadd.f32 %v2105, %v2199
  %v2201 = vpop.f32.mrf.mxu0
  %2202 = vmatprep.mubr.bf16.mxu0 0
  %2203 = vmatmul.mubr.bf16.gmra.mxu0 %v2141
  %v2204 = vpop.f32.mrf.mxu0
  %v2205 = vadd.f32 %v2105, %v2204
  %v2206 = vpop.f32.mrf.mxu0
  %v2207 = vpop.f32.mrf.mxu0
  %v2208 = vadd.f32 %v2105, %v2207
  %v2209 = vpop.f32.mrf.mxu0
  %2210 = vmatprep.mubr.bf16.mxu0 0
  %2211 = vmatmul.mubr.bf16.gmra.mxu0 %v2144
  %v2212 = vpop.f32.mrf.mxu0
  %v2213 = vadd.f32 %v2105, %v2212
  %v2214 = vpop.f32.mrf.mxu0
  %v2215 = vpop.f32.mrf.mxu0
  %v2216 = vadd.f32 %v2105, %v2215
  %v2217 = vpop.f32.mrf.mxu0
  %2218 = vdwg.mxu0
  %vm2219 = vcmp.ge.f32.partialorder %v2181, 0.0
  %vm2220 = vcmp.ge.f32.partialorder %v2184, 0.0
  %vm2221 = vcmp.ge.f32.partialorder %v2189, 0.0
  %vm2222 = vcmp.ge.f32.partialorder %v2192, 0.0
  %vm2223 = vcmp.ge.f32.partialorder %v2197, 0.0
  %vm2224 = vcmp.ge.f32.partialorder %v2200, 0.0
  %vm2225 = vcmp.ge.f32.partialorder %v2205, 0.0
  %vm2226 = vcmp.ge.f32.partialorder %v2208, 0.0
  %vm2227 = vcmp.ge.f32.partialorder %v2213, 0.0
  %vm2228 = vcmp.ge.f32.partialorder %v2216, 0.0
  %s2229 = scalar_lea.vmem %s11, 5
  %v2230 = vld [vmem:[%s2229] sm:$0x1]
  %v2232 = vlaneseq
  %v2233 = vshrl.u32 %v2232, 7
  %v2234 = vsub.s32 0, %v2233
  %v2235 = vrot.slane %v2230, %v2234
  %v2237 = vmul.f32 %v2235, %v2181
  %v2238 = vmul.f32 %v2235, %v2184
  %v2239 = vmul.f32 %v2235, %v2189
  %v2240 = vmul.f32 %v2235, %v2192
  %v2241 = vmul.f32 %v2235, %v2197
  %v2242 = vmul.f32 %v2235, %v2200
  %v2243 = vmul.f32 %v2235, %v2205
  %v2244 = vmul.f32 %v2235, %v2208
  %v2245 = vmul.f32 %v2235, %v2213
  %v2246 = vmul.f32 %v2235, %v2216
  %v2247 = vsel %vm2219, %v2181, %v2237
  %v2248 = vsel %vm2220, %v2184, %v2238
  %v2249 = vsel %vm2221, %v2189, %v2239
  %v2250 = vsel %vm2222, %v2192, %v2240
  %v2251 = vsel %vm2223, %v2197, %v2241
  %v2252 = vsel %vm2224, %v2200, %v2242
  %v2253 = vsel %vm2225, %v2205, %v2243
  %v2254 = vsel %vm2226, %v2208, %v2244
  %v2255 = vsel %vm2227, %v2213, %v2245
  %v2256 = vsel %vm2228, %v2216, %v2246
  %v2257 = vpack.c.bf16 %v2248, %v2247
  %v2258 = vpack.c.bf16 %v2250, %v2249
  %v2259 = vpack.c.bf16 %v2252, %v2251
  %v2260 = vpack.c.bf16 %v2254, %v2253
  %v2261 = vpack.c.bf16 %v2256, %v2255
  %s2262 = scalar_lea.vmem %s9, 320
  %v2263 = vld [vmem:[%s2262] sm:$0xf]
  %v2264 = vld [vmem:[%s2262 + $0x4] sm:$0xf]
  %v2265 = vld [vmem:[%s2262 + $0x8] sm:$0xf]
  %v2266 = vld [vmem:[%s2262 + $0xc] sm:$0xf]
  %v2267 = vld [vmem:[%s2262 + $0x10] sm:$0xf]
  %v2268 = vld [vmem:[%s2262 + $0x14] sm:$0xf]
  %v2269 = vld [vmem:[%s2262 + $0x18] sm:$0xf]
  %v2270 = vld [vmem:[%s2262 + $0x1c] sm:$0xf]
  %v2271 = vld [vmem:[%s2262 + $0x20] sm:$0xf]
  %v2272 = vld [vmem:[%s2262 + $0x24] sm:$0xf]
  %v2273 = vld [vmem:[%s2262 + $0x28] sm:$0xf]
  %v2274 = vld [vmem:[%s2262 + $0x2c] sm:$0xf]
  %v2275 = vld [vmem:[%s2262 + $0x30] sm:$0xf]
  %v2276 = vld [vmem:[%s2262 + $0x34] sm:$0xf]
  %v2277 = vld [vmem:[%s2262 + $0x38] sm:$0xf]
  %v2278 = vld [vmem:[%s2262 + $0x3c] sm:$0xf]
  %v2295 = vunpack.c.l.b16 %v2263
  %v2296 = vunpack.c.l.b16 %v2264
  %v2297 = vunpack.c.l.b16 %v2265
  %v2298 = vunpack.c.l.b16 %v2266
  %v2299 = vunpack.c.l.b16 %v2267
  %v2300 = vunpack.c.l.b16 %v2268
  %v2301 = vunpack.c.l.b16 %v2269
  %v2302 = vunpack.c.l.b16 %v2270
  %v2303 = vunpack.c.l.b16 %v2271
  %v2304 = vunpack.c.l.b16 %v2272
  %v2305 = vunpack.c.l.b16 %v2273
  %v2306 = vunpack.c.l.b16 %v2274
  %v2307 = vunpack.c.l.b16 %v2275
  %v2308 = vunpack.c.l.b16 %v2276
  %v2309 = vunpack.c.l.b16 %v2277
  %v2310 = vunpack.c.l.b16 %v2278
  %v2311 = vpack.c.b16 %v2296, %v2295
  %v2312 = vpack.c.b16 %v2298, %v2297
  %v2313 = vpack.c.b16 %v2300, %v2299
  %v2314 = vpack.c.b16 %v2302, %v2301
  %v2315 = vpack.c.b16 %v2304, %v2303
  %v2316 = vpack.c.b16 %v2306, %v2305
  %v2317 = vpack.c.b16 %v2308, %v2307
  %v2318 = vpack.c.b16 %v2310, %v2309
  %2327 = vmatprep.subr.bf16.mxu0 0
  %2328 = vmatpush1.bf16.msra.mxu0 %v2318
  %2329 = vmatprep.subr.bf16.mxu0 0
  %2330 = vmatpush1.bf16.msra.mxu0 %v2317
  %2331 = vmatprep.subr.bf16.mxu0 0
  %2332 = vmatpush1.bf16.msra.mxu0 %v2316
  %2333 = vmatprep.subr.bf16.mxu0 0
  %2334 = vmatpush1.bf16.msra.mxu0 %v2315
  %2335 = vmatprep.subr.bf16.mxu0 0
  %2336 = vmatpush1.bf16.msra.mxu0 %v2314
  %2337 = vmatprep.subr.bf16.mxu0 0
  %2338 = vmatpush1.bf16.msra.mxu0 %v2313
  %2339 = vmatprep.subr.bf16.mxu0 0
  %2340 = vmatpush1.bf16.msra.mxu0 %v2312
  %2341 = vmatprep.subr.bf16.mxu0 0
  %2342 = vmatpush1.bf16.msra.mxu0 %v2311
  %2343 = vmatprep.subr.bf16.mxu0 0
  %2344 = vmatpush2.bf16.msra.mxu0 0
  %2345 = vmatprep.subr.bf16.mxu0 0
  %2346 = vmatpush2.bf16.msra.mxu0 0
  %2347 = vmatprep.subr.bf16.mxu0 0
  %2348 = vmatpush2.bf16.msra.mxu0 0
  %2349 = vmatprep.subr.bf16.mxu0 0
  %2350 = vmatpush2.bf16.msra.mxu0 0
  %2351 = vmatprep.subr.bf16.mxu0 0
  %2352 = vmatpush2.bf16.msra.mxu0 0
  %2353 = vmatprep.subr.bf16.mxu0 0
  %2354 = vmatpush2.bf16.msra.mxu0 0
  %2355 = vmatprep.subr.bf16.mxu0 0
  %2356 = vmatpush2.bf16.msra.mxu0 0
  %2357 = vmatprep.subr.bf16.mxu0 0
  %2358 = vmatpush2.bf16.msra.mxu0 0
  %2359 = vmatprep.mubr.bf16.mxu0 0
  %2360 = vmatmul.mubr.bf16.gmra.mxu0 %v2257
  %v2361 = vpop.f32.mrf.mxu0
  %v2362 = vadd.f32 0.0, %v2361
  %v2363 = vpop.f32.mrf.mxu0
  %v2364 = vpop.f32.mrf.mxu0
  %v2365 = vadd.f32 0.0, %v2364
  %v2366 = vpop.f32.mrf.mxu0
  %2367 = vmatprep.mubr.bf16.mxu0 0
  %2368 = vmatmul.mubr.bf16.gmra.mxu0 %v2258
  %v2369 = vpop.f32.mrf.mxu0
  %v2370 = vadd.f32 0.0, %v2369
  %v2371 = vpop.f32.mrf.mxu0
  %v2372 = vpop.f32.mrf.mxu0
  %v2373 = vadd.f32 0.0, %v2372
  %v2374 = vpop.f32.mrf.mxu0
  %2375 = vmatprep.mubr.bf16.mxu0 0
  %2376 = vmatmul.mubr.bf16.gmra.mxu0 %v2259
  %v2377 = vpop.f32.mrf.mxu0
  %v2378 = vadd.f32 0.0, %v2377
  %v2379 = vpop.f32.mrf.mxu0
  %v2380 = vpop.f32.mrf.mxu0
  %v2381 = vadd.f32 0.0, %v2380
  %v2382 = vpop.f32.mrf.mxu0
  %2383 = vmatprep.mubr.bf16.mxu0 0
  %2384 = vmatmul.mubr.bf16.gmra.mxu0 %v2260
  %v2385 = vpop.f32.mrf.mxu0
  %v2386 = vadd.f32 0.0, %v2385
  %v2387 = vpop.f32.mrf.mxu0
  %v2388 = vpop.f32.mrf.mxu0
  %v2389 = vadd.f32 0.0, %v2388
  %v2390 = vpop.f32.mrf.mxu0
  %2391 = vmatprep.mubr.bf16.mxu0 0
  %2392 = vmatmul.mubr.bf16.gmra.mxu0 %v2261
  %v2393 = vpop.f32.mrf.mxu0
  %v2394 = vadd.f32 0.0, %v2393
  %v2395 = vpop.f32.mrf.mxu0
  %v2396 = vpop.f32.mrf.mxu0
  %v2397 = vadd.f32 0.0, %v2396
  %v2398 = vpop.f32.mrf.mxu0
  %2399 = vdwg.mxu0
  %v2400 = vadd.f32 %v2075, %v2362
  %v2401 = vadd.f32 %v2076, %v2365
  %v2402 = vadd.f32 %v2077, %v2370
  %v2403 = vadd.f32 %v2078, %v2373
  %v2404 = vadd.f32 %v2079, %v2378
  %v2405 = vadd.f32 %v2080, %v2381
  %v2406 = vadd.f32 %v2081, %v2386
  %v2407 = vadd.f32 %v2082, %v2389
  %v2408 = vadd.f32 %v2083, %v2394
  %v2409 = vadd.f32 %v2084, %v2397
  %s2410 = scalar_lea.vmem %s10, 5
  %v2411 = vld [vmem:[%s2410] sm:$0x1]
  %v2413 = vlaneseq
  %v2414 = vshrl.u32 %v2413, 7
  %v2415 = vsub.s32 0, %v2414
  %v2416 = vrot.slane %v2411, %v2415
  %v2418 = vadd.f32 %v2400, %v2416
  %v2419 = vadd.f32 %v2401, %v2416
  %v2420 = vadd.f32 %v2402, %v2416
  %v2421 = vadd.f32 %v2403, %v2416
  %v2422 = vadd.f32 %v2404, %v2416
  %v2423 = vadd.f32 %v2405, %v2416
  %v2424 = vadd.f32 %v2406, %v2416
  %v2425 = vadd.f32 %v2407, %v2416
  %v2426 = vadd.f32 %v2408, %v2416
  %v2427 = vadd.f32 %v2409, %v2416
  %v2428 = vpack.c.bf16 %v2419, %v2418
  %v2429 = vpack.c.bf16 %v2421, %v2420
  %v2430 = vpack.c.bf16 %v2423, %v2422
  %v2431 = vpack.c.bf16 %v2425, %v2424
  %v2432 = vpack.c.bf16 %v2427, %v2426
  %v2433 = vld [vmem:[%s12] sm:$0xff]
  %v2434 = vld [vmem:[%s12 + $0x8] sm:$0xff]
  %v2435 = vld [vmem:[%s12 + $0x10] sm:$0xff]
  %v2436 = vld [vmem:[%s12 + $0x18] sm:$0xff]
  %v2437 = vld [vmem:[%s12 + $0x20] sm:$0xff]
  %v2438 = vld [vmem:[%s12 + $0x28] sm:$0xff]
  %v2439 = vld [vmem:[%s12 + $0x30] sm:$0xff]
  %v2440 = vld [vmem:[%s12 + $0x38] sm:$0xff]
  %v2441 = vld [vmem:[%s13] sm:$0x3]
  %v2443 = vlaneseq
  %v2444 = vshrl.u32 %v2443, 7
  %v2445 = vsub.s32 0, %v2444
  %v2446 = vrot.slane %v2441, %v2445
  %v2447 = vlaneseq
  %v2448 = vshrl.u32 %v2447, 7
  %v2449 = vsub.s32 1, %v2448
  %v2450 = vrot.slane %v2441, %v2449
  %v2461 = vunpack.c.l.b16 %v2433
  %v2462 = vunpack.c.h.b16 %v2433
  %v2463 = vunpack.c.l.b16 %v2434
  %v2464 = vunpack.c.h.b16 %v2434
  %v2465 = vunpack.c.l.b16 %v2435
  %v2466 = vunpack.c.h.b16 %v2435
  %v2467 = vunpack.c.l.b16 %v2436
  %v2468 = vunpack.c.h.b16 %v2436
  %v2469 = vunpack.c.l.b16 %v2437
  %v2470 = vunpack.c.h.b16 %v2437
  %v2471 = vunpack.c.l.b16 %v2438
  %v2472 = vunpack.c.h.b16 %v2438
  %v2473 = vunpack.c.l.b16 %v2439
  %v2474 = vunpack.c.h.b16 %v2439
  %v2475 = vunpack.c.l.b16 %v2440
  %v2476 = vunpack.c.h.b16 %v2440
  %v2477 = vpack.c.b16 %v2463, %v2461
  %v2478 = vpack.c.b16 %v2464, %v2462
  %v2479 = vpack.c.b16 %v2467, %v2465
  %v2480 = vpack.c.b16 %v2468, %v2466
  %v2481 = vpack.c.b16 %v2471, %v2469
  %v2482 = vpack.c.b16 %v2472, %v2470
  %v2483 = vpack.c.b16 %v2475, %v2473
  %v2484 = vpack.c.b16 %v2476, %v2474
  %v2494 = vsel %vm418, %v2428, 0
  %v2497 = vsel %vm418, %v2429, 0
  %v2500 = vsel %vm418, %v2430, 0
  %v2503 = vsel %vm418, %v2431, 0
  %v2506 = vsel %vm418, %v2432, 0
  %2508 = vmatprep.subr.bf16.mxu0 0
  %2509 = vmatpush1.bf16.msra.mxu0 0
  %2510 = vmatprep.subr.bf16.mxu0 0
  %2511 = vmatpush1.bf16.msra.mxu0 0
  %2512 = vmatprep.subr.bf16.mxu0 0
  %2513 = vmatpush1.bf16.msra.mxu0 0
  %2514 = vmatprep.subr.bf16.mxu0 0
  %2515 = vmatpush1.bf16.msra.mxu0 0
  %2516 = vmatprep.subr.bf16.mxu0 %v2484
  %2517 = vmatpush1.bf16.msra.mxu0 %v2483
  %2518 = vmatprep.subr.bf16.mxu0 %v2482
  %2519 = vmatpush1.bf16.msra.mxu0 %v2481
  %2520 = vmatprep.subr.bf16.mxu0 %v2480
  %2521 = vmatpush1.bf16.msra.mxu0 %v2479
  %2522 = vmatprep.subr.bf16.mxu0 %v2478
  %2523 = vmatpush1.bf16.msra.mxu0 %v2477
  %2524 = vmatprep.subr.bf16.mxu0 0
  %2525 = vmatpush2.bf16.msra.mxu0 0
  %2526 = vmatprep.subr.bf16.mxu0 0
  %2527 = vmatpush2.bf16.msra.mxu0 0
  %2528 = vmatprep.subr.bf16.mxu0 0
  %2529 = vmatpush2.bf16.msra.mxu0 0
  %2530 = vmatprep.subr.bf16.mxu0 0
  %2531 = vmatpush2.bf16.msra.mxu0 0
  %2532 = vmatprep.subr.bf16.mxu0 0
  %2533 = vmatpush2.bf16.msra.mxu0 0
  %2534 = vmatprep.subr.bf16.mxu0 0
  %2535 = vmatpush2.bf16.msra.mxu0 0
  %2536 = vmatprep.subr.bf16.mxu0 0
  %2537 = vmatpush2.bf16.msra.mxu0 0
  %2538 = vmatprep.subr.bf16.mxu0 0
  %2539 = vmatpush2.bf16.msra.mxu0 0
  %2540 = vmatprep.mubr.bf16.mxu0 0
  %2541 = vmatmul.mubr.bf16.gmra.mxu0 %v2494
  %v2542 = vpop.f32.mrf.mxu0
  %v2543 = vadd.f32 %v2446, %v2542
  %v2544 = vpop.f32.mrf.mxu0
  %v2545 = vadd.f32 %v2450, %v2544
  %v2546 = vpop.f32.mrf.mxu0
  %v2547 = vadd.f32 %v2446, %v2546
  %v2548 = vpop.f32.mrf.mxu0
  %v2549 = vadd.f32 %v2450, %v2548
  %2550 = vmatprep.mubr.bf16.mxu0 0
  %2551 = vmatmul.mubr.bf16.gmra.mxu0 %v2497
  %v2552 = vpop.f32.mrf.mxu0
  %v2553 = vadd.f32 %v2446, %v2552
  %v2554 = vpop.f32.mrf.mxu0
  %v2555 = vadd.f32 %v2450, %v2554
  %v2556 = vpop.f32.mrf.mxu0
  %v2557 = vadd.f32 %v2446, %v2556
  %v2558 = vpop.f32.mrf.mxu0
  %v2559 = vadd.f32 %v2450, %v2558
  %2560 = vmatprep.mubr.bf16.mxu0 0
  %2561 = vmatmul.mubr.bf16.gmra.mxu0 %v2500
  %v2562 = vpop.f32.mrf.mxu0
  %v2563 = vadd.f32 %v2446, %v2562
  %v2564 = vpop.f32.mrf.mxu0
  %v2565 = vadd.f32 %v2450, %v2564
  %v2566 = vpop.f32.mrf.mxu0
  %v2567 = vadd.f32 %v2446, %v2566
  %v2568 = vpop.f32.mrf.mxu0
  %v2569 = vadd.f32 %v2450, %v2568
  %2570 = vmatprep.mubr.bf16.mxu0 0
  %2571 = vmatmul.mubr.bf16.gmra.mxu0 %v2503
  %v2572 = vpop.f32.mrf.mxu0
  %v2573 = vadd.f32 %v2446, %v2572
  %v2574 = vpop.f32.mrf.mxu0
  %v2575 = vadd.f32 %v2450, %v2574
  %v2576 = vpop.f32.mrf.mxu0
  %v2577 = vadd.f32 %v2446, %v2576
  %v2578 = vpop.f32.mrf.mxu0
  %v2579 = vadd.f32 %v2450, %v2578
  %2580 = vmatprep.mubr.bf16.mxu0 0
  %2581 = vmatmul.mubr.bf16.gmra.mxu0 %v2506
  %v2582 = vpop.f32.mrf.mxu0
  %v2583 = vadd.f32 %v2446, %v2582
  %v2584 = vpop.f32.mrf.mxu0
  %v2585 = vadd.f32 %v2450, %v2584
  %v2586 = vpop.f32.mrf.mxu0
  %v2587 = vadd.f32 %v2446, %v2586
  %v2588 = vpop.f32.mrf.mxu0
  %v2589 = vadd.f32 %v2450, %v2588
  %2590 = vdwg.mxu0
  %v2591 = vtanh.pop %v2543
  %v2592 = vtanh.pop %v2547
  %v2593 = vtanh.pop %v2553
  %v2594 = vtanh.pop %v2557
  %v2595 = vtanh.pop %v2563
  %v2596 = vtanh.pop %v2567
  %v2597 = vtanh.pop %v2573
  %v2598 = vtanh.pop %v2577
  %v2599 = vtanh.pop %v2583
  %v2600 = vtanh.pop %v2587
  %v2601 = vxor.u32 %v2545, 2147483648
  %v2602 = vxor.u32 %v2549, 2147483648
  %v2603 = vxor.u32 %v2555, 2147483648
  %v2604 = vxor.u32 %v2559, 2147483648
  %v2605 = vxor.u32 %v2565, 2147483648
  %v2606 = vxor.u32 %v2569, 2147483648
  %v2607 = vxor.u32 %v2575, 2147483648
  %v2608 = vxor.u32 %v2579, 2147483648
  %v2609 = vxor.u32 %v2585, 2147483648
  %v2610 = vxor.u32 %v2589, 2147483648
  %v2611 = vmul.f32 %v2601, 1.442695
  %v2612 = vpow.pop %v2611
  %v2613 = vmul.f32 %v2602, 1.442695
  %v2614 = vpow.pop %v2613
  %v2615 = vmul.f32 %v2603, 1.442695
  %v2616 = vpow.pop %v2615
  %v2617 = vmul.f32 %v2604, 1.442695
  %v2618 = vpow.pop %v2617
  %v2619 = vmul.f32 %v2605, 1.442695
  %v2620 = vpow.pop %v2619
  %v2621 = vmul.f32 %v2606, 1.442695
  %v2622 = vpow.pop %v2621
  %v2623 = vmul.f32 %v2607, 1.442695
  %v2624 = vpow.pop %v2623
  %v2625 = vmul.f32 %v2608, 1.442695
  %v2626 = vpow.pop %v2625
  %v2627 = vmul.f32 %v2609, 1.442695
  %v2628 = vpow.pop %v2627
  %v2629 = vmul.f32 %v2610, 1.442695
  %v2630 = vpow.pop %v2629
  %v2631 = vadd.f32 %v2612, 1.0
  %v2632 = vadd.f32 %v2614, 1.0
  %v2633 = vadd.f32 %v2616, 1.0
  %v2634 = vadd.f32 %v2618, 1.0
  %v2635 = vadd.f32 %v2620, 1.0
  %v2636 = vadd.f32 %v2622, 1.0
  %v2637 = vadd.f32 %v2624, 1.0
  %v2638 = vadd.f32 %v2626, 1.0
  %v2639 = vadd.f32 %v2628, 1.0
  %v2640 = vadd.f32 %v2630, 1.0
  %v2641 = vrcp.pop %v2631
  %v2642 = vmul.f32 1.0, %v2641
  %v2643 = vrcp.pop %v2632
  %v2644 = vmul.f32 1.0, %v2643
  %v2645 = vrcp.pop %v2633
  %v2646 = vmul.f32 1.0, %v2645
  %v2647 = vrcp.pop %v2634
  %v2648 = vmul.f32 1.0, %v2647
  %v2649 = vrcp.pop %v2635
  %v2650 = vmul.f32 1.0, %v2649
  %v2651 = vrcp.pop %v2636
  %v2652 = vmul.f32 1.0, %v2651
  %v2653 = vrcp.pop %v2637
  %v2654 = vmul.f32 1.0, %v2653
  %v2655 = vrcp.pop %v2638
  %v2656 = vmul.f32 1.0, %v2655
  %v2657 = vrcp.pop %v2639
  %v2658 = vmul.f32 1.0, %v2657
  %v2659 = vrcp.pop %v2640
  %v2660 = vmul.f32 1.0, %v2659
  %v2661 = vmul.f32 %v2591, %v2642
  %v2662 = vmul.f32 %v2592, %v2644
  %v2663 = vmul.f32 %v2593, %v2646
  %v2664 = vmul.f32 %v2594, %v2648
  %v2665 = vmul.f32 %v2595, %v2650
  %v2666 = vmul.f32 %v2596, %v2652
  %v2667 = vmul.f32 %v2597, %v2654
  %v2668 = vmul.f32 %v2598, %v2656
  %v2669 = vmul.f32 %v2599, %v2658
  %v2670 = vmul.f32 %v2600, %v2660
  %v2671 = vld [vmem:[%s1] sm:$0xff]
  %v2672 = vld [vmem:[%s1 + $0x8] sm:$0xff]
  %v2673 = vld [vmem:[%s1 + $0x10] sm:$0xff]
  %v2674 = vld [vmem:[%s1 + $0x18] sm:$0xff]
  %v2675 = vld [vmem:[%s1 + $0x20] sm:$0xff]
  %v2676 = vld [vmem:[%s1 + $0x28] sm:$0xff]
  %v2677 = vld [vmem:[%s1 + $0x30] sm:$0xff]
  %v2678 = vld [vmem:[%s1 + $0x38] sm:$0xff]
  %v2679 = vld [vmem:[%s1 + $0x40] sm:$0xff]
  %v2680 = vld [vmem:[%s1 + $0x48] sm:$0xff]
  %2682 = vset.pattern.permute.xlu0 0
  %2683 = vperm.xlu0 %2682, %v2661
  %v2684 = vpop.permute.xlu0 %2683
  %2687 = vset.pattern.permute.xlu0 0
  %2688 = vperm.xlu0 %2687, %v2662
  %v2689 = vpop.permute.xlu0 %2688
  %2692 = vset.pattern.permute.xlu0 0
  %2693 = vperm.xlu0 %2692, %v2663
  %v2694 = vpop.permute.xlu0 %2693
  %2697 = vset.pattern.permute.xlu0 0
  %2698 = vperm.xlu0 %2697, %v2664
  %v2699 = vpop.permute.xlu0 %2698
  %2702 = vset.pattern.permute.xlu0 0
  %2703 = vperm.xlu0 %2702, %v2665
  %v2704 = vpop.permute.xlu0 %2703
  %2707 = vset.pattern.permute.xlu0 0
  %2708 = vperm.xlu0 %2707, %v2666
  %v2709 = vpop.permute.xlu0 %2708
  %2712 = vset.pattern.permute.xlu0 0
  %2713 = vperm.xlu0 %2712, %v2667
  %v2714 = vpop.permute.xlu0 %2713
  %2717 = vset.pattern.permute.xlu0 0
  %2718 = vperm.xlu0 %2717, %v2668
  %v2719 = vpop.permute.xlu0 %2718
  %2722 = vset.pattern.permute.xlu0 0
  %2723 = vperm.xlu0 %2722, %v2669
  %v2724 = vpop.permute.xlu0 %2723
  %2727 = vset.pattern.permute.xlu0 0
  %2728 = vperm.xlu0 %2727, %v2670
  %v2729 = vpop.permute.xlu0 %2728
  %v2731 = vmul.f32 %v2671, %v2684
  %v2732 = vmul.f32 %v2672, %v2689
  %v2733 = vmul.f32 %v2673, %v2694
  %v2734 = vmul.f32 %v2674, %v2699
  %v2735 = vmul.f32 %v2675, %v2704
  %v2736 = vmul.f32 %v2676, %v2709
  %v2737 = vmul.f32 %v2677, %v2714
  %v2738 = vmul.f32 %v2678, %v2719
  %v2739 = vmul.f32 %v2679, %v2724
  %v2740 = vmul.f32 %v2680, %v2729
  %v2741 = vadd.f32 %v2731, 0.0
  %v2742 = vadd.f32 %v2732, 0.0
  %v2743 = vadd.f32 %v2733, 0.0
  %v2744 = vadd.f32 %v2734, 0.0
  %v2745 = vadd.f32 %v2735, 0.0
  %v2746 = vadd.f32 %v2736, 0.0
  %v2747 = vadd.f32 %v2737, 0.0
  %v2748 = vadd.f32 %v2738, 0.0
  %v2749 = vadd.f32 %v2739, 0.0
  %v2750 = vadd.f32 %v2740, 0.0
  %2751 = vset.pattern.permute.xlu0 33
  %2752 = vperm.xlu0 %2751, %v2661
  %v2753 = vpop.permute.xlu0 %2752
  %2755 = vset.pattern.permute.xlu0 33
  %2756 = vperm.xlu0 %2755, %v2662
  %v2757 = vpop.permute.xlu0 %2756
  %2759 = vset.pattern.permute.xlu0 33
  %2760 = vperm.xlu0 %2759, %v2663
  %v2761 = vpop.permute.xlu0 %2760
  %2763 = vset.pattern.permute.xlu0 33
  %2764 = vperm.xlu0 %2763, %v2664
  %v2765 = vpop.permute.xlu0 %2764
  %2767 = vset.pattern.permute.xlu0 33
  %2768 = vperm.xlu0 %2767, %v2665
  %v2769 = vpop.permute.xlu0 %2768
  %2771 = vset.pattern.permute.xlu0 33
  %2772 = vperm.xlu0 %2771, %v2666
  %v2773 = vpop.permute.xlu0 %2772
  %2775 = vset.pattern.permute.xlu0 33
  %2776 = vperm.xlu0 %2775, %v2667
  %v2777 = vpop.permute.xlu0 %2776
  %2779 = vset.pattern.permute.xlu0 33
  %2780 = vperm.xlu0 %2779, %v2668
  %v2781 = vpop.permute.xlu0 %2780
  %2783 = vset.pattern.permute.xlu0 33
  %2784 = vperm.xlu0 %2783, %v2669
  %v2785 = vpop.permute.xlu0 %2784
  %2787 = vset.pattern.permute.xlu0 33
  %2788 = vperm.xlu0 %2787, %v2670
  %v2789 = vpop.permute.xlu0 %2788
  %v2791 = vmul.f32 %v2671, %v2753
  %v2792 = vmul.f32 %v2672, %v2757
  %v2793 = vmul.f32 %v2673, %v2761
  %v2794 = vmul.f32 %v2674, %v2765
  %v2795 = vmul.f32 %v2675, %v2769
  %v2796 = vmul.f32 %v2676, %v2773
  %v2797 = vmul.f32 %v2677, %v2777
  %v2798 = vmul.f32 %v2678, %v2781
  %v2799 = vmul.f32 %v2679, %v2785
  %v2800 = vmul.f32 %v2680, %v2789
  %v2801 = vadd.f32 %v2791, 0.0
  %v2802 = vadd.f32 %v2792, 0.0
  %v2803 = vadd.f32 %v2793, 0.0
  %v2804 = vadd.f32 %v2794, 0.0
  %v2805 = vadd.f32 %v2795, 0.0
  %v2806 = vadd.f32 %v2796, 0.0
  %v2807 = vadd.f32 %v2797, 0.0
  %v2808 = vadd.f32 %v2798, 0.0
  %v2809 = vadd.f32 %v2799, 0.0
  %v2810 = vadd.f32 %v2800, 0.0
  %2821 = vrot.lane.b32.xlu0 %v2671, 127
  %v2822 = vpop.permute.xlu0 %2821
  %2823 = vrot.lane.b32.xlu0 %v2672, 127
  %v2824 = vpop.permute.xlu0 %2823
  %2825 = vrot.lane.b32.xlu0 %v2673, 127
  %v2826 = vpop.permute.xlu0 %2825
  %2827 = vrot.lane.b32.xlu0 %v2674, 127
  %v2828 = vpop.permute.xlu0 %2827
  %2829 = vrot.lane.b32.xlu0 %v2675, 127
  %v2830 = vpop.permute.xlu0 %2829
  %2831 = vrot.lane.b32.xlu0 %v2676, 127
  %v2832 = vpop.permute.xlu0 %2831
  %2833 = vrot.lane.b32.xlu0 %v2677, 127
  %v2834 = vpop.permute.xlu0 %2833
  %2835 = vrot.lane.b32.xlu0 %v2678, 127
  %v2836 = vpop.permute.xlu0 %2835
  %2837 = vrot.lane.b32.xlu0 %v2679, 127
  %v2838 = vpop.permute.xlu0 %2837
  %2839 = vrot.lane.b32.xlu0 %v2680, 127
  %v2840 = vpop.permute.xlu0 %2839
  %vm2851 = vcmask 1039360
  %v2852 = vsel %vm2851, %v2822, 0.0
  %v2853 = vsel %vm2851, %v2824, 0.0
  %v2854 = vsel %vm2851, %v2826, 0.0
  %v2855 = vsel %vm2851, %v2828, 0.0
  %v2856 = vsel %vm2851, %v2830, 0.0
  %v2857 = vsel %vm2851, %v2832, 0.0
  %v2858 = vsel %vm2851, %v2834, 0.0
  %v2859 = vsel %vm2851, %v2836, 0.0
  %v2860 = vsel %vm2851, %v2838, 0.0
  %v2861 = vsel %vm2851, %v2840, 0.0
  %2862 = vset.pattern.permute.xlu0 1
  %2863 = vperm.xlu0 %2862, %v2661
  %v2864 = vpop.permute.xlu0 %2863
  %2866 = vset.pattern.permute.xlu0 1
  %2867 = vperm.xlu0 %2866, %v2662
  %v2868 = vpop.permute.xlu0 %2867
  %2870 = vset.pattern.permute.xlu0 1
  %2871 = vperm.xlu0 %2870, %v2663
  %v2872 = vpop.permute.xlu0 %2871
  %2874 = vset.pattern.permute.xlu0 1
  %2875 = vperm.xlu0 %2874, %v2664
  %v2876 = vpop.permute.xlu0 %2875
  %2878 = vset.pattern.permute.xlu0 1
  %2879 = vperm.xlu0 %2878, %v2665
  %v2880 = vpop.permute.xlu0 %2879
  %2882 = vset.pattern.permute.xlu0 1
  %2883 = vperm.xlu0 %2882, %v2666
  %v2884 = vpop.permute.xlu0 %2883
  %2886 = vset.pattern.permute.xlu0 1
  %2887 = vperm.xlu0 %2886, %v2667
  %v2888 = vpop.permute.xlu0 %2887
  %2890 = vset.pattern.permute.xlu0 1
  %2891 = vperm.xlu0 %2890, %v2668
  %v2892 = vpop.permute.xlu0 %2891
  %2894 = vset.pattern.permute.xlu0 1
  %2895 = vperm.xlu0 %2894, %v2669
  %v2896 = vpop.permute.xlu0 %2895
  %2898 = vset.pattern.permute.xlu0 1
  %2899 = vperm.xlu0 %2898, %v2670
  %v2900 = vpop.permute.xlu0 %2899
  %v2902 = vmul.f32 %v2852, %v2864
  %v2903 = vmul.f32 %v2853, %v2868
  %v2904 = vmul.f32 %v2854, %v2872
  %v2905 = vmul.f32 %v2855, %v2876
  %v2906 = vmul.f32 %v2856, %v2880
  %v2907 = vmul.f32 %v2857, %v2884
  %v2908 = vmul.f32 %v2858, %v2888
  %v2909 = vmul.f32 %v2859, %v2892
  %v2910 = vmul.f32 %v2860, %v2896
  %v2911 = vmul.f32 %v2861, %v2900
  %v2912 = vadd.f32 %v2741, %v2902
  %v2913 = vadd.f32 %v2742, %v2903
  %v2914 = vadd.f32 %v2743, %v2904
  %v2915 = vadd.f32 %v2744, %v2905
  %v2916 = vadd.f32 %v2745, %v2906
  %v2917 = vadd.f32 %v2746, %v2907
  %v2918 = vadd.f32 %v2747, %v2908
  %v2919 = vadd.f32 %v2748, %v2909
  %v2920 = vadd.f32 %v2749, %v2910
  %v2921 = vadd.f32 %v2750, %v2911
  %2922 = vset.pattern.permute.xlu0 34
  %2923 = vperm.xlu0 %2922, %v2661
  %v2924 = vpop.permute.xlu0 %2923
  %2926 = vset.pattern.permute.xlu0 34
  %2927 = vperm.xlu0 %2926, %v2662
  %v2928 = vpop.permute.xlu0 %2927
  %2930 = vset.pattern.permute.xlu0 34
  %2931 = vperm.xlu0 %2930, %v2663
  %v2932 = vpop.permute.xlu0 %2931
  %2934 = vset.pattern.permute.xlu0 34
  %2935 = vperm.xlu0 %2934, %v2664
  %v2936 = vpop.permute.xlu0 %2935
  %2938 = vset.pattern.permute.xlu0 34
  %2939 = vperm.xlu0 %2938, %v2665
  %v2940 = vpop.permute.xlu0 %2939
  %2942 = vset.pattern.permute.xlu0 34
  %2943 = vperm.xlu0 %2942, %v2666
  %v2944 = vpop.permute.xlu0 %2943
  %2946 = vset.pattern.permute.xlu0 34
  %2947 = vperm.xlu0 %2946, %v2667
  %v2948 = vpop.permute.xlu0 %2947
  %2950 = vset.pattern.permute.xlu0 34
  %2951 = vperm.xlu0 %2950, %v2668
  %v2952 = vpop.permute.xlu0 %2951
  %2954 = vset.pattern.permute.xlu0 34
  %2955 = vperm.xlu0 %2954, %v2669
  %v2956 = vpop.permute.xlu0 %2955
  %2958 = vset.pattern.permute.xlu0 34
  %2959 = vperm.xlu0 %2958, %v2670
  %v2960 = vpop.permute.xlu0 %2959
  %v2962 = vmul.f32 %v2852, %v2924
  %v2963 = vmul.f32 %v2853, %v2928
  %v2964 = vmul.f32 %v2854, %v2932
  %v2965 = vmul.f32 %v2855, %v2936
  %v2966 = vmul.f32 %v2856, %v2940
  %v2967 = vmul.f32 %v2857, %v2944
  %v2968 = vmul.f32 %v2858, %v2948
  %v2969 = vmul.f32 %v2859, %v2952
  %v2970 = vmul.f32 %v2860, %v2956
  %v2971 = vmul.f32 %v2861, %v2960
  %v2972 = vadd.f32 %v2801, %v2962
  %v2973 = vadd.f32 %v2802, %v2963
  %v2974 = vadd.f32 %v2803, %v2964
  %v2975 = vadd.f32 %v2804, %v2965
  %v2976 = vadd.f32 %v2805, %v2966
  %v2977 = vadd.f32 %v2806, %v2967
  %v2978 = vadd.f32 %v2807, %v2968
  %v2979 = vadd.f32 %v2808, %v2969
  %v2980 = vadd.f32 %v2809, %v2970
  %v2981 = vadd.f32 %v2810, %v2971
  %2982 = vrot.lane.b32.xlu0 %v2671, 126
  %v2983 = vpop.permute.xlu0 %2982
  %2984 = vrot.lane.b32.xlu0 %v2672, 126
  %v2985 = vpop.permute.xlu0 %2984
  %2986 = vrot.lane.b32.xlu0 %v2673, 126
  %v2987 = vpop.permute.xlu0 %2986
  %2988 = vrot.lane.b32.xlu0 %v2674, 126
  %v2989 = vpop.permute.xlu0 %2988
  %2990 = vrot.lane.b32.xlu0 %v2675, 126
  %v2991 = vpop.permute.xlu0 %2990
  %2992 = vrot.lane.b32.xlu0 %v2676, 126
  %v2993 = vpop.permute.xlu0 %2992
  %2994 = vrot.lane.b32.xlu0 %v2677, 126
  %v2995 = vpop.permute.xlu0 %2994
  %2996 = vrot.lane.b32.xlu0 %v2678, 126
  %v2997 = vpop.permute.xlu0 %2996
  %2998 = vrot.lane.b32.xlu0 %v2679, 126
  %v2999 = vpop.permute.xlu0 %2998
  %3000 = vrot.lane.b32.xlu0 %v2680, 126
  %v3001 = vpop.permute.xlu0 %3000
  %vm3012 = vcmask 1031168
  %v3013 = vsel %vm3012, %v2983, 0.0
  %v3014 = vsel %vm3012, %v2985, 0.0
  %v3015 = vsel %vm3012, %v2987, 0.0
  %v3016 = vsel %vm3012, %v2989, 0.0
  %v3017 = vsel %vm3012, %v2991, 0.0
  %v3018 = vsel %vm3012, %v2993, 0.0
  %v3019 = vsel %vm3012, %v2995, 0.0
  %v3020 = vsel %vm3012, %v2997, 0.0
  %v3021 = vsel %vm3012, %v2999, 0.0
  %v3022 = vsel %vm3012, %v3001, 0.0
  %3023 = vset.pattern.permute.xlu0 2
  %3024 = vperm.xlu0 %3023, %v2661
  %v3025 = vpop.permute.xlu0 %3024
  %3027 = vset.pattern.permute.xlu0 2
  %3028 = vperm.xlu0 %3027, %v2662
  %v3029 = vpop.permute.xlu0 %3028
  %3031 = vset.pattern.permute.xlu0 2
  %3032 = vperm.xlu0 %3031, %v2663
  %v3033 = vpop.permute.xlu0 %3032
  %3035 = vset.pattern.permute.xlu0 2
  %3036 = vperm.xlu0 %3035, %v2664
  %v3037 = vpop.permute.xlu0 %3036
  %3039 = vset.pattern.permute.xlu0 2
  %3040 = vperm.xlu0 %3039, %v2665
  %v3041 = vpop.permute.xlu0 %3040
  %3043 = vset.pattern.permute.xlu0 2
  %3044 = vperm.xlu0 %3043, %v2666
  %v3045 = vpop.permute.xlu0 %3044
  %3047 = vset.pattern.permute.xlu0 2
  %3048 = vperm.xlu0 %3047, %v2667
  %v3049 = vpop.permute.xlu0 %3048
  %3051 = vset.pattern.permute.xlu0 2
  %3052 = vperm.xlu0 %3051, %v2668
  %v3053 = vpop.permute.xlu0 %3052
  %3055 = vset.pattern.permute.xlu0 2
  %3056 = vperm.xlu0 %3055, %v2669
  %v3057 = vpop.permute.xlu0 %3056
  %3059 = vset.pattern.permute.xlu0 2
  %3060 = vperm.xlu0 %3059, %v2670
  %v3061 = vpop.permute.xlu0 %3060
  %v3063 = vmul.f32 %v3013, %v3025
  %v3064 = vmul.f32 %v3014, %v3029
  %v3065 = vmul.f32 %v3015, %v3033
  %v3066 = vmul.f32 %v3016, %v3037
  %v3067 = vmul.f32 %v3017, %v3041
  %v3068 = vmul.f32 %v3018, %v3045
  %v3069 = vmul.f32 %v3019, %v3049
  %v3070 = vmul.f32 %v3020, %v3053
  %v3071 = vmul.f32 %v3021, %v3057
  %v3072 = vmul.f32 %v3022, %v3061
  %v3073 = vadd.f32 %v2912, %v3063
  %v3074 = vadd.f32 %v2913, %v3064
  %v3075 = vadd.f32 %v2914, %v3065
  %v3076 = vadd.f32 %v2915, %v3066
  %v3077 = vadd.f32 %v2916, %v3067
  %v3078 = vadd.f32 %v2917, %v3068
  %v3079 = vadd.f32 %v2918, %v3069
  %v3080 = vadd.f32 %v2919, %v3070
  %v3081 = vadd.f32 %v2920, %v3071
  %v3082 = vadd.f32 %v2921, %v3072
  %3083 = vset.pattern.permute.xlu0 35
  %3084 = vperm.xlu0 %3083, %v2661
  %v3085 = vpop.permute.xlu0 %3084
  %3087 = vset.pattern.permute.xlu0 35
  %3088 = vperm.xlu0 %3087, %v2662
  %v3089 = vpop.permute.xlu0 %3088
  %3091 = vset.pattern.permute.xlu0 35
  %3092 = vperm.xlu0 %3091, %v2663
  %v3093 = vpop.permute.xlu0 %3092
  %3095 = vset.pattern.permute.xlu0 35
  %3096 = vperm.xlu0 %3095, %v2664
  %v3097 = vpop.permute.xlu0 %3096
  %3099 = vset.pattern.permute.xlu0 35
  %3100 = vperm.xlu0 %3099, %v2665
  %v3101 = vpop.permute.xlu0 %3100
  %3103 = vset.pattern.permute.xlu0 35
  %3104 = vperm.xlu0 %3103, %v2666
  %v3105 = vpop.permute.xlu0 %3104
  %3107 = vset.pattern.permute.xlu0 35
  %3108 = vperm.xlu0 %3107, %v2667
  %v3109 = vpop.permute.xlu0 %3108
  %3111 = vset.pattern.permute.xlu0 35
  %3112 = vperm.xlu0 %3111, %v2668
  %v3113 = vpop.permute.xlu0 %3112
  %3115 = vset.pattern.permute.xlu0 35
  %3116 = vperm.xlu0 %3115, %v2669
  %v3117 = vpop.permute.xlu0 %3116
  %3119 = vset.pattern.permute.xlu0 35
  %3120 = vperm.xlu0 %3119, %v2670
  %v3121 = vpop.permute.xlu0 %3120
  %v3123 = vmul.f32 %v3013, %v3085
  %v3124 = vmul.f32 %v3014, %v3089
  %v3125 = vmul.f32 %v3015, %v3093
  %v3126 = vmul.f32 %v3016, %v3097
  %v3127 = vmul.f32 %v3017, %v3101
  %v3128 = vmul.f32 %v3018, %v3105
  %v3129 = vmul.f32 %v3019, %v3109
  %v3130 = vmul.f32 %v3020, %v3113
  %v3131 = vmul.f32 %v3021, %v3117
  %v3132 = vmul.f32 %v3022, %v3121
  %v3133 = vadd.f32 %v2972, %v3123
  %v3134 = vadd.f32 %v2973, %v3124
  %v3135 = vadd.f32 %v2974, %v3125
  %v3136 = vadd.f32 %v2975, %v3126
  %v3137 = vadd.f32 %v2976, %v3127
  %v3138 = vadd.f32 %v2977, %v3128
  %v3139 = vadd.f32 %v2978, %v3129
  %v3140 = vadd.f32 %v2979, %v3130
  %v3141 = vadd.f32 %v2980, %v3131
  %v3142 = vadd.f32 %v2981, %v3132
  %3143 = vrot.lane.b32.xlu0 %v2671, 125
  %v3144 = vpop.permute.xlu0 %3143
  %3145 = vrot.lane.b32.xlu0 %v2672, 125
  %v3146 = vpop.permute.xlu0 %3145
  %3147 = vrot.lane.b32.xlu0 %v2673, 125
  %v3148 = vpop.permute.xlu0 %3147
  %3149 = vrot.lane.b32.xlu0 %v2674, 125
  %v3150 = vpop.permute.xlu0 %3149
  %3151 = vrot.lane.b32.xlu0 %v2675, 125
  %v3152 = vpop.permute.xlu0 %3151
  %3153 = vrot.lane.b32.xlu0 %v2676, 125
  %v3154 = vpop.permute.xlu0 %3153
  %3155 = vrot.lane.b32.xlu0 %v2677, 125
  %v3156 = vpop.permute.xlu0 %3155
  %3157 = vrot.lane.b32.xlu0 %v2678, 125
  %v3158 = vpop.permute.xlu0 %3157
  %3159 = vrot.lane.b32.xlu0 %v2679, 125
  %v3160 = vpop.permute.xlu0 %3159
  %3161 = vrot.lane.b32.xlu0 %v2680, 125
  %v3162 = vpop.permute.xlu0 %3161
  %vm3173 = vcmask 1022976
  %v3174 = vsel %vm3173, %v3144, 0.0
  %v3175 = vsel %vm3173, %v3146, 0.0
  %v3176 = vsel %vm3173, %v3148, 0.0
  %v3177 = vsel %vm3173, %v3150, 0.0
  %v3178 = vsel %vm3173, %v3152, 0.0
  %v3179 = vsel %vm3173, %v3154, 0.0
  %v3180 = vsel %vm3173, %v3156, 0.0
  %v3181 = vsel %vm3173, %v3158, 0.0
  %v3182 = vsel %vm3173, %v3160, 0.0
  %v3183 = vsel %vm3173, %v3162, 0.0
  %3184 = vset.pattern.permute.xlu0 3
  %3185 = vperm.xlu0 %3184, %v2661
  %v3186 = vpop.permute.xlu0 %3185
  %3188 = vset.pattern.permute.xlu0 3
  %3189 = vperm.xlu0 %3188, %v2662
  %v3190 = vpop.permute.xlu0 %3189
  %3192 = vset.pattern.permute.xlu0 3
  %3193 = vperm.xlu0 %3192, %v2663
  %v3194 = vpop.permute.xlu0 %3193
  %3196 = vset.pattern.permute.xlu0 3
  %3197 = vperm.xlu0 %3196, %v2664
  %v3198 = vpop.permute.xlu0 %3197
  %3200 = vset.pattern.permute.xlu0 3
  %3201 = vperm.xlu0 %3200, %v2665
  %v3202 = vpop.permute.xlu0 %3201
  %3204 = vset.pattern.permute.xlu0 3
  %3205 = vperm.xlu0 %3204, %v2666
  %v3206 = vpop.permute.xlu0 %3205
  %3208 = vset.pattern.permute.xlu0 3
  %3209 = vperm.xlu0 %3208, %v2667
  %v3210 = vpop.permute.xlu0 %3209
  %3212 = vset.pattern.permute.xlu0 3
  %3213 = vperm.xlu0 %3212, %v2668
  %v3214 = vpop.permute.xlu0 %3213
  %3216 = vset.pattern.permute.xlu0 3
  %3217 = vperm.xlu0 %3216, %v2669
  %v3218 = vpop.permute.xlu0 %3217
  %3220 = vset.pattern.permute.xlu0 3
  %3221 = vperm.xlu0 %3220, %v2670
  %v3222 = vpop.permute.xlu0 %3221
  %v3224 = vmul.f32 %v3174, %v3186
  %v3225 = vmul.f32 %v3175, %v3190
  %v3226 = vmul.f32 %v3176, %v3194
  %v3227 = vmul.f32 %v3177, %v3198
  %v3228 = vmul.f32 %v3178, %v3202
  %v3229 = vmul.f32 %v3179, %v3206
  %v3230 = vmul.f32 %v3180, %v3210
  %v3231 = vmul.f32 %v3181, %v3214
  %v3232 = vmul.f32 %v3182, %v3218
  %v3233 = vmul.f32 %v3183, %v3222
  %v3234 = vadd.f32 %v3073, %v3224
  %v3235 = vadd.f32 %v3074, %v3225
  %v3236 = vadd.f32 %v3075, %v3226
  %v3237 = vadd.f32 %v3076, %v3227
  %v3238 = vadd.f32 %v3077, %v3228
  %v3239 = vadd.f32 %v3078, %v3229
  %v3240 = vadd.f32 %v3079, %v3230
  %v3241 = vadd.f32 %v3080, %v3231
  %v3242 = vadd.f32 %v3081, %v3232
  %v3243 = vadd.f32 %v3082, %v3233
  %3244 = vset.pattern.permute.xlu0 36
  %3245 = vperm.xlu0 %3244, %v2661
  %v3246 = vpop.permute.xlu0 %3245
  %3248 = vset.pattern.permute.xlu0 36
  %3249 = vperm.xlu0 %3248, %v2662
  %v3250 = vpop.permute.xlu0 %3249
  %3252 = vset.pattern.permute.xlu0 36
  %3253 = vperm.xlu0 %3252, %v2663
  %v3254 = vpop.permute.xlu0 %3253
  %3256 = vset.pattern.permute.xlu0 36
  %3257 = vperm.xlu0 %3256, %v2664
  %v3258 = vpop.permute.xlu0 %3257
  %3260 = vset.pattern.permute.xlu0 36
  %3261 = vperm.xlu0 %3260, %v2665
  %v3262 = vpop.permute.xlu0 %3261
  %3264 = vset.pattern.permute.xlu0 36
  %3265 = vperm.xlu0 %3264, %v2666
  %v3266 = vpop.permute.xlu0 %3265
  %3268 = vset.pattern.permute.xlu0 36
  %3269 = vperm.xlu0 %3268, %v2667
  %v3270 = vpop.permute.xlu0 %3269
  %3272 = vset.pattern.permute.xlu0 36
  %3273 = vperm.xlu0 %3272, %v2668
  %v3274 = vpop.permute.xlu0 %3273
  %3276 = vset.pattern.permute.xlu0 36
  %3277 = vperm.xlu0 %3276, %v2669
  %v3278 = vpop.permute.xlu0 %3277
  %3280 = vset.pattern.permute.xlu0 36
  %3281 = vperm.xlu0 %3280, %v2670
  %v3282 = vpop.permute.xlu0 %3281
  %v3284 = vmul.f32 %v3174, %v3246
  %v3285 = vmul.f32 %v3175, %v3250
  %v3286 = vmul.f32 %v3176, %v3254
  %v3287 = vmul.f32 %v3177, %v3258
  %v3288 = vmul.f32 %v3178, %v3262
  %v3289 = vmul.f32 %v3179, %v3266
  %v3290 = vmul.f32 %v3180, %v3270
  %v3291 = vmul.f32 %v3181, %v3274
  %v3292 = vmul.f32 %v3182, %v3278
  %v3293 = vmul.f32 %v3183, %v3282
  %v3294 = vadd.f32 %v3133, %v3284
  %v3295 = vadd.f32 %v3134, %v3285
  %v3296 = vadd.f32 %v3135, %v3286
  %v3297 = vadd.f32 %v3136, %v3287
  %v3298 = vadd.f32 %v3137, %v3288
  %v3299 = vadd.f32 %v3138, %v3289
  %v3300 = vadd.f32 %v3139, %v3290
  %v3301 = vadd.f32 %v3140, %v3291
  %v3302 = vadd.f32 %v3141, %v3292
  %v3303 = vadd.f32 %v3142, %v3293
  %3304 = vrot.lane.b32.xlu0 %v2671, 124
  %v3305 = vpop.permute.xlu0 %3304
  %3306 = vrot.lane.b32.xlu0 %v2672, 124
  %v3307 = vpop.permute.xlu0 %3306
  %3308 = vrot.lane.b32.xlu0 %v2673, 124
  %v3309 = vpop.permute.xlu0 %3308
  %3310 = vrot.lane.b32.xlu0 %v2674, 124
  %v3311 = vpop.permute.xlu0 %3310
  %3312 = vrot.lane.b32.xlu0 %v2675, 124
  %v3313 = vpop.permute.xlu0 %3312
  %3314 = vrot.lane.b32.xlu0 %v2676, 124
  %v3315 = vpop.permute.xlu0 %3314
  %3316 = vrot.lane.b32.xlu0 %v2677, 124
  %v3317 = vpop.permute.xlu0 %3316
  %3318 = vrot.lane.b32.xlu0 %v2678, 124
  %v3319 = vpop.permute.xlu0 %3318
  %3320 = vrot.lane.b32.xlu0 %v2679, 124
  %v3321 = vpop.permute.xlu0 %3320
  %3322 = vrot.lane.b32.xlu0 %v2680, 124
  %v3323 = vpop.permute.xlu0 %3322
  %vm3334 = vcmask 1014784
  %v3335 = vsel %vm3334, %v3305, 0.0
  %v3336 = vsel %vm3334, %v3307, 0.0
  %v3337 = vsel %vm3334, %v3309, 0.0
  %v3338 = vsel %vm3334, %v3311, 0.0
  %v3339 = vsel %vm3334, %v3313, 0.0
  %v3340 = vsel %vm3334, %v3315, 0.0
  %v3341 = vsel %vm3334, %v3317, 0.0
  %v3342 = vsel %vm3334, %v3319, 0.0
  %v3343 = vsel %vm3334, %v3321, 0.0
  %v3344 = vsel %vm3334, %v3323, 0.0
  %3345 = vset.pattern.permute.xlu0 4
  %3346 = vperm.xlu0 %3345, %v2661
  %v3347 = vpop.permute.xlu0 %3346
  %3349 = vset.pattern.permute.xlu0 4
  %3350 = vperm.xlu0 %3349, %v2662
  %v3351 = vpop.permute.xlu0 %3350
  %3353 = vset.pattern.permute.xlu0 4
  %3354 = vperm.xlu0 %3353, %v2663
  %v3355 = vpop.permute.xlu0 %3354
  %3357 = vset.pattern.permute.xlu0 4
  %3358 = vperm.xlu0 %3357, %v2664
  %v3359 = vpop.permute.xlu0 %3358
  %3361 = vset.pattern.permute.xlu0 4
  %3362 = vperm.xlu0 %3361, %v2665
  %v3363 = vpop.permute.xlu0 %3362
  %3365 = vset.pattern.permute.xlu0 4
  %3366 = vperm.xlu0 %3365, %v2666
  %v3367 = vpop.permute.xlu0 %3366
  %3369 = vset.pattern.permute.xlu0 4
  %3370 = vperm.xlu0 %3369, %v2667
  %v3371 = vpop.permute.xlu0 %3370
  %3373 = vset.pattern.permute.xlu0 4
  %3374 = vperm.xlu0 %3373, %v2668
  %v3375 = vpop.permute.xlu0 %3374
  %3377 = vset.pattern.permute.xlu0 4
  %3378 = vperm.xlu0 %3377, %v2669
  %v3379 = vpop.permute.xlu0 %3378
  %3381 = vset.pattern.permute.xlu0 4
  %3382 = vperm.xlu0 %3381, %v2670
  %v3383 = vpop.permute.xlu0 %3382
  %v3385 = vmul.f32 %v3335, %v3347
  %v3386 = vmul.f32 %v3336, %v3351
  %v3387 = vmul.f32 %v3337, %v3355
  %v3388 = vmul.f32 %v3338, %v3359
  %v3389 = vmul.f32 %v3339, %v3363
  %v3390 = vmul.f32 %v3340, %v3367
  %v3391 = vmul.f32 %v3341, %v3371
  %v3392 = vmul.f32 %v3342, %v3375
  %v3393 = vmul.f32 %v3343, %v3379
  %v3394 = vmul.f32 %v3344, %v3383
  %v3395 = vadd.f32 %v3234, %v3385
  %v3396 = vadd.f32 %v3235, %v3386
  %v3397 = vadd.f32 %v3236, %v3387
  %v3398 = vadd.f32 %v3237, %v3388
  %v3399 = vadd.f32 %v3238, %v3389
  %v3400 = vadd.f32 %v3239, %v3390
  %v3401 = vadd.f32 %v3240, %v3391
  %v3402 = vadd.f32 %v3241, %v3392
  %v3403 = vadd.f32 %v3242, %v3393
  %v3404 = vadd.f32 %v3243, %v3394
  %3405 = vset.pattern.permute.xlu0 37
  %3406 = vperm.xlu0 %3405, %v2661
  %v3407 = vpop.permute.xlu0 %3406
  %3409 = vset.pattern.permute.xlu0 37
  %3410 = vperm.xlu0 %3409, %v2662
  %v3411 = vpop.permute.xlu0 %3410
  %3413 = vset.pattern.permute.xlu0 37
  %3414 = vperm.xlu0 %3413, %v2663
  %v3415 = vpop.permute.xlu0 %3414
  %3417 = vset.pattern.permute.xlu0 37
  %3418 = vperm.xlu0 %3417, %v2664
  %v3419 = vpop.permute.xlu0 %3418
  %3421 = vset.pattern.permute.xlu0 37
  %3422 = vperm.xlu0 %3421, %v2665
  %v3423 = vpop.permute.xlu0 %3422
  %3425 = vset.pattern.permute.xlu0 37
  %3426 = vperm.xlu0 %3425, %v2666
  %v3427 = vpop.permute.xlu0 %3426
  %3429 = vset.pattern.permute.xlu0 37
  %3430 = vperm.xlu0 %3429, %v2667
  %v3431 = vpop.permute.xlu0 %3430
  %3433 = vset.pattern.permute.xlu0 37
  %3434 = vperm.xlu0 %3433, %v2668
  %v3435 = vpop.permute.xlu0 %3434
  %3437 = vset.pattern.permute.xlu0 37
  %3438 = vperm.xlu0 %3437, %v2669
  %v3439 = vpop.permute.xlu0 %3438
  %3441 = vset.pattern.permute.xlu0 37
  %3442 = vperm.xlu0 %3441, %v2670
  %v3443 = vpop.permute.xlu0 %3442
  %v3445 = vmul.f32 %v3335, %v3407
  %v3446 = vmul.f32 %v3336, %v3411
  %v3447 = vmul.f32 %v3337, %v3415
  %v3448 = vmul.f32 %v3338, %v3419
  %v3449 = vmul.f32 %v3339, %v3423
  %v3450 = vmul.f32 %v3340, %v3427
  %v3451 = vmul.f32 %v3341, %v3431
  %v3452 = vmul.f32 %v3342, %v3435
  %v3453 = vmul.f32 %v3343, %v3439
  %v3454 = vmul.f32 %v3344, %v3443
  %v3455 = vadd.f32 %v3294, %v3445
  %v3456 = vadd.f32 %v3295, %v3446
  %v3457 = vadd.f32 %v3296, %v3447
  %v3458 = vadd.f32 %v3297, %v3448
  %v3459 = vadd.f32 %v3298, %v3449
  %v3460 = vadd.f32 %v3299, %v3450
  %v3461 = vadd.f32 %v3300, %v3451
  %v3462 = vadd.f32 %v3301, %v3452
  %v3463 = vadd.f32 %v3302, %v3453
  %v3464 = vadd.f32 %v3303, %v3454
  %3465 = vrot.lane.b32.xlu0 %v2671, 123
  %v3466 = vpop.permute.xlu0 %3465
  %3467 = vrot.lane.b32.xlu0 %v2672, 123
  %v3468 = vpop.permute.xlu0 %3467
  %3469 = vrot.lane.b32.xlu0 %v2673, 123
  %v3470 = vpop.permute.xlu0 %3469
  %3471 = vrot.lane.b32.xlu0 %v2674, 123
  %v3472 = vpop.permute.xlu0 %3471
  %3473 = vrot.lane.b32.xlu0 %v2675, 123
  %v3474 = vpop.permute.xlu0 %3473
  %3475 = vrot.lane.b32.xlu0 %v2676, 123
  %v3476 = vpop.permute.xlu0 %3475
  %3477 = vrot.lane.b32.xlu0 %v2677, 123
  %v3478 = vpop.permute.xlu0 %3477
  %3479 = vrot.lane.b32.xlu0 %v2678, 123
  %v3480 = vpop.permute.xlu0 %3479
  %3481 = vrot.lane.b32.xlu0 %v2679, 123
  %v3482 = vpop.permute.xlu0 %3481
  %3483 = vrot.lane.b32.xlu0 %v2680, 123
  %v3484 = vpop.permute.xlu0 %3483
  %vm3495 = vcmask 1006592
  %v3496 = vsel %vm3495, %v3466, 0.0
  %v3497 = vsel %vm3495, %v3468, 0.0
  %v3498 = vsel %vm3495, %v3470, 0.0
  %v3499 = vsel %vm3495, %v3472, 0.0
  %v3500 = vsel %vm3495, %v3474, 0.0
  %v3501 = vsel %vm3495, %v3476, 0.0
  %v3502 = vsel %vm3495, %v3478, 0.0
  %v3503 = vsel %vm3495, %v3480, 0.0
  %v3504 = vsel %vm3495, %v3482, 0.0
  %v3505 = vsel %vm3495, %v3484, 0.0
  %3506 = vset.pattern.permute.xlu0 5
  %3507 = vperm.xlu0 %3506, %v2661
  %v3508 = vpop.permute.xlu0 %3507
  %3510 = vset.pattern.permute.xlu0 5
  %3511 = vperm.xlu0 %3510, %v2662
  %v3512 = vpop.permute.xlu0 %3511
  %3514 = vset.pattern.permute.xlu0 5
  %3515 = vperm.xlu0 %3514, %v2663
  %v3516 = vpop.permute.xlu0 %3515
  %3518 = vset.pattern.permute.xlu0 5
  %3519 = vperm.xlu0 %3518, %v2664
  %v3520 = vpop.permute.xlu0 %3519
  %3522 = vset.pattern.permute.xlu0 5
  %3523 = vperm.xlu0 %3522, %v2665
  %v3524 = vpop.permute.xlu0 %3523
  %3526 = vset.pattern.permute.xlu0 5
  %3527 = vperm.xlu0 %3526, %v2666
  %v3528 = vpop.permute.xlu0 %3527
  %3530 = vset.pattern.permute.xlu0 5
  %3531 = vperm.xlu0 %3530, %v2667
  %v3532 = vpop.permute.xlu0 %3531
  %3534 = vset.pattern.permute.xlu0 5
  %3535 = vperm.xlu0 %3534, %v2668
  %v3536 = vpop.permute.xlu0 %3535
  %3538 = vset.pattern.permute.xlu0 5
  %3539 = vperm.xlu0 %3538, %v2669
  %v3540 = vpop.permute.xlu0 %3539
  %3542 = vset.pattern.permute.xlu0 5
  %3543 = vperm.xlu0 %3542, %v2670
  %v3544 = vpop.permute.xlu0 %3543
  %v3546 = vmul.f32 %v3496, %v3508
  %v3547 = vmul.f32 %v3497, %v3512
  %v3548 = vmul.f32 %v3498, %v3516
  %v3549 = vmul.f32 %v3499, %v3520
  %v3550 = vmul.f32 %v3500, %v3524
  %v3551 = vmul.f32 %v3501, %v3528
  %v3552 = vmul.f32 %v3502, %v3532
  %v3553 = vmul.f32 %v3503, %v3536
  %v3554 = vmul.f32 %v3504, %v3540
  %v3555 = vmul.f32 %v3505, %v3544
  %v3556 = vadd.f32 %v3395, %v3546
  %v3557 = vadd.f32 %v3396, %v3547
  %v3558 = vadd.f32 %v3397, %v3548
  %v3559 = vadd.f32 %v3398, %v3549
  %v3560 = vadd.f32 %v3399, %v3550
  %v3561 = vadd.f32 %v3400, %v3551
  %v3562 = vadd.f32 %v3401, %v3552
  %v3563 = vadd.f32 %v3402, %v3553
  %v3564 = vadd.f32 %v3403, %v3554
  %v3565 = vadd.f32 %v3404, %v3555
  %3566 = vset.pattern.permute.xlu0 38
  %3567 = vperm.xlu0 %3566, %v2661
  %v3568 = vpop.permute.xlu0 %3567
  %3570 = vset.pattern.permute.xlu0 38
  %3571 = vperm.xlu0 %3570, %v2662
  %v3572 = vpop.permute.xlu0 %3571
  %3574 = vset.pattern.permute.xlu0 38
  %3575 = vperm.xlu0 %3574, %v2663
  %v3576 = vpop.permute.xlu0 %3575
  %3578 = vset.pattern.permute.xlu0 38
  %3579 = vperm.xlu0 %3578, %v2664
  %v3580 = vpop.permute.xlu0 %3579
  %3582 = vset.pattern.permute.xlu0 38
  %3583 = vperm.xlu0 %3582, %v2665
  %v3584 = vpop.permute.xlu0 %3583
  %3586 = vset.pattern.permute.xlu0 38
  %3587 = vperm.xlu0 %3586, %v2666
  %v3588 = vpop.permute.xlu0 %3587
  %3590 = vset.pattern.permute.xlu0 38
  %3591 = vperm.xlu0 %3590, %v2667
  %v3592 = vpop.permute.xlu0 %3591
  %3594 = vset.pattern.permute.xlu0 38
  %3595 = vperm.xlu0 %3594, %v2668
  %v3596 = vpop.permute.xlu0 %3595
  %3598 = vset.pattern.permute.xlu0 38
  %3599 = vperm.xlu0 %3598, %v2669
  %v3600 = vpop.permute.xlu0 %3599
  %3602 = vset.pattern.permute.xlu0 38
  %3603 = vperm.xlu0 %3602, %v2670
  %v3604 = vpop.permute.xlu0 %3603
  %v3606 = vmul.f32 %v3496, %v3568
  %v3607 = vmul.f32 %v3497, %v3572
  %v3608 = vmul.f32 %v3498, %v3576
  %v3609 = vmul.f32 %v3499, %v3580
  %v3610 = vmul.f32 %v3500, %v3584
  %v3611 = vmul.f32 %v3501, %v3588
  %v3612 = vmul.f32 %v3502, %v3592
  %v3613 = vmul.f32 %v3503, %v3596
  %v3614 = vmul.f32 %v3504, %v3600
  %v3615 = vmul.f32 %v3505, %v3604
  %v3616 = vadd.f32 %v3455, %v3606
  %v3617 = vadd.f32 %v3456, %v3607
  %v3618 = vadd.f32 %v3457, %v3608
  %v3619 = vadd.f32 %v3458, %v3609
  %v3620 = vadd.f32 %v3459, %v3610
  %v3621 = vadd.f32 %v3460, %v3611
  %v3622 = vadd.f32 %v3461, %v3612
  %v3623 = vadd.f32 %v3462, %v3613
  %v3624 = vadd.f32 %v3463, %v3614
  %v3625 = vadd.f32 %v3464, %v3615
  %3626 = vrot.lane.b32.xlu0 %v2671, 122
  %v3627 = vpop.permute.xlu0 %3626
  %3628 = vrot.lane.b32.xlu0 %v2672, 122
  %v3629 = vpop.permute.xlu0 %3628
  %3630 = vrot.lane.b32.xlu0 %v2673, 122
  %v3631 = vpop.permute.xlu0 %3630
  %3632 = vrot.lane.b32.xlu0 %v2674, 122
  %v3633 = vpop.permute.xlu0 %3632
  %3634 = vrot.lane.b32.xlu0 %v2675, 122
  %v3635 = vpop.permute.xlu0 %3634
  %3636 = vrot.lane.b32.xlu0 %v2676, 122
  %v3637 = vpop.permute.xlu0 %3636
  %3638 = vrot.lane.b32.xlu0 %v2677, 122
  %v3639 = vpop.permute.xlu0 %3638
  %3640 = vrot.lane.b32.xlu0 %v2678, 122
  %v3641 = vpop.permute.xlu0 %3640
  %3642 = vrot.lane.b32.xlu0 %v2679, 122
  %v3643 = vpop.permute.xlu0 %3642
  %3644 = vrot.lane.b32.xlu0 %v2680, 122
  %v3645 = vpop.permute.xlu0 %3644
  %vm3656 = vcmask 998400
  %v3657 = vsel %vm3656, %v3627, 0.0
  %v3658 = vsel %vm3656, %v3629, 0.0
  %v3659 = vsel %vm3656, %v3631, 0.0
  %v3660 = vsel %vm3656, %v3633, 0.0
  %v3661 = vsel %vm3656, %v3635, 0.0
  %v3662 = vsel %vm3656, %v3637, 0.0
  %v3663 = vsel %vm3656, %v3639, 0.0
  %v3664 = vsel %vm3656, %v3641, 0.0
  %v3665 = vsel %vm3656, %v3643, 0.0
  %v3666 = vsel %vm3656, %v3645, 0.0
  %3667 = vset.pattern.permute.xlu0 6
  %3668 = vperm.xlu0 %3667, %v2661
  %v3669 = vpop.permute.xlu0 %3668
  %3671 = vset.pattern.permute.xlu0 6
  %3672 = vperm.xlu0 %3671, %v2662
  %v3673 = vpop.permute.xlu0 %3672
  %3675 = vset.pattern.permute.xlu0 6
  %3676 = vperm.xlu0 %3675, %v2663
  %v3677 = vpop.permute.xlu0 %3676
  %3679 = vset.pattern.permute.xlu0 6
  %3680 = vperm.xlu0 %3679, %v2664
  %v3681 = vpop.permute.xlu0 %3680
  %3683 = vset.pattern.permute.xlu0 6
  %3684 = vperm.xlu0 %3683, %v2665
  %v3685 = vpop.permute.xlu0 %3684
  %3687 = vset.pattern.permute.xlu0 6
  %3688 = vperm.xlu0 %3687, %v2666
  %v3689 = vpop.permute.xlu0 %3688
  %3691 = vset.pattern.permute.xlu0 6
  %3692 = vperm.xlu0 %3691, %v2667
  %v3693 = vpop.permute.xlu0 %3692
  %3695 = vset.pattern.permute.xlu0 6
  %3696 = vperm.xlu0 %3695, %v2668
  %v3697 = vpop.permute.xlu0 %3696
  %3699 = vset.pattern.permute.xlu0 6
  %3700 = vperm.xlu0 %3699, %v2669
  %v3701 = vpop.permute.xlu0 %3700
  %3703 = vset.pattern.permute.xlu0 6
  %3704 = vperm.xlu0 %3703, %v2670
  %v3705 = vpop.permute.xlu0 %3704
  %v3707 = vmul.f32 %v3657, %v3669
  %v3708 = vmul.f32 %v3658, %v3673
  %v3709 = vmul.f32 %v3659, %v3677
  %v3710 = vmul.f32 %v3660, %v3681
  %v3711 = vmul.f32 %v3661, %v3685
  %v3712 = vmul.f32 %v3662, %v3689
  %v3713 = vmul.f32 %v3663, %v3693
  %v3714 = vmul.f32 %v3664, %v3697
  %v3715 = vmul.f32 %v3665, %v3701
  %v3716 = vmul.f32 %v3666, %v3705
  %v3717 = vadd.f32 %v3556, %v3707
  %v3718 = vadd.f32 %v3557, %v3708
  %v3719 = vadd.f32 %v3558, %v3709
  %v3720 = vadd.f32 %v3559, %v3710
  %v3721 = vadd.f32 %v3560, %v3711
  %v3722 = vadd.f32 %v3561, %v3712
  %v3723 = vadd.f32 %v3562, %v3713
  %v3724 = vadd.f32 %v3563, %v3714
  %v3725 = vadd.f32 %v3564, %v3715
  %v3726 = vadd.f32 %v3565, %v3716
  %3727 = vset.pattern.permute.xlu0 39
  %3728 = vperm.xlu0 %3727, %v2661
  %v3729 = vpop.permute.xlu0 %3728
  %3731 = vset.pattern.permute.xlu0 39
  %3732 = vperm.xlu0 %3731, %v2662
  %v3733 = vpop.permute.xlu0 %3732
  %3735 = vset.pattern.permute.xlu0 39
  %3736 = vperm.xlu0 %3735, %v2663
  %v3737 = vpop.permute.xlu0 %3736
  %3739 = vset.pattern.permute.xlu0 39
  %3740 = vperm.xlu0 %3739, %v2664
  %v3741 = vpop.permute.xlu0 %3740
  %3743 = vset.pattern.permute.xlu0 39
  %3744 = vperm.xlu0 %3743, %v2665
  %v3745 = vpop.permute.xlu0 %3744
  %3747 = vset.pattern.permute.xlu0 39
  %3748 = vperm.xlu0 %3747, %v2666
  %v3749 = vpop.permute.xlu0 %3748
  %3751 = vset.pattern.permute.xlu0 39
  %3752 = vperm.xlu0 %3751, %v2667
  %v3753 = vpop.permute.xlu0 %3752
  %3755 = vset.pattern.permute.xlu0 39
  %3756 = vperm.xlu0 %3755, %v2668
  %v3757 = vpop.permute.xlu0 %3756
  %3759 = vset.pattern.permute.xlu0 39
  %3760 = vperm.xlu0 %3759, %v2669
  %v3761 = vpop.permute.xlu0 %3760
  %3763 = vset.pattern.permute.xlu0 39
  %3764 = vperm.xlu0 %3763, %v2670
  %v3765 = vpop.permute.xlu0 %3764
  %v3767 = vmul.f32 %v3657, %v3729
  %v3768 = vmul.f32 %v3658, %v3733
  %v3769 = vmul.f32 %v3659, %v3737
  %v3770 = vmul.f32 %v3660, %v3741
  %v3771 = vmul.f32 %v3661, %v3745
  %v3772 = vmul.f32 %v3662, %v3749
  %v3773 = vmul.f32 %v3663, %v3753
  %v3774 = vmul.f32 %v3664, %v3757
  %v3775 = vmul.f32 %v3665, %v3761
  %v3776 = vmul.f32 %v3666, %v3765
  %v3777 = vadd.f32 %v3616, %v3767
  %v3778 = vadd.f32 %v3617, %v3768
  %v3779 = vadd.f32 %v3618, %v3769
  %v3780 = vadd.f32 %v3619, %v3770
  %v3781 = vadd.f32 %v3620, %v3771
  %v3782 = vadd.f32 %v3621, %v3772
  %v3783 = vadd.f32 %v3622, %v3773
  %v3784 = vadd.f32 %v3623, %v3774
  %v3785 = vadd.f32 %v3624, %v3775
  %v3786 = vadd.f32 %v3625, %v3776
  %3787 = vrot.lane.b32.xlu0 %v2671, 121
  %v3788 = vpop.permute.xlu0 %3787
  %3789 = vrot.lane.b32.xlu0 %v2672, 121
  %v3790 = vpop.permute.xlu0 %3789
  %3791 = vrot.lane.b32.xlu0 %v2673, 121
  %v3792 = vpop.permute.xlu0 %3791
  %3793 = vrot.lane.b32.xlu0 %v2674, 121
  %v3794 = vpop.permute.xlu0 %3793
  %3795 = vrot.lane.b32.xlu0 %v2675, 121
  %v3796 = vpop.permute.xlu0 %3795
  %3797 = vrot.lane.b32.xlu0 %v2676, 121
  %v3798 = vpop.permute.xlu0 %3797
  %3799 = vrot.lane.b32.xlu0 %v2677, 121
  %v3800 = vpop.permute.xlu0 %3799
  %3801 = vrot.lane.b32.xlu0 %v2678, 121
  %v3802 = vpop.permute.xlu0 %3801
  %3803 = vrot.lane.b32.xlu0 %v2679, 121
  %v3804 = vpop.permute.xlu0 %3803
  %3805 = vrot.lane.b32.xlu0 %v2680, 121
  %v3806 = vpop.permute.xlu0 %3805
  %vm3817 = vcmask 990208
  %v3818 = vsel %vm3817, %v3788, 0.0
  %v3819 = vsel %vm3817, %v3790, 0.0
  %v3820 = vsel %vm3817, %v3792, 0.0
  %v3821 = vsel %vm3817, %v3794, 0.0
  %v3822 = vsel %vm3817, %v3796, 0.0
  %v3823 = vsel %vm3817, %v3798, 0.0
  %v3824 = vsel %vm3817, %v3800, 0.0
  %v3825 = vsel %vm3817, %v3802, 0.0
  %v3826 = vsel %vm3817, %v3804, 0.0
  %v3827 = vsel %vm3817, %v3806, 0.0
  %3828 = vset.pattern.permute.xlu0 7
  %3829 = vperm.xlu0 %3828, %v2661
  %v3830 = vpop.permute.xlu0 %3829
  %3832 = vset.pattern.permute.xlu0 7
  %3833 = vperm.xlu0 %3832, %v2662
  %v3834 = vpop.permute.xlu0 %3833
  %3836 = vset.pattern.permute.xlu0 7
  %3837 = vperm.xlu0 %3836, %v2663
  %v3838 = vpop.permute.xlu0 %3837
  %3840 = vset.pattern.permute.xlu0 7
  %3841 = vperm.xlu0 %3840, %v2664
  %v3842 = vpop.permute.xlu0 %3841
  %3844 = vset.pattern.permute.xlu0 7
  %3845 = vperm.xlu0 %3844, %v2665
  %v3846 = vpop.permute.xlu0 %3845
  %3848 = vset.pattern.permute.xlu0 7
  %3849 = vperm.xlu0 %3848, %v2666
  %v3850 = vpop.permute.xlu0 %3849
  %3852 = vset.pattern.permute.xlu0 7
  %3853 = vperm.xlu0 %3852, %v2667
  %v3854 = vpop.permute.xlu0 %3853
  %3856 = vset.pattern.permute.xlu0 7
  %3857 = vperm.xlu0 %3856, %v2668
  %v3858 = vpop.permute.xlu0 %3857
  %3860 = vset.pattern.permute.xlu0 7
  %3861 = vperm.xlu0 %3860, %v2669
  %v3862 = vpop.permute.xlu0 %3861
  %3864 = vset.pattern.permute.xlu0 7
  %3865 = vperm.xlu0 %3864, %v2670
  %v3866 = vpop.permute.xlu0 %3865
  %v3868 = vmul.f32 %v3818, %v3830
  %v3869 = vmul.f32 %v3819, %v3834
  %v3870 = vmul.f32 %v3820, %v3838
  %v3871 = vmul.f32 %v3821, %v3842
  %v3872 = vmul.f32 %v3822, %v3846
  %v3873 = vmul.f32 %v3823, %v3850
  %v3874 = vmul.f32 %v3824, %v3854
  %v3875 = vmul.f32 %v3825, %v3858
  %v3876 = vmul.f32 %v3826, %v3862
  %v3877 = vmul.f32 %v3827, %v3866
  %v3878 = vadd.f32 %v3717, %v3868
  %v3879 = vadd.f32 %v3718, %v3869
  %v3880 = vadd.f32 %v3719, %v3870
  %v3881 = vadd.f32 %v3720, %v3871
  %v3882 = vadd.f32 %v3721, %v3872
  %v3883 = vadd.f32 %v3722, %v3873
  %v3884 = vadd.f32 %v3723, %v3874
  %v3885 = vadd.f32 %v3724, %v3875
  %v3886 = vadd.f32 %v3725, %v3876
  %v3887 = vadd.f32 %v3726, %v3877
  %3888 = vset.pattern.permute.xlu0 40
  %3889 = vperm.xlu0 %3888, %v2661
  %v3890 = vpop.permute.xlu0 %3889
  %3892 = vset.pattern.permute.xlu0 40
  %3893 = vperm.xlu0 %3892, %v2662
  %v3894 = vpop.permute.xlu0 %3893
  %3896 = vset.pattern.permute.xlu0 40
  %3897 = vperm.xlu0 %3896, %v2663
  %v3898 = vpop.permute.xlu0 %3897
  %3900 = vset.pattern.permute.xlu0 40
  %3901 = vperm.xlu0 %3900, %v2664
  %v3902 = vpop.permute.xlu0 %3901
  %3904 = vset.pattern.permute.xlu0 40
  %3905 = vperm.xlu0 %3904, %v2665
  %v3906 = vpop.permute.xlu0 %3905
  %3908 = vset.pattern.permute.xlu0 40
  %3909 = vperm.xlu0 %3908, %v2666
  %v3910 = vpop.permute.xlu0 %3909
  %3912 = vset.pattern.permute.xlu0 40
  %3913 = vperm.xlu0 %3912, %v2667
  %v3914 = vpop.permute.xlu0 %3913
  %3916 = vset.pattern.permute.xlu0 40
  %3917 = vperm.xlu0 %3916, %v2668
  %v3918 = vpop.permute.xlu0 %3917
  %3920 = vset.pattern.permute.xlu0 40
  %3921 = vperm.xlu0 %3920, %v2669
  %v3922 = vpop.permute.xlu0 %3921
  %3924 = vset.pattern.permute.xlu0 40
  %3925 = vperm.xlu0 %3924, %v2670
  %v3926 = vpop.permute.xlu0 %3925
  %v3928 = vmul.f32 %v3818, %v3890
  %v3929 = vmul.f32 %v3819, %v3894
  %v3930 = vmul.f32 %v3820, %v3898
  %v3931 = vmul.f32 %v3821, %v3902
  %v3932 = vmul.f32 %v3822, %v3906
  %v3933 = vmul.f32 %v3823, %v3910
  %v3934 = vmul.f32 %v3824, %v3914
  %v3935 = vmul.f32 %v3825, %v3918
  %v3936 = vmul.f32 %v3826, %v3922
  %v3937 = vmul.f32 %v3827, %v3926
  %v3938 = vadd.f32 %v3777, %v3928
  %v3939 = vadd.f32 %v3778, %v3929
  %v3940 = vadd.f32 %v3779, %v3930
  %v3941 = vadd.f32 %v3780, %v3931
  %v3942 = vadd.f32 %v3781, %v3932
  %v3943 = vadd.f32 %v3782, %v3933
  %v3944 = vadd.f32 %v3783, %v3934
  %v3945 = vadd.f32 %v3784, %v3935
  %v3946 = vadd.f32 %v3785, %v3936
  %v3947 = vadd.f32 %v3786, %v3937
  %3948 = vrot.lane.b32.xlu0 %v2671, 120
  %v3949 = vpop.permute.xlu0 %3948
  %3950 = vrot.lane.b32.xlu0 %v2672, 120
  %v3951 = vpop.permute.xlu0 %3950
  %3952 = vrot.lane.b32.xlu0 %v2673, 120
  %v3953 = vpop.permute.xlu0 %3952
  %3954 = vrot.lane.b32.xlu0 %v2674, 120
  %v3955 = vpop.permute.xlu0 %3954
  %3956 = vrot.lane.b32.xlu0 %v2675, 120
  %v3957 = vpop.permute.xlu0 %3956
  %3958 = vrot.lane.b32.xlu0 %v2676, 120
  %v3959 = vpop.permute.xlu0 %3958
  %3960 = vrot.lane.b32.xlu0 %v2677, 120
  %v3961 = vpop.permute.xlu0 %3960
  %3962 = vrot.lane.b32.xlu0 %v2678, 120
  %v3963 = vpop.permute.xlu0 %3962
  %3964 = vrot.lane.b32.xlu0 %v2679, 120
  %v3965 = vpop.permute.xlu0 %3964
  %3966 = vrot.lane.b32.xlu0 %v2680, 120
  %v3967 = vpop.permute.xlu0 %3966
  %vm3978 = vcmask 982016
  %v3979 = vsel %vm3978, %v3949, 0.0
  %v3980 = vsel %vm3978, %v3951, 0.0
  %v3981 = vsel %vm3978, %v3953, 0.0
  %v3982 = vsel %vm3978, %v3955, 0.0
  %v3983 = vsel %vm3978, %v3957, 0.0
  %v3984 = vsel %vm3978, %v3959, 0.0
  %v3985 = vsel %vm3978, %v3961, 0.0
  %v3986 = vsel %vm3978, %v3963, 0.0
  %v3987 = vsel %vm3978, %v3965, 0.0
  %v3988 = vsel %vm3978, %v3967, 0.0
  %3989 = vset.pattern.permute.xlu0 8
  %3990 = vperm.xlu0 %3989, %v2661
  %v3991 = vpop.permute.xlu0 %3990
  %3993 = vset.pattern.permute.xlu0 8
  %3994 = vperm.xlu0 %3993, %v2662
  %v3995 = vpop.permute.xlu0 %3994
  %3997 = vset.pattern.permute.xlu0 8
  %3998 = vperm.xlu0 %3997, %v2663
  %v3999 = vpop.permute.xlu0 %3998
  %4001 = vset.pattern.permute.xlu0 8
  %4002 = vperm.xlu0 %4001, %v2664
  %v4003 = vpop.permute.xlu0 %4002
  %4005 = vset.pattern.permute.xlu0 8
  %4006 = vperm.xlu0 %4005, %v2665
  %v4007 = vpop.permute.xlu0 %4006
  %4009 = vset.pattern.permute.xlu0 8
  %4010 = vperm.xlu0 %4009, %v2666
  %v4011 = vpop.permute.xlu0 %4010
  %4013 = vset.pattern.permute.xlu0 8
  %4014 = vperm.xlu0 %4013, %v2667
  %v4015 = vpop.permute.xlu0 %4014
  %4017 = vset.pattern.permute.xlu0 8
  %4018 = vperm.xlu0 %4017, %v2668
  %v4019 = vpop.permute.xlu0 %4018
  %4021 = vset.pattern.permute.xlu0 8
  %4022 = vperm.xlu0 %4021, %v2669
  %v4023 = vpop.permute.xlu0 %4022
  %4025 = vset.pattern.permute.xlu0 8
  %4026 = vperm.xlu0 %4025, %v2670
  %v4027 = vpop.permute.xlu0 %4026
  %v4029 = vmul.f32 %v3979, %v3991
  %v4030 = vmul.f32 %v3980, %v3995
  %v4031 = vmul.f32 %v3981, %v3999
  %v4032 = vmul.f32 %v3982, %v4003
  %v4033 = vmul.f32 %v3983, %v4007
  %v4034 = vmul.f32 %v3984, %v4011
  %v4035 = vmul.f32 %v3985, %v4015
  %v4036 = vmul.f32 %v3986, %v4019
  %v4037 = vmul.f32 %v3987, %v4023
  %v4038 = vmul.f32 %v3988, %v4027
  %v4039 = vadd.f32 %v3878, %v4029
  %v4040 = vadd.f32 %v3879, %v4030
  %v4041 = vadd.f32 %v3880, %v4031
  %v4042 = vadd.f32 %v3881, %v4032
  %v4043 = vadd.f32 %v3882, %v4033
  %v4044 = vadd.f32 %v3883, %v4034
  %v4045 = vadd.f32 %v3884, %v4035
  %v4046 = vadd.f32 %v3885, %v4036
  %v4047 = vadd.f32 %v3886, %v4037
  %v4048 = vadd.f32 %v3887, %v4038
  %4049 = vset.pattern.permute.xlu0 41
  %4050 = vperm.xlu0 %4049, %v2661
  %v4051 = vpop.permute.xlu0 %4050
  %4053 = vset.pattern.permute.xlu0 41
  %4054 = vperm.xlu0 %4053, %v2662
  %v4055 = vpop.permute.xlu0 %4054
  %4057 = vset.pattern.permute.xlu0 41
  %4058 = vperm.xlu0 %4057, %v2663
  %v4059 = vpop.permute.xlu0 %4058
  %4061 = vset.pattern.permute.xlu0 41
  %4062 = vperm.xlu0 %4061, %v2664
  %v4063 = vpop.permute.xlu0 %4062
  %4065 = vset.pattern.permute.xlu0 41
  %4066 = vperm.xlu0 %4065, %v2665
  %v4067 = vpop.permute.xlu0 %4066
  %4069 = vset.pattern.permute.xlu0 41
  %4070 = vperm.xlu0 %4069, %v2666
  %v4071 = vpop.permute.xlu0 %4070
  %4073 = vset.pattern.permute.xlu0 41
  %4074 = vperm.xlu0 %4073, %v2667
  %v4075 = vpop.permute.xlu0 %4074
  %4077 = vset.pattern.permute.xlu0 41
  %4078 = vperm.xlu0 %4077, %v2668
  %v4079 = vpop.permute.xlu0 %4078
  %4081 = vset.pattern.permute.xlu0 41
  %4082 = vperm.xlu0 %4081, %v2669
  %v4083 = vpop.permute.xlu0 %4082
  %4085 = vset.pattern.permute.xlu0 41
  %4086 = vperm.xlu0 %4085, %v2670
  %v4087 = vpop.permute.xlu0 %4086
  %v4089 = vmul.f32 %v3979, %v4051
  %v4090 = vmul.f32 %v3980, %v4055
  %v4091 = vmul.f32 %v3981, %v4059
  %v4092 = vmul.f32 %v3982, %v4063
  %v4093 = vmul.f32 %v3983, %v4067
  %v4094 = vmul.f32 %v3984, %v4071
  %v4095 = vmul.f32 %v3985, %v4075
  %v4096 = vmul.f32 %v3986, %v4079
  %v4097 = vmul.f32 %v3987, %v4083
  %v4098 = vmul.f32 %v3988, %v4087
  %v4099 = vadd.f32 %v3938, %v4089
  %v4100 = vadd.f32 %v3939, %v4090
  %v4101 = vadd.f32 %v3940, %v4091
  %v4102 = vadd.f32 %v3941, %v4092
  %v4103 = vadd.f32 %v3942, %v4093
  %v4104 = vadd.f32 %v3943, %v4094
  %v4105 = vadd.f32 %v3944, %v4095
  %v4106 = vadd.f32 %v3945, %v4096
  %v4107 = vadd.f32 %v3946, %v4097
  %v4108 = vadd.f32 %v3947, %v4098
  %4109 = vrot.lane.b32.xlu0 %v2671, 119
  %v4110 = vpop.permute.xlu0 %4109
  %4111 = vrot.lane.b32.xlu0 %v2672, 119
  %v4112 = vpop.permute.xlu0 %4111
  %4113 = vrot.lane.b32.xlu0 %v2673, 119
  %v4114 = vpop.permute.xlu0 %4113
  %4115 = vrot.lane.b32.xlu0 %v2674, 119
  %v4116 = vpop.permute.xlu0 %4115
  %4117 = vrot.lane.b32.xlu0 %v2675, 119
  %v4118 = vpop.permute.xlu0 %4117
  %4119 = vrot.lane.b32.xlu0 %v2676, 119
  %v4120 = vpop.permute.xlu0 %4119
  %4121 = vrot.lane.b32.xlu0 %v2677, 119
  %v4122 = vpop.permute.xlu0 %4121
  %4123 = vrot.lane.b32.xlu0 %v2678, 119
  %v4124 = vpop.permute.xlu0 %4123
  %4125 = vrot.lane.b32.xlu0 %v2679, 119
  %v4126 = vpop.permute.xlu0 %4125
  %4127 = vrot.lane.b32.xlu0 %v2680, 119
  %v4128 = vpop.permute.xlu0 %4127
  %vm4139 = vcmask 973824
  %v4140 = vsel %vm4139, %v4110, 0.0
  %v4141 = vsel %vm4139, %v4112, 0.0
  %v4142 = vsel %vm4139, %v4114, 0.0
  %v4143 = vsel %vm4139, %v4116, 0.0
  %v4144 = vsel %vm4139, %v4118, 0.0
  %v4145 = vsel %vm4139, %v4120, 0.0
  %v4146 = vsel %vm4139, %v4122, 0.0
  %v4147 = vsel %vm4139, %v4124, 0.0
  %v4148 = vsel %vm4139, %v4126, 0.0
  %v4149 = vsel %vm4139, %v4128, 0.0
  %4150 = vset.pattern.permute.xlu0 9
  %4151 = vperm.xlu0 %4150, %v2661
  %v4152 = vpop.permute.xlu0 %4151
  %4154 = vset.pattern.permute.xlu0 9
  %4155 = vperm.xlu0 %4154, %v2662
  %v4156 = vpop.permute.xlu0 %4155
  %4158 = vset.pattern.permute.xlu0 9
  %4159 = vperm.xlu0 %4158, %v2663
  %v4160 = vpop.permute.xlu0 %4159
  %4162 = vset.pattern.permute.xlu0 9
  %4163 = vperm.xlu0 %4162, %v2664
  %v4164 = vpop.permute.xlu0 %4163
  %4166 = vset.pattern.permute.xlu0 9
  %4167 = vperm.xlu0 %4166, %v2665
  %v4168 = vpop.permute.xlu0 %4167
  %4170 = vset.pattern.permute.xlu0 9
  %4171 = vperm.xlu0 %4170, %v2666
  %v4172 = vpop.permute.xlu0 %4171
  %4174 = vset.pattern.permute.xlu0 9
  %4175 = vperm.xlu0 %4174, %v2667
  %v4176 = vpop.permute.xlu0 %4175
  %4178 = vset.pattern.permute.xlu0 9
  %4179 = vperm.xlu0 %4178, %v2668
  %v4180 = vpop.permute.xlu0 %4179
  %4182 = vset.pattern.permute.xlu0 9
  %4183 = vperm.xlu0 %4182, %v2669
  %v4184 = vpop.permute.xlu0 %4183
  %4186 = vset.pattern.permute.xlu0 9
  %4187 = vperm.xlu0 %4186, %v2670
  %v4188 = vpop.permute.xlu0 %4187
  %v4190 = vmul.f32 %v4140, %v4152
  %v4191 = vmul.f32 %v4141, %v4156
  %v4192 = vmul.f32 %v4142, %v4160
  %v4193 = vmul.f32 %v4143, %v4164
  %v4194 = vmul.f32 %v4144, %v4168
  %v4195 = vmul.f32 %v4145, %v4172
  %v4196 = vmul.f32 %v4146, %v4176
  %v4197 = vmul.f32 %v4147, %v4180
  %v4198 = vmul.f32 %v4148, %v4184
  %v4199 = vmul.f32 %v4149, %v4188
  %v4200 = vadd.f32 %v4039, %v4190
  %v4201 = vadd.f32 %v4040, %v4191
  %v4202 = vadd.f32 %v4041, %v4192
  %v4203 = vadd.f32 %v4042, %v4193
  %v4204 = vadd.f32 %v4043, %v4194
  %v4205 = vadd.f32 %v4044, %v4195
  %v4206 = vadd.f32 %v4045, %v4196
  %v4207 = vadd.f32 %v4046, %v4197
  %v4208 = vadd.f32 %v4047, %v4198
  %v4209 = vadd.f32 %v4048, %v4199
  %4210 = vset.pattern.permute.xlu0 42
  %4211 = vperm.xlu0 %4210, %v2661
  %v4212 = vpop.permute.xlu0 %4211
  %4214 = vset.pattern.permute.xlu0 42
  %4215 = vperm.xlu0 %4214, %v2662
  %v4216 = vpop.permute.xlu0 %4215
  %4218 = vset.pattern.permute.xlu0 42
  %4219 = vperm.xlu0 %4218, %v2663
  %v4220 = vpop.permute.xlu0 %4219
  %4222 = vset.pattern.permute.xlu0 42
  %4223 = vperm.xlu0 %4222, %v2664
  %v4224 = vpop.permute.xlu0 %4223
  %4226 = vset.pattern.permute.xlu0 42
  %4227 = vperm.xlu0 %4226, %v2665
  %v4228 = vpop.permute.xlu0 %4227
  %4230 = vset.pattern.permute.xlu0 42
  %4231 = vperm.xlu0 %4230, %v2666
  %v4232 = vpop.permute.xlu0 %4231
  %4234 = vset.pattern.permute.xlu0 42
  %4235 = vperm.xlu0 %4234, %v2667
  %v4236 = vpop.permute.xlu0 %4235
  %4238 = vset.pattern.permute.xlu0 42
  %4239 = vperm.xlu0 %4238, %v2668
  %v4240 = vpop.permute.xlu0 %4239
  %4242 = vset.pattern.permute.xlu0 42
  %4243 = vperm.xlu0 %4242, %v2669
  %v4244 = vpop.permute.xlu0 %4243
  %4246 = vset.pattern.permute.xlu0 42
  %4247 = vperm.xlu0 %4246, %v2670
  %v4248 = vpop.permute.xlu0 %4247
  %v4250 = vmul.f32 %v4140, %v4212
  %v4251 = vmul.f32 %v4141, %v4216
  %v4252 = vmul.f32 %v4142, %v4220
  %v4253 = vmul.f32 %v4143, %v4224
  %v4254 = vmul.f32 %v4144, %v4228
  %v4255 = vmul.f32 %v4145, %v4232
  %v4256 = vmul.f32 %v4146, %v4236
  %v4257 = vmul.f32 %v4147, %v4240
  %v4258 = vmul.f32 %v4148, %v4244
  %v4259 = vmul.f32 %v4149, %v4248
  %v4260 = vadd.f32 %v4099, %v4250
  %v4261 = vadd.f32 %v4100, %v4251
  %v4262 = vadd.f32 %v4101, %v4252
  %v4263 = vadd.f32 %v4102, %v4253
  %v4264 = vadd.f32 %v4103, %v4254
  %v4265 = vadd.f32 %v4104, %v4255
  %v4266 = vadd.f32 %v4105, %v4256
  %v4267 = vadd.f32 %v4106, %v4257
  %v4268 = vadd.f32 %v4107, %v4258
  %v4269 = vadd.f32 %v4108, %v4259
  %4270 = vrot.lane.b32.xlu0 %v2671, 118
  %v4271 = vpop.permute.xlu0 %4270
  %4272 = vrot.lane.b32.xlu0 %v2672, 118
  %v4273 = vpop.permute.xlu0 %4272
  %4274 = vrot.lane.b32.xlu0 %v2673, 118
  %v4275 = vpop.permute.xlu0 %4274
  %4276 = vrot.lane.b32.xlu0 %v2674, 118
  %v4277 = vpop.permute.xlu0 %4276
  %4278 = vrot.lane.b32.xlu0 %v2675, 118
  %v4279 = vpop.permute.xlu0 %4278
  %4280 = vrot.lane.b32.xlu0 %v2676, 118
  %v4281 = vpop.permute.xlu0 %4280
  %4282 = vrot.lane.b32.xlu0 %v2677, 118
  %v4283 = vpop.permute.xlu0 %4282
  %4284 = vrot.lane.b32.xlu0 %v2678, 118
  %v4285 = vpop.permute.xlu0 %4284
  %4286 = vrot.lane.b32.xlu0 %v2679, 118
  %v4287 = vpop.permute.xlu0 %4286
  %4288 = vrot.lane.b32.xlu0 %v2680, 118
  %v4289 = vpop.permute.xlu0 %4288
  %vm4300 = vcmask 965632
  %v4301 = vsel %vm4300, %v4271, 0.0
  %v4302 = vsel %vm4300, %v4273, 0.0
  %v4303 = vsel %vm4300, %v4275, 0.0
  %v4304 = vsel %vm4300, %v4277, 0.0
  %v4305 = vsel %vm4300, %v4279, 0.0
  %v4306 = vsel %vm4300, %v4281, 0.0
  %v4307 = vsel %vm4300, %v4283, 0.0
  %v4308 = vsel %vm4300, %v4285, 0.0
  %v4309 = vsel %vm4300, %v4287, 0.0
  %v4310 = vsel %vm4300, %v4289, 0.0
  %4311 = vset.pattern.permute.xlu0 10
  %4312 = vperm.xlu0 %4311, %v2661
  %v4313 = vpop.permute.xlu0 %4312
  %4315 = vset.pattern.permute.xlu0 10
  %4316 = vperm.xlu0 %4315, %v2662
  %v4317 = vpop.permute.xlu0 %4316
  %4319 = vset.pattern.permute.xlu0 10
  %4320 = vperm.xlu0 %4319, %v2663
  %v4321 = vpop.permute.xlu0 %4320
  %4323 = vset.pattern.permute.xlu0 10
  %4324 = vperm.xlu0 %4323, %v2664
  %v4325 = vpop.permute.xlu0 %4324
  %4327 = vset.pattern.permute.xlu0 10
  %4328 = vperm.xlu0 %4327, %v2665
  %v4329 = vpop.permute.xlu0 %4328
  %4331 = vset.pattern.permute.xlu0 10
  %4332 = vperm.xlu0 %4331, %v2666
  %v4333 = vpop.permute.xlu0 %4332
  %4335 = vset.pattern.permute.xlu0 10
  %4336 = vperm.xlu0 %4335, %v2667
  %v4337 = vpop.permute.xlu0 %4336
  %4339 = vset.pattern.permute.xlu0 10
  %4340 = vperm.xlu0 %4339, %v2668
  %v4341 = vpop.permute.xlu0 %4340
  %4343 = vset.pattern.permute.xlu0 10
  %4344 = vperm.xlu0 %4343, %v2669
  %v4345 = vpop.permute.xlu0 %4344
  %4347 = vset.pattern.permute.xlu0 10
  %4348 = vperm.xlu0 %4347, %v2670
  %v4349 = vpop.permute.xlu0 %4348
  %v4351 = vmul.f32 %v4301, %v4313
  %v4352 = vmul.f32 %v4302, %v4317
  %v4353 = vmul.f32 %v4303, %v4321
  %v4354 = vmul.f32 %v4304, %v4325
  %v4355 = vmul.f32 %v4305, %v4329
  %v4356 = vmul.f32 %v4306, %v4333
  %v4357 = vmul.f32 %v4307, %v4337
  %v4358 = vmul.f32 %v4308, %v4341
  %v4359 = vmul.f32 %v4309, %v4345
  %v4360 = vmul.f32 %v4310, %v4349
  %v4361 = vadd.f32 %v4200, %v4351
  %v4362 = vadd.f32 %v4201, %v4352
  %v4363 = vadd.f32 %v4202, %v4353
  %v4364 = vadd.f32 %v4203, %v4354
  %v4365 = vadd.f32 %v4204, %v4355
  %v4366 = vadd.f32 %v4205, %v4356
  %v4367 = vadd.f32 %v4206, %v4357
  %v4368 = vadd.f32 %v4207, %v4358
  %v4369 = vadd.f32 %v4208, %v4359
  %v4370 = vadd.f32 %v4209, %v4360
  %4371 = vset.pattern.permute.xlu0 43
  %4372 = vperm.xlu0 %4371, %v2661
  %v4373 = vpop.permute.xlu0 %4372
  %4375 = vset.pattern.permute.xlu0 43
  %4376 = vperm.xlu0 %4375, %v2662
  %v4377 = vpop.permute.xlu0 %4376
  %4379 = vset.pattern.permute.xlu0 43
  %4380 = vperm.xlu0 %4379, %v2663
  %v4381 = vpop.permute.xlu0 %4380
  %4383 = vset.pattern.permute.xlu0 43
  %4384 = vperm.xlu0 %4383, %v2664
  %v4385 = vpop.permute.xlu0 %4384
  %4387 = vset.pattern.permute.xlu0 43
  %4388 = vperm.xlu0 %4387, %v2665
  %v4389 = vpop.permute.xlu0 %4388
  %4391 = vset.pattern.permute.xlu0 43
  %4392 = vperm.xlu0 %4391, %v2666
  %v4393 = vpop.permute.xlu0 %4392
  %4395 = vset.pattern.permute.xlu0 43
  %4396 = vperm.xlu0 %4395, %v2667
  %v4397 = vpop.permute.xlu0 %4396
  %4399 = vset.pattern.permute.xlu0 43
  %4400 = vperm.xlu0 %4399, %v2668
  %v4401 = vpop.permute.xlu0 %4400
  %4403 = vset.pattern.permute.xlu0 43
  %4404 = vperm.xlu0 %4403, %v2669
  %v4405 = vpop.permute.xlu0 %4404
  %4407 = vset.pattern.permute.xlu0 43
  %4408 = vperm.xlu0 %4407, %v2670
  %v4409 = vpop.permute.xlu0 %4408
  %v4411 = vmul.f32 %v4301, %v4373
  %v4412 = vmul.f32 %v4302, %v4377
  %v4413 = vmul.f32 %v4303, %v4381
  %v4414 = vmul.f32 %v4304, %v4385
  %v4415 = vmul.f32 %v4305, %v4389
  %v4416 = vmul.f32 %v4306, %v4393
  %v4417 = vmul.f32 %v4307, %v4397
  %v4418 = vmul.f32 %v4308, %v4401
  %v4419 = vmul.f32 %v4309, %v4405
  %v4420 = vmul.f32 %v4310, %v4409
  %v4421 = vadd.f32 %v4260, %v4411
  %v4422 = vadd.f32 %v4261, %v4412
  %v4423 = vadd.f32 %v4262, %v4413
  %v4424 = vadd.f32 %v4263, %v4414
  %v4425 = vadd.f32 %v4264, %v4415
  %v4426 = vadd.f32 %v4265, %v4416
  %v4427 = vadd.f32 %v4266, %v4417
  %v4428 = vadd.f32 %v4267, %v4418
  %v4429 = vadd.f32 %v4268, %v4419
  %v4430 = vadd.f32 %v4269, %v4420
  %4431 = vrot.lane.b32.xlu0 %v2671, 117
  %v4432 = vpop.permute.xlu0 %4431
  %4433 = vrot.lane.b32.xlu0 %v2672, 117
  %v4434 = vpop.permute.xlu0 %4433
  %4435 = vrot.lane.b32.xlu0 %v2673, 117
  %v4436 = vpop.permute.xlu0 %4435
  %4437 = vrot.lane.b32.xlu0 %v2674, 117
  %v4438 = vpop.permute.xlu0 %4437
  %4439 = vrot.lane.b32.xlu0 %v2675, 117
  %v4440 = vpop.permute.xlu0 %4439
  %4441 = vrot.lane.b32.xlu0 %v2676, 117
  %v4442 = vpop.permute.xlu0 %4441
  %4443 = vrot.lane.b32.xlu0 %v2677, 117
  %v4444 = vpop.permute.xlu0 %4443
  %4445 = vrot.lane.b32.xlu0 %v2678, 117
  %v4446 = vpop.permute.xlu0 %4445
  %4447 = vrot.lane.b32.xlu0 %v2679, 117
  %v4448 = vpop.permute.xlu0 %4447
  %4449 = vrot.lane.b32.xlu0 %v2680, 117
  %v4450 = vpop.permute.xlu0 %4449
  %vm4461 = vcmask 957440
  %v4462 = vsel %vm4461, %v4432, 0.0
  %v4463 = vsel %vm4461, %v4434, 0.0
  %v4464 = vsel %vm4461, %v4436, 0.0
  %v4465 = vsel %vm4461, %v4438, 0.0
  %v4466 = vsel %vm4461, %v4440, 0.0
  %v4467 = vsel %vm4461, %v4442, 0.0
  %v4468 = vsel %vm4461, %v4444, 0.0
  %v4469 = vsel %vm4461, %v4446, 0.0
  %v4470 = vsel %vm4461, %v4448, 0.0
  %v4471 = vsel %vm4461, %v4450, 0.0
  %4472 = vset.pattern.permute.xlu0 11
  %4473 = vperm.xlu0 %4472, %v2661
  %v4474 = vpop.permute.xlu0 %4473
  %4476 = vset.pattern.permute.xlu0 11
  %4477 = vperm.xlu0 %4476, %v2662
  %v4478 = vpop.permute.xlu0 %4477
  %4480 = vset.pattern.permute.xlu0 11
  %4481 = vperm.xlu0 %4480, %v2663
  %v4482 = vpop.permute.xlu0 %4481
  %4484 = vset.pattern.permute.xlu0 11
  %4485 = vperm.xlu0 %4484, %v2664
  %v4486 = vpop.permute.xlu0 %4485
  %4488 = vset.pattern.permute.xlu0 11
  %4489 = vperm.xlu0 %4488, %v2665
  %v4490 = vpop.permute.xlu0 %4489
  %4492 = vset.pattern.permute.xlu0 11
  %4493 = vperm.xlu0 %4492, %v2666
  %v4494 = vpop.permute.xlu0 %4493
  %4496 = vset.pattern.permute.xlu0 11
  %4497 = vperm.xlu0 %4496, %v2667
  %v4498 = vpop.permute.xlu0 %4497
  %4500 = vset.pattern.permute.xlu0 11
  %4501 = vperm.xlu0 %4500, %v2668
  %v4502 = vpop.permute.xlu0 %4501
  %4504 = vset.pattern.permute.xlu0 11
  %4505 = vperm.xlu0 %4504, %v2669
  %v4506 = vpop.permute.xlu0 %4505
  %4508 = vset.pattern.permute.xlu0 11
  %4509 = vperm.xlu0 %4508, %v2670
  %v4510 = vpop.permute.xlu0 %4509
  %v4512 = vmul.f32 %v4462, %v4474
  %v4513 = vmul.f32 %v4463, %v4478
  %v4514 = vmul.f32 %v4464, %v4482
  %v4515 = vmul.f32 %v4465, %v4486
  %v4516 = vmul.f32 %v4466, %v4490
  %v4517 = vmul.f32 %v4467, %v4494
  %v4518 = vmul.f32 %v4468, %v4498
  %v4519 = vmul.f32 %v4469, %v4502
  %v4520 = vmul.f32 %v4470, %v4506
  %v4521 = vmul.f32 %v4471, %v4510
  %v4522 = vadd.f32 %v4361, %v4512
  %v4523 = vadd.f32 %v4362, %v4513
  %v4524 = vadd.f32 %v4363, %v4514
  %v4525 = vadd.f32 %v4364, %v4515
  %v4526 = vadd.f32 %v4365, %v4516
  %v4527 = vadd.f32 %v4366, %v4517
  %v4528 = vadd.f32 %v4367, %v4518
  %v4529 = vadd.f32 %v4368, %v4519
  %v4530 = vadd.f32 %v4369, %v4520
  %v4531 = vadd.f32 %v4370, %v4521
  %4532 = vset.pattern.permute.xlu0 44
  %4533 = vperm.xlu0 %4532, %v2661
  %v4534 = vpop.permute.xlu0 %4533
  %4536 = vset.pattern.permute.xlu0 44
  %4537 = vperm.xlu0 %4536, %v2662
  %v4538 = vpop.permute.xlu0 %4537
  %4540 = vset.pattern.permute.xlu0 44
  %4541 = vperm.xlu0 %4540, %v2663
  %v4542 = vpop.permute.xlu0 %4541
  %4544 = vset.pattern.permute.xlu0 44
  %4545 = vperm.xlu0 %4544, %v2664
  %v4546 = vpop.permute.xlu0 %4545
  %4548 = vset.pattern.permute.xlu0 44
  %4549 = vperm.xlu0 %4548, %v2665
  %v4550 = vpop.permute.xlu0 %4549
  %4552 = vset.pattern.permute.xlu0 44
  %4553 = vperm.xlu0 %4552, %v2666
  %v4554 = vpop.permute.xlu0 %4553
  %4556 = vset.pattern.permute.xlu0 44
  %4557 = vperm.xlu0 %4556, %v2667
  %v4558 = vpop.permute.xlu0 %4557
  %4560 = vset.pattern.permute.xlu0 44
  %4561 = vperm.xlu0 %4560, %v2668
  %v4562 = vpop.permute.xlu0 %4561
  %4564 = vset.pattern.permute.xlu0 44
  %4565 = vperm.xlu0 %4564, %v2669
  %v4566 = vpop.permute.xlu0 %4565
  %4568 = vset.pattern.permute.xlu0 44
  %4569 = vperm.xlu0 %4568, %v2670
  %v4570 = vpop.permute.xlu0 %4569
  %v4572 = vmul.f32 %v4462, %v4534
  %v4573 = vmul.f32 %v4463, %v4538
  %v4574 = vmul.f32 %v4464, %v4542
  %v4575 = vmul.f32 %v4465, %v4546
  %v4576 = vmul.f32 %v4466, %v4550
  %v4577 = vmul.f32 %v4467, %v4554
  %v4578 = vmul.f32 %v4468, %v4558
  %v4579 = vmul.f32 %v4469, %v4562
  %v4580 = vmul.f32 %v4470, %v4566
  %v4581 = vmul.f32 %v4471, %v4570
  %v4582 = vadd.f32 %v4421, %v4572
  %v4583 = vadd.f32 %v4422, %v4573
  %v4584 = vadd.f32 %v4423, %v4574
  %v4585 = vadd.f32 %v4424, %v4575
  %v4586 = vadd.f32 %v4425, %v4576
  %v4587 = vadd.f32 %v4426, %v4577
  %v4588 = vadd.f32 %v4427, %v4578
  %v4589 = vadd.f32 %v4428, %v4579
  %v4590 = vadd.f32 %v4429, %v4580
  %v4591 = vadd.f32 %v4430, %v4581
  %4592 = vrot.lane.b32.xlu0 %v2671, 116
  %v4593 = vpop.permute.xlu0 %4592
  %4594 = vrot.lane.b32.xlu0 %v2672, 116
  %v4595 = vpop.permute.xlu0 %4594
  %4596 = vrot.lane.b32.xlu0 %v2673, 116
  %v4597 = vpop.permute.xlu0 %4596
  %4598 = vrot.lane.b32.xlu0 %v2674, 116
  %v4599 = vpop.permute.xlu0 %4598
  %4600 = vrot.lane.b32.xlu0 %v2675, 116
  %v4601 = vpop.permute.xlu0 %4600
  %4602 = vrot.lane.b32.xlu0 %v2676, 116
  %v4603 = vpop.permute.xlu0 %4602
  %4604 = vrot.lane.b32.xlu0 %v2677, 116
  %v4605 = vpop.permute.xlu0 %4604
  %4606 = vrot.lane.b32.xlu0 %v2678, 116
  %v4607 = vpop.permute.xlu0 %4606
  %4608 = vrot.lane.b32.xlu0 %v2679, 116
  %v4609 = vpop.permute.xlu0 %4608
  %4610 = vrot.lane.b32.xlu0 %v2680, 116
  %v4611 = vpop.permute.xlu0 %4610
  %vm4622 = vcmask 949248
  %v4623 = vsel %vm4622, %v4593, 0.0
  %v4624 = vsel %vm4622, %v4595, 0.0
  %v4625 = vsel %vm4622, %v4597, 0.0
  %v4626 = vsel %vm4622, %v4599, 0.0
  %v4627 = vsel %vm4622, %v4601, 0.0
  %v4628 = vsel %vm4622, %v4603, 0.0
  %v4629 = vsel %vm4622, %v4605, 0.0
  %v4630 = vsel %vm4622, %v4607, 0.0
  %v4631 = vsel %vm4622, %v4609, 0.0
  %v4632 = vsel %vm4622, %v4611, 0.0
  %4633 = vset.pattern.permute.xlu0 12
  %4634 = vperm.xlu0 %4633, %v2661
  %v4635 = vpop.permute.xlu0 %4634
  %4637 = vset.pattern.permute.xlu0 12
  %4638 = vperm.xlu0 %4637, %v2662
  %v4639 = vpop.permute.xlu0 %4638
  %4641 = vset.pattern.permute.xlu0 12
  %4642 = vperm.xlu0 %4641, %v2663
  %v4643 = vpop.permute.xlu0 %4642
  %4645 = vset.pattern.permute.xlu0 12
  %4646 = vperm.xlu0 %4645, %v2664
  %v4647 = vpop.permute.xlu0 %4646
  %4649 = vset.pattern.permute.xlu0 12
  %4650 = vperm.xlu0 %4649, %v2665
  %v4651 = vpop.permute.xlu0 %4650
  %4653 = vset.pattern.permute.xlu0 12
  %4654 = vperm.xlu0 %4653, %v2666
  %v4655 = vpop.permute.xlu0 %4654
  %4657 = vset.pattern.permute.xlu0 12
  %4658 = vperm.xlu0 %4657, %v2667
  %v4659 = vpop.permute.xlu0 %4658
  %4661 = vset.pattern.permute.xlu0 12
  %4662 = vperm.xlu0 %4661, %v2668
  %v4663 = vpop.permute.xlu0 %4662
  %4665 = vset.pattern.permute.xlu0 12
  %4666 = vperm.xlu0 %4665, %v2669
  %v4667 = vpop.permute.xlu0 %4666
  %4669 = vset.pattern.permute.xlu0 12
  %4670 = vperm.xlu0 %4669, %v2670
  %v4671 = vpop.permute.xlu0 %4670
  %v4673 = vmul.f32 %v4623, %v4635
  %v4674 = vmul.f32 %v4624, %v4639
  %v4675 = vmul.f32 %v4625, %v4643
  %v4676 = vmul.f32 %v4626, %v4647
  %v4677 = vmul.f32 %v4627, %v4651
  %v4678 = vmul.f32 %v4628, %v4655
  %v4679 = vmul.f32 %v4629, %v4659
  %v4680 = vmul.f32 %v4630, %v4663
  %v4681 = vmul.f32 %v4631, %v4667
  %v4682 = vmul.f32 %v4632, %v4671
  %v4683 = vadd.f32 %v4522, %v4673
  %v4684 = vadd.f32 %v4523, %v4674
  %v4685 = vadd.f32 %v4524, %v4675
  %v4686 = vadd.f32 %v4525, %v4676
  %v4687 = vadd.f32 %v4526, %v4677
  %v4688 = vadd.f32 %v4527, %v4678
  %v4689 = vadd.f32 %v4528, %v4679
  %v4690 = vadd.f32 %v4529, %v4680
  %v4691 = vadd.f32 %v4530, %v4681
  %v4692 = vadd.f32 %v4531, %v4682
  %4693 = vset.pattern.permute.xlu0 45
  %4694 = vperm.xlu0 %4693, %v2661
  %v4695 = vpop.permute.xlu0 %4694
  %4697 = vset.pattern.permute.xlu0 45
  %4698 = vperm.xlu0 %4697, %v2662
  %v4699 = vpop.permute.xlu0 %4698
  %4701 = vset.pattern.permute.xlu0 45
  %4702 = vperm.xlu0 %4701, %v2663
  %v4703 = vpop.permute.xlu0 %4702
  %4705 = vset.pattern.permute.xlu0 45
  %4706 = vperm.xlu0 %4705, %v2664
  %v4707 = vpop.permute.xlu0 %4706
  %4709 = vset.pattern.permute.xlu0 45
  %4710 = vperm.xlu0 %4709, %v2665
  %v4711 = vpop.permute.xlu0 %4710
  %4713 = vset.pattern.permute.xlu0 45
  %4714 = vperm.xlu0 %4713, %v2666
  %v4715 = vpop.permute.xlu0 %4714
  %4717 = vset.pattern.permute.xlu0 45
  %4718 = vperm.xlu0 %4717, %v2667
  %v4719 = vpop.permute.xlu0 %4718
  %4721 = vset.pattern.permute.xlu0 45
  %4722 = vperm.xlu0 %4721, %v2668
  %v4723 = vpop.permute.xlu0 %4722
  %4725 = vset.pattern.permute.xlu0 45
  %4726 = vperm.xlu0 %4725, %v2669
  %v4727 = vpop.permute.xlu0 %4726
  %4729 = vset.pattern.permute.xlu0 45
  %4730 = vperm.xlu0 %4729, %v2670
  %v4731 = vpop.permute.xlu0 %4730
  %v4733 = vmul.f32 %v4623, %v4695
  %v4734 = vmul.f32 %v4624, %v4699
  %v4735 = vmul.f32 %v4625, %v4703
  %v4736 = vmul.f32 %v4626, %v4707
  %v4737 = vmul.f32 %v4627, %v4711
  %v4738 = vmul.f32 %v4628, %v4715
  %v4739 = vmul.f32 %v4629, %v4719
  %v4740 = vmul.f32 %v4630, %v4723
  %v4741 = vmul.f32 %v4631, %v4727
  %v4742 = vmul.f32 %v4632, %v4731
  %v4743 = vadd.f32 %v4582, %v4733
  %v4744 = vadd.f32 %v4583, %v4734
  %v4745 = vadd.f32 %v4584, %v4735
  %v4746 = vadd.f32 %v4585, %v4736
  %v4747 = vadd.f32 %v4586, %v4737
  %v4748 = vadd.f32 %v4587, %v4738
  %v4749 = vadd.f32 %v4588, %v4739
  %v4750 = vadd.f32 %v4589, %v4740
  %v4751 = vadd.f32 %v4590, %v4741
  %v4752 = vadd.f32 %v4591, %v4742
  %4753 = vrot.lane.b32.xlu0 %v2671, 115
  %v4754 = vpop.permute.xlu0 %4753
  %4755 = vrot.lane.b32.xlu0 %v2672, 115
  %v4756 = vpop.permute.xlu0 %4755
  %4757 = vrot.lane.b32.xlu0 %v2673, 115
  %v4758 = vpop.permute.xlu0 %4757
  %4759 = vrot.lane.b32.xlu0 %v2674, 115
  %v4760 = vpop.permute.xlu0 %4759
  %4761 = vrot.lane.b32.xlu0 %v2675, 115
  %v4762 = vpop.permute.xlu0 %4761
  %4763 = vrot.lane.b32.xlu0 %v2676, 115
  %v4764 = vpop.permute.xlu0 %4763
  %4765 = vrot.lane.b32.xlu0 %v2677, 115
  %v4766 = vpop.permute.xlu0 %4765
  %4767 = vrot.lane.b32.xlu0 %v2678, 115
  %v4768 = vpop.permute.xlu0 %4767
  %4769 = vrot.lane.b32.xlu0 %v2679, 115
  %v4770 = vpop.permute.xlu0 %4769
  %4771 = vrot.lane.b32.xlu0 %v2680, 115
  %v4772 = vpop.permute.xlu0 %4771
  %vm4783 = vcmask 941056
  %v4784 = vsel %vm4783, %v4754, 0.0
  %v4785 = vsel %vm4783, %v4756, 0.0
  %v4786 = vsel %vm4783, %v4758, 0.0
  %v4787 = vsel %vm4783, %v4760, 0.0
  %v4788 = vsel %vm4783, %v4762, 0.0
  %v4789 = vsel %vm4783, %v4764, 0.0
  %v4790 = vsel %vm4783, %v4766, 0.0
  %v4791 = vsel %vm4783, %v4768, 0.0
  %v4792 = vsel %vm4783, %v4770, 0.0
  %v4793 = vsel %vm4783, %v4772, 0.0
  %4794 = vset.pattern.permute.xlu0 13
  %4795 = vperm.xlu0 %4794, %v2661
  %v4796 = vpop.permute.xlu0 %4795
  %4798 = vset.pattern.permute.xlu0 13
  %4799 = vperm.xlu0 %4798, %v2662
  %v4800 = vpop.permute.xlu0 %4799
  %4802 = vset.pattern.permute.xlu0 13
  %4803 = vperm.xlu0 %4802, %v2663
  %v4804 = vpop.permute.xlu0 %4803
  %4806 = vset.pattern.permute.xlu0 13
  %4807 = vperm.xlu0 %4806, %v2664
  %v4808 = vpop.permute.xlu0 %4807
  %4810 = vset.pattern.permute.xlu0 13
  %4811 = vperm.xlu0 %4810, %v2665
  %v4812 = vpop.permute.xlu0 %4811
  %4814 = vset.pattern.permute.xlu0 13
  %4815 = vperm.xlu0 %4814, %v2666
  %v4816 = vpop.permute.xlu0 %4815
  %4818 = vset.pattern.permute.xlu0 13
  %4819 = vperm.xlu0 %4818, %v2667
  %v4820 = vpop.permute.xlu0 %4819
  %4822 = vset.pattern.permute.xlu0 13
  %4823 = vperm.xlu0 %4822, %v2668
  %v4824 = vpop.permute.xlu0 %4823
  %4826 = vset.pattern.permute.xlu0 13
  %4827 = vperm.xlu0 %4826, %v2669
  %v4828 = vpop.permute.xlu0 %4827
  %4830 = vset.pattern.permute.xlu0 13
  %4831 = vperm.xlu0 %4830, %v2670
  %v4832 = vpop.permute.xlu0 %4831
  %v4834 = vmul.f32 %v4784, %v4796
  %v4835 = vmul.f32 %v4785, %v4800
  %v4836 = vmul.f32 %v4786, %v4804
  %v4837 = vmul.f32 %v4787, %v4808
  %v4838 = vmul.f32 %v4788, %v4812
  %v4839 = vmul.f32 %v4789, %v4816
  %v4840 = vmul.f32 %v4790, %v4820
  %v4841 = vmul.f32 %v4791, %v4824
  %v4842 = vmul.f32 %v4792, %v4828
  %v4843 = vmul.f32 %v4793, %v4832
  %v4844 = vadd.f32 %v4683, %v4834
  %v4845 = vadd.f32 %v4684, %v4835
  %v4846 = vadd.f32 %v4685, %v4836
  %v4847 = vadd.f32 %v4686, %v4837
  %v4848 = vadd.f32 %v4687, %v4838
  %v4849 = vadd.f32 %v4688, %v4839
  %v4850 = vadd.f32 %v4689, %v4840
  %v4851 = vadd.f32 %v4690, %v4841
  %v4852 = vadd.f32 %v4691, %v4842
  %v4853 = vadd.f32 %v4692, %v4843
  %4854 = vset.pattern.permute.xlu0 46
  %4855 = vperm.xlu0 %4854, %v2661
  %v4856 = vpop.permute.xlu0 %4855
  %4858 = vset.pattern.permute.xlu0 46
  %4859 = vperm.xlu0 %4858, %v2662
  %v4860 = vpop.permute.xlu0 %4859
  %4862 = vset.pattern.permute.xlu0 46
  %4863 = vperm.xlu0 %4862, %v2663
  %v4864 = vpop.permute.xlu0 %4863
  %4866 = vset.pattern.permute.xlu0 46
  %4867 = vperm.xlu0 %4866, %v2664
  %v4868 = vpop.permute.xlu0 %4867
  %4870 = vset.pattern.permute.xlu0 46
  %4871 = vperm.xlu0 %4870, %v2665
  %v4872 = vpop.permute.xlu0 %4871
  %4874 = vset.pattern.permute.xlu0 46
  %4875 = vperm.xlu0 %4874, %v2666
  %v4876 = vpop.permute.xlu0 %4875
  %4878 = vset.pattern.permute.xlu0 46
  %4879 = vperm.xlu0 %4878, %v2667
  %v4880 = vpop.permute.xlu0 %4879
  %4882 = vset.pattern.permute.xlu0 46
  %4883 = vperm.xlu0 %4882, %v2668
  %v4884 = vpop.permute.xlu0 %4883
  %4886 = vset.pattern.permute.xlu0 46
  %4887 = vperm.xlu0 %4886, %v2669
  %v4888 = vpop.permute.xlu0 %4887
  %4890 = vset.pattern.permute.xlu0 46
  %4891 = vperm.xlu0 %4890, %v2670
  %v4892 = vpop.permute.xlu0 %4891
  %v4894 = vmul.f32 %v4784, %v4856
  %v4895 = vmul.f32 %v4785, %v4860
  %v4896 = vmul.f32 %v4786, %v4864
  %v4897 = vmul.f32 %v4787, %v4868
  %v4898 = vmul.f32 %v4788, %v4872
  %v4899 = vmul.f32 %v4789, %v4876
  %v4900 = vmul.f32 %v4790, %v4880
  %v4901 = vmul.f32 %v4791, %v4884
  %v4902 = vmul.f32 %v4792, %v4888
  %v4903 = vmul.f32 %v4793, %v4892
  %v4904 = vadd.f32 %v4743, %v4894
  %v4905 = vadd.f32 %v4744, %v4895
  %v4906 = vadd.f32 %v4745, %v4896
  %v4907 = vadd.f32 %v4746, %v4897
  %v4908 = vadd.f32 %v4747, %v4898
  %v4909 = vadd.f32 %v4748, %v4899
  %v4910 = vadd.f32 %v4749, %v4900
  %v4911 = vadd.f32 %v4750, %v4901
  %v4912 = vadd.f32 %v4751, %v4902
  %v4913 = vadd.f32 %v4752, %v4903
  %4914 = vrot.lane.b32.xlu0 %v2671, 114
  %v4915 = vpop.permute.xlu0 %4914
  %4916 = vrot.lane.b32.xlu0 %v2672, 114
  %v4917 = vpop.permute.xlu0 %4916
  %4918 = vrot.lane.b32.xlu0 %v2673, 114
  %v4919 = vpop.permute.xlu0 %4918
  %4920 = vrot.lane.b32.xlu0 %v2674, 114
  %v4921 = vpop.permute.xlu0 %4920
  %4922 = vrot.lane.b32.xlu0 %v2675, 114
  %v4923 = vpop.permute.xlu0 %4922
  %4924 = vrot.lane.b32.xlu0 %v2676, 114
  %v4925 = vpop.permute.xlu0 %4924
  %4926 = vrot.lane.b32.xlu0 %v2677, 114
  %v4927 = vpop.permute.xlu0 %4926
  %4928 = vrot.lane.b32.xlu0 %v2678, 114
  %v4929 = vpop.permute.xlu0 %4928
  %4930 = vrot.lane.b32.xlu0 %v2679, 114
  %v4931 = vpop.permute.xlu0 %4930
  %4932 = vrot.lane.b32.xlu0 %v2680, 114
  %v4933 = vpop.permute.xlu0 %4932
  %vm4944 = vcmask 932864
  %v4945 = vsel %vm4944, %v4915, 0.0
  %v4946 = vsel %vm4944, %v4917, 0.0
  %v4947 = vsel %vm4944, %v4919, 0.0
  %v4948 = vsel %vm4944, %v4921, 0.0
  %v4949 = vsel %vm4944, %v4923, 0.0
  %v4950 = vsel %vm4944, %v4925, 0.0
  %v4951 = vsel %vm4944, %v4927, 0.0
  %v4952 = vsel %vm4944, %v4929, 0.0
  %v4953 = vsel %vm4944, %v4931, 0.0
  %v4954 = vsel %vm4944, %v4933, 0.0
  %4955 = vset.pattern.permute.xlu0 14
  %4956 = vperm.xlu0 %4955, %v2661
  %v4957 = vpop.permute.xlu0 %4956
  %4959 = vset.pattern.permute.xlu0 14
  %4960 = vperm.xlu0 %4959, %v2662
  %v4961 = vpop.permute.xlu0 %4960
  %4963 = vset.pattern.permute.xlu0 14
  %4964 = vperm.xlu0 %4963, %v2663
  %v4965 = vpop.permute.xlu0 %4964
  %4967 = vset.pattern.permute.xlu0 14
  %4968 = vperm.xlu0 %4967, %v2664
  %v4969 = vpop.permute.xlu0 %4968
  %4971 = vset.pattern.permute.xlu0 14
  %4972 = vperm.xlu0 %4971, %v2665
  %v4973 = vpop.permute.xlu0 %4972
  %4975 = vset.pattern.permute.xlu0 14
  %4976 = vperm.xlu0 %4975, %v2666
  %v4977 = vpop.permute.xlu0 %4976
  %4979 = vset.pattern.permute.xlu0 14
  %4980 = vperm.xlu0 %4979, %v2667
  %v4981 = vpop.permute.xlu0 %4980
  %4983 = vset.pattern.permute.xlu0 14
  %4984 = vperm.xlu0 %4983, %v2668
  %v4985 = vpop.permute.xlu0 %4984
  %4987 = vset.pattern.permute.xlu0 14
  %4988 = vperm.xlu0 %4987, %v2669
  %v4989 = vpop.permute.xlu0 %4988
  %4991 = vset.pattern.permute.xlu0 14
  %4992 = vperm.xlu0 %4991, %v2670
  %v4993 = vpop.permute.xlu0 %4992
  %v4995 = vmul.f32 %v4945, %v4957
  %v4996 = vmul.f32 %v4946, %v4961
  %v4997 = vmul.f32 %v4947, %v4965
  %v4998 = vmul.f32 %v4948, %v4969
  %v4999 = vmul.f32 %v4949, %v4973
  %v5000 = vmul.f32 %v4950, %v4977
  %v5001 = vmul.f32 %v4951, %v4981
  %v5002 = vmul.f32 %v4952, %v4985
  %v5003 = vmul.f32 %v4953, %v4989
  %v5004 = vmul.f32 %v4954, %v4993
  %v5005 = vadd.f32 %v4844, %v4995
  %v5006 = vadd.f32 %v4845, %v4996
  %v5007 = vadd.f32 %v4846, %v4997
  %v5008 = vadd.f32 %v4847, %v4998
  %v5009 = vadd.f32 %v4848, %v4999
  %v5010 = vadd.f32 %v4849, %v5000
  %v5011 = vadd.f32 %v4850, %v5001
  %v5012 = vadd.f32 %v4851, %v5002
  %v5013 = vadd.f32 %v4852, %v5003
  %v5014 = vadd.f32 %v4853, %v5004
  %5015 = vset.pattern.permute.xlu0 47
  %5016 = vperm.xlu0 %5015, %v2661
  %v5017 = vpop.permute.xlu0 %5016
  %5019 = vset.pattern.permute.xlu0 47
  %5020 = vperm.xlu0 %5019, %v2662
  %v5021 = vpop.permute.xlu0 %5020
  %5023 = vset.pattern.permute.xlu0 47
  %5024 = vperm.xlu0 %5023, %v2663
  %v5025 = vpop.permute.xlu0 %5024
  %5027 = vset.pattern.permute.xlu0 47
  %5028 = vperm.xlu0 %5027, %v2664
  %v5029 = vpop.permute.xlu0 %5028
  %5031 = vset.pattern.permute.xlu0 47
  %5032 = vperm.xlu0 %5031, %v2665
  %v5033 = vpop.permute.xlu0 %5032
  %5035 = vset.pattern.permute.xlu0 47
  %5036 = vperm.xlu0 %5035, %v2666
  %v5037 = vpop.permute.xlu0 %5036
  %5039 = vset.pattern.permute.xlu0 47
  %5040 = vperm.xlu0 %5039, %v2667
  %v5041 = vpop.permute.xlu0 %5040
  %5043 = vset.pattern.permute.xlu0 47
  %5044 = vperm.xlu0 %5043, %v2668
  %v5045 = vpop.permute.xlu0 %5044
  %5047 = vset.pattern.permute.xlu0 47
  %5048 = vperm.xlu0 %5047, %v2669
  %v5049 = vpop.permute.xlu0 %5048
  %5051 = vset.pattern.permute.xlu0 47
  %5052 = vperm.xlu0 %5051, %v2670
  %v5053 = vpop.permute.xlu0 %5052
  %v5055 = vmul.f32 %v4945, %v5017
  %v5056 = vmul.f32 %v4946, %v5021
  %v5057 = vmul.f32 %v4947, %v5025
  %v5058 = vmul.f32 %v4948, %v5029
  %v5059 = vmul.f32 %v4949, %v5033
  %v5060 = vmul.f32 %v4950, %v5037
  %v5061 = vmul.f32 %v4951, %v5041
  %v5062 = vmul.f32 %v4952, %v5045
  %v5063 = vmul.f32 %v4953, %v5049
  %v5064 = vmul.f32 %v4954, %v5053
  %v5065 = vadd.f32 %v4904, %v5055
  %v5066 = vadd.f32 %v4905, %v5056
  %v5067 = vadd.f32 %v4906, %v5057
  %v5068 = vadd.f32 %v4907, %v5058
  %v5069 = vadd.f32 %v4908, %v5059
  %v5070 = vadd.f32 %v4909, %v5060
  %v5071 = vadd.f32 %v4910, %v5061
  %v5072 = vadd.f32 %v4911, %v5062
  %v5073 = vadd.f32 %v4912, %v5063
  %v5074 = vadd.f32 %v4913, %v5064
  %5075 = vrot.lane.b32.xlu0 %v2671, 113
  %v5076 = vpop.permute.xlu0 %5075
  %5077 = vrot.lane.b32.xlu0 %v2672, 113
  %v5078 = vpop.permute.xlu0 %5077
  %5079 = vrot.lane.b32.xlu0 %v2673, 113
  %v5080 = vpop.permute.xlu0 %5079
  %5081 = vrot.lane.b32.xlu0 %v2674, 113
  %v5082 = vpop.permute.xlu0 %5081
  %5083 = vrot.lane.b32.xlu0 %v2675, 113
  %v5084 = vpop.permute.xlu0 %5083
  %5085 = vrot.lane.b32.xlu0 %v2676, 113
  %v5086 = vpop.permute.xlu0 %5085
  %5087 = vrot.lane.b32.xlu0 %v2677, 113
  %v5088 = vpop.permute.xlu0 %5087
  %5089 = vrot.lane.b32.xlu0 %v2678, 113
  %v5090 = vpop.permute.xlu0 %5089
  %5091 = vrot.lane.b32.xlu0 %v2679, 113
  %v5092 = vpop.permute.xlu0 %5091
  %5093 = vrot.lane.b32.xlu0 %v2680, 113
  %v5094 = vpop.permute.xlu0 %5093
  %vm5105 = vcmask 924672
  %v5106 = vsel %vm5105, %v5076, 0.0
  %v5107 = vsel %vm5105, %v5078, 0.0
  %v5108 = vsel %vm5105, %v5080, 0.0
  %v5109 = vsel %vm5105, %v5082, 0.0
  %v5110 = vsel %vm5105, %v5084, 0.0
  %v5111 = vsel %vm5105, %v5086, 0.0
  %v5112 = vsel %vm5105, %v5088, 0.0
  %v5113 = vsel %vm5105, %v5090, 0.0
  %v5114 = vsel %vm5105, %v5092, 0.0
  %v5115 = vsel %vm5105, %v5094, 0.0
  %5116 = vset.pattern.permute.xlu0 15
  %5117 = vperm.xlu0 %5116, %v2661
  %v5118 = vpop.permute.xlu0 %5117
  %5120 = vset.pattern.permute.xlu0 15
  %5121 = vperm.xlu0 %5120, %v2662
  %v5122 = vpop.permute.xlu0 %5121
  %5124 = vset.pattern.permute.xlu0 15
  %5125 = vperm.xlu0 %5124, %v2663
  %v5126 = vpop.permute.xlu0 %5125
  %5128 = vset.pattern.permute.xlu0 15
  %5129 = vperm.xlu0 %5128, %v2664
  %v5130 = vpop.permute.xlu0 %5129
  %5132 = vset.pattern.permute.xlu0 15
  %5133 = vperm.xlu0 %5132, %v2665
  %v5134 = vpop.permute.xlu0 %5133
  %5136 = vset.pattern.permute.xlu0 15
  %5137 = vperm.xlu0 %5136, %v2666
  %v5138 = vpop.permute.xlu0 %5137
  %5140 = vset.pattern.permute.xlu0 15
  %5141 = vperm.xlu0 %5140, %v2667
  %v5142 = vpop.permute.xlu0 %5141
  %5144 = vset.pattern.permute.xlu0 15
  %5145 = vperm.xlu0 %5144, %v2668
  %v5146 = vpop.permute.xlu0 %5145
  %5148 = vset.pattern.permute.xlu0 15
  %5149 = vperm.xlu0 %5148, %v2669
  %v5150 = vpop.permute.xlu0 %5149
  %5152 = vset.pattern.permute.xlu0 15
  %5153 = vperm.xlu0 %5152, %v2670
  %v5154 = vpop.permute.xlu0 %5153
  %v5156 = vmul.f32 %v5106, %v5118
  %v5157 = vmul.f32 %v5107, %v5122
  %v5158 = vmul.f32 %v5108, %v5126
  %v5159 = vmul.f32 %v5109, %v5130
  %v5160 = vmul.f32 %v5110, %v5134
  %v5161 = vmul.f32 %v5111, %v5138
  %v5162 = vmul.f32 %v5112, %v5142
  %v5163 = vmul.f32 %v5113, %v5146
  %v5164 = vmul.f32 %v5114, %v5150
  %v5165 = vmul.f32 %v5115, %v5154
  %v5166 = vadd.f32 %v5005, %v5156
  %v5167 = vadd.f32 %v5006, %v5157
  %v5168 = vadd.f32 %v5007, %v5158
  %v5169 = vadd.f32 %v5008, %v5159
  %v5170 = vadd.f32 %v5009, %v5160
  %v5171 = vadd.f32 %v5010, %v5161
  %v5172 = vadd.f32 %v5011, %v5162
  %v5173 = vadd.f32 %v5012, %v5163
  %v5174 = vadd.f32 %v5013, %v5164
  %v5175 = vadd.f32 %v5014, %v5165
  %5176 = vset.pattern.permute.xlu0 48
  %5177 = vperm.xlu0 %5176, %v2661
  %v5178 = vpop.permute.xlu0 %5177
  %5180 = vset.pattern.permute.xlu0 48
  %5181 = vperm.xlu0 %5180, %v2662
  %v5182 = vpop.permute.xlu0 %5181
  %5184 = vset.pattern.permute.xlu0 48
  %5185 = vperm.xlu0 %5184, %v2663
  %v5186 = vpop.permute.xlu0 %5185
  %5188 = vset.pattern.permute.xlu0 48
  %5189 = vperm.xlu0 %5188, %v2664
  %v5190 = vpop.permute.xlu0 %5189
  %5192 = vset.pattern.permute.xlu0 48
  %5193 = vperm.xlu0 %5192, %v2665
  %v5194 = vpop.permute.xlu0 %5193
  %5196 = vset.pattern.permute.xlu0 48
  %5197 = vperm.xlu0 %5196, %v2666
  %v5198 = vpop.permute.xlu0 %5197
  %5200 = vset.pattern.permute.xlu0 48
  %5201 = vperm.xlu0 %5200, %v2667
  %v5202 = vpop.permute.xlu0 %5201
  %5204 = vset.pattern.permute.xlu0 48
  %5205 = vperm.xlu0 %5204, %v2668
  %v5206 = vpop.permute.xlu0 %5205
  %5208 = vset.pattern.permute.xlu0 48
  %5209 = vperm.xlu0 %5208, %v2669
  %v5210 = vpop.permute.xlu0 %5209
  %5212 = vset.pattern.permute.xlu0 48
  %5213 = vperm.xlu0 %5212, %v2670
  %v5214 = vpop.permute.xlu0 %5213
  %v5216 = vmul.f32 %v5106, %v5178
  %v5217 = vmul.f32 %v5107, %v5182
  %v5218 = vmul.f32 %v5108, %v5186
  %v5219 = vmul.f32 %v5109, %v5190
  %v5220 = vmul.f32 %v5110, %v5194
  %v5221 = vmul.f32 %v5111, %v5198
  %v5222 = vmul.f32 %v5112, %v5202
  %v5223 = vmul.f32 %v5113, %v5206
  %v5224 = vmul.f32 %v5114, %v5210
  %v5225 = vmul.f32 %v5115, %v5214
  %v5226 = vadd.f32 %v5065, %v5216
  %v5227 = vadd.f32 %v5066, %v5217
  %v5228 = vadd.f32 %v5067, %v5218
  %v5229 = vadd.f32 %v5068, %v5219
  %v5230 = vadd.f32 %v5069, %v5220
  %v5231 = vadd.f32 %v5070, %v5221
  %v5232 = vadd.f32 %v5071, %v5222
  %v5233 = vadd.f32 %v5072, %v5223
  %v5234 = vadd.f32 %v5073, %v5224
  %v5235 = vadd.f32 %v5074, %v5225
  %5236 = vrot.lane.b32.xlu0 %v2671, 112
  %v5237 = vpop.permute.xlu0 %5236
  %5238 = vrot.lane.b32.xlu0 %v2672, 112
  %v5239 = vpop.permute.xlu0 %5238
  %5240 = vrot.lane.b32.xlu0 %v2673, 112
  %v5241 = vpop.permute.xlu0 %5240
  %5242 = vrot.lane.b32.xlu0 %v2674, 112
  %v5243 = vpop.permute.xlu0 %5242
  %5244 = vrot.lane.b32.xlu0 %v2675, 112
  %v5245 = vpop.permute.xlu0 %5244
  %5246 = vrot.lane.b32.xlu0 %v2676, 112
  %v5247 = vpop.permute.xlu0 %5246
  %5248 = vrot.lane.b32.xlu0 %v2677, 112
  %v5249 = vpop.permute.xlu0 %5248
  %5250 = vrot.lane.b32.xlu0 %v2678, 112
  %v5251 = vpop.permute.xlu0 %5250
  %5252 = vrot.lane.b32.xlu0 %v2679, 112
  %v5253 = vpop.permute.xlu0 %5252
  %5254 = vrot.lane.b32.xlu0 %v2680, 112
  %v5255 = vpop.permute.xlu0 %5254
  %vm5266 = vcmask 916480
  %v5267 = vsel %vm5266, %v5237, 0.0
  %v5268 = vsel %vm5266, %v5239, 0.0
  %v5269 = vsel %vm5266, %v5241, 0.0
  %v5270 = vsel %vm5266, %v5243, 0.0
  %v5271 = vsel %vm5266, %v5245, 0.0
  %v5272 = vsel %vm5266, %v5247, 0.0
  %v5273 = vsel %vm5266, %v5249, 0.0
  %v5274 = vsel %vm5266, %v5251, 0.0
  %v5275 = vsel %vm5266, %v5253, 0.0
  %v5276 = vsel %vm5266, %v5255, 0.0
  %5277 = vset.pattern.permute.xlu0 16
  %5278 = vperm.xlu0 %5277, %v2661
  %v5279 = vpop.permute.xlu0 %5278
  %5281 = vset.pattern.permute.xlu0 16
  %5282 = vperm.xlu0 %5281, %v2662
  %v5283 = vpop.permute.xlu0 %5282
  %5285 = vset.pattern.permute.xlu0 16
  %5286 = vperm.xlu0 %5285, %v2663
  %v5287 = vpop.permute.xlu0 %5286
  %5289 = vset.pattern.permute.xlu0 16
  %5290 = vperm.xlu0 %5289, %v2664
  %v5291 = vpop.permute.xlu0 %5290
  %5293 = vset.pattern.permute.xlu0 16
  %5294 = vperm.xlu0 %5293, %v2665
  %v5295 = vpop.permute.xlu0 %5294
  %5297 = vset.pattern.permute.xlu0 16
  %5298 = vperm.xlu0 %5297, %v2666
  %v5299 = vpop.permute.xlu0 %5298
  %5301 = vset.pattern.permute.xlu0 16
  %5302 = vperm.xlu0 %5301, %v2667
  %v5303 = vpop.permute.xlu0 %5302
  %5305 = vset.pattern.permute.xlu0 16
  %5306 = vperm.xlu0 %5305, %v2668
  %v5307 = vpop.permute.xlu0 %5306
  %5309 = vset.pattern.permute.xlu0 16
  %5310 = vperm.xlu0 %5309, %v2669
  %v5311 = vpop.permute.xlu0 %5310
  %5313 = vset.pattern.permute.xlu0 16
  %5314 = vperm.xlu0 %5313, %v2670
  %v5315 = vpop.permute.xlu0 %5314
  %v5317 = vmul.f32 %v5267, %v5279
  %v5318 = vmul.f32 %v5268, %v5283
  %v5319 = vmul.f32 %v5269, %v5287
  %v5320 = vmul.f32 %v5270, %v5291
  %v5321 = vmul.f32 %v5271, %v5295
  %v5322 = vmul.f32 %v5272, %v5299
  %v5323 = vmul.f32 %v5273, %v5303
  %v5324 = vmul.f32 %v5274, %v5307
  %v5325 = vmul.f32 %v5275, %v5311
  %v5326 = vmul.f32 %v5276, %v5315
  %v5327 = vadd.f32 %v5166, %v5317
  %v5328 = vadd.f32 %v5167, %v5318
  %v5329 = vadd.f32 %v5168, %v5319
  %v5330 = vadd.f32 %v5169, %v5320
  %v5331 = vadd.f32 %v5170, %v5321
  %v5332 = vadd.f32 %v5171, %v5322
  %v5333 = vadd.f32 %v5172, %v5323
  %v5334 = vadd.f32 %v5173, %v5324
  %v5335 = vadd.f32 %v5174, %v5325
  %v5336 = vadd.f32 %v5175, %v5326
  %5337 = vset.pattern.permute.xlu0 49
  %5338 = vperm.xlu0 %5337, %v2661
  %v5339 = vpop.permute.xlu0 %5338
  %5341 = vset.pattern.permute.xlu0 49
  %5342 = vperm.xlu0 %5341, %v2662
  %v5343 = vpop.permute.xlu0 %5342
  %5345 = vset.pattern.permute.xlu0 49
  %5346 = vperm.xlu0 %5345, %v2663
  %v5347 = vpop.permute.xlu0 %5346
  %5349 = vset.pattern.permute.xlu0 49
  %5350 = vperm.xlu0 %5349, %v2664
  %v5351 = vpop.permute.xlu0 %5350
  %5353 = vset.pattern.permute.xlu0 49
  %5354 = vperm.xlu0 %5353, %v2665
  %v5355 = vpop.permute.xlu0 %5354
  %5357 = vset.pattern.permute.xlu0 49
  %5358 = vperm.xlu0 %5357, %v2666
  %v5359 = vpop.permute.xlu0 %5358
  %5361 = vset.pattern.permute.xlu0 49
  %5362 = vperm.xlu0 %5361, %v2667
  %v5363 = vpop.permute.xlu0 %5362
  %5365 = vset.pattern.permute.xlu0 49
  %5366 = vperm.xlu0 %5365, %v2668
  %v5367 = vpop.permute.xlu0 %5366
  %5369 = vset.pattern.permute.xlu0 49
  %5370 = vperm.xlu0 %5369, %v2669
  %v5371 = vpop.permute.xlu0 %5370
  %5373 = vset.pattern.permute.xlu0 49
  %5374 = vperm.xlu0 %5373, %v2670
  %v5375 = vpop.permute.xlu0 %5374
  %v5377 = vmul.f32 %v5267, %v5339
  %v5378 = vmul.f32 %v5268, %v5343
  %v5379 = vmul.f32 %v5269, %v5347
  %v5380 = vmul.f32 %v5270, %v5351
  %v5381 = vmul.f32 %v5271, %v5355
  %v5382 = vmul.f32 %v5272, %v5359
  %v5383 = vmul.f32 %v5273, %v5363
  %v5384 = vmul.f32 %v5274, %v5367
  %v5385 = vmul.f32 %v5275, %v5371
  %v5386 = vmul.f32 %v5276, %v5375
  %v5387 = vadd.f32 %v5226, %v5377
  %v5388 = vadd.f32 %v5227, %v5378
  %v5389 = vadd.f32 %v5228, %v5379
  %v5390 = vadd.f32 %v5229, %v5380
  %v5391 = vadd.f32 %v5230, %v5381
  %v5392 = vadd.f32 %v5231, %v5382
  %v5393 = vadd.f32 %v5232, %v5383
  %v5394 = vadd.f32 %v5233, %v5384
  %v5395 = vadd.f32 %v5234, %v5385
  %v5396 = vadd.f32 %v5235, %v5386
  %5397 = vrot.lane.b32.xlu0 %v2671, 111
  %v5398 = vpop.permute.xlu0 %5397
  %5399 = vrot.lane.b32.xlu0 %v2672, 111
  %v5400 = vpop.permute.xlu0 %5399
  %5401 = vrot.lane.b32.xlu0 %v2673, 111
  %v5402 = vpop.permute.xlu0 %5401
  %5403 = vrot.lane.b32.xlu0 %v2674, 111
  %v5404 = vpop.permute.xlu0 %5403
  %5405 = vrot.lane.b32.xlu0 %v2675, 111
  %v5406 = vpop.permute.xlu0 %5405
  %5407 = vrot.lane.b32.xlu0 %v2676, 111
  %v5408 = vpop.permute.xlu0 %5407
  %5409 = vrot.lane.b32.xlu0 %v2677, 111
  %v5410 = vpop.permute.xlu0 %5409
  %5411 = vrot.lane.b32.xlu0 %v2678, 111
  %v5412 = vpop.permute.xlu0 %5411
  %5413 = vrot.lane.b32.xlu0 %v2679, 111
  %v5414 = vpop.permute.xlu0 %5413
  %5415 = vrot.lane.b32.xlu0 %v2680, 111
  %v5416 = vpop.permute.xlu0 %5415
  %vm5427 = vcmask 908288
  %v5428 = vsel %vm5427, %v5398, 0.0
  %v5429 = vsel %vm5427, %v5400, 0.0
  %v5430 = vsel %vm5427, %v5402, 0.0
  %v5431 = vsel %vm5427, %v5404, 0.0
  %v5432 = vsel %vm5427, %v5406, 0.0
  %v5433 = vsel %vm5427, %v5408, 0.0
  %v5434 = vsel %vm5427, %v5410, 0.0
  %v5435 = vsel %vm5427, %v5412, 0.0
  %v5436 = vsel %vm5427, %v5414, 0.0
  %v5437 = vsel %vm5427, %v5416, 0.0
  %5438 = vset.pattern.permute.xlu0 17
  %5439 = vperm.xlu0 %5438, %v2661
  %v5440 = vpop.permute.xlu0 %5439
  %5442 = vset.pattern.permute.xlu0 17
  %5443 = vperm.xlu0 %5442, %v2662
  %v5444 = vpop.permute.xlu0 %5443
  %5446 = vset.pattern.permute.xlu0 17
  %5447 = vperm.xlu0 %5446, %v2663
  %v5448 = vpop.permute.xlu0 %5447
  %5450 = vset.pattern.permute.xlu0 17
  %5451 = vperm.xlu0 %5450, %v2664
  %v5452 = vpop.permute.xlu0 %5451
  %5454 = vset.pattern.permute.xlu0 17
  %5455 = vperm.xlu0 %5454, %v2665
  %v5456 = vpop.permute.xlu0 %5455
  %5458 = vset.pattern.permute.xlu0 17
  %5459 = vperm.xlu0 %5458, %v2666
  %v5460 = vpop.permute.xlu0 %5459
  %5462 = vset.pattern.permute.xlu0 17
  %5463 = vperm.xlu0 %5462, %v2667
  %v5464 = vpop.permute.xlu0 %5463
  %5466 = vset.pattern.permute.xlu0 17
  %5467 = vperm.xlu0 %5466, %v2668
  %v5468 = vpop.permute.xlu0 %5467
  %5470 = vset.pattern.permute.xlu0 17
  %5471 = vperm.xlu0 %5470, %v2669
  %v5472 = vpop.permute.xlu0 %5471
  %5474 = vset.pattern.permute.xlu0 17
  %5475 = vperm.xlu0 %5474, %v2670
  %v5476 = vpop.permute.xlu0 %5475
  %v5478 = vmul.f32 %v5428, %v5440
  %v5479 = vmul.f32 %v5429, %v5444
  %v5480 = vmul.f32 %v5430, %v5448
  %v5481 = vmul.f32 %v5431, %v5452
  %v5482 = vmul.f32 %v5432, %v5456
  %v5483 = vmul.f32 %v5433, %v5460
  %v5484 = vmul.f32 %v5434, %v5464
  %v5485 = vmul.f32 %v5435, %v5468
  %v5486 = vmul.f32 %v5436, %v5472
  %v5487 = vmul.f32 %v5437, %v5476
  %v5488 = vadd.f32 %v5327, %v5478
  %v5489 = vadd.f32 %v5328, %v5479
  %v5490 = vadd.f32 %v5329, %v5480
  %v5491 = vadd.f32 %v5330, %v5481
  %v5492 = vadd.f32 %v5331, %v5482
  %v5493 = vadd.f32 %v5332, %v5483
  %v5494 = vadd.f32 %v5333, %v5484
  %v5495 = vadd.f32 %v5334, %v5485
  %v5496 = vadd.f32 %v5335, %v5486
  %v5497 = vadd.f32 %v5336, %v5487
  %5498 = vset.pattern.permute.xlu0 50
  %5499 = vperm.xlu0 %5498, %v2661
  %v5500 = vpop.permute.xlu0 %5499
  %5502 = vset.pattern.permute.xlu0 50
  %5503 = vperm.xlu0 %5502, %v2662
  %v5504 = vpop.permute.xlu0 %5503
  %5506 = vset.pattern.permute.xlu0 50
  %5507 = vperm.xlu0 %5506, %v2663
  %v5508 = vpop.permute.xlu0 %5507
  %5510 = vset.pattern.permute.xlu0 50
  %5511 = vperm.xlu0 %5510, %v2664
  %v5512 = vpop.permute.xlu0 %5511
  %5514 = vset.pattern.permute.xlu0 50
  %5515 = vperm.xlu0 %5514, %v2665
  %v5516 = vpop.permute.xlu0 %5515
  %5518 = vset.pattern.permute.xlu0 50
  %5519 = vperm.xlu0 %5518, %v2666
  %v5520 = vpop.permute.xlu0 %5519
  %5522 = vset.pattern.permute.xlu0 50
  %5523 = vperm.xlu0 %5522, %v2667
  %v5524 = vpop.permute.xlu0 %5523
  %5526 = vset.pattern.permute.xlu0 50
  %5527 = vperm.xlu0 %5526, %v2668
  %v5528 = vpop.permute.xlu0 %5527
  %5530 = vset.pattern.permute.xlu0 50
  %5531 = vperm.xlu0 %5530, %v2669
  %v5532 = vpop.permute.xlu0 %5531
  %5534 = vset.pattern.permute.xlu0 50
  %5535 = vperm.xlu0 %5534, %v2670
  %v5536 = vpop.permute.xlu0 %5535
  %v5538 = vmul.f32 %v5428, %v5500
  %v5539 = vmul.f32 %v5429, %v5504
  %v5540 = vmul.f32 %v5430, %v5508
  %v5541 = vmul.f32 %v5431, %v5512
  %v5542 = vmul.f32 %v5432, %v5516
  %v5543 = vmul.f32 %v5433, %v5520
  %v5544 = vmul.f32 %v5434, %v5524
  %v5545 = vmul.f32 %v5435, %v5528
  %v5546 = vmul.f32 %v5436, %v5532
  %v5547 = vmul.f32 %v5437, %v5536
  %v5548 = vadd.f32 %v5387, %v5538
  %v5549 = vadd.f32 %v5388, %v5539
  %v5550 = vadd.f32 %v5389, %v5540
  %v5551 = vadd.f32 %v5390, %v5541
  %v5552 = vadd.f32 %v5391, %v5542
  %v5553 = vadd.f32 %v5392, %v5543
  %v5554 = vadd.f32 %v5393, %v5544
  %v5555 = vadd.f32 %v5394, %v5545
  %v5556 = vadd.f32 %v5395, %v5546
  %v5557 = vadd.f32 %v5396, %v5547
  %5558 = vrot.lane.b32.xlu0 %v2671, 110
  %v5559 = vpop.permute.xlu0 %5558
  %5560 = vrot.lane.b32.xlu0 %v2672, 110
  %v5561 = vpop.permute.xlu0 %5560
  %5562 = vrot.lane.b32.xlu0 %v2673, 110
  %v5563 = vpop.permute.xlu0 %5562
  %5564 = vrot.lane.b32.xlu0 %v2674, 110
  %v5565 = vpop.permute.xlu0 %5564
  %5566 = vrot.lane.b32.xlu0 %v2675, 110
  %v5567 = vpop.permute.xlu0 %5566
  %5568 = vrot.lane.b32.xlu0 %v2676, 110
  %v5569 = vpop.permute.xlu0 %5568
  %5570 = vrot.lane.b32.xlu0 %v2677, 110
  %v5571 = vpop.permute.xlu0 %5570
  %5572 = vrot.lane.b32.xlu0 %v2678, 110
  %v5573 = vpop.permute.xlu0 %5572
  %5574 = vrot.lane.b32.xlu0 %v2679, 110
  %v5575 = vpop.permute.xlu0 %5574
  %5576 = vrot.lane.b32.xlu0 %v2680, 110
  %v5577 = vpop.permute.xlu0 %5576
  %vm5588 = vcmask 900096
  %v5589 = vsel %vm5588, %v5559, 0.0
  %v5590 = vsel %vm5588, %v5561, 0.0
  %v5591 = vsel %vm5588, %v5563, 0.0
  %v5592 = vsel %vm5588, %v5565, 0.0
  %v5593 = vsel %vm5588, %v5567, 0.0
  %v5594 = vsel %vm5588, %v5569, 0.0
  %v5595 = vsel %vm5588, %v5571, 0.0
  %v5596 = vsel %vm5588, %v5573, 0.0
  %v5597 = vsel %vm5588, %v5575, 0.0
  %v5598 = vsel %vm5588, %v5577, 0.0
  %5599 = vset.pattern.permute.xlu0 18
  %5600 = vperm.xlu0 %5599, %v2661
  %v5601 = vpop.permute.xlu0 %5600
  %5603 = vset.pattern.permute.xlu0 18
  %5604 = vperm.xlu0 %5603, %v2662
  %v5605 = vpop.permute.xlu0 %5604
  %5607 = vset.pattern.permute.xlu0 18
  %5608 = vperm.xlu0 %5607, %v2663
  %v5609 = vpop.permute.xlu0 %5608
  %5611 = vset.pattern.permute.xlu0 18
  %5612 = vperm.xlu0 %5611, %v2664
  %v5613 = vpop.permute.xlu0 %5612
  %5615 = vset.pattern.permute.xlu0 18
  %5616 = vperm.xlu0 %5615, %v2665
  %v5617 = vpop.permute.xlu0 %5616
  %5619 = vset.pattern.permute.xlu0 18
  %5620 = vperm.xlu0 %5619, %v2666
  %v5621 = vpop.permute.xlu0 %5620
  %5623 = vset.pattern.permute.xlu0 18
  %5624 = vperm.xlu0 %5623, %v2667
  %v5625 = vpop.permute.xlu0 %5624
  %5627 = vset.pattern.permute.xlu0 18
  %5628 = vperm.xlu0 %5627, %v2668
  %v5629 = vpop.permute.xlu0 %5628
  %5631 = vset.pattern.permute.xlu0 18
  %5632 = vperm.xlu0 %5631, %v2669
  %v5633 = vpop.permute.xlu0 %5632
  %5635 = vset.pattern.permute.xlu0 18
  %5636 = vperm.xlu0 %5635, %v2670
  %v5637 = vpop.permute.xlu0 %5636
  %v5639 = vmul.f32 %v5589, %v5601
  %v5640 = vmul.f32 %v5590, %v5605
  %v5641 = vmul.f32 %v5591, %v5609
  %v5642 = vmul.f32 %v5592, %v5613
  %v5643 = vmul.f32 %v5593, %v5617
  %v5644 = vmul.f32 %v5594, %v5621
  %v5645 = vmul.f32 %v5595, %v5625
  %v5646 = vmul.f32 %v5596, %v5629
  %v5647 = vmul.f32 %v5597, %v5633
  %v5648 = vmul.f32 %v5598, %v5637
  %v5649 = vadd.f32 %v5488, %v5639
  %v5650 = vadd.f32 %v5489, %v5640
  %v5651 = vadd.f32 %v5490, %v5641
  %v5652 = vadd.f32 %v5491, %v5642
  %v5653 = vadd.f32 %v5492, %v5643
  %v5654 = vadd.f32 %v5493, %v5644
  %v5655 = vadd.f32 %v5494, %v5645
  %v5656 = vadd.f32 %v5495, %v5646
  %v5657 = vadd.f32 %v5496, %v5647
  %v5658 = vadd.f32 %v5497, %v5648
  %5659 = vset.pattern.permute.xlu0 51
  %5660 = vperm.xlu0 %5659, %v2661
  %v5661 = vpop.permute.xlu0 %5660
  %5663 = vset.pattern.permute.xlu0 51
  %5664 = vperm.xlu0 %5663, %v2662
  %v5665 = vpop.permute.xlu0 %5664
  %5667 = vset.pattern.permute.xlu0 51
  %5668 = vperm.xlu0 %5667, %v2663
  %v5669 = vpop.permute.xlu0 %5668
  %5671 = vset.pattern.permute.xlu0 51
  %5672 = vperm.xlu0 %5671, %v2664
  %v5673 = vpop.permute.xlu0 %5672
  %5675 = vset.pattern.permute.xlu0 51
  %5676 = vperm.xlu0 %5675, %v2665
  %v5677 = vpop.permute.xlu0 %5676
  %5679 = vset.pattern.permute.xlu0 51
  %5680 = vperm.xlu0 %5679, %v2666
  %v5681 = vpop.permute.xlu0 %5680
  %5683 = vset.pattern.permute.xlu0 51
  %5684 = vperm.xlu0 %5683, %v2667
  %v5685 = vpop.permute.xlu0 %5684
  %5687 = vset.pattern.permute.xlu0 51
  %5688 = vperm.xlu0 %5687, %v2668
  %v5689 = vpop.permute.xlu0 %5688
  %5691 = vset.pattern.permute.xlu0 51
  %5692 = vperm.xlu0 %5691, %v2669
  %v5693 = vpop.permute.xlu0 %5692
  %5695 = vset.pattern.permute.xlu0 51
  %5696 = vperm.xlu0 %5695, %v2670
  %v5697 = vpop.permute.xlu0 %5696
  %v5699 = vmul.f32 %v5589, %v5661
  %v5700 = vmul.f32 %v5590, %v5665
  %v5701 = vmul.f32 %v5591, %v5669
  %v5702 = vmul.f32 %v5592, %v5673
  %v5703 = vmul.f32 %v5593, %v5677
  %v5704 = vmul.f32 %v5594, %v5681
  %v5705 = vmul.f32 %v5595, %v5685
  %v5706 = vmul.f32 %v5596, %v5689
  %v5707 = vmul.f32 %v5597, %v5693
  %v5708 = vmul.f32 %v5598, %v5697
  %v5709 = vadd.f32 %v5548, %v5699
  %v5710 = vadd.f32 %v5549, %v5700
  %v5711 = vadd.f32 %v5550, %v5701
  %v5712 = vadd.f32 %v5551, %v5702
  %v5713 = vadd.f32 %v5552, %v5703
  %v5714 = vadd.f32 %v5553, %v5704
  %v5715 = vadd.f32 %v5554, %v5705
  %v5716 = vadd.f32 %v5555, %v5706
  %v5717 = vadd.f32 %v5556, %v5707
  %v5718 = vadd.f32 %v5557, %v5708
  %5719 = vrot.lane.b32.xlu0 %v2671, 109
  %v5720 = vpop.permute.xlu0 %5719
  %5721 = vrot.lane.b32.xlu0 %v2672, 109
  %v5722 = vpop.permute.xlu0 %5721
  %5723 = vrot.lane.b32.xlu0 %v2673, 109
  %v5724 = vpop.permute.xlu0 %5723
  %5725 = vrot.lane.b32.xlu0 %v2674, 109
  %v5726 = vpop.permute.xlu0 %5725
  %5727 = vrot.lane.b32.xlu0 %v2675, 109
  %v5728 = vpop.permute.xlu0 %5727
  %5729 = vrot.lane.b32.xlu0 %v2676, 109
  %v5730 = vpop.permute.xlu0 %5729
  %5731 = vrot.lane.b32.xlu0 %v2677, 109
  %v5732 = vpop.permute.xlu0 %5731
  %5733 = vrot.lane.b32.xlu0 %v2678, 109
  %v5734 = vpop.permute.xlu0 %5733
  %5735 = vrot.lane.b32.xlu0 %v2679, 109
  %v5736 = vpop.permute.xlu0 %5735
  %5737 = vrot.lane.b32.xlu0 %v2680, 109
  %v5738 = vpop.permute.xlu0 %5737
  %vm5749 = vcmask 891904
  %v5750 = vsel %vm5749, %v5720, 0.0
  %v5751 = vsel %vm5749, %v5722, 0.0
  %v5752 = vsel %vm5749, %v5724, 0.0
  %v5753 = vsel %vm5749, %v5726, 0.0
  %v5754 = vsel %vm5749, %v5728, 0.0
  %v5755 = vsel %vm5749, %v5730, 0.0
  %v5756 = vsel %vm5749, %v5732, 0.0
  %v5757 = vsel %vm5749, %v5734, 0.0
  %v5758 = vsel %vm5749, %v5736, 0.0
  %v5759 = vsel %vm5749, %v5738, 0.0
  %5760 = vset.pattern.permute.xlu0 19
  %5761 = vperm.xlu0 %5760, %v2661
  %v5762 = vpop.permute.xlu0 %5761
  %5764 = vset.pattern.permute.xlu0 19
  %5765 = vperm.xlu0 %5764, %v2662
  %v5766 = vpop.permute.xlu0 %5765
  %5768 = vset.pattern.permute.xlu0 19
  %5769 = vperm.xlu0 %5768, %v2663
  %v5770 = vpop.permute.xlu0 %5769
  %5772 = vset.pattern.permute.xlu0 19
  %5773 = vperm.xlu0 %5772, %v2664
  %v5774 = vpop.permute.xlu0 %5773
  %5776 = vset.pattern.permute.xlu0 19
  %5777 = vperm.xlu0 %5776, %v2665
  %v5778 = vpop.permute.xlu0 %5777
  %5780 = vset.pattern.permute.xlu0 19
  %5781 = vperm.xlu0 %5780, %v2666
  %v5782 = vpop.permute.xlu0 %5781
  %5784 = vset.pattern.permute.xlu0 19
  %5785 = vperm.xlu0 %5784, %v2667
  %v5786 = vpop.permute.xlu0 %5785
  %5788 = vset.pattern.permute.xlu0 19
  %5789 = vperm.xlu0 %5788, %v2668
  %v5790 = vpop.permute.xlu0 %5789
  %5792 = vset.pattern.permute.xlu0 19
  %5793 = vperm.xlu0 %5792, %v2669
  %v5794 = vpop.permute.xlu0 %5793
  %5796 = vset.pattern.permute.xlu0 19
  %5797 = vperm.xlu0 %5796, %v2670
  %v5798 = vpop.permute.xlu0 %5797
  %v5800 = vmul.f32 %v5750, %v5762
  %v5801 = vmul.f32 %v5751, %v5766
  %v5802 = vmul.f32 %v5752, %v5770
  %v5803 = vmul.f32 %v5753, %v5774
  %v5804 = vmul.f32 %v5754, %v5778
  %v5805 = vmul.f32 %v5755, %v5782
  %v5806 = vmul.f32 %v5756, %v5786
  %v5807 = vmul.f32 %v5757, %v5790
  %v5808 = vmul.f32 %v5758, %v5794
  %v5809 = vmul.f32 %v5759, %v5798
  %v5810 = vadd.f32 %v5649, %v5800
  %v5811 = vadd.f32 %v5650, %v5801
  %v5812 = vadd.f32 %v5651, %v5802
  %v5813 = vadd.f32 %v5652, %v5803
  %v5814 = vadd.f32 %v5653, %v5804
  %v5815 = vadd.f32 %v5654, %v5805
  %v5816 = vadd.f32 %v5655, %v5806
  %v5817 = vadd.f32 %v5656, %v5807
  %v5818 = vadd.f32 %v5657, %v5808
  %v5819 = vadd.f32 %v5658, %v5809
  %5820 = vset.pattern.permute.xlu0 52
  %5821 = vperm.xlu0 %5820, %v2661
  %v5822 = vpop.permute.xlu0 %5821
  %5824 = vset.pattern.permute.xlu0 52
  %5825 = vperm.xlu0 %5824, %v2662
  %v5826 = vpop.permute.xlu0 %5825
  %5828 = vset.pattern.permute.xlu0 52
  %5829 = vperm.xlu0 %5828, %v2663
  %v5830 = vpop.permute.xlu0 %5829
  %5832 = vset.pattern.permute.xlu0 52
  %5833 = vperm.xlu0 %5832, %v2664
  %v5834 = vpop.permute.xlu0 %5833
  %5836 = vset.pattern.permute.xlu0 52
  %5837 = vperm.xlu0 %5836, %v2665
  %v5838 = vpop.permute.xlu0 %5837
  %5840 = vset.pattern.permute.xlu0 52
  %5841 = vperm.xlu0 %5840, %v2666
  %v5842 = vpop.permute.xlu0 %5841
  %5844 = vset.pattern.permute.xlu0 52
  %5845 = vperm.xlu0 %5844, %v2667
  %v5846 = vpop.permute.xlu0 %5845
  %5848 = vset.pattern.permute.xlu0 52
  %5849 = vperm.xlu0 %5848, %v2668
  %v5850 = vpop.permute.xlu0 %5849
  %5852 = vset.pattern.permute.xlu0 52
  %5853 = vperm.xlu0 %5852, %v2669
  %v5854 = vpop.permute.xlu0 %5853
  %5856 = vset.pattern.permute.xlu0 52
  %5857 = vperm.xlu0 %5856, %v2670
  %v5858 = vpop.permute.xlu0 %5857
  %v5860 = vmul.f32 %v5750, %v5822
  %v5861 = vmul.f32 %v5751, %v5826
  %v5862 = vmul.f32 %v5752, %v5830
  %v5863 = vmul.f32 %v5753, %v5834
  %v5864 = vmul.f32 %v5754, %v5838
  %v5865 = vmul.f32 %v5755, %v5842
  %v5866 = vmul.f32 %v5756, %v5846
  %v5867 = vmul.f32 %v5757, %v5850
  %v5868 = vmul.f32 %v5758, %v5854
  %v5869 = vmul.f32 %v5759, %v5858
  %v5870 = vadd.f32 %v5709, %v5860
  %v5871 = vadd.f32 %v5710, %v5861
  %v5872 = vadd.f32 %v5711, %v5862
  %v5873 = vadd.f32 %v5712, %v5863
  %v5874 = vadd.f32 %v5713, %v5864
  %v5875 = vadd.f32 %v5714, %v5865
  %v5876 = vadd.f32 %v5715, %v5866
  %v5877 = vadd.f32 %v5716, %v5867
  %v5878 = vadd.f32 %v5717, %v5868
  %v5879 = vadd.f32 %v5718, %v5869
  %5880 = vrot.lane.b32.xlu0 %v2671, 108
  %v5881 = vpop.permute.xlu0 %5880
  %5882 = vrot.lane.b32.xlu0 %v2672, 108
  %v5883 = vpop.permute.xlu0 %5882
  %5884 = vrot.lane.b32.xlu0 %v2673, 108
  %v5885 = vpop.permute.xlu0 %5884
  %5886 = vrot.lane.b32.xlu0 %v2674, 108
  %v5887 = vpop.permute.xlu0 %5886
  %5888 = vrot.lane.b32.xlu0 %v2675, 108
  %v5889 = vpop.permute.xlu0 %5888
  %5890 = vrot.lane.b32.xlu0 %v2676, 108
  %v5891 = vpop.permute.xlu0 %5890
  %5892 = vrot.lane.b32.xlu0 %v2677, 108
  %v5893 = vpop.permute.xlu0 %5892
  %5894 = vrot.lane.b32.xlu0 %v2678, 108
  %v5895 = vpop.permute.xlu0 %5894
  %5896 = vrot.lane.b32.xlu0 %v2679, 108
  %v5897 = vpop.permute.xlu0 %5896
  %5898 = vrot.lane.b32.xlu0 %v2680, 108
  %v5899 = vpop.permute.xlu0 %5898
  %vm5910 = vcmask 883712
  %v5911 = vsel %vm5910, %v5881, 0.0
  %v5912 = vsel %vm5910, %v5883, 0.0
  %v5913 = vsel %vm5910, %v5885, 0.0
  %v5914 = vsel %vm5910, %v5887, 0.0
  %v5915 = vsel %vm5910, %v5889, 0.0
  %v5916 = vsel %vm5910, %v5891, 0.0
  %v5917 = vsel %vm5910, %v5893, 0.0
  %v5918 = vsel %vm5910, %v5895, 0.0
  %v5919 = vsel %vm5910, %v5897, 0.0
  %v5920 = vsel %vm5910, %v5899, 0.0
  %5921 = vset.pattern.permute.xlu0 20
  %5922 = vperm.xlu0 %5921, %v2661
  %v5923 = vpop.permute.xlu0 %5922
  %5925 = vset.pattern.permute.xlu0 20
  %5926 = vperm.xlu0 %5925, %v2662
  %v5927 = vpop.permute.xlu0 %5926
  %5929 = vset.pattern.permute.xlu0 20
  %5930 = vperm.xlu0 %5929, %v2663
  %v5931 = vpop.permute.xlu0 %5930
  %5933 = vset.pattern.permute.xlu0 20
  %5934 = vperm.xlu0 %5933, %v2664
  %v5935 = vpop.permute.xlu0 %5934
  %5937 = vset.pattern.permute.xlu0 20
  %5938 = vperm.xlu0 %5937, %v2665
  %v5939 = vpop.permute.xlu0 %5938
  %5941 = vset.pattern.permute.xlu0 20
  %5942 = vperm.xlu0 %5941, %v2666
  %v5943 = vpop.permute.xlu0 %5942
  %5945 = vset.pattern.permute.xlu0 20
  %5946 = vperm.xlu0 %5945, %v2667
  %v5947 = vpop.permute.xlu0 %5946
  %5949 = vset.pattern.permute.xlu0 20
  %5950 = vperm.xlu0 %5949, %v2668
  %v5951 = vpop.permute.xlu0 %5950
  %5953 = vset.pattern.permute.xlu0 20
  %5954 = vperm.xlu0 %5953, %v2669
  %v5955 = vpop.permute.xlu0 %5954
  %5957 = vset.pattern.permute.xlu0 20
  %5958 = vperm.xlu0 %5957, %v2670
  %v5959 = vpop.permute.xlu0 %5958
  %v5961 = vmul.f32 %v5911, %v5923
  %v5962 = vmul.f32 %v5912, %v5927
  %v5963 = vmul.f32 %v5913, %v5931
  %v5964 = vmul.f32 %v5914, %v5935
  %v5965 = vmul.f32 %v5915, %v5939
  %v5966 = vmul.f32 %v5916, %v5943
  %v5967 = vmul.f32 %v5917, %v5947
  %v5968 = vmul.f32 %v5918, %v5951
  %v5969 = vmul.f32 %v5919, %v5955
  %v5970 = vmul.f32 %v5920, %v5959
  %v5971 = vadd.f32 %v5810, %v5961
  %v5972 = vadd.f32 %v5811, %v5962
  %v5973 = vadd.f32 %v5812, %v5963
  %v5974 = vadd.f32 %v5813, %v5964
  %v5975 = vadd.f32 %v5814, %v5965
  %v5976 = vadd.f32 %v5815, %v5966
  %v5977 = vadd.f32 %v5816, %v5967
  %v5978 = vadd.f32 %v5817, %v5968
  %v5979 = vadd.f32 %v5818, %v5969
  %v5980 = vadd.f32 %v5819, %v5970
  %5981 = vset.pattern.permute.xlu0 53
  %5982 = vperm.xlu0 %5981, %v2661
  %v5983 = vpop.permute.xlu0 %5982
  %5985 = vset.pattern.permute.xlu0 53
  %5986 = vperm.xlu0 %5985, %v2662
  %v5987 = vpop.permute.xlu0 %5986
  %5989 = vset.pattern.permute.xlu0 53
  %5990 = vperm.xlu0 %5989, %v2663
  %v5991 = vpop.permute.xlu0 %5990
  %5993 = vset.pattern.permute.xlu0 53
  %5994 = vperm.xlu0 %5993, %v2664
  %v5995 = vpop.permute.xlu0 %5994
  %5997 = vset.pattern.permute.xlu0 53
  %5998 = vperm.xlu0 %5997, %v2665
  %v5999 = vpop.permute.xlu0 %5998
  %6001 = vset.pattern.permute.xlu0 53
  %6002 = vperm.xlu0 %6001, %v2666
  %v6003 = vpop.permute.xlu0 %6002
  %6005 = vset.pattern.permute.xlu0 53
  %6006 = vperm.xlu0 %6005, %v2667
  %v6007 = vpop.permute.xlu0 %6006
  %6009 = vset.pattern.permute.xlu0 53
  %6010 = vperm.xlu0 %6009, %v2668
  %v6011 = vpop.permute.xlu0 %6010
  %6013 = vset.pattern.permute.xlu0 53
  %6014 = vperm.xlu0 %6013, %v2669
  %v6015 = vpop.permute.xlu0 %6014
  %6017 = vset.pattern.permute.xlu0 53
  %6018 = vperm.xlu0 %6017, %v2670
  %v6019 = vpop.permute.xlu0 %6018
  %v6021 = vmul.f32 %v5911, %v5983
  %v6022 = vmul.f32 %v5912, %v5987
  %v6023 = vmul.f32 %v5913, %v5991
  %v6024 = vmul.f32 %v5914, %v5995
  %v6025 = vmul.f32 %v5915, %v5999
  %v6026 = vmul.f32 %v5916, %v6003
  %v6027 = vmul.f32 %v5917, %v6007
  %v6028 = vmul.f32 %v5918, %v6011
  %v6029 = vmul.f32 %v5919, %v6015
  %v6030 = vmul.f32 %v5920, %v6019
  %v6031 = vadd.f32 %v5870, %v6021
  %v6032 = vadd.f32 %v5871, %v6022
  %v6033 = vadd.f32 %v5872, %v6023
  %v6034 = vadd.f32 %v5873, %v6024
  %v6035 = vadd.f32 %v5874, %v6025
  %v6036 = vadd.f32 %v5875, %v6026
  %v6037 = vadd.f32 %v5876, %v6027
  %v6038 = vadd.f32 %v5877, %v6028
  %v6039 = vadd.f32 %v5878, %v6029
  %v6040 = vadd.f32 %v5879, %v6030
  %6041 = vrot.lane.b32.xlu0 %v2671, 107
  %v6042 = vpop.permute.xlu0 %6041
  %6043 = vrot.lane.b32.xlu0 %v2672, 107
  %v6044 = vpop.permute.xlu0 %6043
  %6045 = vrot.lane.b32.xlu0 %v2673, 107
  %v6046 = vpop.permute.xlu0 %6045
  %6047 = vrot.lane.b32.xlu0 %v2674, 107
  %v6048 = vpop.permute.xlu0 %6047
  %6049 = vrot.lane.b32.xlu0 %v2675, 107
  %v6050 = vpop.permute.xlu0 %6049
  %6051 = vrot.lane.b32.xlu0 %v2676, 107
  %v6052 = vpop.permute.xlu0 %6051
  %6053 = vrot.lane.b32.xlu0 %v2677, 107
  %v6054 = vpop.permute.xlu0 %6053
  %6055 = vrot.lane.b32.xlu0 %v2678, 107
  %v6056 = vpop.permute.xlu0 %6055
  %6057 = vrot.lane.b32.xlu0 %v2679, 107
  %v6058 = vpop.permute.xlu0 %6057
  %6059 = vrot.lane.b32.xlu0 %v2680, 107
  %v6060 = vpop.permute.xlu0 %6059
  %vm6071 = vcmask 875520
  %v6072 = vsel %vm6071, %v6042, 0.0
  %v6073 = vsel %vm6071, %v6044, 0.0
  %v6074 = vsel %vm6071, %v6046, 0.0
  %v6075 = vsel %vm6071, %v6048, 0.0
  %v6076 = vsel %vm6071, %v6050, 0.0
  %v6077 = vsel %vm6071, %v6052, 0.0
  %v6078 = vsel %vm6071, %v6054, 0.0
  %v6079 = vsel %vm6071, %v6056, 0.0
  %v6080 = vsel %vm6071, %v6058, 0.0
  %v6081 = vsel %vm6071, %v6060, 0.0
  %6082 = vset.pattern.permute.xlu0 21
  %6083 = vperm.xlu0 %6082, %v2661
  %v6084 = vpop.permute.xlu0 %6083
  %6086 = vset.pattern.permute.xlu0 21
  %6087 = vperm.xlu0 %6086, %v2662
  %v6088 = vpop.permute.xlu0 %6087
  %6090 = vset.pattern.permute.xlu0 21
  %6091 = vperm.xlu0 %6090, %v2663
  %v6092 = vpop.permute.xlu0 %6091
  %6094 = vset.pattern.permute.xlu0 21
  %6095 = vperm.xlu0 %6094, %v2664
  %v6096 = vpop.permute.xlu0 %6095
  %6098 = vset.pattern.permute.xlu0 21
  %6099 = vperm.xlu0 %6098, %v2665
  %v6100 = vpop.permute.xlu0 %6099
  %6102 = vset.pattern.permute.xlu0 21
  %6103 = vperm.xlu0 %6102, %v2666
  %v6104 = vpop.permute.xlu0 %6103
  %6106 = vset.pattern.permute.xlu0 21
  %6107 = vperm.xlu0 %6106, %v2667
  %v6108 = vpop.permute.xlu0 %6107
  %6110 = vset.pattern.permute.xlu0 21
  %6111 = vperm.xlu0 %6110, %v2668
  %v6112 = vpop.permute.xlu0 %6111
  %6114 = vset.pattern.permute.xlu0 21
  %6115 = vperm.xlu0 %6114, %v2669
  %v6116 = vpop.permute.xlu0 %6115
  %6118 = vset.pattern.permute.xlu0 21
  %6119 = vperm.xlu0 %6118, %v2670
  %v6120 = vpop.permute.xlu0 %6119
  %v6122 = vmul.f32 %v6072, %v6084
  %v6123 = vmul.f32 %v6073, %v6088
  %v6124 = vmul.f32 %v6074, %v6092
  %v6125 = vmul.f32 %v6075, %v6096
  %v6126 = vmul.f32 %v6076, %v6100
  %v6127 = vmul.f32 %v6077, %v6104
  %v6128 = vmul.f32 %v6078, %v6108
  %v6129 = vmul.f32 %v6079, %v6112
  %v6130 = vmul.f32 %v6080, %v6116
  %v6131 = vmul.f32 %v6081, %v6120
  %v6132 = vadd.f32 %v5971, %v6122
  %v6133 = vadd.f32 %v5972, %v6123
  %v6134 = vadd.f32 %v5973, %v6124
  %v6135 = vadd.f32 %v5974, %v6125
  %v6136 = vadd.f32 %v5975, %v6126
  %v6137 = vadd.f32 %v5976, %v6127
  %v6138 = vadd.f32 %v5977, %v6128
  %v6139 = vadd.f32 %v5978, %v6129
  %v6140 = vadd.f32 %v5979, %v6130
  %v6141 = vadd.f32 %v5980, %v6131
  %6142 = vset.pattern.permute.xlu0 54
  %6143 = vperm.xlu0 %6142, %v2661
  %v6144 = vpop.permute.xlu0 %6143
  %6146 = vset.pattern.permute.xlu0 54
  %6147 = vperm.xlu0 %6146, %v2662
  %v6148 = vpop.permute.xlu0 %6147
  %6150 = vset.pattern.permute.xlu0 54
  %6151 = vperm.xlu0 %6150, %v2663
  %v6152 = vpop.permute.xlu0 %6151
  %6154 = vset.pattern.permute.xlu0 54
  %6155 = vperm.xlu0 %6154, %v2664
  %v6156 = vpop.permute.xlu0 %6155
  %6158 = vset.pattern.permute.xlu0 54
  %6159 = vperm.xlu0 %6158, %v2665
  %v6160 = vpop.permute.xlu0 %6159
  %6162 = vset.pattern.permute.xlu0 54
  %6163 = vperm.xlu0 %6162, %v2666
  %v6164 = vpop.permute.xlu0 %6163
  %6166 = vset.pattern.permute.xlu0 54
  %6167 = vperm.xlu0 %6166, %v2667
  %v6168 = vpop.permute.xlu0 %6167
  %6170 = vset.pattern.permute.xlu0 54
  %6171 = vperm.xlu0 %6170, %v2668
  %v6172 = vpop.permute.xlu0 %6171
  %6174 = vset.pattern.permute.xlu0 54
  %6175 = vperm.xlu0 %6174, %v2669
  %v6176 = vpop.permute.xlu0 %6175
  %6178 = vset.pattern.permute.xlu0 54
  %6179 = vperm.xlu0 %6178, %v2670
  %v6180 = vpop.permute.xlu0 %6179
  %v6182 = vmul.f32 %v6072, %v6144
  %v6183 = vmul.f32 %v6073, %v6148
  %v6184 = vmul.f32 %v6074, %v6152
  %v6185 = vmul.f32 %v6075, %v6156
  %v6186 = vmul.f32 %v6076, %v6160
  %v6187 = vmul.f32 %v6077, %v6164
  %v6188 = vmul.f32 %v6078, %v6168
  %v6189 = vmul.f32 %v6079, %v6172
  %v6190 = vmul.f32 %v6080, %v6176
  %v6191 = vmul.f32 %v6081, %v6180
  %v6192 = vadd.f32 %v6031, %v6182
  %v6193 = vadd.f32 %v6032, %v6183
  %v6194 = vadd.f32 %v6033, %v6184
  %v6195 = vadd.f32 %v6034, %v6185
  %v6196 = vadd.f32 %v6035, %v6186
  %v6197 = vadd.f32 %v6036, %v6187
  %v6198 = vadd.f32 %v6037, %v6188
  %v6199 = vadd.f32 %v6038, %v6189
  %v6200 = vadd.f32 %v6039, %v6190
  %v6201 = vadd.f32 %v6040, %v6191
  %6202 = vrot.lane.b32.xlu0 %v2671, 106
  %v6203 = vpop.permute.xlu0 %6202
  %6204 = vrot.lane.b32.xlu0 %v2672, 106
  %v6205 = vpop.permute.xlu0 %6204
  %6206 = vrot.lane.b32.xlu0 %v2673, 106
  %v6207 = vpop.permute.xlu0 %6206
  %6208 = vrot.lane.b32.xlu0 %v2674, 106
  %v6209 = vpop.permute.xlu0 %6208
  %6210 = vrot.lane.b32.xlu0 %v2675, 106
  %v6211 = vpop.permute.xlu0 %6210
  %6212 = vrot.lane.b32.xlu0 %v2676, 106
  %v6213 = vpop.permute.xlu0 %6212
  %6214 = vrot.lane.b32.xlu0 %v2677, 106
  %v6215 = vpop.permute.xlu0 %6214
  %6216 = vrot.lane.b32.xlu0 %v2678, 106
  %v6217 = vpop.permute.xlu0 %6216
  %6218 = vrot.lane.b32.xlu0 %v2679, 106
  %v6219 = vpop.permute.xlu0 %6218
  %6220 = vrot.lane.b32.xlu0 %v2680, 106
  %v6221 = vpop.permute.xlu0 %6220
  %vm6232 = vcmask 867328
  %v6233 = vsel %vm6232, %v6203, 0.0
  %v6234 = vsel %vm6232, %v6205, 0.0
  %v6235 = vsel %vm6232, %v6207, 0.0
  %v6236 = vsel %vm6232, %v6209, 0.0
  %v6237 = vsel %vm6232, %v6211, 0.0
  %v6238 = vsel %vm6232, %v6213, 0.0
  %v6239 = vsel %vm6232, %v6215, 0.0
  %v6240 = vsel %vm6232, %v6217, 0.0
  %v6241 = vsel %vm6232, %v6219, 0.0
  %v6242 = vsel %vm6232, %v6221, 0.0
  %6243 = vset.pattern.permute.xlu0 22
  %6244 = vperm.xlu0 %6243, %v2661
  %v6245 = vpop.permute.xlu0 %6244
  %6247 = vset.pattern.permute.xlu0 22
  %6248 = vperm.xlu0 %6247, %v2662
  %v6249 = vpop.permute.xlu0 %6248
  %6251 = vset.pattern.permute.xlu0 22
  %6252 = vperm.xlu0 %6251, %v2663
  %v6253 = vpop.permute.xlu0 %6252
  %6255 = vset.pattern.permute.xlu0 22
  %6256 = vperm.xlu0 %6255, %v2664
  %v6257 = vpop.permute.xlu0 %6256
  %6259 = vset.pattern.permute.xlu0 22
  %6260 = vperm.xlu0 %6259, %v2665
  %v6261 = vpop.permute.xlu0 %6260
  %6263 = vset.pattern.permute.xlu0 22
  %6264 = vperm.xlu0 %6263, %v2666
  %v6265 = vpop.permute.xlu0 %6264
  %6267 = vset.pattern.permute.xlu0 22
  %6268 = vperm.xlu0 %6267, %v2667
  %v6269 = vpop.permute.xlu0 %6268
  %6271 = vset.pattern.permute.xlu0 22
  %6272 = vperm.xlu0 %6271, %v2668
  %v6273 = vpop.permute.xlu0 %6272
  %6275 = vset.pattern.permute.xlu0 22
  %6276 = vperm.xlu0 %6275, %v2669
  %v6277 = vpop.permute.xlu0 %6276
  %6279 = vset.pattern.permute.xlu0 22
  %6280 = vperm.xlu0 %6279, %v2670
  %v6281 = vpop.permute.xlu0 %6280
  %v6283 = vmul.f32 %v6233, %v6245
  %v6284 = vmul.f32 %v6234, %v6249
  %v6285 = vmul.f32 %v6235, %v6253
  %v6286 = vmul.f32 %v6236, %v6257
  %v6287 = vmul.f32 %v6237, %v6261
  %v6288 = vmul.f32 %v6238, %v6265
  %v6289 = vmul.f32 %v6239, %v6269
  %v6290 = vmul.f32 %v6240, %v6273
  %v6291 = vmul.f32 %v6241, %v6277
  %v6292 = vmul.f32 %v6242, %v6281
  %v6293 = vadd.f32 %v6132, %v6283
  %v6294 = vadd.f32 %v6133, %v6284
  %v6295 = vadd.f32 %v6134, %v6285
  %v6296 = vadd.f32 %v6135, %v6286
  %v6297 = vadd.f32 %v6136, %v6287
  %v6298 = vadd.f32 %v6137, %v6288
  %v6299 = vadd.f32 %v6138, %v6289
  %v6300 = vadd.f32 %v6139, %v6290
  %v6301 = vadd.f32 %v6140, %v6291
  %v6302 = vadd.f32 %v6141, %v6292
  %6303 = vset.pattern.permute.xlu0 55
  %6304 = vperm.xlu0 %6303, %v2661
  %v6305 = vpop.permute.xlu0 %6304
  %6307 = vset.pattern.permute.xlu0 55
  %6308 = vperm.xlu0 %6307, %v2662
  %v6309 = vpop.permute.xlu0 %6308
  %6311 = vset.pattern.permute.xlu0 55
  %6312 = vperm.xlu0 %6311, %v2663
  %v6313 = vpop.permute.xlu0 %6312
  %6315 = vset.pattern.permute.xlu0 55
  %6316 = vperm.xlu0 %6315, %v2664
  %v6317 = vpop.permute.xlu0 %6316
  %6319 = vset.pattern.permute.xlu0 55
  %6320 = vperm.xlu0 %6319, %v2665
  %v6321 = vpop.permute.xlu0 %6320
  %6323 = vset.pattern.permute.xlu0 55
  %6324 = vperm.xlu0 %6323, %v2666
  %v6325 = vpop.permute.xlu0 %6324
  %6327 = vset.pattern.permute.xlu0 55
  %6328 = vperm.xlu0 %6327, %v2667
  %v6329 = vpop.permute.xlu0 %6328
  %6331 = vset.pattern.permute.xlu0 55
  %6332 = vperm.xlu0 %6331, %v2668
  %v6333 = vpop.permute.xlu0 %6332
  %6335 = vset.pattern.permute.xlu0 55
  %6336 = vperm.xlu0 %6335, %v2669
  %v6337 = vpop.permute.xlu0 %6336
  %6339 = vset.pattern.permute.xlu0 55
  %6340 = vperm.xlu0 %6339, %v2670
  %v6341 = vpop.permute.xlu0 %6340
  %v6343 = vmul.f32 %v6233, %v6305
  %v6344 = vmul.f32 %v6234, %v6309
  %v6345 = vmul.f32 %v6235, %v6313
  %v6346 = vmul.f32 %v6236, %v6317
  %v6347 = vmul.f32 %v6237, %v6321
  %v6348 = vmul.f32 %v6238, %v6325
  %v6349 = vmul.f32 %v6239, %v6329
  %v6350 = vmul.f32 %v6240, %v6333
  %v6351 = vmul.f32 %v6241, %v6337
  %v6352 = vmul.f32 %v6242, %v6341
  %v6353 = vadd.f32 %v6192, %v6343
  %v6354 = vadd.f32 %v6193, %v6344
  %v6355 = vadd.f32 %v6194, %v6345
  %v6356 = vadd.f32 %v6195, %v6346
  %v6357 = vadd.f32 %v6196, %v6347
  %v6358 = vadd.f32 %v6197, %v6348
  %v6359 = vadd.f32 %v6198, %v6349
  %v6360 = vadd.f32 %v6199, %v6350
  %v6361 = vadd.f32 %v6200, %v6351
  %v6362 = vadd.f32 %v6201, %v6352
  %6363 = vrot.lane.b32.xlu0 %v2671, 105
  %v6364 = vpop.permute.xlu0 %6363
  %6365 = vrot.lane.b32.xlu0 %v2672, 105
  %v6366 = vpop.permute.xlu0 %6365
  %6367 = vrot.lane.b32.xlu0 %v2673, 105
  %v6368 = vpop.permute.xlu0 %6367
  %6369 = vrot.lane.b32.xlu0 %v2674, 105
  %v6370 = vpop.permute.xlu0 %6369
  %6371 = vrot.lane.b32.xlu0 %v2675, 105
  %v6372 = vpop.permute.xlu0 %6371
  %6373 = vrot.lane.b32.xlu0 %v2676, 105
  %v6374 = vpop.permute.xlu0 %6373
  %6375 = vrot.lane.b32.xlu0 %v2677, 105
  %v6376 = vpop.permute.xlu0 %6375
  %6377 = vrot.lane.b32.xlu0 %v2678, 105
  %v6378 = vpop.permute.xlu0 %6377
  %6379 = vrot.lane.b32.xlu0 %v2679, 105
  %v6380 = vpop.permute.xlu0 %6379
  %6381 = vrot.lane.b32.xlu0 %v2680, 105
  %v6382 = vpop.permute.xlu0 %6381
  %vm6393 = vcmask 859136
  %v6394 = vsel %vm6393, %v6364, 0.0
  %v6395 = vsel %vm6393, %v6366, 0.0
  %v6396 = vsel %vm6393, %v6368, 0.0
  %v6397 = vsel %vm6393, %v6370, 0.0
  %v6398 = vsel %vm6393, %v6372, 0.0
  %v6399 = vsel %vm6393, %v6374, 0.0
  %v6400 = vsel %vm6393, %v6376, 0.0
  %v6401 = vsel %vm6393, %v6378, 0.0
  %v6402 = vsel %vm6393, %v6380, 0.0
  %v6403 = vsel %vm6393, %v6382, 0.0
  %6404 = vset.pattern.permute.xlu0 23
  %6405 = vperm.xlu0 %6404, %v2661
  %v6406 = vpop.permute.xlu0 %6405
  %6408 = vset.pattern.permute.xlu0 23
  %6409 = vperm.xlu0 %6408, %v2662
  %v6410 = vpop.permute.xlu0 %6409
  %6412 = vset.pattern.permute.xlu0 23
  %6413 = vperm.xlu0 %6412, %v2663
  %v6414 = vpop.permute.xlu0 %6413
  %6416 = vset.pattern.permute.xlu0 23
  %6417 = vperm.xlu0 %6416, %v2664
  %v6418 = vpop.permute.xlu0 %6417
  %6420 = vset.pattern.permute.xlu0 23
  %6421 = vperm.xlu0 %6420, %v2665
  %v6422 = vpop.permute.xlu0 %6421
  %6424 = vset.pattern.permute.xlu0 23
  %6425 = vperm.xlu0 %6424, %v2666
  %v6426 = vpop.permute.xlu0 %6425
  %6428 = vset.pattern.permute.xlu0 23
  %6429 = vperm.xlu0 %6428, %v2667
  %v6430 = vpop.permute.xlu0 %6429
  %6432 = vset.pattern.permute.xlu0 23
  %6433 = vperm.xlu0 %6432, %v2668
  %v6434 = vpop.permute.xlu0 %6433
  %6436 = vset.pattern.permute.xlu0 23
  %6437 = vperm.xlu0 %6436, %v2669
  %v6438 = vpop.permute.xlu0 %6437
  %6440 = vset.pattern.permute.xlu0 23
  %6441 = vperm.xlu0 %6440, %v2670
  %v6442 = vpop.permute.xlu0 %6441
  %v6444 = vmul.f32 %v6394, %v6406
  %v6445 = vmul.f32 %v6395, %v6410
  %v6446 = vmul.f32 %v6396, %v6414
  %v6447 = vmul.f32 %v6397, %v6418
  %v6448 = vmul.f32 %v6398, %v6422
  %v6449 = vmul.f32 %v6399, %v6426
  %v6450 = vmul.f32 %v6400, %v6430
  %v6451 = vmul.f32 %v6401, %v6434
  %v6452 = vmul.f32 %v6402, %v6438
  %v6453 = vmul.f32 %v6403, %v6442
  %v6454 = vadd.f32 %v6293, %v6444
  %v6455 = vadd.f32 %v6294, %v6445
  %v6456 = vadd.f32 %v6295, %v6446
  %v6457 = vadd.f32 %v6296, %v6447
  %v6458 = vadd.f32 %v6297, %v6448
  %v6459 = vadd.f32 %v6298, %v6449
  %v6460 = vadd.f32 %v6299, %v6450
  %v6461 = vadd.f32 %v6300, %v6451
  %v6462 = vadd.f32 %v6301, %v6452
  %v6463 = vadd.f32 %v6302, %v6453
  %6464 = vset.pattern.permute.xlu0 56
  %6465 = vperm.xlu0 %6464, %v2661
  %v6466 = vpop.permute.xlu0 %6465
  %6468 = vset.pattern.permute.xlu0 56
  %6469 = vperm.xlu0 %6468, %v2662
  %v6470 = vpop.permute.xlu0 %6469
  %6472 = vset.pattern.permute.xlu0 56
  %6473 = vperm.xlu0 %6472, %v2663
  %v6474 = vpop.permute.xlu0 %6473
  %6476 = vset.pattern.permute.xlu0 56
  %6477 = vperm.xlu0 %6476, %v2664
  %v6478 = vpop.permute.xlu0 %6477
  %6480 = vset.pattern.permute.xlu0 56
  %6481 = vperm.xlu0 %6480, %v2665
  %v6482 = vpop.permute.xlu0 %6481
  %6484 = vset.pattern.permute.xlu0 56
  %6485 = vperm.xlu0 %6484, %v2666
  %v6486 = vpop.permute.xlu0 %6485
  %6488 = vset.pattern.permute.xlu0 56
  %6489 = vperm.xlu0 %6488, %v2667
  %v6490 = vpop.permute.xlu0 %6489
  %6492 = vset.pattern.permute.xlu0 56
  %6493 = vperm.xlu0 %6492, %v2668
  %v6494 = vpop.permute.xlu0 %6493
  %6496 = vset.pattern.permute.xlu0 56
  %6497 = vperm.xlu0 %6496, %v2669
  %v6498 = vpop.permute.xlu0 %6497
  %6500 = vset.pattern.permute.xlu0 56
  %6501 = vperm.xlu0 %6500, %v2670
  %v6502 = vpop.permute.xlu0 %6501
  %v6504 = vmul.f32 %v6394, %v6466
  %v6505 = vmul.f32 %v6395, %v6470
  %v6506 = vmul.f32 %v6396, %v6474
  %v6507 = vmul.f32 %v6397, %v6478
  %v6508 = vmul.f32 %v6398, %v6482
  %v6509 = vmul.f32 %v6399, %v6486
  %v6510 = vmul.f32 %v6400, %v6490
  %v6511 = vmul.f32 %v6401, %v6494
  %v6512 = vmul.f32 %v6402, %v6498
  %v6513 = vmul.f32 %v6403, %v6502
  %v6514 = vadd.f32 %v6353, %v6504
  %v6515 = vadd.f32 %v6354, %v6505
  %v6516 = vadd.f32 %v6355, %v6506
  %v6517 = vadd.f32 %v6356, %v6507
  %v6518 = vadd.f32 %v6357, %v6508
  %v6519 = vadd.f32 %v6358, %v6509
  %v6520 = vadd.f32 %v6359, %v6510
  %v6521 = vadd.f32 %v6360, %v6511
  %v6522 = vadd.f32 %v6361, %v6512
  %v6523 = vadd.f32 %v6362, %v6513
  %6524 = vrot.lane.b32.xlu0 %v2671, 104
  %v6525 = vpop.permute.xlu0 %6524
  %6526 = vrot.lane.b32.xlu0 %v2672, 104
  %v6527 = vpop.permute.xlu0 %6526
  %6528 = vrot.lane.b32.xlu0 %v2673, 104
  %v6529 = vpop.permute.xlu0 %6528
  %6530 = vrot.lane.b32.xlu0 %v2674, 104
  %v6531 = vpop.permute.xlu0 %6530
  %6532 = vrot.lane.b32.xlu0 %v2675, 104
  %v6533 = vpop.permute.xlu0 %6532
  %6534 = vrot.lane.b32.xlu0 %v2676, 104
  %v6535 = vpop.permute.xlu0 %6534
  %6536 = vrot.lane.b32.xlu0 %v2677, 104
  %v6537 = vpop.permute.xlu0 %6536
  %6538 = vrot.lane.b32.xlu0 %v2678, 104
  %v6539 = vpop.permute.xlu0 %6538
  %6540 = vrot.lane.b32.xlu0 %v2679, 104
  %v6541 = vpop.permute.xlu0 %6540
  %6542 = vrot.lane.b32.xlu0 %v2680, 104
  %v6543 = vpop.permute.xlu0 %6542
  %vm6554 = vcmask 850944
  %v6555 = vsel %vm6554, %v6525, 0.0
  %v6556 = vsel %vm6554, %v6527, 0.0
  %v6557 = vsel %vm6554, %v6529, 0.0
  %v6558 = vsel %vm6554, %v6531, 0.0
  %v6559 = vsel %vm6554, %v6533, 0.0
  %v6560 = vsel %vm6554, %v6535, 0.0
  %v6561 = vsel %vm6554, %v6537, 0.0
  %v6562 = vsel %vm6554, %v6539, 0.0
  %v6563 = vsel %vm6554, %v6541, 0.0
  %v6564 = vsel %vm6554, %v6543, 0.0
  %6565 = vset.pattern.permute.xlu0 24
  %6566 = vperm.xlu0 %6565, %v2661
  %v6567 = vpop.permute.xlu0 %6566
  %6569 = vset.pattern.permute.xlu0 24
  %6570 = vperm.xlu0 %6569, %v2662
  %v6571 = vpop.permute.xlu0 %6570
  %6573 = vset.pattern.permute.xlu0 24
  %6574 = vperm.xlu0 %6573, %v2663
  %v6575 = vpop.permute.xlu0 %6574
  %6577 = vset.pattern.permute.xlu0 24
  %6578 = vperm.xlu0 %6577, %v2664
  %v6579 = vpop.permute.xlu0 %6578
  %6581 = vset.pattern.permute.xlu0 24
  %6582 = vperm.xlu0 %6581, %v2665
  %v6583 = vpop.permute.xlu0 %6582
  %6585 = vset.pattern.permute.xlu0 24
  %6586 = vperm.xlu0 %6585, %v2666
  %v6587 = vpop.permute.xlu0 %6586
  %6589 = vset.pattern.permute.xlu0 24
  %6590 = vperm.xlu0 %6589, %v2667
  %v6591 = vpop.permute.xlu0 %6590
  %6593 = vset.pattern.permute.xlu0 24
  %6594 = vperm.xlu0 %6593, %v2668
  %v6595 = vpop.permute.xlu0 %6594
  %6597 = vset.pattern.permute.xlu0 24
  %6598 = vperm.xlu0 %6597, %v2669
  %v6599 = vpop.permute.xlu0 %6598
  %6601 = vset.pattern.permute.xlu0 24
  %6602 = vperm.xlu0 %6601, %v2670
  %v6603 = vpop.permute.xlu0 %6602
  %v6605 = vmul.f32 %v6555, %v6567
  %v6606 = vmul.f32 %v6556, %v6571
  %v6607 = vmul.f32 %v6557, %v6575
  %v6608 = vmul.f32 %v6558, %v6579
  %v6609 = vmul.f32 %v6559, %v6583
  %v6610 = vmul.f32 %v6560, %v6587
  %v6611 = vmul.f32 %v6561, %v6591
  %v6612 = vmul.f32 %v6562, %v6595
  %v6613 = vmul.f32 %v6563, %v6599
  %v6614 = vmul.f32 %v6564, %v6603
  %v6615 = vadd.f32 %v6454, %v6605
  %v6616 = vadd.f32 %v6455, %v6606
  %v6617 = vadd.f32 %v6456, %v6607
  %v6618 = vadd.f32 %v6457, %v6608
  %v6619 = vadd.f32 %v6458, %v6609
  %v6620 = vadd.f32 %v6459, %v6610
  %v6621 = vadd.f32 %v6460, %v6611
  %v6622 = vadd.f32 %v6461, %v6612
  %v6623 = vadd.f32 %v6462, %v6613
  %v6624 = vadd.f32 %v6463, %v6614
  %6625 = vset.pattern.permute.xlu0 57
  %6626 = vperm.xlu0 %6625, %v2661
  %v6627 = vpop.permute.xlu0 %6626
  %6629 = vset.pattern.permute.xlu0 57
  %6630 = vperm.xlu0 %6629, %v2662
  %v6631 = vpop.permute.xlu0 %6630
  %6633 = vset.pattern.permute.xlu0 57
  %6634 = vperm.xlu0 %6633, %v2663
  %v6635 = vpop.permute.xlu0 %6634
  %6637 = vset.pattern.permute.xlu0 57
  %6638 = vperm.xlu0 %6637, %v2664
  %v6639 = vpop.permute.xlu0 %6638
  %6641 = vset.pattern.permute.xlu0 57
  %6642 = vperm.xlu0 %6641, %v2665
  %v6643 = vpop.permute.xlu0 %6642
  %6645 = vset.pattern.permute.xlu0 57
  %6646 = vperm.xlu0 %6645, %v2666
  %v6647 = vpop.permute.xlu0 %6646
  %6649 = vset.pattern.permute.xlu0 57
  %6650 = vperm.xlu0 %6649, %v2667
  %v6651 = vpop.permute.xlu0 %6650
  %6653 = vset.pattern.permute.xlu0 57
  %6654 = vperm.xlu0 %6653, %v2668
  %v6655 = vpop.permute.xlu0 %6654
  %6657 = vset.pattern.permute.xlu0 57
  %6658 = vperm.xlu0 %6657, %v2669
  %v6659 = vpop.permute.xlu0 %6658
  %6661 = vset.pattern.permute.xlu0 57
  %6662 = vperm.xlu0 %6661, %v2670
  %v6663 = vpop.permute.xlu0 %6662
  %v6665 = vmul.f32 %v6555, %v6627
  %v6666 = vmul.f32 %v6556, %v6631
  %v6667 = vmul.f32 %v6557, %v6635
  %v6668 = vmul.f32 %v6558, %v6639
  %v6669 = vmul.f32 %v6559, %v6643
  %v6670 = vmul.f32 %v6560, %v6647
  %v6671 = vmul.f32 %v6561, %v6651
  %v6672 = vmul.f32 %v6562, %v6655
  %v6673 = vmul.f32 %v6563, %v6659
  %v6674 = vmul.f32 %v6564, %v6663
  %v6675 = vadd.f32 %v6514, %v6665
  %v6676 = vadd.f32 %v6515, %v6666
  %v6677 = vadd.f32 %v6516, %v6667
  %v6678 = vadd.f32 %v6517, %v6668
  %v6679 = vadd.f32 %v6518, %v6669
  %v6680 = vadd.f32 %v6519, %v6670
  %v6681 = vadd.f32 %v6520, %v6671
  %v6682 = vadd.f32 %v6521, %v6672
  %v6683 = vadd.f32 %v6522, %v6673
  %v6684 = vadd.f32 %v6523, %v6674
  %6685 = vrot.lane.b32.xlu0 %v2671, 103
  %v6686 = vpop.permute.xlu0 %6685
  %6687 = vrot.lane.b32.xlu0 %v2672, 103
  %v6688 = vpop.permute.xlu0 %6687
  %6689 = vrot.lane.b32.xlu0 %v2673, 103
  %v6690 = vpop.permute.xlu0 %6689
  %6691 = vrot.lane.b32.xlu0 %v2674, 103
  %v6692 = vpop.permute.xlu0 %6691
  %6693 = vrot.lane.b32.xlu0 %v2675, 103
  %v6694 = vpop.permute.xlu0 %6693
  %6695 = vrot.lane.b32.xlu0 %v2676, 103
  %v6696 = vpop.permute.xlu0 %6695
  %6697 = vrot.lane.b32.xlu0 %v2677, 103
  %v6698 = vpop.permute.xlu0 %6697
  %6699 = vrot.lane.b32.xlu0 %v2678, 103
  %v6700 = vpop.permute.xlu0 %6699
  %6701 = vrot.lane.b32.xlu0 %v2679, 103
  %v6702 = vpop.permute.xlu0 %6701
  %6703 = vrot.lane.b32.xlu0 %v2680, 103
  %v6704 = vpop.permute.xlu0 %6703
  %vm6715 = vcmask 842752
  %v6716 = vsel %vm6715, %v6686, 0.0
  %v6717 = vsel %vm6715, %v6688, 0.0
  %v6718 = vsel %vm6715, %v6690, 0.0
  %v6719 = vsel %vm6715, %v6692, 0.0
  %v6720 = vsel %vm6715, %v6694, 0.0
  %v6721 = vsel %vm6715, %v6696, 0.0
  %v6722 = vsel %vm6715, %v6698, 0.0
  %v6723 = vsel %vm6715, %v6700, 0.0
  %v6724 = vsel %vm6715, %v6702, 0.0
  %v6725 = vsel %vm6715, %v6704, 0.0
  %6726 = vset.pattern.permute.xlu0 25
  %6727 = vperm.xlu0 %6726, %v2661
  %v6728 = vpop.permute.xlu0 %6727
  %6730 = vset.pattern.permute.xlu0 25
  %6731 = vperm.xlu0 %6730, %v2662
  %v6732 = vpop.permute.xlu0 %6731
  %6734 = vset.pattern.permute.xlu0 25
  %6735 = vperm.xlu0 %6734, %v2663
  %v6736 = vpop.permute.xlu0 %6735
  %6738 = vset.pattern.permute.xlu0 25
  %6739 = vperm.xlu0 %6738, %v2664
  %v6740 = vpop.permute.xlu0 %6739
  %6742 = vset.pattern.permute.xlu0 25
  %6743 = vperm.xlu0 %6742, %v2665
  %v6744 = vpop.permute.xlu0 %6743
  %6746 = vset.pattern.permute.xlu0 25
  %6747 = vperm.xlu0 %6746, %v2666
  %v6748 = vpop.permute.xlu0 %6747
  %6750 = vset.pattern.permute.xlu0 25
  %6751 = vperm.xlu0 %6750, %v2667
  %v6752 = vpop.permute.xlu0 %6751
  %6754 = vset.pattern.permute.xlu0 25
  %6755 = vperm.xlu0 %6754, %v2668
  %v6756 = vpop.permute.xlu0 %6755
  %6758 = vset.pattern.permute.xlu0 25
  %6759 = vperm.xlu0 %6758, %v2669
  %v6760 = vpop.permute.xlu0 %6759
  %6762 = vset.pattern.permute.xlu0 25
  %6763 = vperm.xlu0 %6762, %v2670
  %v6764 = vpop.permute.xlu0 %6763
  %v6766 = vmul.f32 %v6716, %v6728
  %v6767 = vmul.f32 %v6717, %v6732
  %v6768 = vmul.f32 %v6718, %v6736
  %v6769 = vmul.f32 %v6719, %v6740
  %v6770 = vmul.f32 %v6720, %v6744
  %v6771 = vmul.f32 %v6721, %v6748
  %v6772 = vmul.f32 %v6722, %v6752
  %v6773 = vmul.f32 %v6723, %v6756
  %v6774 = vmul.f32 %v6724, %v6760
  %v6775 = vmul.f32 %v6725, %v6764
  %v6776 = vadd.f32 %v6615, %v6766
  %v6777 = vadd.f32 %v6616, %v6767
  %v6778 = vadd.f32 %v6617, %v6768
  %v6779 = vadd.f32 %v6618, %v6769
  %v6780 = vadd.f32 %v6619, %v6770
  %v6781 = vadd.f32 %v6620, %v6771
  %v6782 = vadd.f32 %v6621, %v6772
  %v6783 = vadd.f32 %v6622, %v6773
  %v6784 = vadd.f32 %v6623, %v6774
  %v6785 = vadd.f32 %v6624, %v6775
  %6786 = vset.pattern.permute.xlu0 58
  %6787 = vperm.xlu0 %6786, %v2661
  %v6788 = vpop.permute.xlu0 %6787
  %6790 = vset.pattern.permute.xlu0 58
  %6791 = vperm.xlu0 %6790, %v2662
  %v6792 = vpop.permute.xlu0 %6791
  %6794 = vset.pattern.permute.xlu0 58
  %6795 = vperm.xlu0 %6794, %v2663
  %v6796 = vpop.permute.xlu0 %6795
  %6798 = vset.pattern.permute.xlu0 58
  %6799 = vperm.xlu0 %6798, %v2664
  %v6800 = vpop.permute.xlu0 %6799
  %6802 = vset.pattern.permute.xlu0 58
  %6803 = vperm.xlu0 %6802, %v2665
  %v6804 = vpop.permute.xlu0 %6803
  %6806 = vset.pattern.permute.xlu0 58
  %6807 = vperm.xlu0 %6806, %v2666
  %v6808 = vpop.permute.xlu0 %6807
  %6810 = vset.pattern.permute.xlu0 58
  %6811 = vperm.xlu0 %6810, %v2667
  %v6812 = vpop.permute.xlu0 %6811
  %6814 = vset.pattern.permute.xlu0 58
  %6815 = vperm.xlu0 %6814, %v2668
  %v6816 = vpop.permute.xlu0 %6815
  %6818 = vset.pattern.permute.xlu0 58
  %6819 = vperm.xlu0 %6818, %v2669
  %v6820 = vpop.permute.xlu0 %6819
  %6822 = vset.pattern.permute.xlu0 58
  %6823 = vperm.xlu0 %6822, %v2670
  %v6824 = vpop.permute.xlu0 %6823
  %v6826 = vmul.f32 %v6716, %v6788
  %v6827 = vmul.f32 %v6717, %v6792
  %v6828 = vmul.f32 %v6718, %v6796
  %v6829 = vmul.f32 %v6719, %v6800
  %v6830 = vmul.f32 %v6720, %v6804
  %v6831 = vmul.f32 %v6721, %v6808
  %v6832 = vmul.f32 %v6722, %v6812
  %v6833 = vmul.f32 %v6723, %v6816
  %v6834 = vmul.f32 %v6724, %v6820
  %v6835 = vmul.f32 %v6725, %v6824
  %v6836 = vadd.f32 %v6675, %v6826
  %v6837 = vadd.f32 %v6676, %v6827
  %v6838 = vadd.f32 %v6677, %v6828
  %v6839 = vadd.f32 %v6678, %v6829
  %v6840 = vadd.f32 %v6679, %v6830
  %v6841 = vadd.f32 %v6680, %v6831
  %v6842 = vadd.f32 %v6681, %v6832
  %v6843 = vadd.f32 %v6682, %v6833
  %v6844 = vadd.f32 %v6683, %v6834
  %v6845 = vadd.f32 %v6684, %v6835
  %6846 = vrot.lane.b32.xlu0 %v2671, 102
  %v6847 = vpop.permute.xlu0 %6846
  %6848 = vrot.lane.b32.xlu0 %v2672, 102
  %v6849 = vpop.permute.xlu0 %6848
  %6850 = vrot.lane.b32.xlu0 %v2673, 102
  %v6851 = vpop.permute.xlu0 %6850
  %6852 = vrot.lane.b32.xlu0 %v2674, 102
  %v6853 = vpop.permute.xlu0 %6852
  %6854 = vrot.lane.b32.xlu0 %v2675, 102
  %v6855 = vpop.permute.xlu0 %6854
  %6856 = vrot.lane.b32.xlu0 %v2676, 102
  %v6857 = vpop.permute.xlu0 %6856
  %6858 = vrot.lane.b32.xlu0 %v2677, 102
  %v6859 = vpop.permute.xlu0 %6858
  %6860 = vrot.lane.b32.xlu0 %v2678, 102
  %v6861 = vpop.permute.xlu0 %6860
  %6862 = vrot.lane.b32.xlu0 %v2679, 102
  %v6863 = vpop.permute.xlu0 %6862
  %6864 = vrot.lane.b32.xlu0 %v2680, 102
  %v6865 = vpop.permute.xlu0 %6864
  %vm6876 = vcmask 834560
  %v6877 = vsel %vm6876, %v6847, 0.0
  %v6878 = vsel %vm6876, %v6849, 0.0
  %v6879 = vsel %vm6876, %v6851, 0.0
  %v6880 = vsel %vm6876, %v6853, 0.0
  %v6881 = vsel %vm6876, %v6855, 0.0
  %v6882 = vsel %vm6876, %v6857, 0.0
  %v6883 = vsel %vm6876, %v6859, 0.0
  %v6884 = vsel %vm6876, %v6861, 0.0
  %v6885 = vsel %vm6876, %v6863, 0.0
  %v6886 = vsel %vm6876, %v6865, 0.0
  %6887 = vset.pattern.permute.xlu0 26
  %6888 = vperm.xlu0 %6887, %v2661
  %v6889 = vpop.permute.xlu0 %6888
  %6891 = vset.pattern.permute.xlu0 26
  %6892 = vperm.xlu0 %6891, %v2662
  %v6893 = vpop.permute.xlu0 %6892
  %6895 = vset.pattern.permute.xlu0 26
  %6896 = vperm.xlu0 %6895, %v2663
  %v6897 = vpop.permute.xlu0 %6896
  %6899 = vset.pattern.permute.xlu0 26
  %6900 = vperm.xlu0 %6899, %v2664
  %v6901 = vpop.permute.xlu0 %6900
  %6903 = vset.pattern.permute.xlu0 26
  %6904 = vperm.xlu0 %6903, %v2665
  %v6905 = vpop.permute.xlu0 %6904
  %6907 = vset.pattern.permute.xlu0 26
  %6908 = vperm.xlu0 %6907, %v2666
  %v6909 = vpop.permute.xlu0 %6908
  %6911 = vset.pattern.permute.xlu0 26
  %6912 = vperm.xlu0 %6911, %v2667
  %v6913 = vpop.permute.xlu0 %6912
  %6915 = vset.pattern.permute.xlu0 26
  %6916 = vperm.xlu0 %6915, %v2668
  %v6917 = vpop.permute.xlu0 %6916
  %6919 = vset.pattern.permute.xlu0 26
  %6920 = vperm.xlu0 %6919, %v2669
  %v6921 = vpop.permute.xlu0 %6920
  %6923 = vset.pattern.permute.xlu0 26
  %6924 = vperm.xlu0 %6923, %v2670
  %v6925 = vpop.permute.xlu0 %6924
  %v6927 = vmul.f32 %v6877, %v6889
  %v6928 = vmul.f32 %v6878, %v6893
  %v6929 = vmul.f32 %v6879, %v6897
  %v6930 = vmul.f32 %v6880, %v6901
  %v6931 = vmul.f32 %v6881, %v6905
  %v6932 = vmul.f32 %v6882, %v6909
  %v6933 = vmul.f32 %v6883, %v6913
  %v6934 = vmul.f32 %v6884, %v6917
  %v6935 = vmul.f32 %v6885, %v6921
  %v6936 = vmul.f32 %v6886, %v6925
  %v6937 = vadd.f32 %v6776, %v6927
  %v6938 = vadd.f32 %v6777, %v6928
  %v6939 = vadd.f32 %v6778, %v6929
  %v6940 = vadd.f32 %v6779, %v6930
  %v6941 = vadd.f32 %v6780, %v6931
  %v6942 = vadd.f32 %v6781, %v6932
  %v6943 = vadd.f32 %v6782, %v6933
  %v6944 = vadd.f32 %v6783, %v6934
  %v6945 = vadd.f32 %v6784, %v6935
  %v6946 = vadd.f32 %v6785, %v6936
  %6947 = vset.pattern.permute.xlu0 59
  %6948 = vperm.xlu0 %6947, %v2661
  %v6949 = vpop.permute.xlu0 %6948
  %6951 = vset.pattern.permute.xlu0 59
  %6952 = vperm.xlu0 %6951, %v2662
  %v6953 = vpop.permute.xlu0 %6952
  %6955 = vset.pattern.permute.xlu0 59
  %6956 = vperm.xlu0 %6955, %v2663
  %v6957 = vpop.permute.xlu0 %6956
  %6959 = vset.pattern.permute.xlu0 59
  %6960 = vperm.xlu0 %6959, %v2664
  %v6961 = vpop.permute.xlu0 %6960
  %6963 = vset.pattern.permute.xlu0 59
  %6964 = vperm.xlu0 %6963, %v2665
  %v6965 = vpop.permute.xlu0 %6964
  %6967 = vset.pattern.permute.xlu0 59
  %6968 = vperm.xlu0 %6967, %v2666
  %v6969 = vpop.permute.xlu0 %6968
  %6971 = vset.pattern.permute.xlu0 59
  %6972 = vperm.xlu0 %6971, %v2667
  %v6973 = vpop.permute.xlu0 %6972
  %6975 = vset.pattern.permute.xlu0 59
  %6976 = vperm.xlu0 %6975, %v2668
  %v6977 = vpop.permute.xlu0 %6976
  %6979 = vset.pattern.permute.xlu0 59
  %6980 = vperm.xlu0 %6979, %v2669
  %v6981 = vpop.permute.xlu0 %6980
  %6983 = vset.pattern.permute.xlu0 59
  %6984 = vperm.xlu0 %6983, %v2670
  %v6985 = vpop.permute.xlu0 %6984
  %v6987 = vmul.f32 %v6877, %v6949
  %v6988 = vmul.f32 %v6878, %v6953
  %v6989 = vmul.f32 %v6879, %v6957
  %v6990 = vmul.f32 %v6880, %v6961
  %v6991 = vmul.f32 %v6881, %v6965
  %v6992 = vmul.f32 %v6882, %v6969
  %v6993 = vmul.f32 %v6883, %v6973
  %v6994 = vmul.f32 %v6884, %v6977
  %v6995 = vmul.f32 %v6885, %v6981
  %v6996 = vmul.f32 %v6886, %v6985
  %v6997 = vadd.f32 %v6836, %v6987
  %v6998 = vadd.f32 %v6837, %v6988
  %v6999 = vadd.f32 %v6838, %v6989
  %v7000 = vadd.f32 %v6839, %v6990
  %v7001 = vadd.f32 %v6840, %v6991
  %v7002 = vadd.f32 %v6841, %v6992
  %v7003 = vadd.f32 %v6842, %v6993
  %v7004 = vadd.f32 %v6843, %v6994
  %v7005 = vadd.f32 %v6844, %v6995
  %v7006 = vadd.f32 %v6845, %v6996
  %7007 = vrot.lane.b32.xlu0 %v2671, 101
  %v7008 = vpop.permute.xlu0 %7007
  %7009 = vrot.lane.b32.xlu0 %v2672, 101
  %v7010 = vpop.permute.xlu0 %7009
  %7011 = vrot.lane.b32.xlu0 %v2673, 101
  %v7012 = vpop.permute.xlu0 %7011
  %7013 = vrot.lane.b32.xlu0 %v2674, 101
  %v7014 = vpop.permute.xlu0 %7013
  %7015 = vrot.lane.b32.xlu0 %v2675, 101
  %v7016 = vpop.permute.xlu0 %7015
  %7017 = vrot.lane.b32.xlu0 %v2676, 101
  %v7018 = vpop.permute.xlu0 %7017
  %7019 = vrot.lane.b32.xlu0 %v2677, 101
  %v7020 = vpop.permute.xlu0 %7019
  %7021 = vrot.lane.b32.xlu0 %v2678, 101
  %v7022 = vpop.permute.xlu0 %7021
  %7023 = vrot.lane.b32.xlu0 %v2679, 101
  %v7024 = vpop.permute.xlu0 %7023
  %7025 = vrot.lane.b32.xlu0 %v2680, 101
  %v7026 = vpop.permute.xlu0 %7025
  %vm7037 = vcmask 826368
  %v7038 = vsel %vm7037, %v7008, 0.0
  %v7039 = vsel %vm7037, %v7010, 0.0
  %v7040 = vsel %vm7037, %v7012, 0.0
  %v7041 = vsel %vm7037, %v7014, 0.0
  %v7042 = vsel %vm7037, %v7016, 0.0
  %v7043 = vsel %vm7037, %v7018, 0.0
  %v7044 = vsel %vm7037, %v7020, 0.0
  %v7045 = vsel %vm7037, %v7022, 0.0
  %v7046 = vsel %vm7037, %v7024, 0.0
  %v7047 = vsel %vm7037, %v7026, 0.0
  %7048 = vset.pattern.permute.xlu0 27
  %7049 = vperm.xlu0 %7048, %v2661
  %v7050 = vpop.permute.xlu0 %7049
  %7052 = vset.pattern.permute.xlu0 27
  %7053 = vperm.xlu0 %7052, %v2662
  %v7054 = vpop.permute.xlu0 %7053
  %7056 = vset.pattern.permute.xlu0 27
  %7057 = vperm.xlu0 %7056, %v2663
  %v7058 = vpop.permute.xlu0 %7057
  %7060 = vset.pattern.permute.xlu0 27
  %7061 = vperm.xlu0 %7060, %v2664
  %v7062 = vpop.permute.xlu0 %7061
  %7064 = vset.pattern.permute.xlu0 27
  %7065 = vperm.xlu0 %7064, %v2665
  %v7066 = vpop.permute.xlu0 %7065
  %7068 = vset.pattern.permute.xlu0 27
  %7069 = vperm.xlu0 %7068, %v2666
  %v7070 = vpop.permute.xlu0 %7069
  %7072 = vset.pattern.permute.xlu0 27
  %7073 = vperm.xlu0 %7072, %v2667
  %v7074 = vpop.permute.xlu0 %7073
  %7076 = vset.pattern.permute.xlu0 27
  %7077 = vperm.xlu0 %7076, %v2668
  %v7078 = vpop.permute.xlu0 %7077
  %7080 = vset.pattern.permute.xlu0 27
  %7081 = vperm.xlu0 %7080, %v2669
  %v7082 = vpop.permute.xlu0 %7081
  %7084 = vset.pattern.permute.xlu0 27
  %7085 = vperm.xlu0 %7084, %v2670
  %v7086 = vpop.permute.xlu0 %7085
  %v7088 = vmul.f32 %v7038, %v7050
  %v7089 = vmul.f32 %v7039, %v7054
  %v7090 = vmul.f32 %v7040, %v7058
  %v7091 = vmul.f32 %v7041, %v7062
  %v7092 = vmul.f32 %v7042, %v7066
  %v7093 = vmul.f32 %v7043, %v7070
  %v7094 = vmul.f32 %v7044, %v7074
  %v7095 = vmul.f32 %v7045, %v7078
  %v7096 = vmul.f32 %v7046, %v7082
  %v7097 = vmul.f32 %v7047, %v7086
  %v7098 = vadd.f32 %v6937, %v7088
  %v7099 = vadd.f32 %v6938, %v7089
  %v7100 = vadd.f32 %v6939, %v7090
  %v7101 = vadd.f32 %v6940, %v7091
  %v7102 = vadd.f32 %v6941, %v7092
  %v7103 = vadd.f32 %v6942, %v7093
  %v7104 = vadd.f32 %v6943, %v7094
  %v7105 = vadd.f32 %v6944, %v7095
  %v7106 = vadd.f32 %v6945, %v7096
  %v7107 = vadd.f32 %v6946, %v7097
  %7108 = vset.pattern.permute.xlu0 60
  %7109 = vperm.xlu0 %7108, %v2661
  %v7110 = vpop.permute.xlu0 %7109
  %7112 = vset.pattern.permute.xlu0 60
  %7113 = vperm.xlu0 %7112, %v2662
  %v7114 = vpop.permute.xlu0 %7113
  %7116 = vset.pattern.permute.xlu0 60
  %7117 = vperm.xlu0 %7116, %v2663
  %v7118 = vpop.permute.xlu0 %7117
  %7120 = vset.pattern.permute.xlu0 60
  %7121 = vperm.xlu0 %7120, %v2664
  %v7122 = vpop.permute.xlu0 %7121
  %7124 = vset.pattern.permute.xlu0 60
  %7125 = vperm.xlu0 %7124, %v2665
  %v7126 = vpop.permute.xlu0 %7125
  %7128 = vset.pattern.permute.xlu0 60
  %7129 = vperm.xlu0 %7128, %v2666
  %v7130 = vpop.permute.xlu0 %7129
  %7132 = vset.pattern.permute.xlu0 60
  %7133 = vperm.xlu0 %7132, %v2667
  %v7134 = vpop.permute.xlu0 %7133
  %7136 = vset.pattern.permute.xlu0 60
  %7137 = vperm.xlu0 %7136, %v2668
  %v7138 = vpop.permute.xlu0 %7137
  %7140 = vset.pattern.permute.xlu0 60
  %7141 = vperm.xlu0 %7140, %v2669
  %v7142 = vpop.permute.xlu0 %7141
  %7144 = vset.pattern.permute.xlu0 60
  %7145 = vperm.xlu0 %7144, %v2670
  %v7146 = vpop.permute.xlu0 %7145
  %v7148 = vmul.f32 %v7038, %v7110
  %v7149 = vmul.f32 %v7039, %v7114
  %v7150 = vmul.f32 %v7040, %v7118
  %v7151 = vmul.f32 %v7041, %v7122
  %v7152 = vmul.f32 %v7042, %v7126
  %v7153 = vmul.f32 %v7043, %v7130
  %v7154 = vmul.f32 %v7044, %v7134
  %v7155 = vmul.f32 %v7045, %v7138
  %v7156 = vmul.f32 %v7046, %v7142
  %v7157 = vmul.f32 %v7047, %v7146
  %v7158 = vadd.f32 %v6997, %v7148
  %v7159 = vadd.f32 %v6998, %v7149
  %v7160 = vadd.f32 %v6999, %v7150
  %v7161 = vadd.f32 %v7000, %v7151
  %v7162 = vadd.f32 %v7001, %v7152
  %v7163 = vadd.f32 %v7002, %v7153
  %v7164 = vadd.f32 %v7003, %v7154
  %v7165 = vadd.f32 %v7004, %v7155
  %v7166 = vadd.f32 %v7005, %v7156
  %v7167 = vadd.f32 %v7006, %v7157
  %7168 = vrot.lane.b32.xlu0 %v2671, 100
  %v7169 = vpop.permute.xlu0 %7168
  %7170 = vrot.lane.b32.xlu0 %v2672, 100
  %v7171 = vpop.permute.xlu0 %7170
  %7172 = vrot.lane.b32.xlu0 %v2673, 100
  %v7173 = vpop.permute.xlu0 %7172
  %7174 = vrot.lane.b32.xlu0 %v2674, 100
  %v7175 = vpop.permute.xlu0 %7174
  %7176 = vrot.lane.b32.xlu0 %v2675, 100
  %v7177 = vpop.permute.xlu0 %7176
  %7178 = vrot.lane.b32.xlu0 %v2676, 100
  %v7179 = vpop.permute.xlu0 %7178
  %7180 = vrot.lane.b32.xlu0 %v2677, 100
  %v7181 = vpop.permute.xlu0 %7180
  %7182 = vrot.lane.b32.xlu0 %v2678, 100
  %v7183 = vpop.permute.xlu0 %7182
  %7184 = vrot.lane.b32.xlu0 %v2679, 100
  %v7185 = vpop.permute.xlu0 %7184
  %7186 = vrot.lane.b32.xlu0 %v2680, 100
  %v7187 = vpop.permute.xlu0 %7186
  %vm7198 = vcmask 818176
  %v7199 = vsel %vm7198, %v7169, 0.0
  %v7200 = vsel %vm7198, %v7171, 0.0
  %v7201 = vsel %vm7198, %v7173, 0.0
  %v7202 = vsel %vm7198, %v7175, 0.0
  %v7203 = vsel %vm7198, %v7177, 0.0
  %v7204 = vsel %vm7198, %v7179, 0.0
  %v7205 = vsel %vm7198, %v7181, 0.0
  %v7206 = vsel %vm7198, %v7183, 0.0
  %v7207 = vsel %vm7198, %v7185, 0.0
  %v7208 = vsel %vm7198, %v7187, 0.0
  %7209 = vset.pattern.permute.xlu0 28
  %7210 = vperm.xlu0 %7209, %v2661
  %v7211 = vpop.permute.xlu0 %7210
  %7213 = vset.pattern.permute.xlu0 28
  %7214 = vperm.xlu0 %7213, %v2662
  %v7215 = vpop.permute.xlu0 %7214
  %7217 = vset.pattern.permute.xlu0 28
  %7218 = vperm.xlu0 %7217, %v2663
  %v7219 = vpop.permute.xlu0 %7218
  %7221 = vset.pattern.permute.xlu0 28
  %7222 = vperm.xlu0 %7221, %v2664
  %v7223 = vpop.permute.xlu0 %7222
  %7225 = vset.pattern.permute.xlu0 28
  %7226 = vperm.xlu0 %7225, %v2665
  %v7227 = vpop.permute.xlu0 %7226
  %7229 = vset.pattern.permute.xlu0 28
  %7230 = vperm.xlu0 %7229, %v2666
  %v7231 = vpop.permute.xlu0 %7230
  %7233 = vset.pattern.permute.xlu0 28
  %7234 = vperm.xlu0 %7233, %v2667
  %v7235 = vpop.permute.xlu0 %7234
  %7237 = vset.pattern.permute.xlu0 28
  %7238 = vperm.xlu0 %7237, %v2668
  %v7239 = vpop.permute.xlu0 %7238
  %7241 = vset.pattern.permute.xlu0 28
  %7242 = vperm.xlu0 %7241, %v2669
  %v7243 = vpop.permute.xlu0 %7242
  %7245 = vset.pattern.permute.xlu0 28
  %7246 = vperm.xlu0 %7245, %v2670
  %v7247 = vpop.permute.xlu0 %7246
  %v7249 = vmul.f32 %v7199, %v7211
  %v7250 = vmul.f32 %v7200, %v7215
  %v7251 = vmul.f32 %v7201, %v7219
  %v7252 = vmul.f32 %v7202, %v7223
  %v7253 = vmul.f32 %v7203, %v7227
  %v7254 = vmul.f32 %v7204, %v7231
  %v7255 = vmul.f32 %v7205, %v7235
  %v7256 = vmul.f32 %v7206, %v7239
  %v7257 = vmul.f32 %v7207, %v7243
  %v7258 = vmul.f32 %v7208, %v7247
  %v7259 = vadd.f32 %v7098, %v7249
  %v7260 = vadd.f32 %v7099, %v7250
  %v7261 = vadd.f32 %v7100, %v7251
  %v7262 = vadd.f32 %v7101, %v7252
  %v7263 = vadd.f32 %v7102, %v7253
  %v7264 = vadd.f32 %v7103, %v7254
  %v7265 = vadd.f32 %v7104, %v7255
  %v7266 = vadd.f32 %v7105, %v7256
  %v7267 = vadd.f32 %v7106, %v7257
  %v7268 = vadd.f32 %v7107, %v7258
  %7269 = vset.pattern.permute.xlu0 61
  %7270 = vperm.xlu0 %7269, %v2661
  %v7271 = vpop.permute.xlu0 %7270
  %7273 = vset.pattern.permute.xlu0 61
  %7274 = vperm.xlu0 %7273, %v2662
  %v7275 = vpop.permute.xlu0 %7274
  %7277 = vset.pattern.permute.xlu0 61
  %7278 = vperm.xlu0 %7277, %v2663
  %v7279 = vpop.permute.xlu0 %7278
  %7281 = vset.pattern.permute.xlu0 61
  %7282 = vperm.xlu0 %7281, %v2664
  %v7283 = vpop.permute.xlu0 %7282
  %7285 = vset.pattern.permute.xlu0 61
  %7286 = vperm.xlu0 %7285, %v2665
  %v7287 = vpop.permute.xlu0 %7286
  %7289 = vset.pattern.permute.xlu0 61
  %7290 = vperm.xlu0 %7289, %v2666
  %v7291 = vpop.permute.xlu0 %7290
  %7293 = vset.pattern.permute.xlu0 61
  %7294 = vperm.xlu0 %7293, %v2667
  %v7295 = vpop.permute.xlu0 %7294
  %7297 = vset.pattern.permute.xlu0 61
  %7298 = vperm.xlu0 %7297, %v2668
  %v7299 = vpop.permute.xlu0 %7298
  %7301 = vset.pattern.permute.xlu0 61
  %7302 = vperm.xlu0 %7301, %v2669
  %v7303 = vpop.permute.xlu0 %7302
  %7305 = vset.pattern.permute.xlu0 61
  %7306 = vperm.xlu0 %7305, %v2670
  %v7307 = vpop.permute.xlu0 %7306
  %v7309 = vmul.f32 %v7199, %v7271
  %v7310 = vmul.f32 %v7200, %v7275
  %v7311 = vmul.f32 %v7201, %v7279
  %v7312 = vmul.f32 %v7202, %v7283
  %v7313 = vmul.f32 %v7203, %v7287
  %v7314 = vmul.f32 %v7204, %v7291
  %v7315 = vmul.f32 %v7205, %v7295
  %v7316 = vmul.f32 %v7206, %v7299
  %v7317 = vmul.f32 %v7207, %v7303
  %v7318 = vmul.f32 %v7208, %v7307
  %v7319 = vadd.f32 %v7158, %v7309
  %v7320 = vadd.f32 %v7159, %v7310
  %v7321 = vadd.f32 %v7160, %v7311
  %v7322 = vadd.f32 %v7161, %v7312
  %v7323 = vadd.f32 %v7162, %v7313
  %v7324 = vadd.f32 %v7163, %v7314
  %v7325 = vadd.f32 %v7164, %v7315
  %v7326 = vadd.f32 %v7165, %v7316
  %v7327 = vadd.f32 %v7166, %v7317
  %v7328 = vadd.f32 %v7167, %v7318
  %7329 = vrot.lane.b32.xlu0 %v2671, 99
  %v7330 = vpop.permute.xlu0 %7329
  %7331 = vrot.lane.b32.xlu0 %v2672, 99
  %v7332 = vpop.permute.xlu0 %7331
  %7333 = vrot.lane.b32.xlu0 %v2673, 99
  %v7334 = vpop.permute.xlu0 %7333
  %7335 = vrot.lane.b32.xlu0 %v2674, 99
  %v7336 = vpop.permute.xlu0 %7335
  %7337 = vrot.lane.b32.xlu0 %v2675, 99
  %v7338 = vpop.permute.xlu0 %7337
  %7339 = vrot.lane.b32.xlu0 %v2676, 99
  %v7340 = vpop.permute.xlu0 %7339
  %7341 = vrot.lane.b32.xlu0 %v2677, 99
  %v7342 = vpop.permute.xlu0 %7341
  %7343 = vrot.lane.b32.xlu0 %v2678, 99
  %v7344 = vpop.permute.xlu0 %7343
  %7345 = vrot.lane.b32.xlu0 %v2679, 99
  %v7346 = vpop.permute.xlu0 %7345
  %7347 = vrot.lane.b32.xlu0 %v2680, 99
  %v7348 = vpop.permute.xlu0 %7347
  %vm7359 = vcmask 809984
  %v7360 = vsel %vm7359, %v7330, 0.0
  %v7361 = vsel %vm7359, %v7332, 0.0
  %v7362 = vsel %vm7359, %v7334, 0.0
  %v7363 = vsel %vm7359, %v7336, 0.0
  %v7364 = vsel %vm7359, %v7338, 0.0
  %v7365 = vsel %vm7359, %v7340, 0.0
  %v7366 = vsel %vm7359, %v7342, 0.0
  %v7367 = vsel %vm7359, %v7344, 0.0
  %v7368 = vsel %vm7359, %v7346, 0.0
  %v7369 = vsel %vm7359, %v7348, 0.0
  %7370 = vset.pattern.permute.xlu0 29
  %7371 = vperm.xlu0 %7370, %v2661
  %v7372 = vpop.permute.xlu0 %7371
  %7374 = vset.pattern.permute.xlu0 29
  %7375 = vperm.xlu0 %7374, %v2662
  %v7376 = vpop.permute.xlu0 %7375
  %7378 = vset.pattern.permute.xlu0 29
  %7379 = vperm.xlu0 %7378, %v2663
  %v7380 = vpop.permute.xlu0 %7379
  %7382 = vset.pattern.permute.xlu0 29
  %7383 = vperm.xlu0 %7382, %v2664
  %v7384 = vpop.permute.xlu0 %7383
  %7386 = vset.pattern.permute.xlu0 29
  %7387 = vperm.xlu0 %7386, %v2665
  %v7388 = vpop.permute.xlu0 %7387
  %7390 = vset.pattern.permute.xlu0 29
  %7391 = vperm.xlu0 %7390, %v2666
  %v7392 = vpop.permute.xlu0 %7391
  %7394 = vset.pattern.permute.xlu0 29
  %7395 = vperm.xlu0 %7394, %v2667
  %v7396 = vpop.permute.xlu0 %7395
  %7398 = vset.pattern.permute.xlu0 29
  %7399 = vperm.xlu0 %7398, %v2668
  %v7400 = vpop.permute.xlu0 %7399
  %7402 = vset.pattern.permute.xlu0 29
  %7403 = vperm.xlu0 %7402, %v2669
  %v7404 = vpop.permute.xlu0 %7403
  %7406 = vset.pattern.permute.xlu0 29
  %7407 = vperm.xlu0 %7406, %v2670
  %v7408 = vpop.permute.xlu0 %7407
  %v7410 = vmul.f32 %v7360, %v7372
  %v7411 = vmul.f32 %v7361, %v7376
  %v7412 = vmul.f32 %v7362, %v7380
  %v7413 = vmul.f32 %v7363, %v7384
  %v7414 = vmul.f32 %v7364, %v7388
  %v7415 = vmul.f32 %v7365, %v7392
  %v7416 = vmul.f32 %v7366, %v7396
  %v7417 = vmul.f32 %v7367, %v7400
  %v7418 = vmul.f32 %v7368, %v7404
  %v7419 = vmul.f32 %v7369, %v7408
  %v7420 = vadd.f32 %v7259, %v7410
  %v7421 = vadd.f32 %v7260, %v7411
  %v7422 = vadd.f32 %v7261, %v7412
  %v7423 = vadd.f32 %v7262, %v7413
  %v7424 = vadd.f32 %v7263, %v7414
  %v7425 = vadd.f32 %v7264, %v7415
  %v7426 = vadd.f32 %v7265, %v7416
  %v7427 = vadd.f32 %v7266, %v7417
  %v7428 = vadd.f32 %v7267, %v7418
  %v7429 = vadd.f32 %v7268, %v7419
  %7430 = vset.pattern.permute.xlu0 62
  %7431 = vperm.xlu0 %7430, %v2661
  %v7432 = vpop.permute.xlu0 %7431
  %7434 = vset.pattern.permute.xlu0 62
  %7435 = vperm.xlu0 %7434, %v2662
  %v7436 = vpop.permute.xlu0 %7435
  %7438 = vset.pattern.permute.xlu0 62
  %7439 = vperm.xlu0 %7438, %v2663
  %v7440 = vpop.permute.xlu0 %7439
  %7442 = vset.pattern.permute.xlu0 62
  %7443 = vperm.xlu0 %7442, %v2664
  %v7444 = vpop.permute.xlu0 %7443
  %7446 = vset.pattern.permute.xlu0 62
  %7447 = vperm.xlu0 %7446, %v2665
  %v7448 = vpop.permute.xlu0 %7447
  %7450 = vset.pattern.permute.xlu0 62
  %7451 = vperm.xlu0 %7450, %v2666
  %v7452 = vpop.permute.xlu0 %7451
  %7454 = vset.pattern.permute.xlu0 62
  %7455 = vperm.xlu0 %7454, %v2667
  %v7456 = vpop.permute.xlu0 %7455
  %7458 = vset.pattern.permute.xlu0 62
  %7459 = vperm.xlu0 %7458, %v2668
  %v7460 = vpop.permute.xlu0 %7459
  %7462 = vset.pattern.permute.xlu0 62
  %7463 = vperm.xlu0 %7462, %v2669
  %v7464 = vpop.permute.xlu0 %7463
  %7466 = vset.pattern.permute.xlu0 62
  %7467 = vperm.xlu0 %7466, %v2670
  %v7468 = vpop.permute.xlu0 %7467
  %v7470 = vmul.f32 %v7360, %v7432
  %v7471 = vmul.f32 %v7361, %v7436
  %v7472 = vmul.f32 %v7362, %v7440
  %v7473 = vmul.f32 %v7363, %v7444
  %v7474 = vmul.f32 %v7364, %v7448
  %v7475 = vmul.f32 %v7365, %v7452
  %v7476 = vmul.f32 %v7366, %v7456
  %v7477 = vmul.f32 %v7367, %v7460
  %v7478 = vmul.f32 %v7368, %v7464
  %v7479 = vmul.f32 %v7369, %v7468
  %v7480 = vadd.f32 %v7319, %v7470
  %v7481 = vadd.f32 %v7320, %v7471
  %v7482 = vadd.f32 %v7321, %v7472
  %v7483 = vadd.f32 %v7322, %v7473
  %v7484 = vadd.f32 %v7323, %v7474
  %v7485 = vadd.f32 %v7324, %v7475
  %v7486 = vadd.f32 %v7325, %v7476
  %v7487 = vadd.f32 %v7326, %v7477
  %v7488 = vadd.f32 %v7327, %v7478
  %v7489 = vadd.f32 %v7328, %v7479
  %7490 = vrot.lane.b32.xlu0 %v2671, 98
  %v7491 = vpop.permute.xlu0 %7490
  %7492 = vrot.lane.b32.xlu0 %v2672, 98
  %v7493 = vpop.permute.xlu0 %7492
  %7494 = vrot.lane.b32.xlu0 %v2673, 98
  %v7495 = vpop.permute.xlu0 %7494
  %7496 = vrot.lane.b32.xlu0 %v2674, 98
  %v7497 = vpop.permute.xlu0 %7496
  %7498 = vrot.lane.b32.xlu0 %v2675, 98
  %v7499 = vpop.permute.xlu0 %7498
  %7500 = vrot.lane.b32.xlu0 %v2676, 98
  %v7501 = vpop.permute.xlu0 %7500
  %7502 = vrot.lane.b32.xlu0 %v2677, 98
  %v7503 = vpop.permute.xlu0 %7502
  %7504 = vrot.lane.b32.xlu0 %v2678, 98
  %v7505 = vpop.permute.xlu0 %7504
  %7506 = vrot.lane.b32.xlu0 %v2679, 98
  %v7507 = vpop.permute.xlu0 %7506
  %7508 = vrot.lane.b32.xlu0 %v2680, 98
  %v7509 = vpop.permute.xlu0 %7508
  %vm7520 = vcmask 801792
  %v7521 = vsel %vm7520, %v7491, 0.0
  %v7522 = vsel %vm7520, %v7493, 0.0
  %v7523 = vsel %vm7520, %v7495, 0.0
  %v7524 = vsel %vm7520, %v7497, 0.0
  %v7525 = vsel %vm7520, %v7499, 0.0
  %v7526 = vsel %vm7520, %v7501, 0.0
  %v7527 = vsel %vm7520, %v7503, 0.0
  %v7528 = vsel %vm7520, %v7505, 0.0
  %v7529 = vsel %vm7520, %v7507, 0.0
  %v7530 = vsel %vm7520, %v7509, 0.0
  %7531 = vset.pattern.permute.xlu0 30
  %7532 = vperm.xlu0 %7531, %v2661
  %v7533 = vpop.permute.xlu0 %7532
  %7535 = vset.pattern.permute.xlu0 30
  %7536 = vperm.xlu0 %7535, %v2662
  %v7537 = vpop.permute.xlu0 %7536
  %7539 = vset.pattern.permute.xlu0 30
  %7540 = vperm.xlu0 %7539, %v2663
  %v7541 = vpop.permute.xlu0 %7540
  %7543 = vset.pattern.permute.xlu0 30
  %7544 = vperm.xlu0 %7543, %v2664
  %v7545 = vpop.permute.xlu0 %7544
  %7547 = vset.pattern.permute.xlu0 30
  %7548 = vperm.xlu0 %7547, %v2665
  %v7549 = vpop.permute.xlu0 %7548
  %7551 = vset.pattern.permute.xlu0 30
  %7552 = vperm.xlu0 %7551, %v2666
  %v7553 = vpop.permute.xlu0 %7552
  %7555 = vset.pattern.permute.xlu0 30
  %7556 = vperm.xlu0 %7555, %v2667
  %v7557 = vpop.permute.xlu0 %7556
  %7559 = vset.pattern.permute.xlu0 30
  %7560 = vperm.xlu0 %7559, %v2668
  %v7561 = vpop.permute.xlu0 %7560
  %7563 = vset.pattern.permute.xlu0 30
  %7564 = vperm.xlu0 %7563, %v2669
  %v7565 = vpop.permute.xlu0 %7564
  %7567 = vset.pattern.permute.xlu0 30
  %7568 = vperm.xlu0 %7567, %v2670
  %v7569 = vpop.permute.xlu0 %7568
  %v7571 = vmul.f32 %v7521, %v7533
  %v7572 = vmul.f32 %v7522, %v7537
  %v7573 = vmul.f32 %v7523, %v7541
  %v7574 = vmul.f32 %v7524, %v7545
  %v7575 = vmul.f32 %v7525, %v7549
  %v7576 = vmul.f32 %v7526, %v7553
  %v7577 = vmul.f32 %v7527, %v7557
  %v7578 = vmul.f32 %v7528, %v7561
  %v7579 = vmul.f32 %v7529, %v7565
  %v7580 = vmul.f32 %v7530, %v7569
  %v7581 = vadd.f32 %v7420, %v7571
  %v7582 = vadd.f32 %v7421, %v7572
  %v7583 = vadd.f32 %v7422, %v7573
  %v7584 = vadd.f32 %v7423, %v7574
  %v7585 = vadd.f32 %v7424, %v7575
  %v7586 = vadd.f32 %v7425, %v7576
  %v7587 = vadd.f32 %v7426, %v7577
  %v7588 = vadd.f32 %v7427, %v7578
  %v7589 = vadd.f32 %v7428, %v7579
  %v7590 = vadd.f32 %v7429, %v7580
  %7591 = vset.pattern.permute.xlu0 63
  %7592 = vperm.xlu0 %7591, %v2661
  %v7593 = vpop.permute.xlu0 %7592
  %7595 = vset.pattern.permute.xlu0 63
  %7596 = vperm.xlu0 %7595, %v2662
  %v7597 = vpop.permute.xlu0 %7596
  %7599 = vset.pattern.permute.xlu0 63
  %7600 = vperm.xlu0 %7599, %v2663
  %v7601 = vpop.permute.xlu0 %7600
  %7603 = vset.pattern.permute.xlu0 63
  %7604 = vperm.xlu0 %7603, %v2664
  %v7605 = vpop.permute.xlu0 %7604
  %7607 = vset.pattern.permute.xlu0 63
  %7608 = vperm.xlu0 %7607, %v2665
  %v7609 = vpop.permute.xlu0 %7608
  %7611 = vset.pattern.permute.xlu0 63
  %7612 = vperm.xlu0 %7611, %v2666
  %v7613 = vpop.permute.xlu0 %7612
  %7615 = vset.pattern.permute.xlu0 63
  %7616 = vperm.xlu0 %7615, %v2667
  %v7617 = vpop.permute.xlu0 %7616
  %7619 = vset.pattern.permute.xlu0 63
  %7620 = vperm.xlu0 %7619, %v2668
  %v7621 = vpop.permute.xlu0 %7620
  %7623 = vset.pattern.permute.xlu0 63
  %7624 = vperm.xlu0 %7623, %v2669
  %v7625 = vpop.permute.xlu0 %7624
  %7627 = vset.pattern.permute.xlu0 63
  %7628 = vperm.xlu0 %7627, %v2670
  %v7629 = vpop.permute.xlu0 %7628
  %v7631 = vmul.f32 %v7521, %v7593
  %v7632 = vmul.f32 %v7522, %v7597
  %v7633 = vmul.f32 %v7523, %v7601
  %v7634 = vmul.f32 %v7524, %v7605
  %v7635 = vmul.f32 %v7525, %v7609
  %v7636 = vmul.f32 %v7526, %v7613
  %v7637 = vmul.f32 %v7527, %v7617
  %v7638 = vmul.f32 %v7528, %v7621
  %v7639 = vmul.f32 %v7529, %v7625
  %v7640 = vmul.f32 %v7530, %v7629
  %v7641 = vadd.f32 %v7480, %v7631
  %v7642 = vadd.f32 %v7481, %v7632
  %v7643 = vadd.f32 %v7482, %v7633
  %v7644 = vadd.f32 %v7483, %v7634
  %v7645 = vadd.f32 %v7484, %v7635
  %v7646 = vadd.f32 %v7485, %v7636
  %v7647 = vadd.f32 %v7486, %v7637
  %v7648 = vadd.f32 %v7487, %v7638
  %v7649 = vadd.f32 %v7488, %v7639
  %v7650 = vadd.f32 %v7489, %v7640
  %7651 = vrot.lane.b32.xlu0 %v2671, 97
  %v7652 = vpop.permute.xlu0 %7651
  %7653 = vrot.lane.b32.xlu0 %v2672, 97
  %v7654 = vpop.permute.xlu0 %7653
  %7655 = vrot.lane.b32.xlu0 %v2673, 97
  %v7656 = vpop.permute.xlu0 %7655
  %7657 = vrot.lane.b32.xlu0 %v2674, 97
  %v7658 = vpop.permute.xlu0 %7657
  %7659 = vrot.lane.b32.xlu0 %v2675, 97
  %v7660 = vpop.permute.xlu0 %7659
  %7661 = vrot.lane.b32.xlu0 %v2676, 97
  %v7662 = vpop.permute.xlu0 %7661
  %7663 = vrot.lane.b32.xlu0 %v2677, 97
  %v7664 = vpop.permute.xlu0 %7663
  %7665 = vrot.lane.b32.xlu0 %v2678, 97
  %v7666 = vpop.permute.xlu0 %7665
  %7667 = vrot.lane.b32.xlu0 %v2679, 97
  %v7668 = vpop.permute.xlu0 %7667
  %7669 = vrot.lane.b32.xlu0 %v2680, 97
  %v7670 = vpop.permute.xlu0 %7669
  %vm7681 = vcmask 793600
  %v7682 = vsel %vm7681, %v7652, 0.0
  %v7683 = vsel %vm7681, %v7654, 0.0
  %v7684 = vsel %vm7681, %v7656, 0.0
  %v7685 = vsel %vm7681, %v7658, 0.0
  %v7686 = vsel %vm7681, %v7660, 0.0
  %v7687 = vsel %vm7681, %v7662, 0.0
  %v7688 = vsel %vm7681, %v7664, 0.0
  %v7689 = vsel %vm7681, %v7666, 0.0
  %v7690 = vsel %vm7681, %v7668, 0.0
  %v7691 = vsel %vm7681, %v7670, 0.0
  %7692 = vset.pattern.permute.xlu0 31
  %7693 = vperm.xlu0 %7692, %v2661
  %v7694 = vpop.permute.xlu0 %7693
  %7696 = vset.pattern.permute.xlu0 31
  %7697 = vperm.xlu0 %7696, %v2662
  %v7698 = vpop.permute.xlu0 %7697
  %7700 = vset.pattern.permute.xlu0 31
  %7701 = vperm.xlu0 %7700, %v2663
  %v7702 = vpop.permute.xlu0 %7701
  %7704 = vset.pattern.permute.xlu0 31
  %7705 = vperm.xlu0 %7704, %v2664
  %v7706 = vpop.permute.xlu0 %7705
  %7708 = vset.pattern.permute.xlu0 31
  %7709 = vperm.xlu0 %7708, %v2665
  %v7710 = vpop.permute.xlu0 %7709
  %7712 = vset.pattern.permute.xlu0 31
  %7713 = vperm.xlu0 %7712, %v2666
  %v7714 = vpop.permute.xlu0 %7713
  %7716 = vset.pattern.permute.xlu0 31
  %7717 = vperm.xlu0 %7716, %v2667
  %v7718 = vpop.permute.xlu0 %7717
  %7720 = vset.pattern.permute.xlu0 31
  %7721 = vperm.xlu0 %7720, %v2668
  %v7722 = vpop.permute.xlu0 %7721
  %7724 = vset.pattern.permute.xlu0 31
  %7725 = vperm.xlu0 %7724, %v2669
  %v7726 = vpop.permute.xlu0 %7725
  %7728 = vset.pattern.permute.xlu0 31
  %7729 = vperm.xlu0 %7728, %v2670
  %v7730 = vpop.permute.xlu0 %7729
  %v7732 = vmul.f32 %v7682, %v7694
  %v7733 = vmul.f32 %v7683, %v7698
  %v7734 = vmul.f32 %v7684, %v7702
  %v7735 = vmul.f32 %v7685, %v7706
  %v7736 = vmul.f32 %v7686, %v7710
  %v7737 = vmul.f32 %v7687, %v7714
  %v7738 = vmul.f32 %v7688, %v7718
  %v7739 = vmul.f32 %v7689, %v7722
  %v7740 = vmul.f32 %v7690, %v7726
  %v7741 = vmul.f32 %v7691, %v7730
  %v7742 = vadd.f32 %v7581, %v7732
  %v7743 = vadd.f32 %v7582, %v7733
  %v7744 = vadd.f32 %v7583, %v7734
  %v7745 = vadd.f32 %v7584, %v7735
  %v7746 = vadd.f32 %v7585, %v7736
  %v7747 = vadd.f32 %v7586, %v7737
  %v7748 = vadd.f32 %v7587, %v7738
  %v7749 = vadd.f32 %v7588, %v7739
  %v7750 = vadd.f32 %v7589, %v7740
  %v7751 = vadd.f32 %v7590, %v7741
  %7752 = vset.pattern.permute.xlu0 64
  %7753 = vperm.xlu0 %7752, %v2661
  %v7754 = vpop.permute.xlu0 %7753
  %7756 = vset.pattern.permute.xlu0 64
  %7757 = vperm.xlu0 %7756, %v2662
  %v7758 = vpop.permute.xlu0 %7757
  %7760 = vset.pattern.permute.xlu0 64
  %7761 = vperm.xlu0 %7760, %v2663
  %v7762 = vpop.permute.xlu0 %7761
  %7764 = vset.pattern.permute.xlu0 64
  %7765 = vperm.xlu0 %7764, %v2664
  %v7766 = vpop.permute.xlu0 %7765
  %7768 = vset.pattern.permute.xlu0 64
  %7769 = vperm.xlu0 %7768, %v2665
  %v7770 = vpop.permute.xlu0 %7769
  %7772 = vset.pattern.permute.xlu0 64
  %7773 = vperm.xlu0 %7772, %v2666
  %v7774 = vpop.permute.xlu0 %7773
  %7776 = vset.pattern.permute.xlu0 64
  %7777 = vperm.xlu0 %7776, %v2667
  %v7778 = vpop.permute.xlu0 %7777
  %7780 = vset.pattern.permute.xlu0 64
  %7781 = vperm.xlu0 %7780, %v2668
  %v7782 = vpop.permute.xlu0 %7781
  %7784 = vset.pattern.permute.xlu0 64
  %7785 = vperm.xlu0 %7784, %v2669
  %v7786 = vpop.permute.xlu0 %7785
  %7788 = vset.pattern.permute.xlu0 64
  %7789 = vperm.xlu0 %7788, %v2670
  %v7790 = vpop.permute.xlu0 %7789
  %v7792 = vmul.f32 %v7682, %v7754
  %v7793 = vmul.f32 %v7683, %v7758
  %v7794 = vmul.f32 %v7684, %v7762
  %v7795 = vmul.f32 %v7685, %v7766
  %v7796 = vmul.f32 %v7686, %v7770
  %v7797 = vmul.f32 %v7687, %v7774
  %v7798 = vmul.f32 %v7688, %v7778
  %v7799 = vmul.f32 %v7689, %v7782
  %v7800 = vmul.f32 %v7690, %v7786
  %v7801 = vmul.f32 %v7691, %v7790
  %v7802 = vadd.f32 %v7641, %v7792
  %v7803 = vadd.f32 %v7642, %v7793
  %v7804 = vadd.f32 %v7643, %v7794
  %v7805 = vadd.f32 %v7644, %v7795
  %v7806 = vadd.f32 %v7645, %v7796
  %v7807 = vadd.f32 %v7646, %v7797
  %v7808 = vadd.f32 %v7647, %v7798
  %v7809 = vadd.f32 %v7648, %v7799
  %v7810 = vadd.f32 %v7649, %v7800
  %v7811 = vadd.f32 %v7650, %v7801
  %7812 = vrot.lane.b32.xlu0 %v2671, 96
  %v7813 = vpop.permute.xlu0 %7812
  %7814 = vrot.lane.b32.xlu0 %v2672, 96
  %v7815 = vpop.permute.xlu0 %7814
  %7816 = vrot.lane.b32.xlu0 %v2673, 96
  %v7817 = vpop.permute.xlu0 %7816
  %7818 = vrot.lane.b32.xlu0 %v2674, 96
  %v7819 = vpop.permute.xlu0 %7818
  %7820 = vrot.lane.b32.xlu0 %v2675, 96
  %v7821 = vpop.permute.xlu0 %7820
  %7822 = vrot.lane.b32.xlu0 %v2676, 96
  %v7823 = vpop.permute.xlu0 %7822
  %7824 = vrot.lane.b32.xlu0 %v2677, 96
  %v7825 = vpop.permute.xlu0 %7824
  %7826 = vrot.lane.b32.xlu0 %v2678, 96
  %v7827 = vpop.permute.xlu0 %7826
  %7828 = vrot.lane.b32.xlu0 %v2679, 96
  %v7829 = vpop.permute.xlu0 %7828
  %7830 = vrot.lane.b32.xlu0 %v2680, 96
  %v7831 = vpop.permute.xlu0 %7830
  %vm7842 = vcmask 785408
  %v7843 = vsel %vm7842, %v7813, 0.0
  %v7844 = vsel %vm7842, %v7815, 0.0
  %v7845 = vsel %vm7842, %v7817, 0.0
  %v7846 = vsel %vm7842, %v7819, 0.0
  %v7847 = vsel %vm7842, %v7821, 0.0
  %v7848 = vsel %vm7842, %v7823, 0.0
  %v7849 = vsel %vm7842, %v7825, 0.0
  %v7850 = vsel %vm7842, %v7827, 0.0
  %v7851 = vsel %vm7842, %v7829, 0.0
  %v7852 = vsel %vm7842, %v7831, 0.0
  %7853 = vset.pattern.permute.xlu0 32
  %7854 = vperm.xlu0 %7853, %v2661
  %v7855 = vpop.permute.xlu0 %7854
  %7857 = vset.pattern.permute.xlu0 32
  %7858 = vperm.xlu0 %7857, %v2662
  %v7859 = vpop.permute.xlu0 %7858
  %7861 = vset.pattern.permute.xlu0 32
  %7862 = vperm.xlu0 %7861, %v2663
  %v7863 = vpop.permute.xlu0 %7862
  %7865 = vset.pattern.permute.xlu0 32
  %7866 = vperm.xlu0 %7865, %v2664
  %v7867 = vpop.permute.xlu0 %7866
  %7869 = vset.pattern.permute.xlu0 32
  %7870 = vperm.xlu0 %7869, %v2665
  %v7871 = vpop.permute.xlu0 %7870
  %7873 = vset.pattern.permute.xlu0 32
  %7874 = vperm.xlu0 %7873, %v2666
  %v7875 = vpop.permute.xlu0 %7874
  %7877 = vset.pattern.permute.xlu0 32
  %7878 = vperm.xlu0 %7877, %v2667
  %v7879 = vpop.permute.xlu0 %7878
  %7881 = vset.pattern.permute.xlu0 32
  %7882 = vperm.xlu0 %7881, %v2668
  %v7883 = vpop.permute.xlu0 %7882
  %7885 = vset.pattern.permute.xlu0 32
  %7886 = vperm.xlu0 %7885, %v2669
  %v7887 = vpop.permute.xlu0 %7886
  %7889 = vset.pattern.permute.xlu0 32
  %7890 = vperm.xlu0 %7889, %v2670
  %v7891 = vpop.permute.xlu0 %7890
  %v7893 = vmul.f32 %v7843, %v7855
  %v7894 = vmul.f32 %v7844, %v7859
  %v7895 = vmul.f32 %v7845, %v7863
  %v7896 = vmul.f32 %v7846, %v7867
  %v7897 = vmul.f32 %v7847, %v7871
  %v7898 = vmul.f32 %v7848, %v7875
  %v7899 = vmul.f32 %v7849, %v7879
  %v7900 = vmul.f32 %v7850, %v7883
  %v7901 = vmul.f32 %v7851, %v7887
  %v7902 = vmul.f32 %v7852, %v7891
  %v7903 = vadd.f32 %v7742, %v7893
  %v7904 = vadd.f32 %v7743, %v7894
  %v7905 = vadd.f32 %v7744, %v7895
  %v7906 = vadd.f32 %v7745, %v7896
  %v7907 = vadd.f32 %v7746, %v7897
  %v7908 = vadd.f32 %v7747, %v7898
  %v7909 = vadd.f32 %v7748, %v7899
  %v7910 = vadd.f32 %v7749, %v7900
  %v7911 = vadd.f32 %v7750, %v7901
  %v7912 = vadd.f32 %v7751, %v7902
  %7913 = vset.pattern.permute.xlu0 65
  %7914 = vperm.xlu0 %7913, %v2661
  %v7915 = vpop.permute.xlu0 %7914
  %7917 = vset.pattern.permute.xlu0 65
  %7918 = vperm.xlu0 %7917, %v2662
  %v7919 = vpop.permute.xlu0 %7918
  %7921 = vset.pattern.permute.xlu0 65
  %7922 = vperm.xlu0 %7921, %v2663
  %v7923 = vpop.permute.xlu0 %7922
  %7925 = vset.pattern.permute.xlu0 65
  %7926 = vperm.xlu0 %7925, %v2664
  %v7927 = vpop.permute.xlu0 %7926
  %7929 = vset.pattern.permute.xlu0 65
  %7930 = vperm.xlu0 %7929, %v2665
  %v7931 = vpop.permute.xlu0 %7930
  %7933 = vset.pattern.permute.xlu0 65
  %7934 = vperm.xlu0 %7933, %v2666
  %v7935 = vpop.permute.xlu0 %7934
  %7937 = vset.pattern.permute.xlu0 65
  %7938 = vperm.xlu0 %7937, %v2667
  %v7939 = vpop.permute.xlu0 %7938
  %7941 = vset.pattern.permute.xlu0 65
  %7942 = vperm.xlu0 %7941, %v2668
  %v7943 = vpop.permute.xlu0 %7942
  %7945 = vset.pattern.permute.xlu0 65
  %7946 = vperm.xlu0 %7945, %v2669
  %v7947 = vpop.permute.xlu0 %7946
  %7949 = vset.pattern.permute.xlu0 65
  %7950 = vperm.xlu0 %7949, %v2670
  %v7951 = vpop.permute.xlu0 %7950
  %v7953 = vmul.f32 %v7843, %v7915
  %v7954 = vmul.f32 %v7844, %v7919
  %v7955 = vmul.f32 %v7845, %v7923
  %v7956 = vmul.f32 %v7846, %v7927
  %v7957 = vmul.f32 %v7847, %v7931
  %v7958 = vmul.f32 %v7848, %v7935
  %v7959 = vmul.f32 %v7849, %v7939
  %v7960 = vmul.f32 %v7850, %v7943
  %v7961 = vmul.f32 %v7851, %v7947
  %v7962 = vmul.f32 %v7852, %v7951
  %v7963 = vadd.f32 %v7802, %v7953
  %v7964 = vadd.f32 %v7803, %v7954
  %v7965 = vadd.f32 %v7804, %v7955
  %v7966 = vadd.f32 %v7805, %v7956
  %v7967 = vadd.f32 %v7806, %v7957
  %v7968 = vadd.f32 %v7807, %v7958
  %v7969 = vadd.f32 %v7808, %v7959
  %v7970 = vadd.f32 %v7809, %v7960
  %v7971 = vadd.f32 %v7810, %v7961
  %v7972 = vadd.f32 %v7811, %v7962
  %7983 = vrot.lane.b32.xlu0 %v7963, 16
  %v7984 = vpop.permute.xlu0 %7983
  %7985 = vrot.lane.b32.xlu0 %v7964, 16
  %v7986 = vpop.permute.xlu0 %7985
  %7987 = vrot.lane.b32.xlu0 %v7965, 16
  %v7988 = vpop.permute.xlu0 %7987
  %7989 = vrot.lane.b32.xlu0 %v7966, 16
  %v7990 = vpop.permute.xlu0 %7989
  %7991 = vrot.lane.b32.xlu0 %v7967, 16
  %v7992 = vpop.permute.xlu0 %7991
  %7993 = vrot.lane.b32.xlu0 %v7968, 16
  %v7994 = vpop.permute.xlu0 %7993
  %7995 = vrot.lane.b32.xlu0 %v7969, 16
  %v7996 = vpop.permute.xlu0 %7995
  %7997 = vrot.lane.b32.xlu0 %v7970, 16
  %v7998 = vpop.permute.xlu0 %7997
  %7999 = vrot.lane.b32.xlu0 %v7971, 16
  %v8000 = vpop.permute.xlu0 %7999
  %8001 = vrot.lane.b32.xlu0 %v7972, 16
  %v8002 = vpop.permute.xlu0 %8001
  %vm8013 = vcmask 130048
  %v8014 = vsel %vm8013, %v7903, %v7984
  %v8015 = vsel %vm8013, %v7904, %v7986
  %v8016 = vsel %vm8013, %v7905, %v7988
  %v8017 = vsel %vm8013, %v7906, %v7990
  %v8018 = vsel %vm8013, %v7907, %v7992
  %v8019 = vsel %vm8013, %v7908, %v7994
  %v8020 = vsel %vm8013, %v7909, %v7996
  %v8021 = vsel %vm8013, %v7910, %v7998
  %v8022 = vsel %vm8013, %v7911, %v8000
  %v8023 = vsel %vm8013, %v7912, %v8002
  %vm8024 = vcmask 261120
  %v8025 = vsel %vm8024, %v8014, 0.0
  %v8026 = vsel %vm8024, %v8015, 0.0
  %v8027 = vsel %vm8024, %v8016, 0.0
  %v8028 = vsel %vm8024, %v8017, 0.0
  %v8029 = vsel %vm8024, %v8018, 0.0
  %v8030 = vsel %vm8024, %v8019, 0.0
  %v8031 = vsel %vm8024, %v8020, 0.0
  %v8032 = vsel %vm8024, %v8021, 0.0
  %v8033 = vsel %vm8024, %v8022, 0.0
  %v8034 = vsel %vm8024, %v8023, 0.0
  %8035 = vst [vmem:[%s14] sm:$0xff] %v8025
  %8036 = vst [vmem:[%s14 + $0x8] sm:$0xff] %v8026
  %8037 = vst [vmem:[%s14 + $0x10] sm:$0xff] %v8027
  %8038 = vst [vmem:[%s14 + $0x18] sm:$0xff] %v8028
  %8039 = vst [vmem:[%s14 + $0x20] sm:$0xff] %v8029
  %8040 = vst [vmem:[%s14 + $0x28] sm:$0xff] %v8030
  %8041 = vst [vmem:[%s14 + $0x30] sm:$0xff] %v8031
  %8042 = vst [vmem:[%s14 + $0x38] sm:$0xff] %v8032
  %8043 = vst [vmem:[%s14 + $0x40] sm:$0xff] %v8033
  %8044 = vst [vmem:[%s14 + $0x48] sm:$0xff] %v8034
  // Predicated region
  $region58: #{net_forward.3} parent=0 // pred_check
    _
  $region59: #{net_forward.3} parent=0 // pred_check_branch
    %8046 = sbr.rel (0) target = $region61
  $region60: #{net_forward.3} parent=0 // pred_region
    _
  $region61: #{net_forward.3} parent=0 // pred_fallthru
    _
  // Predicated region
  $region62: #{net_forward.3} parent=0 // pred_check
    _
  $region63: #{net_forward.3} parent=0 // pred_check_branch
    %8048 = sbr.rel (0) target = $region65
  $region64: #{net_forward.3} parent=0 // pred_region
    _
  $region65: #{net_forward.3} parent=0 // pred_fallthru
    _

</llo_original>
